<compile_context>
chip_gen: v7x
topology: tpu7x:2x2x1
jax: 0.10.0
libtpu: 0.0.40
codegen_flags: <defaults>
</compile_context>

<pallas_src>
from functools import partial

import jax
import jax.numpy as jnp
from jax import lax
from jax.experimental import pallas as pl
from jax.experimental.pallas import tpu as pltpu

BN_EPS = 1e-5


def _round_up(x, m):
    return ((x + m - 1) // m) * m


# --------------------------------------------------------------------------
# Pallas kernels (single grid step, full-array blocks, everything pre-padded)
# --------------------------------------------------------------------------
def _mm_kernel(a_ref, w_ref, b_ref, o_ref, *, relu):
    """o = relu?(a @ w + b); BN scale already folded into w."""
    y = jnp.dot(a_ref[...], w_ref[...], preferred_element_type=jnp.float32) + b_ref[...]
    if relu:
        y = jnp.maximum(y, 0.0)
    o_ref[...] = y.astype(o_ref.dtype)


def _mm_res_kernel(a_ref, w_ref, b_ref, r_ref, o_ref, *, relu):
    """o = relu?(a @ w + b + residual)."""
    y = (jnp.dot(a_ref[...], w_ref[...], preferred_element_type=jnp.float32)
         + b_ref[...] + r_ref[...].astype(jnp.float32))
    if relu:
        y = jnp.maximum(y, 0.0)
    o_ref[...] = y.astype(o_ref.dtype)


def _block_kernel(p1_ref, w1_ref, b1_ref, w2_ref, b2_ref, r_ref, o_ref):
    """Fused BasicBlock (identity residual): relu(conv2(relu(conv1(x))) + x)."""
    h = jnp.maximum(
        jnp.dot(p1_ref[...], w1_ref[...], preferred_element_type=jnp.float32)
        + b1_ref[...], 0.0).astype(jnp.bfloat16)
    y = (jnp.dot(h, w2_ref[...], preferred_element_type=jnp.float32)
         + b2_ref[...] + r_ref[...].astype(jnp.float32))
    o_ref[...] = jnp.maximum(y, 0.0).astype(o_ref.dtype)


def _block_down_kernel(p1_ref, w1_ref, b1_ref, pd_ref, wd_ref, bd_ref,
                       w2_ref, b2_ref, o_ref):
    """Fused BasicBlock with downsample branch."""
    h = jnp.maximum(
        jnp.dot(p1_ref[...], w1_ref[...], preferred_element_type=jnp.float32)
        + b1_ref[...], 0.0).astype(jnp.bfloat16)
    idn = (jnp.dot(pd_ref[...], wd_ref[...], preferred_element_type=jnp.float32)
           + bd_ref[...])
    y = (jnp.dot(h, w2_ref[...], preferred_element_type=jnp.float32)
         + b2_ref[...] + idn)
    o_ref[...] = jnp.maximum(y, 0.0).astype(o_ref.dtype)


def _tail_kernel(x_ref, s_ref, c_ref, fcw_ref, fcb_ref, aw_ref, o_ref):
    """Fused tail: BN1d(inference)+ReLU -> FC -> L2-normalize -> cosine."""
    f = jnp.maximum(x_ref[...] * s_ref[...] + c_ref[...], 0.0)
    z = (jnp.dot(f.astype(jnp.bfloat16), fcw_ref[...],
                 preferred_element_type=jnp.float32) + fcb_ref[...])
    inv = lax.rsqrt(jnp.maximum(jnp.sum(z * z, axis=-1, keepdims=True), 1e-24))
    zn = (z * inv).astype(jnp.bfloat16)
    o_ref[...] = jnp.dot(zn, aw_ref[...], preferred_element_type=jnp.float32)


# --------------------------------------------------------------------------
# pallas_call wrappers
# --------------------------------------------------------------------------
def _call_full(kernel, args, out_sd):
    """Single-step pallas_call; every operand is one full-array VMEM block."""
    in_specs = [pl.BlockSpec(a.shape, lambda i: (0, 0)) for a in args]
    out_specs = pl.BlockSpec(out_sd.shape, lambda i: (0, 0))
    return pl.pallas_call(
        kernel,
        out_shape=out_sd,
        grid=(1,),
        in_specs=in_specs,
        out_specs=out_specs,
        compiler_params=pltpu.CompilerParams(
            dimension_semantics=("arbitrary",),
            vmem_limit_bytes=32 * 1024 * 1024),
    )(*args)


def matmul_fused(a, w, b, n_out, residual=None, relu=True, out_dtype=jnp.bfloat16):
    """relu?(a @ w + b (+ residual)); w is a prepared bf16 (Kp, Np) weight."""
    M, K = a.shape
    Kp, Np = w.shape
    Mp = max(16, _round_up(M, 16))
    ap = jnp.pad(a.astype(jnp.bfloat16), ((0, Mp - M), (0, Kp - K)))
    out_sd = jax.ShapeDtypeStruct((Mp, Np), out_dtype)
    if residual is None:
        out = _call_full(partial(_mm_kernel, relu=relu), [ap, w, b], out_sd)
    else:
        rM, rN = residual.shape
        rp = jnp.pad(residual.astype(jnp.bfloat16), ((0, Mp - rM), (0, Np - rN)))
        out = _call_full(partial(_mm_res_kernel, relu=relu), [ap, w, b, rp], out_sd)
    return out[:M, :n_out]


def fused_block_call(p1, bp, cout, pd=None, residual=None, out_dtype=jnp.bfloat16):
    """One pallas_call for a whole BasicBlock whose feature maps are 1x1."""
    M, K1 = p1.shape
    K1p, _ = bp["c1"]["w"].shape
    _, N2p = bp["c2"]["w"].shape
    Mp = max(16, _round_up(M, 16))
    p1p = jnp.pad(p1.astype(jnp.bfloat16), ((0, Mp - M), (0, K1p - K1)))
    out_sd = jax.ShapeDtypeStruct((Mp, N2p), out_dtype)
    if pd is not None:
        Md, Kd = pd.shape
        Kdp, _ = bp["down"]["w"].shape
        pdp = jnp.pad(pd.astype(jnp.bfloat16), ((0, Mp - Md), (0, Kdp - Kd)))
        out = _call_full(
            _block_down_kernel,
            [p1p, bp["c1"]["w"], bp["c1"]["b"], pdp, bp["down"]["w"], bp["down"]["b"],
             bp["c2"]["w"], bp["c2"]["b"]], out_sd)
    else:
        rM, rN = residual.shape
        rp = jnp.pad(residual.astype(jnp.bfloat16), ((0, Mp - rM), (0, N2p - rN)))
        out = _call_full(
            _block_kernel,
            [p1p, bp["c1"]["w"], bp["c1"]["b"], bp["c2"]["w"], bp["c2"]["b"], rp],
            out_sd)
    return out[:M, :cout]


def arcface_tail(feat, tail, n_classes):
    """Fused BN1d+ReLU -> FC -> L2 normalize -> cosine (one small kernel)."""
    n, C = feat.shape
    Cp = tail["scale"].shape[1]
    Np_ = tail["aw"].shape[1]
    Mp = max(8, _round_up(n, 8))
    xp = jnp.pad(feat.astype(jnp.float32), ((0, Mp - n), (0, Cp - C)))
    out_sd = jax.ShapeDtypeStruct((Mp, Np_), jnp.float32)
    out = _call_full(_tail_kernel,
                     [xp, tail["scale"], tail["bias"],
                      tail["fcw"], tail["fcb"], tail["aw"]], out_sd)
    return out[:n, :n_classes]


# --------------------------------------------------------------------------
# Glue: im2col, static plan, weight preparation
# --------------------------------------------------------------------------
def _im2col(x, kh, kw, stride, pad):
    n, h, w, c = x.shape
    xp = jnp.pad(x, ((0, 0), (pad, pad), (pad, pad), (0, 0)))
    ho = (h + 2 * pad - kh) // stride + 1
    wo = (w + 2 * pad - kw) // stride + 1
    cols = []
    for di in range(kh):
        for dj in range(kw):
            cols.append(xp[:, di:di + (ho - 1) * stride + 1:stride,
                           dj:dj + (wo - 1) * stride + 1:stride, :])
    patches = jnp.concatenate(cols, axis=-1)          # (n, ho, wo, kh*kw*c)
    return patches.reshape(n * ho * wo, kh * kw * c), (n, ho, wo)


def _fold_bn(bn):
    scale = bn["gamma"] / jnp.sqrt(bn["var"] + BN_EPS)
    bias = bn["beta"] - bn["mean"] * scale
    return scale, bias


LAYER_CFG = [(64, 64, 3, 1), (64, 128, 4, 2), (128, 256, 6, 2), (256, 512, 3, 2)]


def _out_hw(h, w, k, s, p):
    return (h + 2 * p - k) // s + 1, (w + 2 * p - k) // s + 1


def make_plan(in_h, in_w):
    """Static (trace-time) description: spatial sizes, centre-tap & fusion flags."""
    h, w = _out_hw(in_h, in_w, 7, 2, 3)                # conv1
    conv1_out = (h, w)
    h, w = _out_hw(h, w, 3, 2, 1)                      # maxpool
    layers = []
    for cin, cout, nblocks, stride in LAYER_CFG:
        blocks, ci = [], cin
        for b in range(nblocks):
            s = stride if b == 0 else 1
            in_hw = (h, w)
            center1 = (h == 1 and w == 1)              # 3x3 pad1 conv on 1x1 map
            ho, wo = (1, 1) if center1 else _out_hw(h, w, 3, s, 1)
            fused = (ho == 1 and wo == 1)              # conv2 is then centre-tap
            has_down = (s != 1 or ci != cout)
            blocks.append(dict(cin=ci, cout=cout, stride=s, has_down=has_down,
                               in_hw=in_hw, out_hw=(ho, wo),
                               center1=center1, fused=fused))
            h, w, ci = ho, wo, cout
        layers.append(blocks)
    return dict(conv1_out=conv1_out, layers=layers)


def _prep_conv_bn(w_oihw, bn, center):
    """im2col (or centre-tap) layout, BN scale folded, padded, bf16."""
    cout, cin, kh, kw = w_oihw.shape
    scale, bias = _fold_bn(bn)
    if center:
        wmat = jnp.transpose(w_oihw[:, :, kh // 2, kw // 2], (1, 0))      # (cin, cout)
    else:
        wmat = jnp.transpose(w_oihw, (2, 3, 1, 0)).reshape(kh * kw * cin, cout)
    wmat = wmat * scale[None, :]
    K, N = wmat.shape
    Kp, Np = _round_up(K, 128), _round_up(N, 128)
    wq = jnp.pad(wmat, ((0, Kp - K), (0, Np - N))).astype(jnp.bfloat16)
    bq = jnp.pad(bias.astype(jnp.float32).reshape(1, N), ((0, 0), (0, Np - N)))
    return {"w": wq, "b": bq}


def prepare_params(params, plan):
    """One-time (eager) weight preparation; the forward only reads bf16 slabs."""
    prep = {"conv1": _prep_conv_bn(params["conv1"], params["bn1"], center=False)}
    layers = []
    for blocks_p, blocks_cfg in zip(params["layers"], plan["layers"]):
        blocks = []
        for bp, cfg in zip(blocks_p, blocks_cfg):
            d = {"c1": _prep_conv_bn(bp["conv1"], bp["bn1"], center=cfg["center1"]),
                 "c2": _prep_conv_bn(bp["conv2"], bp["bn2"], center=cfg["fused"])}
            if cfg["has_down"]:
                d["down"] = _prep_conv_bn(bp["down_conv"], bp["down_bn"], center=False)
            blocks.append(d)
        layers.append(blocks)
    prep["layers"] = layers

    # Tail: fold BN1d, transpose FC, pre-normalize arc rows, pad + bf16.
    scale, bias = _fold_bn(params["norm1"])
    C = scale.shape[0]
    L = params["fc_w"].shape[0]
    NC = params["arc_w"].shape[0]
    Cp, Lp, Np = _round_up(C, 128), _round_up(L, 128), _round_up(NC, 128)
    wn = params["arc_w"] / jnp.maximum(
        jnp.linalg.norm(params["arc_w"], axis=1, keepdims=True), 1e-12)
    prep["tail"] = dict(
        scale=jnp.pad(scale.astype(jnp.float32).reshape(1, C), ((0, 0), (0, Cp - C))),
        bias=jnp.pad(bias.astype(jnp.float32).reshape(1, C), ((0, 0), (0, Cp - C))),
        fcw=jnp.pad(params["fc_w"].T, ((0, Cp - C), (0, Lp - L))).astype(jnp.bfloat16),
        fcb=jnp.pad(params["fc_b"].astype(jnp.float32).reshape(1, L),
                    ((0, 0), (0, Lp - L))),
        aw=jnp.pad(wn.T, ((0, Lp - L), (0, Np - NC))).astype(jnp.bfloat16))
    return prep


# --------------------------------------------------------------------------
# Blocks
# --------------------------------------------------------------------------
def run_block(x, bp, cfg, n):
    cin, cout, stride = cfg["cin"], cfg["cout"], cfg["stride"]
    ho, wo = cfg["out_hw"]
    M = n * ho * wo

    if cfg["center1"]:
        p1 = x.reshape(n, cin)                         # 1x1 map: centre tap only
    else:
        p1, _ = _im2col(x, 3, 3, stride, 1)

    if cfg["fused"]:
        if cfg["has_down"]:
            pd = x[:, ::stride, ::stride, :].reshape(M, cin)
            out = fused_block_call(p1, bp, cout, pd=pd)
        else:
            out = fused_block_call(p1, bp, cout, residual=x.reshape(M, cout))
        return out.reshape(n, ho, wo, cout)

    # Unfused path (layer1/layer2: 4x4 / 2x2 maps), per-conv Pallas calls.
    h = matmul_fused(p1, bp["c1"]["w"], bp["c1"]["b"], cout, relu=True)
    h_nhwc = h.reshape(n, ho, wo, cout)
    if cfg["has_down"]:
        pd = x[:, ::stride, ::stride, :].reshape(M, cin)
        idn = matmul_fused(pd, bp["down"]["w"], bp["down"]["b"], cout, relu=False)
    else:
        idn = x.reshape(M, cout)
    p2, _ = _im2col(h_nhwc, 3, 3, 1, 1)
    out = matmul_fused(p2, bp["c2"]["w"], bp["c2"]["b"], cout,
                       residual=idn, relu=True)
    return out.reshape(n, ho, wo, cout)


# --------------------------------------------------------------------------
# Deterministic parameter initialization (synthetic; no checkpoint load)
# --------------------------------------------------------------------------
def _conv_init(key, cout, cin, kh, kw):
    fan_in = cin * kh * kw
    return jax.random.normal(key, (cout, cin, kh, kw), jnp.float32) * (2.0 / fan_in) ** 0.5


def _bn_init(key, c):
    k1, k2, k3, k4 = jax.random.split(key, 4)
    return dict(
        gamma=jax.random.uniform(k1, (c,), jnp.float32, 0.5, 1.5),
        beta=0.1 * jax.random.normal(k2, (c,), jnp.float32),
        mean=0.1 * jax.random.normal(k3, (c,), jnp.float32),
        var=jax.random.uniform(k4, (c,), jnp.float32, 0.5, 1.5),
    )


def init_params(key, latent_dim, n_classes):
    keys = iter(jax.random.split(key, 256))
    p = {}
    # conv1: 3-channel kernel replicated onto 6 input channels (matches the
    # weight.data[:, :3] = w ; weight.data[:, 3:] = w construction).
    w3 = _conv_init(next(keys), 64, 3, 7, 7)
    p["conv1"] = jnp.concatenate([w3, w3], axis=1)
    p["bn1"] = _bn_init(next(keys), 64)

    layers = []
    for cin, cout, nblocks, stride in LAYER_CFG:
        blocks, ci = [], cin
        for b in range(nblocks):
            s = stride if b == 0 else 1
            blk = dict(
                conv1=_conv_init(next(keys), cout, ci, 3, 3),
                bn1=_bn_init(next(keys), cout),
                conv2=_conv_init(next(keys), cout, cout, 3, 3),
                bn2=_bn_init(next(keys), cout),
            )
            if s != 1 or ci != cout:
                blk["down_conv"] = _conv_init(next(keys), cout, ci, 1, 1)
                blk["down_bn"] = _bn_init(next(keys), cout)
            blocks.append(blk)
            ci = cout
        layers.append(blocks)
    p["layers"] = layers

    p["norm1"] = _bn_init(next(keys), 512)
    p["fc_w"] = jax.random.normal(next(keys), (latent_dim, 512), jnp.float32) * (1.0 / 512) ** 0.5
    p["fc_b"] = 0.01 * jax.random.normal(next(keys), (latent_dim,), jnp.float32)
    p["arc_w"] = jax.random.normal(next(keys), (n_classes, latent_dim), jnp.float32) * 0.1
    return p


# --------------------------------------------------------------------------
# Full forward
# --------------------------------------------------------------------------
def resnet_forward(prep, x_nchw, *, plan, n_classes, s=30.0, m=0.5, label=None):
    n = x_nchw.shape[0]
    x = jnp.transpose(x_nchw, (0, 2, 3, 1)).astype(jnp.bfloat16)     # NCHW -> NHWC

    # conv1 7x7 s2 p3 + BN + ReLU (one pallas_call)
    p1, (_, ho, wo) = _im2col(x, 7, 7, 2, 3)
    y = matmul_fused(p1, prep["conv1"]["w"], prep["conv1"]["b"], 64, relu=True)
    x = y.reshape(n, ho, wo, 64)

    # maxpool 3x3 s2 p1
    x = lax.reduce_window(x, jnp.array(-jnp.inf, x.dtype), lax.max,
                          (1, 3, 3, 1), (1, 2, 2, 1),
                          ((0, 0), (1, 1), (1, 1), (0, 0)))

    for blocks_p, blocks_cfg in zip(prep["layers"], plan["layers"]):
        for bp, cfg in zip(blocks_p, blocks_cfg):
            x = run_block(x, bp, cfg, n)

    feat = jnp.mean(x.astype(jnp.float32), axis=(1, 2))   # adaptive_avg_pool2d(1,1)
    # TODO(synk): Dropout is an inference-mode identity here (no RNG mask applied).
    cosine = arcface_tail(feat, prep["tail"], n_classes)

    if label is None:
        # TODO(synk): upstream ArcMarginProduct source not shown; with label=None we
        # return s * cosine (the common inference path).
        return cosine * s

    cos_m, sin_m = jnp.cos(m), jnp.sin(m)
    th, mm = jnp.cos(jnp.pi - m), jnp.sin(jnp.pi - m) * m
    sine = jnp.sqrt(jnp.clip(1.0 - cosine ** 2, 0.0, 1.0))
    phi = cosine * cos_m - sine * sin_m
    phi = jnp.where(cosine > th, phi, cosine - mm)         # easy_margin=False
    one_hot = jax.nn.one_hot(label, n_classes, dtype=cosine.dtype)
    return (one_hot * phi + (1.0 - one_hot) * cosine) * s


if __name__ == "__main__":
    key = jax.random.PRNGKey(0)
    kp, kx = jax.random.split(key)

    dropout_rate = 0.2      # unused at inference
    latent_dim = 32
    temperature = 30.0      # ArcFace s
    margin = 0.5            # ArcFace m
    n_classes = 16          # config.N_CLASSES (synthetic)

    params = init_params(kp, latent_dim, n_classes)
    x = jax.random.normal(kx, (2, 6, 16, 16), jnp.float32)   # NCHW, 6 input channels

    plan = make_plan(16, 16)                     # static: spatial sizes, fusion flags
    prep = prepare_params(params, plan)          # one-time bf16 im2col weight prep

    fwd = jax.jit(lambda prep_, x_: resnet_forward(
        prep_, x_, plan=plan, n_classes=n_classes, s=temperature, m=margin))
    out = fwd(prep, x)
    out = jax.block_until_ready(out)
    assert out.shape == (2, n_classes), out.shape
    assert jnp.all(jnp.isfinite(out))
    print("KERNEL_OK")
</pallas_src>

<mosaic_0001>
module attributes {stable_mosaic.version = 11 : i64} {
  func.func @_mm_kernel(%arg0: i32, %arg1: memref<128x384xbf16, #tpu.memory_space<vmem>>, %arg2: memref<384x128xbf16, #tpu.memory_space<vmem>>, %arg3: memref<1x128xf32, #tpu.memory_space<vmem>>, %arg4: memref<128x128xbf16, #tpu.memory_space<vmem>>) attributes {dimension_semantics = [#tpu.dimension_semantics<arbitrary>], iteration_bounds = array<i64: 1>, scalar_prefetch = 0 : i64, scratch_operands = 0 : i64, tpu.core_type = #tpu.core_type<tc>, window_params = [{pipeline_mode = #tpu.pipeline_mode<synchronous>, transform_indices = @transform_0, window_bounds = array<i64: 128, 384>}, {pipeline_mode = #tpu.pipeline_mode<synchronous>, transform_indices = @transform_1, window_bounds = array<i64: 384, 128>}, {pipeline_mode = #tpu.pipeline_mode<synchronous>, transform_indices = @transform_2, window_bounds = array<i64: 1, 128>}, {pipeline_mode = #tpu.pipeline_mode<synchronous>, transform_indices = @transform_3, window_bounds = array<i64: 128, 128>}]} {
    %c0 = arith.constant 0 : index
    %c0_0 = arith.constant 0 : index
    %0 = vector.load %arg1[%c0, %c0_0] : memref<128x384xbf16, #tpu.memory_space<vmem>>, vector<128x384xbf16>
    %c0_1 = arith.constant 0 : index
    %c0_2 = arith.constant 0 : index
    %1 = vector.load %arg2[%c0_1, %c0_2] : memref<384x128xbf16, #tpu.memory_space<vmem>>, vector<384x128xbf16>
    %cst = arith.constant dense<0.000000e+00> : vector<128x128xf32>
    %2 = tpu.matmul %0, %1, %cst {dimension_numbers = #tpu.dot_dimension_numbers<[1], [0], [0], [1], [0, 0, 1, 1], [], []>} : vector<128x384xbf16>, vector<384x128xbf16>, vector<128x128xf32> -> vector<128x128xf32>
    %c0_3 = arith.constant 0 : index
    %c0_4 = arith.constant 0 : index
    %3 = vector.load %arg3[%c0_3, %c0_4] : memref<1x128xf32, #tpu.memory_space<vmem>>, vector<1x128xf32>
    %4 = vector.broadcast %3 : vector<1x128xf32> to vector<128x128xf32>
    %5 = arith.addf %2, %4 : vector<128x128xf32>
    %cst_5 = arith.constant 0.000000e+00 : f32
    %6 = vector.broadcast %cst_5 : f32 to vector<128x128xf32>
    %7 = arith.maximumf %5, %6 : vector<128x128xf32>
    %8 = arith.truncf %7 : vector<128x128xf32> to vector<128x128xbf16>
    %c0_6 = arith.constant 0 : index
    %c0_7 = arith.constant 0 : index
    %9 = vector.load %arg4[%c0_6, %c0_7] : memref<128x128xbf16, #tpu.memory_space<vmem>>, vector<128x128xbf16>
    tpu.vector_store %arg4[%c0_6, %c0_7], %8 {strides = array<i32>} : memref<128x128xbf16, #tpu.memory_space<vmem>>, vector<128x128xbf16>,
    return
  }
  func.func @transform_0(%arg0: i32) -> (i32, i32) {
    %c0_i32 = arith.constant 0 : i32
    %c0_i32_0 = arith.constant 0 : i32
    %c0_i32_1 = arith.constant 0 : i32
    return %c0_i32, %c0_i32_0 : i32, i32
  }
  func.func @transform_1(%arg0: i32) -> (i32, i32) {
    %c0_i32 = arith.constant 0 : i32
    %c0_i32_0 = arith.constant 0 : i32
    %c0_i32_1 = arith.constant 0 : i32
    return %c0_i32, %c0_i32_0 : i32, i32
  }
  func.func @transform_2(%arg0: i32) -> (i32, i32) {
    %c0_i32 = arith.constant 0 : i32
    %c0_i32_0 = arith.constant 0 : i32
    %c0_i32_1 = arith.constant 0 : i32
    return %c0_i32, %c0_i32_0 : i32, i32
  }
  func.func @transform_3(%arg0: i32) -> (i32, i32) {
    %c0_i32 = arith.constant 0 : i32
    %c0_i32_0 = arith.constant 0 : i32
    %c0_i32_1 = arith.constant 0 : i32
    return %c0_i32, %c0_i32_0 : i32, i32
  }
}

module attributes {stable_mosaic.version = 11 : i64} {
  func.func @_mm_kernel(%arg0: i32, %arg1: memref<32x640xbf16, #tpu.memory_space<vmem>>, %arg2: memref<640x128xbf16, #tpu.memory_space<vmem>>, %arg3: memref<1x128xf32, #tpu.memory_space<vmem>>, %arg4: memref<32x128xbf16, #tpu.memory_space<vmem>>) attributes {dimension_semantics = [#tpu.dimension_semantics<arbitrary>], iteration_bounds = array<i64: 1>, scalar_prefetch = 0 : i64, scratch_operands = 0 : i64, tpu.core_type = #tpu.core_type<tc>, window_params = [{pipeline_mode = #tpu.pipeline_mode<synchronous>, transform_indices = @transform_0, window_bounds = array<i64: 32, 640>}, {pipeline_mode = #tpu.pipeline_mode<synchronous>, transform_indices = @transform_1, window_bounds = array<i64: 640, 128>}, {pipeline_mode = #tpu.pipeline_mode<synchronous>, transform_indices = @transform_2, window_bounds = array<i64: 1, 128>}, {pipeline_mode = #tpu.pipeline_mode<synchronous>, transform_indices = @transform_3, window_bounds = array<i64: 32, 128>}]} {
    %c0 = arith.constant 0 : index
    %c0_0 = arith.constant 0 : index
    %0 = vector.load %arg1[%c0, %c0_0] : memref<32x640xbf16, #tpu.memory_space<vmem>>, vector<32x640xbf16>
    %c0_1 = arith.constant 0 : index
    %c0_2 = arith.constant 0 : index
    %1 = vector.load %arg2[%c0_1, %c0_2] : memref<640x128xbf16, #tpu.memory_space<vmem>>, vector<640x128xbf16>
    %cst = arith.constant dense<0.000000e+00> : vector<32x128xf32>
    %2 = tpu.matmul %0, %1, %cst {dimension_numbers = #tpu.dot_dimension_numbers<[1], [0], [0], [1], [0, 0, 1, 1], [], []>} : vector<32x640xbf16>, vector<640x128xbf16>, vector<32x128xf32> -> vector<32x128xf32>
    %c0_3 = arith.constant 0 : index
    %c0_4 = arith.constant 0 : index
    %3 = vector.load %arg3[%c0_3, %c0_4] : memref<1x128xf32, #tpu.memory_space<vmem>>, vector<1x128xf32>
    %4 = vector.broadcast %3 : vector<1x128xf32> to vector<32x128xf32>
    %5 = arith.addf %2, %4 : vector<32x128xf32>
    %cst_5 = arith.constant 0.000000e+00 : f32
    %6 = vector.broadcast %cst_5 : f32 to vector<32x128xf32>
    %7 = arith.maximumf %5, %6 : vector<32x128xf32>
    %8 = arith.truncf %7 : vector<32x128xf32> to vector<32x128xbf16>
    %c0_6 = arith.constant 0 : index
    %c0_7 = arith.constant 0 : index
    %9 = vector.load %arg4[%c0_6, %c0_7] : memref<32x128xbf16, #tpu.memory_space<vmem>>, vector<32x128xbf16>
    tpu.vector_store %arg4[%c0_6, %c0_7], %8 {strides = array<i32>} : memref<32x128xbf16, #tpu.memory_space<vmem>>, vector<32x128xbf16>,
    return
  }
  func.func @transform_0(%arg0: i32) -> (i32, i32) {
    %c0_i32 = arith.constant 0 : i32
    %c0_i32_0 = arith.constant 0 : i32
    %c0_i32_1 = arith.constant 0 : i32
    return %c0_i32, %c0_i32_0 : i32, i32
  }
  func.func @transform_1(%arg0: i32) -> (i32, i32) {
    %c0_i32 = arith.constant 0 : i32
    %c0_i32_0 = arith.constant 0 : i32
    %c0_i32_1 = arith.constant 0 : i32
    return %c0_i32, %c0_i32_0 : i32, i32
  }
  func.func @transform_2(%arg0: i32) -> (i32, i32) {
    %c0_i32 = arith.constant 0 : i32
    %c0_i32_0 = arith.constant 0 : i32
    %c0_i32_1 = arith.constant 0 : i32
    return %c0_i32, %c0_i32_0 : i32, i32
  }
  func.func @transform_3(%arg0: i32) -> (i32, i32) {
    %c0_i32 = arith.constant 0 : i32
    %c0_i32_0 = arith.constant 0 : i32
    %c0_i32_1 = arith.constant 0 : i32
    return %c0_i32, %c0_i32_0 : i32, i32
  }
}

module attributes {stable_mosaic.version = 11 : i64} {
  func.func @_mm_res_kernel(%arg0: i32, %arg1: memref<32x640xbf16, #tpu.memory_space<vmem>>, %arg2: memref<640x128xbf16, #tpu.memory_space<vmem>>, %arg3: memref<1x128xf32, #tpu.memory_space<vmem>>, %arg4: memref<32x128xbf16, #tpu.memory_space<vmem>>, %arg5: memref<32x128xbf16, #tpu.memory_space<vmem>>) attributes {dimension_semantics = [#tpu.dimension_semantics<arbitrary>], iteration_bounds = array<i64: 1>, scalar_prefetch = 0 : i64, scratch_operands = 0 : i64, tpu.core_type = #tpu.core_type<tc>, window_params = [{pipeline_mode = #tpu.pipeline_mode<synchronous>, transform_indices = @transform_0, window_bounds = array<i64: 32, 640>}, {pipeline_mode = #tpu.pipeline_mode<synchronous>, transform_indices = @transform_1, window_bounds = array<i64: 640, 128>}, {pipeline_mode = #tpu.pipeline_mode<synchronous>, transform_indices = @transform_2, window_bounds = array<i64: 1, 128>}, {pipeline_mode = #tpu.pipeline_mode<synchronous>, transform_indices = @transform_3, window_bounds = array<i64: 32, 128>}, {pipeline_mode = #tpu.pipeline_mode<synchronous>, transform_indices = @transform_4, window_bounds = array<i64: 32, 128>}]} {
    %c0 = arith.constant 0 : index
    %c0_0 = arith.constant 0 : index
    %0 = vector.load %arg1[%c0, %c0_0] : memref<32x640xbf16, #tpu.memory_space<vmem>>, vector<32x640xbf16>
    %c0_1 = arith.constant 0 : index
    %c0_2 = arith.constant 0 : index
    %1 = vector.load %arg2[%c0_1, %c0_2] : memref<640x128xbf16, #tpu.memory_space<vmem>>, vector<640x128xbf16>
    %cst = arith.constant dense<0.000000e+00> : vector<32x128xf32>
    %2 = tpu.matmul %0, %1, %cst {dimension_numbers = #tpu.dot_dimension_numbers<[1], [0], [0], [1], [0, 0, 1, 1], [], []>} : vector<32x640xbf16>, vector<640x128xbf16>, vector<32x128xf32> -> vector<32x128xf32>
    %c0_3 = arith.constant 0 : index
    %c0_4 = arith.constant 0 : index
    %3 = vector.load %arg3[%c0_3, %c0_4] : memref<1x128xf32, #tpu.memory_space<vmem>>, vector<1x128xf32>
    %4 = vector.broadcast %3 : vector<1x128xf32> to vector<32x128xf32>
    %5 = arith.addf %2, %4 : vector<32x128xf32>
    %c0_5 = arith.constant 0 : index
    %c0_6 = arith.constant 0 : index
    %6 = vector.load %arg4[%c0_5, %c0_6] : memref<32x128xbf16, #tpu.memory_space<vmem>>, vector<32x128xbf16>
    %7 = arith.extf %6 : vector<32x128xbf16> to vector<32x128xf32>
    %8 = arith.addf %5, %7 : vector<32x128xf32>
    %cst_7 = arith.constant 0.000000e+00 : f32
    %9 = vector.broadcast %cst_7 : f32 to vector<32x128xf32>
    %10 = arith.maximumf %8, %9 : vector<32x128xf32>
    %11 = arith.truncf %10 : vector<32x128xf32> to vector<32x128xbf16>
    %c0_8 = arith.constant 0 : index
    %c0_9 = arith.constant 0 : index
    %12 = vector.load %arg5[%c0_8, %c0_9] : memref<32x128xbf16, #tpu.memory_space<vmem>>, vector<32x128xbf16>
    tpu.vector_store %arg5[%c0_8, %c0_9], %11 {strides = array<i32>} : memref<32x128xbf16, #tpu.memory_space<vmem>>, vector<32x128xbf16>,
    return
  }
  func.func @transform_0(%arg0: i32) -> (i32, i32) {
    %c0_i32 = arith.constant 0 : i32
    %c0_i32_0 = arith.constant 0 : i32
    %c0_i32_1 = arith.constant 0 : i32
    return %c0_i32, %c0_i32_0 : i32, i32
  }
  func.func @transform_1(%arg0: i32) -> (i32, i32) {
    %c0_i32 = arith.constant 0 : i32
    %c0_i32_0 = arith.constant 0 : i32
    %c0_i32_1 = arith.constant 0 : i32
    return %c0_i32, %c0_i32_0 : i32, i32
  }
  func.func @transform_2(%arg0: i32) -> (i32, i32) {
    %c0_i32 = arith.constant 0 : i32
    %c0_i32_0 = arith.constant 0 : i32
    %c0_i32_1 = arith.constant 0 : i32
    return %c0_i32, %c0_i32_0 : i32, i32
  }
  func.func @transform_3(%arg0: i32) -> (i32, i32) {
    %c0_i32 = arith.constant 0 : i32
    %c0_i32_0 = arith.constant 0 : i32
    %c0_i32_1 = arith.constant 0 : i32
    return %c0_i32, %c0_i32_0 : i32, i32
  }
  func.func @transform_4(%arg0: i32) -> (i32, i32) {
    %c0_i32 = arith.constant 0 : i32
    %c0_i32_0 = arith.constant 0 : i32
    %c0_i32_1 = arith.constant 0 : i32
    return %c0_i32, %c0_i32_0 : i32, i32
  }
}

module attributes {stable_mosaic.version = 11 : i64} {
  func.func @_mm_kernel(%arg0: i32, %arg1: memref<16x640xbf16, #tpu.memory_space<vmem>>, %arg2: memref<640x128xbf16, #tpu.memory_space<vmem>>, %arg3: memref<1x128xf32, #tpu.memory_space<vmem>>, %arg4: memref<16x128xbf16, #tpu.memory_space<vmem>>) attributes {dimension_semantics = [#tpu.dimension_semantics<arbitrary>], iteration_bounds = array<i64: 1>, scalar_prefetch = 0 : i64, scratch_operands = 0 : i64, tpu.core_type = #tpu.core_type<tc>, window_params = [{pipeline_mode = #tpu.pipeline_mode<synchronous>, transform_indices = @transform_0, window_bounds = array<i64: 16, 640>}, {pipeline_mode = #tpu.pipeline_mode<synchronous>, transform_indices = @transform_1, window_bounds = array<i64: 640, 128>}, {pipeline_mode = #tpu.pipeline_mode<synchronous>, transform_indices = @transform_2, window_bounds = array<i64: 1, 128>}, {pipeline_mode = #tpu.pipeline_mode<synchronous>, transform_indices = @transform_3, window_bounds = array<i64: 16, 128>}]} {
    %c0 = arith.constant 0 : index
    %c0_0 = arith.constant 0 : index
    %0 = vector.load %arg1[%c0, %c0_0] : memref<16x640xbf16, #tpu.memory_space<vmem>>, vector<16x640xbf16>
    %c0_1 = arith.constant 0 : index
    %c0_2 = arith.constant 0 : index
    %1 = vector.load %arg2[%c0_1, %c0_2] : memref<640x128xbf16, #tpu.memory_space<vmem>>, vector<640x128xbf16>
    %cst = arith.constant dense<0.000000e+00> : vector<16x128xf32>
    %2 = tpu.matmul %0, %1, %cst {dimension_numbers = #tpu.dot_dimension_numbers<[1], [0], [0], [1], [0, 0, 1, 1], [], []>} : vector<16x640xbf16>, vector<640x128xbf16>, vector<16x128xf32> -> vector<16x128xf32>
    %c0_3 = arith.constant 0 : index
    %c0_4 = arith.constant 0 : index
    %3 = vector.load %arg3[%c0_3, %c0_4] : memref<1x128xf32, #tpu.memory_space<vmem>>, vector<1x128xf32>
    %4 = vector.broadcast %3 : vector<1x128xf32> to vector<16x128xf32>
    %5 = arith.addf %2, %4 : vector<16x128xf32>
    %cst_5 = arith.constant 0.000000e+00 : f32
    %6 = vector.broadcast %cst_5 : f32 to vector<16x128xf32>
    %7 = arith.maximumf %5, %6 : vector<16x128xf32>
    %8 = arith.truncf %7 : vector<16x128xf32> to vector<16x128xbf16>
    %c0_6 = arith.constant 0 : index
    %c0_7 = arith.constant 0 : index
    %9 = vector.load %arg4[%c0_6, %c0_7] : memref<16x128xbf16, #tpu.memory_space<vmem>>, vector<16x128xbf16>
    tpu.vector_store %arg4[%c0_6, %c0_7], %8 {strides = array<i32>} : memref<16x128xbf16, #tpu.memory_space<vmem>>, vector<16x128xbf16>,
    return
  }
  func.func @transform_0(%arg0: i32) -> (i32, i32) {
    %c0_i32 = arith.constant 0 : i32
    %c0_i32_0 = arith.constant 0 : i32
    %c0_i32_1 = arith.constant 0 : i32
    return %c0_i32, %c0_i32_0 : i32, i32
  }
  func.func @transform_1(%arg0: i32) -> (i32, i32) {
    %c0_i32 = arith.constant 0 : i32
    %c0_i32_0 = arith.constant 0 : i32
    %c0_i32_1 = arith.constant 0 : i32
    return %c0_i32, %c0_i32_0 : i32, i32
  }
  func.func @transform_2(%arg0: i32) -> (i32, i32) {
    %c0_i32 = arith.constant 0 : i32
    %c0_i32_0 = arith.constant 0 : i32
    %c0_i32_1 = arith.constant 0 : i32
    return %c0_i32, %c0_i32_0 : i32, i32
  }
  func.func @transform_3(%arg0: i32) -> (i32, i32) {
    %c0_i32 = arith.constant 0 : i32
    %c0_i32_0 = arith.constant 0 : i32
    %c0_i32_1 = arith.constant 0 : i32
    return %c0_i32, %c0_i32_0 : i32, i32
  }
}

module attributes {stable_mosaic.version = 11 : i64} {
  func.func @_mm_kernel(%arg0: i32, %arg1: memref<16x128xbf16, #tpu.memory_space<vmem>>, %arg2: memref<128x128xbf16, #tpu.memory_space<vmem>>, %arg3: memref<1x128xf32, #tpu.memory_space<vmem>>, %arg4: memref<16x128xbf16, #tpu.memory_space<vmem>>) attributes {dimension_semantics = [#tpu.dimension_semantics<arbitrary>], iteration_bounds = array<i64: 1>, scalar_prefetch = 0 : i64, scratch_operands = 0 : i64, tpu.core_type = #tpu.core_type<tc>, window_params = [{pipeline_mode = #tpu.pipeline_mode<synchronous>, transform_indices = @transform_0, window_bounds = array<i64: 16, 128>}, {pipeline_mode = #tpu.pipeline_mode<synchronous>, transform_indices = @transform_1, window_bounds = array<i64: 128, 128>}, {pipeline_mode = #tpu.pipeline_mode<synchronous>, transform_indices = @transform_2, window_bounds = array<i64: 1, 128>}, {pipeline_mode = #tpu.pipeline_mode<synchronous>, transform_indices = @transform_3, window_bounds = array<i64: 16, 128>}]} {
    %c0 = arith.constant 0 : index
    %c0_0 = arith.constant 0 : index
    %0 = vector.load %arg1[%c0, %c0_0] : memref<16x128xbf16, #tpu.memory_space<vmem>>, vector<16x128xbf16>
    %c0_1 = arith.constant 0 : index
    %c0_2 = arith.constant 0 : index
    %1 = vector.load %arg2[%c0_1, %c0_2] : memref<128x128xbf16, #tpu.memory_space<vmem>>, vector<128x128xbf16>
    %cst = arith.constant dense<0.000000e+00> : vector<16x128xf32>
    %2 = tpu.matmul %0, %1, %cst {dimension_numbers = #tpu.dot_dimension_numbers<[1], [0], [0], [1], [0, 0, 1, 1], [], []>} : vector<16x128xbf16>, vector<128x128xbf16>, vector<16x128xf32> -> vector<16x128xf32>
    %c0_3 = arith.constant 0 : index
    %c0_4 = arith.constant 0 : index
    %3 = vector.load %arg3[%c0_3, %c0_4] : memref<1x128xf32, #tpu.memory_space<vmem>>, vector<1x128xf32>
    %4 = vector.broadcast %3 : vector<1x128xf32> to vector<16x128xf32>
    %5 = arith.addf %2, %4 : vector<16x128xf32>
    %6 = arith.truncf %5 : vector<16x128xf32> to vector<16x128xbf16>
    %c0_5 = arith.constant 0 : index
    %c0_6 = arith.constant 0 : index
    %7 = vector.load %arg4[%c0_5, %c0_6] : memref<16x128xbf16, #tpu.memory_space<vmem>>, vector<16x128xbf16>
    tpu.vector_store %arg4[%c0_5, %c0_6], %6 {strides = array<i32>} : memref<16x128xbf16, #tpu.memory_space<vmem>>, vector<16x128xbf16>,
    return
  }
  func.func @transform_0(%arg0: i32) -> (i32, i32) {
    %c0_i32 = arith.constant 0 : i32
    %c0_i32_0 = arith.constant 0 : i32
    %c0_i32_1 = arith.constant 0 : i32
    return %c0_i32, %c0_i32_0 : i32, i32
  }
  func.func @transform_1(%arg0: i32) -> (i32, i32) {
    %c0_i32 = arith.constant 0 : i32
    %c0_i32_0 = arith.constant 0 : i32
    %c0_i32_1 = arith.constant 0 : i32
    return %c0_i32, %c0_i32_0 : i32, i32
  }
  func.func @transform_2(%arg0: i32) -> (i32, i32) {
    %c0_i32 = arith.constant 0 : i32
    %c0_i32_0 = arith.constant 0 : i32
    %c0_i32_1 = arith.constant 0 : i32
    return %c0_i32, %c0_i32_0 : i32, i32
  }
  func.func @transform_3(%arg0: i32) -> (i32, i32) {
    %c0_i32 = arith.constant 0 : i32
    %c0_i32_0 = arith.constant 0 : i32
    %c0_i32_1 = arith.constant 0 : i32
    return %c0_i32, %c0_i32_0 : i32, i32
  }
}

module attributes {stable_mosaic.version = 11 : i64} {
  func.func @_mm_res_kernel(%arg0: i32, %arg1: memref<16x1152xbf16, #tpu.memory_space<vmem>>, %arg2: memref<1152x128xbf16, #tpu.memory_space<vmem>>, %arg3: memref<1x128xf32, #tpu.memory_space<vmem>>, %arg4: memref<16x128xbf16, #tpu.memory_space<vmem>>, %arg5: memref<16x128xbf16, #tpu.memory_space<vmem>>) attributes {dimension_semantics = [#tpu.dimension_semantics<arbitrary>], iteration_bounds = array<i64: 1>, scalar_prefetch = 0 : i64, scratch_operands = 0 : i64, tpu.core_type = #tpu.core_type<tc>, window_params = [{pipeline_mode = #tpu.pipeline_mode<synchronous>, transform_indices = @transform_0, window_bounds = array<i64: 16, 1152>}, {pipeline_mode = #tpu.pipeline_mode<synchronous>, transform_indices = @transform_1, window_bounds = array<i64: 1152, 128>}, {pipeline_mode = #tpu.pipeline_mode<synchronous>, transform_indices = @transform_2, window_bounds = array<i64: 1, 128>}, {pipeline_mode = #tpu.pipeline_mode<synchronous>, transform_indices = @transform_3, window_bounds = array<i64: 16, 128>}, {pipeline_mode = #tpu.pipeline_mode<synchronous>, transform_indices = @transform_4, window_bounds = array<i64: 16, 128>}]} {
    %c0 = arith.constant 0 : index
    %c0_0 = arith.constant 0 : index
    %0 = vector.load %arg1[%c0, %c0_0] : memref<16x1152xbf16, #tpu.memory_space<vmem>>, vector<16x1152xbf16>
    %c0_1 = arith.constant 0 : index
    %c0_2 = arith.constant 0 : index
    %1 = vector.load %arg2[%c0_1, %c0_2] : memref<1152x128xbf16, #tpu.memory_space<vmem>>, vector<1152x128xbf16>
    %cst = arith.constant dense<0.000000e+00> : vector<16x128xf32>
    %2 = tpu.matmul %0, %1, %cst {dimension_numbers = #tpu.dot_dimension_numbers<[1], [0], [0], [1], [0, 0, 1, 1], [], []>} : vector<16x1152xbf16>, vector<1152x128xbf16>, vector<16x128xf32> -> vector<16x128xf32>
    %c0_3 = arith.constant 0 : index
    %c0_4 = arith.constant 0 : index
    %3 = vector.load %arg3[%c0_3, %c0_4] : memref<1x128xf32, #tpu.memory_space<vmem>>, vector<1x128xf32>
    %4 = vector.broadcast %3 : vector<1x128xf32> to vector<16x128xf32>
    %5 = arith.addf %2, %4 : vector<16x128xf32>
    %c0_5 = arith.constant 0 : index
    %c0_6 = arith.constant 0 : index
    %6 = vector.load %arg4[%c0_5, %c0_6] : memref<16x128xbf16, #tpu.memory_space<vmem>>, vector<16x128xbf16>
    %7 = arith.extf %6 : vector<16x128xbf16> to vector<16x128xf32>
    %8 = arith.addf %5, %7 : vector<16x128xf32>
    %cst_7 = arith.constant 0.000000e+00 : f32
    %9 = vector.broadcast %cst_7 : f32 to vector<16x128xf32>
    %10 = arith.maximumf %8, %9 : vector<16x128xf32>
    %11 = arith.truncf %10 : vector<16x128xf32> to vector<16x128xbf16>
    %c0_8 = arith.constant 0 : index
    %c0_9 = arith.constant 0 : index
    %12 = vector.load %arg5[%c0_8, %c0_9] : memref<16x128xbf16, #tpu.memory_space<vmem>>, vector<16x128xbf16>
    tpu.vector_store %arg5[%c0_8, %c0_9], %11 {strides = array<i32>} : memref<16x128xbf16, #tpu.memory_space<vmem>>, vector<16x128xbf16>,
    return
  }
  func.func @transform_0(%arg0: i32) -> (i32, i32) {
    %c0_i32 = arith.constant 0 : i32
    %c0_i32_0 = arith.constant 0 : i32
    %c0_i32_1 = arith.constant 0 : i32
    return %c0_i32, %c0_i32_0 : i32, i32
  }
  func.func @transform_1(%arg0: i32) -> (i32, i32) {
    %c0_i32 = arith.constant 0 : i32
    %c0_i32_0 = arith.constant 0 : i32
    %c0_i32_1 = arith.constant 0 : i32
    return %c0_i32, %c0_i32_0 : i32, i32
  }
  func.func @transform_2(%arg0: i32) -> (i32, i32) {
    %c0_i32 = arith.constant 0 : i32
    %c0_i32_0 = arith.constant 0 : i32
    %c0_i32_1 = arith.constant 0 : i32
    return %c0_i32, %c0_i32_0 : i32, i32
  }
  func.func @transform_3(%arg0: i32) -> (i32, i32) {
    %c0_i32 = arith.constant 0 : i32
    %c0_i32_0 = arith.constant 0 : i32
    %c0_i32_1 = arith.constant 0 : i32
    return %c0_i32, %c0_i32_0 : i32, i32
  }
  func.func @transform_4(%arg0: i32) -> (i32, i32) {
    %c0_i32 = arith.constant 0 : i32
    %c0_i32_0 = arith.constant 0 : i32
    %c0_i32_1 = arith.constant 0 : i32
    return %c0_i32, %c0_i32_0 : i32, i32
  }
}

module attributes {stable_mosaic.version = 11 : i64} {
  func.func @_mm_kernel(%arg0: i32, %arg1: memref<16x1152xbf16, #tpu.memory_space<vmem>>, %arg2: memref<1152x128xbf16, #tpu.memory_space<vmem>>, %arg3: memref<1x128xf32, #tpu.memory_space<vmem>>, %arg4: memref<16x128xbf16, #tpu.memory_space<vmem>>) attributes {dimension_semantics = [#tpu.dimension_semantics<arbitrary>], iteration_bounds = array<i64: 1>, scalar_prefetch = 0 : i64, scratch_operands = 0 : i64, tpu.core_type = #tpu.core_type<tc>, window_params = [{pipeline_mode = #tpu.pipeline_mode<synchronous>, transform_indices = @transform_0, window_bounds = array<i64: 16, 1152>}, {pipeline_mode = #tpu.pipeline_mode<synchronous>, transform_indices = @transform_1, window_bounds = array<i64: 1152, 128>}, {pipeline_mode = #tpu.pipeline_mode<synchronous>, transform_indices = @transform_2, window_bounds = array<i64: 1, 128>}, {pipeline_mode = #tpu.pipeline_mode<synchronous>, transform_indices = @transform_3, window_bounds = array<i64: 16, 128>}]} {
    %c0 = arith.constant 0 : index
    %c0_0 = arith.constant 0 : index
    %0 = vector.load %arg1[%c0, %c0_0] : memref<16x1152xbf16, #tpu.memory_space<vmem>>, vector<16x1152xbf16>
    %c0_1 = arith.constant 0 : index
    %c0_2 = arith.constant 0 : index
    %1 = vector.load %arg2[%c0_1, %c0_2] : memref<1152x128xbf16, #tpu.memory_space<vmem>>, vector<1152x128xbf16>
    %cst = arith.constant dense<0.000000e+00> : vector<16x128xf32>
    %2 = tpu.matmul %0, %1, %cst {dimension_numbers = #tpu.dot_dimension_numbers<[1], [0], [0], [1], [0, 0, 1, 1], [], []>} : vector<16x1152xbf16>, vector<1152x128xbf16>, vector<16x128xf32> -> vector<16x128xf32>
    %c0_3 = arith.constant 0 : index
    %c0_4 = arith.constant 0 : index
    %3 = vector.load %arg3[%c0_3, %c0_4] : memref<1x128xf32, #tpu.memory_space<vmem>>, vector<1x128xf32>
    %4 = vector.broadcast %3 : vector<1x128xf32> to vector<16x128xf32>
    %5 = arith.addf %2, %4 : vector<16x128xf32>
    %cst_5 = arith.constant 0.000000e+00 : f32
    %6 = vector.broadcast %cst_5 : f32 to vector<16x128xf32>
    %7 = arith.maximumf %5, %6 : vector<16x128xf32>
    %8 = arith.truncf %7 : vector<16x128xf32> to vector<16x128xbf16>
    %c0_6 = arith.constant 0 : index
    %c0_7 = arith.constant 0 : index
    %9 = vector.load %arg4[%c0_6, %c0_7] : memref<16x128xbf16, #tpu.memory_space<vmem>>, vector<16x128xbf16>
    tpu.vector_store %arg4[%c0_6, %c0_7], %8 {strides = array<i32>} : memref<16x128xbf16, #tpu.memory_space<vmem>>, vector<16x128xbf16>,
    return
  }
  func.func @transform_0(%arg0: i32) -> (i32, i32) {
    %c0_i32 = arith.constant 0 : i32
    %c0_i32_0 = arith.constant 0 : i32
    %c0_i32_1 = arith.constant 0 : i32
    return %c0_i32, %c0_i32_0 : i32, i32
  }
  func.func @transform_1(%arg0: i32) -> (i32, i32) {
    %c0_i32 = arith.constant 0 : i32
    %c0_i32_0 = arith.constant 0 : i32
    %c0_i32_1 = arith.constant 0 : i32
    return %c0_i32, %c0_i32_0 : i32, i32
  }
  func.func @transform_2(%arg0: i32) -> (i32, i32) {
    %c0_i32 = arith.constant 0 : i32
    %c0_i32_0 = arith.constant 0 : i32
    %c0_i32_1 = arith.constant 0 : i32
    return %c0_i32, %c0_i32_0 : i32, i32
  }
  func.func @transform_3(%arg0: i32) -> (i32, i32) {
    %c0_i32 = arith.constant 0 : i32
    %c0_i32_0 = arith.constant 0 : i32
    %c0_i32_1 = arith.constant 0 : i32
    return %c0_i32, %c0_i32_0 : i32, i32
  }
}

module attributes {stable_mosaic.version = 11 : i64} {
  func.func @_block_down_kernel(%arg0: i32, %arg1: memref<16x1152xbf16, #tpu.memory_space<vmem>>, %arg2: memref<1152x256xbf16, #tpu.memory_space<vmem>>, %arg3: memref<1x256xf32, #tpu.memory_space<vmem>>, %arg4: memref<16x128xbf16, #tpu.memory_space<vmem>>, %arg5: memref<128x256xbf16, #tpu.memory_space<vmem>>, %arg6: memref<1x256xf32, #tpu.memory_space<vmem>>, %arg7: memref<256x256xbf16, #tpu.memory_space<vmem>>, %arg8: memref<1x256xf32, #tpu.memory_space<vmem>>, %arg9: memref<16x256xbf16, #tpu.memory_space<vmem>>) attributes {dimension_semantics = [#tpu.dimension_semantics<arbitrary>], iteration_bounds = array<i64: 1>, scalar_prefetch = 0 : i64, scratch_operands = 0 : i64, tpu.core_type = #tpu.core_type<tc>, window_params = [{pipeline_mode = #tpu.pipeline_mode<synchronous>, transform_indices = @transform_0, window_bounds = array<i64: 16, 1152>}, {pipeline_mode = #tpu.pipeline_mode<synchronous>, transform_indices = @transform_1, window_bounds = array<i64: 1152, 256>}, {pipeline_mode = #tpu.pipeline_mode<synchronous>, transform_indices = @transform_2, window_bounds = array<i64: 1, 256>}, {pipeline_mode = #tpu.pipeline_mode<synchronous>, transform_indices = @transform_3, window_bounds = array<i64: 16, 128>}, {pipeline_mode = #tpu.pipeline_mode<synchronous>, transform_indices = @transform_4, window_bounds = array<i64: 128, 256>}, {pipeline_mode = #tpu.pipeline_mode<synchronous>, transform_indices = @transform_5, window_bounds = array<i64: 1, 256>}, {pipeline_mode = #tpu.pipeline_mode<synchronous>, transform_indices = @transform_6, window_bounds = array<i64: 256, 256>}, {pipeline_mode = #tpu.pipeline_mode<synchronous>, transform_indices = @transform_7, window_bounds = array<i64: 1, 256>}, {pipeline_mode = #tpu.pipeline_mode<synchronous>, transform_indices = @transform_8, window_bounds = array<i64: 16, 256>}]} {
    %c0 = arith.constant 0 : index
    %c0_0 = arith.constant 0 : index
    %0 = vector.load %arg1[%c0, %c0_0] : memref<16x1152xbf16, #tpu.memory_space<vmem>>, vector<16x1152xbf16>
    %c0_1 = arith.constant 0 : index
    %c0_2 = arith.constant 0 : index
    %1 = vector.load %arg2[%c0_1, %c0_2] : memref<1152x256xbf16, #tpu.memory_space<vmem>>, vector<1152x256xbf16>
    %cst = arith.constant dense<0.000000e+00> : vector<16x256xf32>
    %2 = tpu.matmul %0, %1, %cst {dimension_numbers = #tpu.dot_dimension_numbers<[1], [0], [0], [1], [0, 0, 1, 1], [], []>} : vector<16x1152xbf16>, vector<1152x256xbf16>, vector<16x256xf32> -> vector<16x256xf32>
    %c0_3 = arith.constant 0 : index
    %c0_4 = arith.constant 0 : index
    %3 = vector.load %arg3[%c0_3, %c0_4] : memref<1x256xf32, #tpu.memory_space<vmem>>, vector<1x256xf32>
    %4 = vector.broadcast %3 : vector<1x256xf32> to vector<16x256xf32>
    %5 = arith.addf %2, %4 : vector<16x256xf32>
    %cst_5 = arith.constant 0.000000e+00 : f32
    %6 = vector.broadcast %cst_5 : f32 to vector<16x256xf32>
    %7 = arith.maximumf %5, %6 : vector<16x256xf32>
    %8 = arith.truncf %7 : vector<16x256xf32> to vector<16x256xbf16>
    %c0_6 = arith.constant 0 : index
    %c0_7 = arith.constant 0 : index
    %9 = vector.load %arg4[%c0_6, %c0_7] : memref<16x128xbf16, #tpu.memory_space<vmem>>, vector<16x128xbf16>
    %c0_8 = arith.constant 0 : index
    %c0_9 = arith.constant 0 : index
    %10 = vector.load %arg5[%c0_8, %c0_9] : memref<128x256xbf16, #tpu.memory_space<vmem>>, vector<128x256xbf16>
    %cst_10 = arith.constant dense<0.000000e+00> : vector<16x256xf32>
    %11 = tpu.matmul %9, %10, %cst_10 {dimension_numbers = #tpu.dot_dimension_numbers<[1], [0], [0], [1], [0, 0, 1, 1], [], []>} : vector<16x128xbf16>, vector<128x256xbf16>, vector<16x256xf32> -> vector<16x256xf32>
    %c0_11 = arith.constant 0 : index
    %c0_12 = arith.constant 0 : index
    %12 = vector.load %arg6[%c0_11, %c0_12] : memref<1x256xf32, #tpu.memory_space<vmem>>, vector<1x256xf32>
    %13 = vector.broadcast %12 : vector<1x256xf32> to vector<16x256xf32>
    %14 = arith.addf %11, %13 : vector<16x256xf32>
    %c0_13 = arith.constant 0 : index
    %c0_14 = arith.constant 0 : index
    %15 = vector.load %arg7[%c0_13, %c0_14] : memref<256x256xbf16, #tpu.memory_space<vmem>>, vector<256x256xbf16>
    %cst_15 = arith.constant dense<0.000000e+00> : vector<16x256xf32>
    %16 = tpu.matmul %8, %15, %cst_15 {dimension_numbers = #tpu.dot_dimension_numbers<[1], [0], [0], [1], [0, 0, 1, 1], [], []>} : vector<16x256xbf16>, vector<256x256xbf16>, vector<16x256xf32> -> vector<16x256xf32>
    %c0_16 = arith.constant 0 : index
    %c0_17 = arith.constant 0 : index
    %17 = vector.load %arg8[%c0_16, %c0_17] : memref<1x256xf32, #tpu.memory_space<vmem>>, vector<1x256xf32>
    %18 = vector.broadcast %17 : vector<1x256xf32> to vector<16x256xf32>
    %19 = arith.addf %16, %18 : vector<16x256xf32>
    %20 = arith.addf %19, %14 : vector<16x256xf32>
    %cst_18 = arith.constant 0.000000e+00 : f32
    %21 = vector.broadcast %cst_18 : f32 to vector<16x256xf32>
    %22 = arith.maximumf %20, %21 : vector<16x256xf32>
    %23 = arith.truncf %22 : vector<16x256xf32> to vector<16x256xbf16>
    %c0_19 = arith.constant 0 : index
    %c0_20 = arith.constant 0 : index
    %24 = vector.load %arg9[%c0_19, %c0_20] : memref<16x256xbf16, #tpu.memory_space<vmem>>, vector<16x256xbf16>
    tpu.vector_store %arg9[%c0_19, %c0_20], %23 {strides = array<i32>} : memref<16x256xbf16, #tpu.memory_space<vmem>>, vector<16x256xbf16>,
    return
  }
  func.func @transform_0(%arg0: i32) -> (i32, i32) {
    %c0_i32 = arith.constant 0 : i32
    %c0_i32_0 = arith.constant 0 : i32
    %c0_i32_1 = arith.constant 0 : i32
    return %c0_i32, %c0_i32_0 : i32, i32
  }
  func.func @transform_1(%arg0: i32) -> (i32, i32) {
    %c0_i32 = arith.constant 0 : i32
    %c0_i32_0 = arith.constant 0 : i32
    %c0_i32_1 = arith.constant 0 : i32
    return %c0_i32, %c0_i32_0 : i32, i32
  }
  func.func @transform_2(%arg0: i32) -> (i32, i32) {
    %c0_i32 = arith.constant 0 : i32
    %c0_i32_0 = arith.constant 0 : i32
    %c0_i32_1 = arith.constant 0 : i32
    return %c0_i32, %c0_i32_0 : i32, i32
  }
  func.func @transform_3(%arg0: i32) -> (i32, i32) {
    %c0_i32 = arith.constant 0 : i32
    %c0_i32_0 = arith.constant 0 : i32
    %c0_i32_1 = arith.constant 0 : i32
    return %c0_i32, %c0_i32_0 : i32, i32
  }
  func.func @transform_4(%arg0: i32) -> (i32, i32) {
    %c0_i32 = arith.constant 0 : i32
    %c0_i32_0 = arith.constant 0 : i32
    %c0_i32_1 = arith.constant 0 : i32
    return %c0_i32, %c0_i32_0 : i32, i32
  }
  func.func @transform_5(%arg0: i32) -> (i32, i32) {
    %c0_i32 = arith.constant 0 : i32
    %c0_i32_0 = arith.constant 0 : i32
    %c0_i32_1 = arith.constant 0 : i32
    return %c0_i32, %c0_i32_0 : i32, i32
  }
  func.func @transform_6(%arg0: i32) -> (i32, i32) {
    %c0_i32 = arith.constant 0 : i32
    %c0_i32_0 = arith.constant 0 : i32
    %c0_i32_1 = arith.constant 0 : i32
    return %c0_i32, %c0_i32_0 : i32, i32
  }
  func.func @transform_7(%arg0: i32) -> (i32, i32) {
    %c0_i32 = arith.constant 0 : i32
    %c0_i32_0 = arith.constant 0 : i32
    %c0_i32_1 = arith.constant 0 : i32
    return %c0_i32, %c0_i32_0 : i32, i32
  }
  func.func @transform_8(%arg0: i32) -> (i32, i32) {
    %c0_i32 = arith.constant 0 : i32
    %c0_i32_0 = arith.constant 0 : i32
    %c0_i32_1 = arith.constant 0 : i32
    return %c0_i32, %c0_i32_0 : i32, i32
  }
}

module attributes {stable_mosaic.version = 11 : i64} {
  func.func @_block_kernel(%arg0: i32, %arg1: memref<16x256xbf16, #tpu.memory_space<vmem>>, %arg2: memref<256x256xbf16, #tpu.memory_space<vmem>>, %arg3: memref<1x256xf32, #tpu.memory_space<vmem>>, %arg4: memref<256x256xbf16, #tpu.memory_space<vmem>>, %arg5: memref<1x256xf32, #tpu.memory_space<vmem>>, %arg6: memref<16x256xbf16, #tpu.memory_space<vmem>>, %arg7: memref<16x256xbf16, #tpu.memory_space<vmem>>) attributes {dimension_semantics = [#tpu.dimension_semantics<arbitrary>], iteration_bounds = array<i64: 1>, scalar_prefetch = 0 : i64, scratch_operands = 0 : i64, tpu.core_type = #tpu.core_type<tc>, window_params = [{pipeline_mode = #tpu.pipeline_mode<synchronous>, transform_indices = @transform_0, window_bounds = array<i64: 16, 256>}, {pipeline_mode = #tpu.pipeline_mode<synchronous>, transform_indices = @transform_1, window_bounds = array<i64: 256, 256>}, {pipeline_mode = #tpu.pipeline_mode<synchronous>, transform_indices = @transform_2, window_bounds = array<i64: 1, 256>}, {pipeline_mode = #tpu.pipeline_mode<synchronous>, transform_indices = @transform_3, window_bounds = array<i64: 256, 256>}, {pipeline_mode = #tpu.pipeline_mode<synchronous>, transform_indices = @transform_4, window_bounds = array<i64: 1, 256>}, {pipeline_mode = #tpu.pipeline_mode<synchronous>, transform_indices = @transform_5, window_bounds = array<i64: 16, 256>}, {pipeline_mode = #tpu.pipeline_mode<synchronous>, transform_indices = @transform_6, window_bounds = array<i64: 16, 256>}]} {
    %c0 = arith.constant 0 : index
    %c0_0 = arith.constant 0 : index
    %0 = vector.load %arg1[%c0, %c0_0] : memref<16x256xbf16, #tpu.memory_space<vmem>>, vector<16x256xbf16>
    %c0_1 = arith.constant 0 : index
    %c0_2 = arith.constant 0 : index
    %1 = vector.load %arg2[%c0_1, %c0_2] : memref<256x256xbf16, #tpu.memory_space<vmem>>, vector<256x256xbf16>
    %cst = arith.constant dense<0.000000e+00> : vector<16x256xf32>
    %2 = tpu.matmul %0, %1, %cst {dimension_numbers = #tpu.dot_dimension_numbers<[1], [0], [0], [1], [0, 0, 1, 1], [], []>} : vector<16x256xbf16>, vector<256x256xbf16>, vector<16x256xf32> -> vector<16x256xf32>
    %c0_3 = arith.constant 0 : index
    %c0_4 = arith.constant 0 : index
    %3 = vector.load %arg3[%c0_3, %c0_4] : memref<1x256xf32, #tpu.memory_space<vmem>>, vector<1x256xf32>
    %4 = vector.broadcast %3 : vector<1x256xf32> to vector<16x256xf32>
    %5 = arith.addf %2, %4 : vector<16x256xf32>
    %cst_5 = arith.constant 0.000000e+00 : f32
    %6 = vector.broadcast %cst_5 : f32 to vector<16x256xf32>
    %7 = arith.maximumf %5, %6 : vector<16x256xf32>
    %8 = arith.truncf %7 : vector<16x256xf32> to vector<16x256xbf16>
    %c0_6 = arith.constant 0 : index
    %c0_7 = arith.constant 0 : index
    %9 = vector.load %arg4[%c0_6, %c0_7] : memref<256x256xbf16, #tpu.memory_space<vmem>>, vector<256x256xbf16>
    %cst_8 = arith.constant dense<0.000000e+00> : vector<16x256xf32>
    %10 = tpu.matmul %8, %9, %cst_8 {dimension_numbers = #tpu.dot_dimension_numbers<[1], [0], [0], [1], [0, 0, 1, 1], [], []>} : vector<16x256xbf16>, vector<256x256xbf16>, vector<16x256xf32> -> vector<16x256xf32>
    %c0_9 = arith.constant 0 : index
    %c0_10 = arith.constant 0 : index
    %11 = vector.load %arg5[%c0_9, %c0_10] : memref<1x256xf32, #tpu.memory_space<vmem>>, vector<1x256xf32>
    %12 = vector.broadcast %11 : vector<1x256xf32> to vector<16x256xf32>
    %13 = arith.addf %10, %12 : vector<16x256xf32>
    %c0_11 = arith.constant 0 : index
    %c0_12 = arith.constant 0 : index
    %14 = vector.load %arg6[%c0_11, %c0_12] : memref<16x256xbf16, #tpu.memory_space<vmem>>, vector<16x256xbf16>
    %15 = arith.extf %14 : vector<16x256xbf16> to vector<16x256xf32>
    %16 = arith.addf %13, %15 : vector<16x256xf32>
    %cst_13 = arith.constant 0.000000e+00 : f32
    %17 = vector.broadcast %cst_13 : f32 to vector<16x256xf32>
    %18 = arith.maximumf %16, %17 : vector<16x256xf32>
    %19 = arith.truncf %18 : vector<16x256xf32> to vector<16x256xbf16>
    %c0_14 = arith.constant 0 : index
    %c0_15 = arith.constant 0 : index
    %20 = vector.load %arg7[%c0_14, %c0_15] : memref<16x256xbf16, #tpu.memory_space<vmem>>, vector<16x256xbf16>
    tpu.vector_store %arg7[%c0_14, %c0_15], %19 {strides = array<i32>} : memref<16x256xbf16, #tpu.memory_space<vmem>>, vector<16x256xbf16>,
    return
  }
  func.func @transform_0(%arg0: i32) -> (i32, i32) {
    %c0_i32 = arith.constant 0 : i32
    %c0_i32_0 = arith.constant 0 : i32
    %c0_i32_1 = arith.constant 0 : i32
    return %c0_i32, %c0_i32_0 : i32, i32
  }
  func.func @transform_1(%arg0: i32) -> (i32, i32) {
    %c0_i32 = arith.constant 0 : i32
    %c0_i32_0 = arith.constant 0 : i32
    %c0_i32_1 = arith.constant 0 : i32
    return %c0_i32, %c0_i32_0 : i32, i32
  }
  func.func @transform_2(%arg0: i32) -> (i32, i32) {
    %c0_i32 = arith.constant 0 : i32
    %c0_i32_0 = arith.constant 0 : i32
    %c0_i32_1 = arith.constant 0 : i32
    return %c0_i32, %c0_i32_0 : i32, i32
  }
  func.func @transform_3(%arg0: i32) -> (i32, i32) {
    %c0_i32 = arith.constant 0 : i32
    %c0_i32_0 = arith.constant 0 : i32
    %c0_i32_1 = arith.constant 0 : i32
    return %c0_i32, %c0_i32_0 : i32, i32
  }
  func.func @transform_4(%arg0: i32) -> (i32, i32) {
    %c0_i32 = arith.constant 0 : i32
    %c0_i32_0 = arith.constant 0 : i32
    %c0_i32_1 = arith.constant 0 : i32
    return %c0_i32, %c0_i32_0 : i32, i32
  }
  func.func @transform_5(%arg0: i32) -> (i32, i32) {
    %c0_i32 = arith.constant 0 : i32
    %c0_i32_0 = arith.constant 0 : i32
    %c0_i32_1 = arith.constant 0 : i32
    return %c0_i32, %c0_i32_0 : i32, i32
  }
  func.func @transform_6(%arg0: i32) -> (i32, i32) {
    %c0_i32 = arith.constant 0 : i32
    %c0_i32_0 = arith.constant 0 : i32
    %c0_i32_1 = arith.constant 0 : i32
    return %c0_i32, %c0_i32_0 : i32, i32
  }
}

module attributes {stable_mosaic.version = 11 : i64} {
  func.func @_block_down_kernel(%arg0: i32, %arg1: memref<16x256xbf16, #tpu.memory_space<vmem>>, %arg2: memref<256x512xbf16, #tpu.memory_space<vmem>>, %arg3: memref<1x512xf32, #tpu.memory_space<vmem>>, %arg4: memref<16x256xbf16, #tpu.memory_space<vmem>>, %arg5: memref<256x512xbf16, #tpu.memory_space<vmem>>, %arg6: memref<1x512xf32, #tpu.memory_space<vmem>>, %arg7: memref<512x512xbf16, #tpu.memory_space<vmem>>, %arg8: memref<1x512xf32, #tpu.memory_space<vmem>>, %arg9: memref<16x512xbf16, #tpu.memory_space<vmem>>) attributes {dimension_semantics = [#tpu.dimension_semantics<arbitrary>], iteration_bounds = array<i64: 1>, scalar_prefetch = 0 : i64, scratch_operands = 0 : i64, tpu.core_type = #tpu.core_type<tc>, window_params = [{pipeline_mode = #tpu.pipeline_mode<synchronous>, transform_indices = @transform_0, window_bounds = array<i64: 16, 256>}, {pipeline_mode = #tpu.pipeline_mode<synchronous>, transform_indices = @transform_1, window_bounds = array<i64: 256, 512>}, {pipeline_mode = #tpu.pipeline_mode<synchronous>, transform_indices = @transform_2, window_bounds = array<i64: 1, 512>}, {pipeline_mode = #tpu.pipeline_mode<synchronous>, transform_indices = @transform_3, window_bounds = array<i64: 16, 256>}, {pipeline_mode = #tpu.pipeline_mode<synchronous>, transform_indices = @transform_4, window_bounds = array<i64: 256, 512>}, {pipeline_mode = #tpu.pipeline_mode<synchronous>, transform_indices = @transform_5, window_bounds = array<i64: 1, 512>}, {pipeline_mode = #tpu.pipeline_mode<synchronous>, transform_indices = @transform_6, window_bounds = array<i64: 512, 512>}, {pipeline_mode = #tpu.pipeline_mode<synchronous>, transform_indices = @transform_7, window_bounds = array<i64: 1, 512>}, {pipeline_mode = #tpu.pipeline_mode<synchronous>, transform_indices = @transform_8, window_bounds = array<i64: 16, 512>}]} {
    %c0 = arith.constant 0 : index
    %c0_0 = arith.constant 0 : index
    %0 = vector.load %arg1[%c0, %c0_0] : memref<16x256xbf16, #tpu.memory_space<vmem>>, vector<16x256xbf16>
    %c0_1 = arith.constant 0 : index
    %c0_2 = arith.constant 0 : index
    %1 = vector.load %arg2[%c0_1, %c0_2] : memref<256x512xbf16, #tpu.memory_space<vmem>>, vector<256x512xbf16>
    %cst = arith.constant dense<0.000000e+00> : vector<16x512xf32>
    %2 = tpu.matmul %0, %1, %cst {dimension_numbers = #tpu.dot_dimension_numbers<[1], [0], [0], [1], [0, 0, 1, 1], [], []>} : vector<16x256xbf16>, vector<256x512xbf16>, vector<16x512xf32> -> vector<16x512xf32>
    %c0_3 = arith.constant 0 : index
    %c0_4 = arith.constant 0 : index
    %3 = vector.load %arg3[%c0_3, %c0_4] : memref<1x512xf32, #tpu.memory_space<vmem>>, vector<1x512xf32>
    %4 = vector.broadcast %3 : vector<1x512xf32> to vector<16x512xf32>
    %5 = arith.addf %2, %4 : vector<16x512xf32>
    %cst_5 = arith.constant 0.000000e+00 : f32
    %6 = vector.broadcast %cst_5 : f32 to vector<16x512xf32>
    %7 = arith.maximumf %5, %6 : vector<16x512xf32>
    %8 = arith.truncf %7 : vector<16x512xf32> to vector<16x512xbf16>
    %c0_6 = arith.constant 0 : index
    %c0_7 = arith.constant 0 : index
    %9 = vector.load %arg4[%c0_6, %c0_7] : memref<16x256xbf16, #tpu.memory_space<vmem>>, vector<16x256xbf16>
    %c0_8 = arith.constant 0 : index
    %c0_9 = arith.constant 0 : index
    %10 = vector.load %arg5[%c0_8, %c0_9] : memref<256x512xbf16, #tpu.memory_space<vmem>>, vector<256x512xbf16>
    %cst_10 = arith.constant dense<0.000000e+00> : vector<16x512xf32>
    %11 = tpu.matmul %9, %10, %cst_10 {dimension_numbers = #tpu.dot_dimension_numbers<[1], [0], [0], [1], [0, 0, 1, 1], [], []>} : vector<16x256xbf16>, vector<256x512xbf16>, vector<16x512xf32> -> vector<16x512xf32>
    %c0_11 = arith.constant 0 : index
    %c0_12 = arith.constant 0 : index
    %12 = vector.load %arg6[%c0_11, %c0_12] : memref<1x512xf32, #tpu.memory_space<vmem>>, vector<1x512xf32>
    %13 = vector.broadcast %12 : vector<1x512xf32> to vector<16x512xf32>
    %14 = arith.addf %11, %13 : vector<16x512xf32>
    %c0_13 = arith.constant 0 : index
    %c0_14 = arith.constant 0 : index
    %15 = vector.load %arg7[%c0_13, %c0_14] : memref<512x512xbf16, #tpu.memory_space<vmem>>, vector<512x512xbf16>
    %cst_15 = arith.constant dense<0.000000e+00> : vector<16x512xf32>
    %16 = tpu.matmul %8, %15, %cst_15 {dimension_numbers = #tpu.dot_dimension_numbers<[1], [0], [0], [1], [0, 0, 1, 1], [], []>} : vector<16x512xbf16>, vector<512x512xbf16>, vector<16x512xf32> -> vector<16x512xf32>
    %c0_16 = arith.constant 0 : index
    %c0_17 = arith.constant 0 : index
    %17 = vector.load %arg8[%c0_16, %c0_17] : memref<1x512xf32, #tpu.memory_space<vmem>>, vector<1x512xf32>
    %18 = vector.broadcast %17 : vector<1x512xf32> to vector<16x512xf32>
    %19 = arith.addf %16, %18 : vector<16x512xf32>
    %20 = arith.addf %19, %14 : vector<16x512xf32>
    %cst_18 = arith.constant 0.000000e+00 : f32
    %21 = vector.broadcast %cst_18 : f32 to vector<16x512xf32>
    %22 = arith.maximumf %20, %21 : vector<16x512xf32>
    %23 = arith.truncf %22 : vector<16x512xf32> to vector<16x512xbf16>
    %c0_19 = arith.constant 0 : index
    %c0_20 = arith.constant 0 : index
    %24 = vector.load %arg9[%c0_19, %c0_20] : memref<16x512xbf16, #tpu.memory_space<vmem>>, vector<16x512xbf16>
    tpu.vector_store %arg9[%c0_19, %c0_20], %23 {strides = array<i32>} : memref<16x512xbf16, #tpu.memory_space<vmem>>, vector<16x512xbf16>,
    return
  }
  func.func @transform_0(%arg0: i32) -> (i32, i32) {
    %c0_i32 = arith.constant 0 : i32
    %c0_i32_0 = arith.constant 0 : i32
    %c0_i32_1 = arith.constant 0 : i32
    return %c0_i32, %c0_i32_0 : i32, i32
  }
  func.func @transform_1(%arg0: i32) -> (i32, i32) {
    %c0_i32 = arith.constant 0 : i32
    %c0_i32_0 = arith.constant 0 : i32
    %c0_i32_1 = arith.constant 0 : i32
    return %c0_i32, %c0_i32_0 : i32, i32
  }
  func.func @transform_2(%arg0: i32) -> (i32, i32) {
    %c0_i32 = arith.constant 0 : i32
    %c0_i32_0 = arith.constant 0 : i32
    %c0_i32_1 = arith.constant 0 : i32
    return %c0_i32, %c0_i32_0 : i32, i32
  }
  func.func @transform_3(%arg0: i32) -> (i32, i32) {
    %c0_i32 = arith.constant 0 : i32
    %c0_i32_0 = arith.constant 0 : i32
    %c0_i32_1 = arith.constant 0 : i32
    return %c0_i32, %c0_i32_0 : i32, i32
  }
  func.func @transform_4(%arg0: i32) -> (i32, i32) {
    %c0_i32 = arith.constant 0 : i32
    %c0_i32_0 = arith.constant 0 : i32
    %c0_i32_1 = arith.constant 0 : i32
    return %c0_i32, %c0_i32_0 : i32, i32
  }
  func.func @transform_5(%arg0: i32) -> (i32, i32) {
    %c0_i32 = arith.constant 0 : i32
    %c0_i32_0 = arith.constant 0 : i32
    %c0_i32_1 = arith.constant 0 : i32
    return %c0_i32, %c0_i32_0 : i32, i32
  }
  func.func @transform_6(%arg0: i32) -> (i32, i32) {
    %c0_i32 = arith.constant 0 : i32
    %c0_i32_0 = arith.constant 0 : i32
    %c0_i32_1 = arith.constant 0 : i32
    return %c0_i32, %c0_i32_0 : i32, i32
  }
  func.func @transform_7(%arg0: i32) -> (i32, i32) {
    %c0_i32 = arith.constant 0 : i32
    %c0_i32_0 = arith.constant 0 : i32
    %c0_i32_1 = arith.constant 0 : i32
    return %c0_i32, %c0_i32_0 : i32, i32
  }
  func.func @transform_8(%arg0: i32) -> (i32, i32) {
    %c0_i32 = arith.constant 0 : i32
    %c0_i32_0 = arith.constant 0 : i32
    %c0_i32_1 = arith.constant 0 : i32
    return %c0_i32, %c0_i32_0 : i32, i32
  }
}

module attributes {stable_mosaic.version = 11 : i64} {
  func.func @_block_kernel(%arg0: i32, %arg1: memref<16x512xbf16, #tpu.memory_space<vmem>>, %arg2: memref<512x512xbf16, #tpu.memory_space<vmem>>, %arg3: memref<1x512xf32, #tpu.memory_space<vmem>>, %arg4: memref<512x512xbf16, #tpu.memory_space<vmem>>, %arg5: memref<1x512xf32, #tpu.memory_space<vmem>>, %arg6: memref<16x512xbf16, #tpu.memory_space<vmem>>, %arg7: memref<16x512xbf16, #tpu.memory_space<vmem>>) attributes {dimension_semantics = [#tpu.dimension_semantics<arbitrary>], iteration_bounds = array<i64: 1>, scalar_prefetch = 0 : i64, scratch_operands = 0 : i64, tpu.core_type = #tpu.core_type<tc>, window_params = [{pipeline_mode = #tpu.pipeline_mode<synchronous>, transform_indices = @transform_0, window_bounds = array<i64: 16, 512>}, {pipeline_mode = #tpu.pipeline_mode<synchronous>, transform_indices = @transform_1, window_bounds = array<i64: 512, 512>}, {pipeline_mode = #tpu.pipeline_mode<synchronous>, transform_indices = @transform_2, window_bounds = array<i64: 1, 512>}, {pipeline_mode = #tpu.pipeline_mode<synchronous>, transform_indices = @transform_3, window_bounds = array<i64: 512, 512>}, {pipeline_mode = #tpu.pipeline_mode<synchronous>, transform_indices = @transform_4, window_bounds = array<i64: 1, 512>}, {pipeline_mode = #tpu.pipeline_mode<synchronous>, transform_indices = @transform_5, window_bounds = array<i64: 16, 512>}, {pipeline_mode = #tpu.pipeline_mode<synchronous>, transform_indices = @transform_6, window_bounds = array<i64: 16, 512>}]} {
    %c0 = arith.constant 0 : index
    %c0_0 = arith.constant 0 : index
    %0 = vector.load %arg1[%c0, %c0_0] : memref<16x512xbf16, #tpu.memory_space<vmem>>, vector<16x512xbf16>
    %c0_1 = arith.constant 0 : index
    %c0_2 = arith.constant 0 : index
    %1 = vector.load %arg2[%c0_1, %c0_2] : memref<512x512xbf16, #tpu.memory_space<vmem>>, vector<512x512xbf16>
    %cst = arith.constant dense<0.000000e+00> : vector<16x512xf32>
    %2 = tpu.matmul %0, %1, %cst {dimension_numbers = #tpu.dot_dimension_numbers<[1], [0], [0], [1], [0, 0, 1, 1], [], []>} : vector<16x512xbf16>, vector<512x512xbf16>, vector<16x512xf32> -> vector<16x512xf32>
    %c0_3 = arith.constant 0 : index
    %c0_4 = arith.constant 0 : index
    %3 = vector.load %arg3[%c0_3, %c0_4] : memref<1x512xf32, #tpu.memory_space<vmem>>, vector<1x512xf32>
    %4 = vector.broadcast %3 : vector<1x512xf32> to vector<16x512xf32>
    %5 = arith.addf %2, %4 : vector<16x512xf32>
    %cst_5 = arith.constant 0.000000e+00 : f32
    %6 = vector.broadcast %cst_5 : f32 to vector<16x512xf32>
    %7 = arith.maximumf %5, %6 : vector<16x512xf32>
    %8 = arith.truncf %7 : vector<16x512xf32> to vector<16x512xbf16>
    %c0_6 = arith.constant 0 : index
    %c0_7 = arith.constant 0 : index
    %9 = vector.load %arg4[%c0_6, %c0_7] : memref<512x512xbf16, #tpu.memory_space<vmem>>, vector<512x512xbf16>
    %cst_8 = arith.constant dense<0.000000e+00> : vector<16x512xf32>
    %10 = tpu.matmul %8, %9, %cst_8 {dimension_numbers = #tpu.dot_dimension_numbers<[1], [0], [0], [1], [0, 0, 1, 1], [], []>} : vector<16x512xbf16>, vector<512x512xbf16>, vector<16x512xf32> -> vector<16x512xf32>
    %c0_9 = arith.constant 0 : index
    %c0_10 = arith.constant 0 : index
    %11 = vector.load %arg5[%c0_9, %c0_10] : memref<1x512xf32, #tpu.memory_space<vmem>>, vector<1x512xf32>
    %12 = vector.broadcast %11 : vector<1x512xf32> to vector<16x512xf32>
    %13 = arith.addf %10, %12 : vector<16x512xf32>
    %c0_11 = arith.constant 0 : index
    %c0_12 = arith.constant 0 : index
    %14 = vector.load %arg6[%c0_11, %c0_12] : memref<16x512xbf16, #tpu.memory_space<vmem>>, vector<16x512xbf16>
    %15 = arith.extf %14 : vector<16x512xbf16> to vector<16x512xf32>
    %16 = arith.addf %13, %15 : vector<16x512xf32>
    %cst_13 = arith.constant 0.000000e+00 : f32
    %17 = vector.broadcast %cst_13 : f32 to vector<16x512xf32>
    %18 = arith.maximumf %16, %17 : vector<16x512xf32>
    %19 = arith.truncf %18 : vector<16x512xf32> to vector<16x512xbf16>
    %c0_14 = arith.constant 0 : index
    %c0_15 = arith.constant 0 : index
    %20 = vector.load %arg7[%c0_14, %c0_15] : memref<16x512xbf16, #tpu.memory_space<vmem>>, vector<16x512xbf16>
    tpu.vector_store %arg7[%c0_14, %c0_15], %19 {strides = array<i32>} : memref<16x512xbf16, #tpu.memory_space<vmem>>, vector<16x512xbf16>,
    return
  }
  func.func @transform_0(%arg0: i32) -> (i32, i32) {
    %c0_i32 = arith.constant 0 : i32
    %c0_i32_0 = arith.constant 0 : i32
    %c0_i32_1 = arith.constant 0 : i32
    return %c0_i32, %c0_i32_0 : i32, i32
  }
  func.func @transform_1(%arg0: i32) -> (i32, i32) {
    %c0_i32 = arith.constant 0 : i32
    %c0_i32_0 = arith.constant 0 : i32
    %c0_i32_1 = arith.constant 0 : i32
    return %c0_i32, %c0_i32_0 : i32, i32
  }
  func.func @transform_2(%arg0: i32) -> (i32, i32) {
    %c0_i32 = arith.constant 0 : i32
    %c0_i32_0 = arith.constant 0 : i32
    %c0_i32_1 = arith.constant 0 : i32
    return %c0_i32, %c0_i32_0 : i32, i32
  }
  func.func @transform_3(%arg0: i32) -> (i32, i32) {
    %c0_i32 = arith.constant 0 : i32
    %c0_i32_0 = arith.constant 0 : i32
    %c0_i32_1 = arith.constant 0 : i32
    return %c0_i32, %c0_i32_0 : i32, i32
  }
  func.func @transform_4(%arg0: i32) -> (i32, i32) {
    %c0_i32 = arith.constant 0 : i32
    %c0_i32_0 = arith.constant 0 : i32
    %c0_i32_1 = arith.constant 0 : i32
    return %c0_i32, %c0_i32_0 : i32, i32
  }
  func.func @transform_5(%arg0: i32) -> (i32, i32) {
    %c0_i32 = arith.constant 0 : i32
    %c0_i32_0 = arith.constant 0 : i32
    %c0_i32_1 = arith.constant 0 : i32
    return %c0_i32, %c0_i32_0 : i32, i32
  }
  func.func @transform_6(%arg0: i32) -> (i32, i32) {
    %c0_i32 = arith.constant 0 : i32
    %c0_i32_0 = arith.constant 0 : i32
    %c0_i32_1 = arith.constant 0 : i32
    return %c0_i32, %c0_i32_0 : i32, i32
  }
}

module attributes {stable_mosaic.version = 11 : i64} {
  func.func @_tail_kernel(%arg0: i32, %arg1: memref<8x512xf32, #tpu.memory_space<vmem>>, %arg2: memref<1x512xf32, #tpu.memory_space<vmem>>, %arg3: memref<1x512xf32, #tpu.memory_space<vmem>>, %arg4: memref<512x128xbf16, #tpu.memory_space<vmem>>, %arg5: memref<1x128xf32, #tpu.memory_space<vmem>>, %arg6: memref<128x128xbf16, #tpu.memory_space<vmem>>, %arg7: memref<8x128xf32, #tpu.memory_space<vmem>>) attributes {dimension_semantics = [#tpu.dimension_semantics<arbitrary>], iteration_bounds = array<i64: 1>, scalar_prefetch = 0 : i64, scratch_operands = 0 : i64, tpu.core_type = #tpu.core_type<tc>, window_params = [{pipeline_mode = #tpu.pipeline_mode<synchronous>, transform_indices = @transform_0, window_bounds = array<i64: 8, 512>}, {pipeline_mode = #tpu.pipeline_mode<synchronous>, transform_indices = @transform_1, window_bounds = array<i64: 1, 512>}, {pipeline_mode = #tpu.pipeline_mode<synchronous>, transform_indices = @transform_2, window_bounds = array<i64: 1, 512>}, {pipeline_mode = #tpu.pipeline_mode<synchronous>, transform_indices = @transform_3, window_bounds = array<i64: 512, 128>}, {pipeline_mode = #tpu.pipeline_mode<synchronous>, transform_indices = @transform_4, window_bounds = array<i64: 1, 128>}, {pipeline_mode = #tpu.pipeline_mode<synchronous>, transform_indices = @transform_5, window_bounds = array<i64: 128, 128>}, {pipeline_mode = #tpu.pipeline_mode<synchronous>, transform_indices = @transform_6, window_bounds = array<i64: 8, 128>}]} {
    %c0 = arith.constant 0 : index
    %c0_0 = arith.constant 0 : index
    %0 = vector.load %arg1[%c0, %c0_0] : memref<8x512xf32, #tpu.memory_space<vmem>>, vector<8x512xf32>
    %c0_1 = arith.constant 0 : index
    %c0_2 = arith.constant 0 : index
    %1 = vector.load %arg2[%c0_1, %c0_2] : memref<1x512xf32, #tpu.memory_space<vmem>>, vector<1x512xf32>
    %2 = vector.broadcast %1 : vector<1x512xf32> to vector<8x512xf32>
    %3 = arith.mulf %0, %2 : vector<8x512xf32>
    %c0_3 = arith.constant 0 : index
    %c0_4 = arith.constant 0 : index
    %4 = vector.load %arg3[%c0_3, %c0_4] : memref<1x512xf32, #tpu.memory_space<vmem>>, vector<1x512xf32>
    %5 = vector.broadcast %4 : vector<1x512xf32> to vector<8x512xf32>
    %6 = arith.addf %3, %5 : vector<8x512xf32>
    %cst = arith.constant 0.000000e+00 : f32
    %7 = vector.broadcast %cst : f32 to vector<8x512xf32>
    %8 = arith.maximumf %6, %7 : vector<8x512xf32>
    %9 = arith.truncf %8 : vector<8x512xf32> to vector<8x512xbf16>
    %c0_5 = arith.constant 0 : index
    %c0_6 = arith.constant 0 : index
    %10 = vector.load %arg4[%c0_5, %c0_6] : memref<512x128xbf16, #tpu.memory_space<vmem>>, vector<512x128xbf16>
    %cst_7 = arith.constant dense<0.000000e+00> : vector<8x128xf32>
    %11 = tpu.matmul %9, %10, %cst_7 {dimension_numbers = #tpu.dot_dimension_numbers<[1], [0], [0], [1], [0, 0, 1, 1], [], []>} : vector<8x512xbf16>, vector<512x128xbf16>, vector<8x128xf32> -> vector<8x128xf32>
    %c0_8 = arith.constant 0 : index
    %c0_9 = arith.constant 0 : index
    %12 = vector.load %arg5[%c0_8, %c0_9] : memref<1x128xf32, #tpu.memory_space<vmem>>, vector<1x128xf32>
    %13 = vector.broadcast %12 : vector<1x128xf32> to vector<8x128xf32>
    %14 = arith.addf %11, %13 : vector<8x128xf32>
    %15 = arith.mulf %14, %14 : vector<8x128xf32>
    %cst_10 = arith.constant dense<0.000000e+00> : vector<8xf32>
    %16 = vector.multi_reduction <add>, %15, %cst_10 [1] : vector<8x128xf32> to vector<8xf32>
    %17 = vector.shape_cast %16 : vector<8xf32> to vector<8x1xf32>
    %cst_11 = arith.constant 1.000000e-24 : f32
    %18 = vector.broadcast %cst_11 : f32 to vector<8x1xf32>
    %19 = arith.maximumf %17, %18 : vector<8x1xf32>
    %20 = math.rsqrt %19 : vector<8x1xf32>
    %21 = vector.broadcast %20 : vector<8x1xf32> to vector<8x128xf32>
    %22 = arith.mulf %14, %21 : vector<8x128xf32>
    %23 = arith.truncf %22 : vector<8x128xf32> to vector<8x128xbf16>
    %c0_12 = arith.constant 0 : index
    %c0_13 = arith.constant 0 : index
    %24 = vector.load %arg6[%c0_12, %c0_13] : memref<128x128xbf16, #tpu.memory_space<vmem>>, vector<128x128xbf16>
    %cst_14 = arith.constant dense<0.000000e+00> : vector<8x128xf32>
    %25 = tpu.matmul %23, %24, %cst_14 {dimension_numbers = #tpu.dot_dimension_numbers<[1], [0], [0], [1], [0, 0, 1, 1], [], []>} : vector<8x128xbf16>, vector<128x128xbf16>, vector<8x128xf32> -> vector<8x128xf32>
    %c0_15 = arith.constant 0 : index
    %c0_16 = arith.constant 0 : index
    %26 = vector.load %arg7[%c0_15, %c0_16] : memref<8x128xf32, #tpu.memory_space<vmem>>, vector<8x128xf32>
    tpu.vector_store %arg7[%c0_15, %c0_16], %25 {strides = array<i32>} : memref<8x128xf32, #tpu.memory_space<vmem>>, vector<8x128xf32>,
    return
  }
  func.func @transform_0(%arg0: i32) -> (i32, i32) {
    %c0_i32 = arith.constant 0 : i32
    %c0_i32_0 = arith.constant 0 : i32
    %c0_i32_1 = arith.constant 0 : i32
    return %c0_i32, %c0_i32_0 : i32, i32
  }
  func.func @transform_1(%arg0: i32) -> (i32, i32) {
    %c0_i32 = arith.constant 0 : i32
    %c0_i32_0 = arith.constant 0 : i32
    %c0_i32_1 = arith.constant 0 : i32
    return %c0_i32, %c0_i32_0 : i32, i32
  }
  func.func @transform_2(%arg0: i32) -> (i32, i32) {
    %c0_i32 = arith.constant 0 : i32
    %c0_i32_0 = arith.constant 0 : i32
    %c0_i32_1 = arith.constant 0 : i32
    return %c0_i32, %c0_i32_0 : i32, i32
  }
  func.func @transform_3(%arg0: i32) -> (i32, i32) {
    %c0_i32 = arith.constant 0 : i32
    %c0_i32_0 = arith.constant 0 : i32
    %c0_i32_1 = arith.constant 0 : i32
    return %c0_i32, %c0_i32_0 : i32, i32
  }
  func.func @transform_4(%arg0: i32) -> (i32, i32) {
    %c0_i32 = arith.constant 0 : i32
    %c0_i32_0 = arith.constant 0 : i32
    %c0_i32_1 = arith.constant 0 : i32
    return %c0_i32, %c0_i32_0 : i32, i32
  }
  func.func @transform_5(%arg0: i32) -> (i32, i32) {
    %c0_i32 = arith.constant 0 : i32
    %c0_i32_0 = arith.constant 0 : i32
    %c0_i32_1 = arith.constant 0 : i32
    return %c0_i32, %c0_i32_0 : i32, i32
  }
  func.func @transform_6(%arg0: i32) -> (i32, i32) {
    %c0_i32 = arith.constant 0 : i32
    %c0_i32_0 = arith.constant 0 : i32
    %c0_i32_1 = arith.constant 0 : i32
    return %c0_i32, %c0_i32_0 : i32, i32
  }
}

</mosaic_0001>

<llo_original>
// kernel: _lambda_.26
$region0: #{_lambda_.26}
  #allocation0 [shape = 'u32[]', space=smem, size = 0x4, offset = 0x4, fixed_abs, tag = 'smem constant byte address 0x4 - core index']
  #allocation1 [shape = 'u32[144,128]{1,0:T(1,128)}', space=vmem, size = 0x12000, scoped, tag = 'internal scratch']
  %s0 = inlined_call_operand.vmem [shape: bf16[128,384], index: 0, kind: input, shape index: {}]
  %s1 = inlined_call_operand.vmem [shape: bf16[384,128], index: 1, kind: input, shape index: {}]
  %s2 = inlined_call_operand.vmem [shape: f32[1,128], index: 2, kind: input, shape index: {}]
  %s3 = inlined_call_operand.vmem [shape: bf16[128,128], index: 3, kind: output, shape index: {}]
  %s4 = sld [smem:[#allocation0]]
  $region22: #{_lambda_.26} parent=0
    _
  %s6 = ssub.s32 1, %s4
  %s7 = scalar_select 0, %s6, %s4
  // Predicated region
  $region2: #{_lambda_.26} parent=0 // pred_check
    _
  $region3: #{_lambda_.26} parent=0 // pred_check_branch
    %9 = sbr.rel (0) target = $region5
  $region4: #{_lambda_.26} parent=0 // pred_region
    _
  $region5: #{_lambda_.26} parent=0 // pred_fallthru
    _
  // Predicated region
  $region6: #{_lambda_.26} parent=0 // pred_check
    _
  $region7: #{_lambda_.26} parent=0 // pred_check_branch
    %11 = sbr.rel (0) target = $region9
  $region8: #{_lambda_.26} parent=0 // pred_region
    _
  $region9: #{_lambda_.26} parent=0 // pred_fallthru
    _
  // Predicated region
  $region10: #{_lambda_.26} parent=0 // pred_check
    _
  $region11: #{_lambda_.26} parent=0 // pred_check_branch
    %13 = sbr.rel (0) target = $region13
  $region12: #{_lambda_.26} parent=0 // pred_region
    _
  $region13: #{_lambda_.26} parent=0 // pred_fallthru
    _
  %v15 = vld [vmem:[%s0] sm:$0xff]
  %v16 = vld [vmem:[%s0 + $0x8] sm:$0xf]
  %v17 = vld [vmem:[%s0 + $0xc] sm:$0xff]
  %v18 = vld [vmem:[%s0 + $0x14] sm:$0xf]
  %v19 = vld [vmem:[%s0 + $0x18] sm:$0xff]
  %v20 = vld [vmem:[%s0 + $0x20] sm:$0xf]
  %v21 = vld [vmem:[%s0 + $0x24] sm:$0xff]
  %v22 = vld [vmem:[%s0 + $0x2c] sm:$0xf]
  %v23 = vld [vmem:[%s0 + $0x30] sm:$0xff]
  %v24 = vld [vmem:[%s0 + $0x38] sm:$0xf]
  %v25 = vld [vmem:[%s0 + $0x3c] sm:$0xff]
  %v26 = vld [vmem:[%s0 + $0x44] sm:$0xf]
  %v27 = vld [vmem:[%s0 + $0x48] sm:$0xff]
  %v28 = vld [vmem:[%s0 + $0x50] sm:$0xf]
  %v29 = vld [vmem:[%s0 + $0x54] sm:$0xff]
  %v30 = vld [vmem:[%s0 + $0x5c] sm:$0xf]
  %v31 = vld [vmem:[%s0 + $0x60] sm:$0xff]
  %v32 = vld [vmem:[%s0 + $0x68] sm:$0xf]
  %v33 = vld [vmem:[%s0 + $0x6c] sm:$0xff]
  %v34 = vld [vmem:[%s0 + $0x74] sm:$0xf]
  %v35 = vld [vmem:[%s0 + $0x78] sm:$0xff]
  %v36 = vld [vmem:[%s0 + $0x80] sm:$0xf]
  %v37 = vld [vmem:[%s0 + $0x84] sm:$0xff]
  %v38 = vld [vmem:[%s0 + $0x8c] sm:$0xf]
  %v39 = vld [vmem:[%s0 + $0x90] sm:$0xff]
  %v40 = vld [vmem:[%s0 + $0x98] sm:$0xf]
  %v41 = vld [vmem:[%s0 + $0x9c] sm:$0xff]
  %v42 = vld [vmem:[%s0 + $0xa4] sm:$0xf]
  %v43 = vld [vmem:[%s0 + $0xa8] sm:$0xff]
  %v44 = vld [vmem:[%s0 + $0xb0] sm:$0xf]
  %v45 = vld [vmem:[%s0 + $0xb4] sm:$0xff]
  %v46 = vld [vmem:[%s0 + $0xbc] sm:$0xf]
  %v47 = vld [vmem:[%s1] sm:$0xf]
  %v48 = vld [vmem:[%s1 + $0x4] sm:$0xf]
  %v49 = vld [vmem:[%s1 + $0x8] sm:$0xf]
  %v50 = vld [vmem:[%s1 + $0xc] sm:$0xf]
  %v51 = vld [vmem:[%s1 + $0x10] sm:$0xf]
  %v52 = vld [vmem:[%s1 + $0x14] sm:$0xf]
  %v53 = vld [vmem:[%s1 + $0x18] sm:$0xf]
  %v54 = vld [vmem:[%s1 + $0x1c] sm:$0xf]
  %v55 = vld [vmem:[%s1 + $0x20] sm:$0xf]
  %v56 = vld [vmem:[%s1 + $0x24] sm:$0xf]
  %v57 = vld [vmem:[%s1 + $0x28] sm:$0xf]
  %v58 = vld [vmem:[%s1 + $0x2c] sm:$0xf]
  %v59 = vld [vmem:[%s1 + $0x30] sm:$0xf]
  %v60 = vld [vmem:[%s1 + $0x34] sm:$0xf]
  %v61 = vld [vmem:[%s1 + $0x38] sm:$0xf]
  %v62 = vld [vmem:[%s1 + $0x3c] sm:$0xf]
  %v63 = vld [vmem:[%s1 + $0x40] sm:$0xf]
  %v64 = vld [vmem:[%s1 + $0x44] sm:$0xf]
  %v65 = vld [vmem:[%s1 + $0x48] sm:$0xf]
  %v66 = vld [vmem:[%s1 + $0x4c] sm:$0xf]
  %v67 = vld [vmem:[%s1 + $0x50] sm:$0xf]
  %v68 = vld [vmem:[%s1 + $0x54] sm:$0xf]
  %v69 = vld [vmem:[%s1 + $0x58] sm:$0xf]
  %v70 = vld [vmem:[%s1 + $0x5c] sm:$0xf]
  %v71 = vld [vmem:[%s1 + $0x60] sm:$0xf]
  %v72 = vld [vmem:[%s1 + $0x64] sm:$0xf]
  %v73 = vld [vmem:[%s1 + $0x68] sm:$0xf]
  %v74 = vld [vmem:[%s1 + $0x6c] sm:$0xf]
  %v75 = vld [vmem:[%s1 + $0x70] sm:$0xf]
  %v76 = vld [vmem:[%s1 + $0x74] sm:$0xf]
  %v77 = vld [vmem:[%s1 + $0x78] sm:$0xf]
  %v78 = vld [vmem:[%s1 + $0x7c] sm:$0xf]
  %v79 = vld [vmem:[%s1 + $0x80] sm:$0xf]
  %v80 = vld [vmem:[%s1 + $0x84] sm:$0xf]
  %v81 = vld [vmem:[%s1 + $0x88] sm:$0xf]
  %v82 = vld [vmem:[%s1 + $0x8c] sm:$0xf]
  %v83 = vld [vmem:[%s1 + $0x90] sm:$0xf]
  %v84 = vld [vmem:[%s1 + $0x94] sm:$0xf]
  %v85 = vld [vmem:[%s1 + $0x98] sm:$0xf]
  %v86 = vld [vmem:[%s1 + $0x9c] sm:$0xf]
  %v87 = vld [vmem:[%s1 + $0xa0] sm:$0xf]
  %v88 = vld [vmem:[%s1 + $0xa4] sm:$0xf]
  %v89 = vld [vmem:[%s1 + $0xa8] sm:$0xf]
  %v90 = vld [vmem:[%s1 + $0xac] sm:$0xf]
  %v91 = vld [vmem:[%s1 + $0xb0] sm:$0xf]
  %v92 = vld [vmem:[%s1 + $0xb4] sm:$0xf]
  %v93 = vld [vmem:[%s1 + $0xb8] sm:$0xf]
  %v94 = vld [vmem:[%s1 + $0xbc] sm:$0xf]
  %v95 = vld [vmem:[%s2] sm:$0x1]
  %v97 = vlaneseq
  %v98 = vshrl.u32 %v97, 7
  %v99 = vsub.s32 0, %v98
  %v100 = vrot.slane %v95, %v99
  %v134 = vunpack.c.l.b16 %v15
  %v135 = vunpack.c.h.b16 %v15
  %v136 = vunpack.c.l.b16 %v16
  %v137 = vunpack.c.l.b16 %v17
  %v138 = vunpack.c.h.b16 %v17
  %v139 = vunpack.c.l.b16 %v18
  %v140 = vunpack.c.l.b16 %v19
  %v141 = vunpack.c.h.b16 %v19
  %v142 = vunpack.c.l.b16 %v20
  %v143 = vunpack.c.l.b16 %v21
  %v144 = vunpack.c.h.b16 %v21
  %v145 = vunpack.c.l.b16 %v22
  %v146 = vunpack.c.l.b16 %v23
  %v147 = vunpack.c.h.b16 %v23
  %v148 = vunpack.c.l.b16 %v24
  %v149 = vunpack.c.l.b16 %v25
  %v150 = vunpack.c.h.b16 %v25
  %v151 = vunpack.c.l.b16 %v26
  %v152 = vunpack.c.l.b16 %v27
  %v153 = vunpack.c.h.b16 %v27
  %v154 = vunpack.c.l.b16 %v28
  %v155 = vunpack.c.l.b16 %v29
  %v156 = vunpack.c.h.b16 %v29
  %v157 = vunpack.c.l.b16 %v30
  %v158 = vunpack.c.l.b16 %v31
  %v159 = vunpack.c.h.b16 %v31
  %v160 = vunpack.c.l.b16 %v32
  %v161 = vunpack.c.l.b16 %v33
  %v162 = vunpack.c.h.b16 %v33
  %v163 = vunpack.c.l.b16 %v34
  %v164 = vunpack.c.l.b16 %v35
  %v165 = vunpack.c.h.b16 %v35
  %v166 = vunpack.c.l.b16 %v36
  %v167 = vunpack.c.l.b16 %v37
  %v168 = vunpack.c.h.b16 %v37
  %v169 = vunpack.c.l.b16 %v38
  %v170 = vunpack.c.l.b16 %v39
  %v171 = vunpack.c.h.b16 %v39
  %v172 = vunpack.c.l.b16 %v40
  %v173 = vunpack.c.l.b16 %v41
  %v174 = vunpack.c.h.b16 %v41
  %v175 = vunpack.c.l.b16 %v42
  %v176 = vunpack.c.l.b16 %v43
  %v177 = vunpack.c.h.b16 %v43
  %v178 = vunpack.c.l.b16 %v44
  %v179 = vunpack.c.l.b16 %v45
  %v180 = vunpack.c.h.b16 %v45
  %v181 = vunpack.c.l.b16 %v46
  %v182 = vpack.c.b16 %v137, %v134
  %v183 = vpack.c.b16 %v138, %v135
  %v184 = vpack.c.b16 %v139, %v136
  %v185 = vpack.c.b16 %v143, %v140
  %v186 = vpack.c.b16 %v144, %v141
  %v187 = vpack.c.b16 %v145, %v142
  %v188 = vpack.c.b16 %v149, %v146
  %v189 = vpack.c.b16 %v150, %v147
  %v190 = vpack.c.b16 %v151, %v148
  %v191 = vpack.c.b16 %v155, %v152
  %v192 = vpack.c.b16 %v156, %v153
  %v193 = vpack.c.b16 %v157, %v154
  %v194 = vpack.c.b16 %v161, %v158
  %v195 = vpack.c.b16 %v162, %v159
  %v196 = vpack.c.b16 %v163, %v160
  %v197 = vpack.c.b16 %v167, %v164
  %v198 = vpack.c.b16 %v168, %v165
  %v199 = vpack.c.b16 %v169, %v166
  %v200 = vpack.c.b16 %v173, %v170
  %v201 = vpack.c.b16 %v174, %v171
  %v202 = vpack.c.b16 %v175, %v172
  %v203 = vpack.c.b16 %v179, %v176
  %v204 = vpack.c.b16 %v180, %v177
  %v205 = vpack.c.b16 %v181, %v178
  %v278 = vunpack.c.l.b16 %v47
  %v279 = vunpack.c.l.b16 %v48
  %v280 = vunpack.c.l.b16 %v49
  %v281 = vunpack.c.l.b16 %v50
  %v282 = vunpack.c.l.b16 %v51
  %v283 = vunpack.c.l.b16 %v52
  %v284 = vunpack.c.l.b16 %v53
  %v285 = vunpack.c.l.b16 %v54
  %v286 = vunpack.c.l.b16 %v55
  %v287 = vunpack.c.l.b16 %v56
  %v288 = vunpack.c.l.b16 %v57
  %v289 = vunpack.c.l.b16 %v58
  %v290 = vunpack.c.l.b16 %v59
  %v291 = vunpack.c.l.b16 %v60
  %v292 = vunpack.c.l.b16 %v61
  %v293 = vunpack.c.l.b16 %v62
  %v294 = vunpack.c.l.b16 %v63
  %v295 = vunpack.c.l.b16 %v64
  %v296 = vunpack.c.l.b16 %v65
  %v297 = vunpack.c.l.b16 %v66
  %v298 = vunpack.c.l.b16 %v67
  %v299 = vunpack.c.l.b16 %v68
  %v300 = vunpack.c.l.b16 %v69
  %v301 = vunpack.c.l.b16 %v70
  %v302 = vunpack.c.l.b16 %v71
  %v303 = vunpack.c.l.b16 %v72
  %v304 = vunpack.c.l.b16 %v73
  %v305 = vunpack.c.l.b16 %v74
  %v306 = vunpack.c.l.b16 %v75
  %v307 = vunpack.c.l.b16 %v76
  %v308 = vunpack.c.l.b16 %v77
  %v309 = vunpack.c.l.b16 %v78
  %v310 = vunpack.c.l.b16 %v79
  %v311 = vunpack.c.l.b16 %v80
  %v312 = vunpack.c.l.b16 %v81
  %v313 = vunpack.c.l.b16 %v82
  %v314 = vunpack.c.l.b16 %v83
  %v315 = vunpack.c.l.b16 %v84
  %v316 = vunpack.c.l.b16 %v85
  %v317 = vunpack.c.l.b16 %v86
  %v318 = vunpack.c.l.b16 %v87
  %v319 = vunpack.c.l.b16 %v88
  %v320 = vunpack.c.l.b16 %v89
  %v321 = vunpack.c.l.b16 %v90
  %v322 = vunpack.c.l.b16 %v91
  %v323 = vunpack.c.l.b16 %v92
  %v324 = vunpack.c.l.b16 %v93
  %v325 = vunpack.c.l.b16 %v94
  %v326 = vpack.c.b16 %v279, %v278
  %v327 = vpack.c.b16 %v281, %v280
  %v328 = vpack.c.b16 %v283, %v282
  %v329 = vpack.c.b16 %v285, %v284
  %v330 = vpack.c.b16 %v287, %v286
  %v331 = vpack.c.b16 %v289, %v288
  %v332 = vpack.c.b16 %v291, %v290
  %v333 = vpack.c.b16 %v293, %v292
  %v334 = vpack.c.b16 %v295, %v294
  %v335 = vpack.c.b16 %v297, %v296
  %v336 = vpack.c.b16 %v299, %v298
  %v337 = vpack.c.b16 %v301, %v300
  %v338 = vpack.c.b16 %v303, %v302
  %v339 = vpack.c.b16 %v305, %v304
  %v340 = vpack.c.b16 %v307, %v306
  %v341 = vpack.c.b16 %v309, %v308
  %v342 = vpack.c.b16 %v311, %v310
  %v343 = vpack.c.b16 %v313, %v312
  %v344 = vpack.c.b16 %v315, %v314
  %v345 = vpack.c.b16 %v317, %v316
  %v346 = vpack.c.b16 %v319, %v318
  %v347 = vpack.c.b16 %v321, %v320
  %v348 = vpack.c.b16 %v323, %v322
  %v349 = vpack.c.b16 %v325, %v324
  %374 = vmatprep.subr.bf16.mxu0 0
  %375 = vmatpush1.bf16.msra.mxu0 %v326
  %376 = vmatprep.subr.bf16.mxu0 0
  %377 = vmatpush1.bf16.msra.mxu0 %v327
  %378 = vmatprep.subr.bf16.mxu0 0
  %379 = vmatpush1.bf16.msra.mxu0 %v328
  %380 = vmatprep.subr.bf16.mxu0 0
  %381 = vmatpush1.bf16.msra.mxu0 %v329
  %382 = vmatprep.subr.bf16.mxu0 0
  %383 = vmatpush1.bf16.msra.mxu0 %v330
  %384 = vmatprep.subr.bf16.mxu0 0
  %385 = vmatpush1.bf16.msra.mxu0 %v331
  %386 = vmatprep.subr.bf16.mxu0 0
  %387 = vmatpush1.bf16.msra.mxu0 %v332
  %388 = vmatprep.subr.bf16.mxu0 0
  %389 = vmatpush1.bf16.msra.mxu0 %v333
  %390 = vmatprep.subr.bf16.mxu0 0
  %391 = vmatpush1.bf16.msra.mxu0 %v334
  %392 = vmatprep.subr.bf16.mxu0 0
  %393 = vmatpush1.bf16.msra.mxu0 %v335
  %394 = vmatprep.subr.bf16.mxu0 0
  %395 = vmatpush1.bf16.msra.mxu0 %v336
  %396 = vmatprep.subr.bf16.mxu0 0
  %397 = vmatpush1.bf16.msra.mxu0 %v337
  %398 = vmatprep.subr.bf16.mxu0 0
  %399 = vmatpush1.bf16.msra.mxu0 %v338
  %400 = vmatprep.subr.bf16.mxu0 0
  %401 = vmatpush1.bf16.msra.mxu0 %v339
  %402 = vmatprep.subr.bf16.mxu0 0
  %403 = vmatpush1.bf16.msra.mxu0 %v340
  %404 = vmatprep.subr.bf16.mxu0 0
  %405 = vmatpush1.bf16.msra.mxu0 %v341
  %406 = vmatprep.mubr.bf16.mxu0 %v183
  %407 = vmatmul.mubr.bf16.gmra.mrb[0].mxu0 %v182
  %v408 = vpop.f32.mrb[0].mxu0
  %v409 = vadd.f32 %v100, %v408
  %v410 = vpop.f32.mrb[0].mxu0
  %v411 = vpop.f32.mrb[0].mxu0
  %v412 = vadd.f32 %v100, %v411
  %v413 = vpop.f32.mrb[0].mxu0
  %414 = vmatprep.mubr.bf16.mxu0 %v186
  %415 = vmatmul.mubr.bf16.gmra.mrb[0].mxu0 %v185
  %v416 = vpop.f32.mrb[0].mxu0
  %v417 = vadd.f32 %v100, %v416
  %v418 = vpop.f32.mrb[0].mxu0
  %v419 = vpop.f32.mrb[0].mxu0
  %v420 = vadd.f32 %v100, %v419
  %v421 = vpop.f32.mrb[0].mxu0
  %422 = vmatprep.mubr.bf16.mxu0 %v189
  %423 = vmatmul.mubr.bf16.gmra.mrb[0].mxu0 %v188
  %v424 = vpop.f32.mrb[0].mxu0
  %v425 = vadd.f32 %v100, %v424
  %v426 = vpop.f32.mrb[0].mxu0
  %v427 = vpop.f32.mrb[0].mxu0
  %v428 = vadd.f32 %v100, %v427
  %v429 = vpop.f32.mrb[0].mxu0
  %430 = vmatprep.mubr.bf16.mxu0 %v192
  %431 = vmatmul.mubr.bf16.gmra.mrb[0].mxu0 %v191
  %v432 = vpop.f32.mrb[0].mxu0
  %v433 = vadd.f32 %v100, %v432
  %v434 = vpop.f32.mrb[0].mxu0
  %v435 = vpop.f32.mrb[0].mxu0
  %v436 = vadd.f32 %v100, %v435
  %v437 = vpop.f32.mrb[0].mxu0
  %438 = vmatprep.mubr.bf16.mxu0 %v195
  %439 = vmatmul.mubr.bf16.gmra.mrb[0].mxu0 %v194
  %v440 = vpop.f32.mrb[0].mxu0
  %v441 = vadd.f32 %v100, %v440
  %v442 = vpop.f32.mrb[0].mxu0
  %v443 = vpop.f32.mrb[0].mxu0
  %v444 = vadd.f32 %v100, %v443
  %v445 = vpop.f32.mrb[0].mxu0
  %446 = vmatprep.mubr.bf16.mxu0 %v198
  %447 = vmatmul.mubr.bf16.gmra.mrb[0].mxu0 %v197
  %v448 = vpop.f32.mrb[0].mxu0
  %v449 = vadd.f32 %v100, %v448
  %v450 = vpop.f32.mrb[0].mxu0
  %v451 = vpop.f32.mrb[0].mxu0
  %v452 = vadd.f32 %v100, %v451
  %v453 = vpop.f32.mrb[0].mxu0
  %454 = vmatprep.mubr.bf16.mxu0 %v201
  %455 = vmatmul.mubr.bf16.gmra.mrb[0].mxu0 %v200
  %v456 = vpop.f32.mrb[0].mxu0
  %v457 = vadd.f32 %v100, %v456
  %v458 = vpop.f32.mrb[0].mxu0
  %v459 = vpop.f32.mrb[0].mxu0
  %v460 = vadd.f32 %v100, %v459
  %v461 = vpop.f32.mrb[0].mxu0
  %462 = vmatprep.mubr.bf16.mxu0 %v204
  %463 = vmatmul.mubr.bf16.gmra.mrb[0].mxu0 %v203
  %v464 = vpop.f32.mrb[0].mxu0
  %v465 = vadd.f32 %v100, %v464
  %v466 = vpop.f32.mrb[0].mxu0
  %v467 = vpop.f32.mrb[0].mxu0
  %v468 = vadd.f32 %v100, %v467
  %v469 = vpop.f32.mrb[0].mxu0
  %470 = vdwg.mxu0
  %471 = vmatprep.subr.bf16.mxu0 0
  %472 = vmatpush1.bf16.msra.mxu0 %v342
  %473 = vmatprep.subr.bf16.mxu0 0
  %474 = vmatpush1.bf16.msra.mxu0 %v343
  %475 = vmatprep.subr.bf16.mxu0 0
  %476 = vmatpush1.bf16.msra.mxu0 %v344
  %477 = vmatprep.subr.bf16.mxu0 0
  %478 = vmatpush1.bf16.msra.mxu0 %v345
  %479 = vmatprep.subr.bf16.mxu0 0
  %480 = vmatpush1.bf16.msra.mxu0 %v346
  %481 = vmatprep.subr.bf16.mxu0 0
  %482 = vmatpush1.bf16.msra.mxu0 %v347
  %483 = vmatprep.subr.bf16.mxu0 0
  %484 = vmatpush1.bf16.msra.mxu0 %v348
  %485 = vmatprep.subr.bf16.mxu0 0
  %486 = vmatpush1.bf16.msra.mxu0 %v349
  %487 = vmatprep.subr.bf16.mxu0 0
  %488 = vmatpush1.bf16.msra.mxu0 0
  %489 = vmatprep.subr.bf16.mxu0 0
  %490 = vmatpush1.bf16.msra.mxu0 0
  %491 = vmatprep.subr.bf16.mxu0 0
  %492 = vmatpush1.bf16.msra.mxu0 0
  %493 = vmatprep.subr.bf16.mxu0 0
  %494 = vmatpush1.bf16.msra.mxu0 0
  %495 = vmatprep.subr.bf16.mxu0 0
  %496 = vmatpush1.bf16.msra.mxu0 0
  %497 = vmatprep.subr.bf16.mxu0 0
  %498 = vmatpush1.bf16.msra.mxu0 0
  %499 = vmatprep.subr.bf16.mxu0 0
  %500 = vmatpush1.bf16.msra.mxu0 0
  %501 = vmatprep.subr.bf16.mxu0 0
  %502 = vmatpush1.bf16.msra.mxu0 0
  %503 = vmatprep.mubr.bf16.mxu0 0
  %504 = vmatmul.mubr.bf16.gmra.mrb[0].mxu0 %v184
  %v505 = vpop.f32.mrb[0].mxu0
  %v506 = vadd.f32 %v409, %v505
  %v507 = vpop.f32.mrb[0].mxu0
  %v508 = vpop.f32.mrb[0].mxu0
  %v509 = vadd.f32 %v412, %v508
  %v510 = vpop.f32.mrb[0].mxu0
  %511 = vmatprep.mubr.bf16.mxu0 0
  %512 = vmatmul.mubr.bf16.gmra.mrb[0].mxu0 %v187
  %v513 = vpop.f32.mrb[0].mxu0
  %v514 = vadd.f32 %v417, %v513
  %v515 = vpop.f32.mrb[0].mxu0
  %v516 = vpop.f32.mrb[0].mxu0
  %v517 = vadd.f32 %v420, %v516
  %v518 = vpop.f32.mrb[0].mxu0
  %519 = vmatprep.mubr.bf16.mxu0 0
  %520 = vmatmul.mubr.bf16.gmra.mrb[0].mxu0 %v190
  %v521 = vpop.f32.mrb[0].mxu0
  %v522 = vadd.f32 %v425, %v521
  %v523 = vpop.f32.mrb[0].mxu0
  %v524 = vpop.f32.mrb[0].mxu0
  %v525 = vadd.f32 %v428, %v524
  %v526 = vpop.f32.mrb[0].mxu0
  %527 = vmatprep.mubr.bf16.mxu0 0
  %528 = vmatmul.mubr.bf16.gmra.mrb[0].mxu0 %v193
  %v529 = vpop.f32.mrb[0].mxu0
  %v530 = vadd.f32 %v433, %v529
  %v531 = vpop.f32.mrb[0].mxu0
  %v532 = vpop.f32.mrb[0].mxu0
  %v533 = vadd.f32 %v436, %v532
  %v534 = vpop.f32.mrb[0].mxu0
  %535 = vmatprep.mubr.bf16.mxu0 0
  %536 = vmatmul.mubr.bf16.gmra.mrb[0].mxu0 %v196
  %v537 = vpop.f32.mrb[0].mxu0
  %v538 = vadd.f32 %v441, %v537
  %v539 = vpop.f32.mrb[0].mxu0
  %v540 = vpop.f32.mrb[0].mxu0
  %v541 = vadd.f32 %v444, %v540
  %v542 = vpop.f32.mrb[0].mxu0
  %543 = vmatprep.mubr.bf16.mxu0 0
  %544 = vmatmul.mubr.bf16.gmra.mrb[0].mxu0 %v199
  %v545 = vpop.f32.mrb[0].mxu0
  %v546 = vadd.f32 %v449, %v545
  %v547 = vpop.f32.mrb[0].mxu0
  %v548 = vpop.f32.mrb[0].mxu0
  %v549 = vadd.f32 %v452, %v548
  %v550 = vpop.f32.mrb[0].mxu0
  %551 = vmatprep.mubr.bf16.mxu0 0
  %552 = vmatmul.mubr.bf16.gmra.mrb[0].mxu0 %v202
  %v553 = vpop.f32.mrb[0].mxu0
  %v554 = vadd.f32 %v457, %v553
  %v555 = vpop.f32.mrb[0].mxu0
  %v556 = vpop.f32.mrb[0].mxu0
  %v557 = vadd.f32 %v460, %v556
  %v558 = vpop.f32.mrb[0].mxu0
  %559 = vmatprep.mubr.bf16.mxu0 0
  %560 = vmatmul.mubr.bf16.gmra.mrb[0].mxu0 %v205
  %v561 = vpop.f32.mrb[0].mxu0
  %v562 = vadd.f32 %v465, %v561
  %v563 = vpop.f32.mrb[0].mxu0
  %v564 = vpop.f32.mrb[0].mxu0
  %v565 = vadd.f32 %v468, %v564
  %v566 = vpop.f32.mrb[0].mxu0
  %567 = vdwg.mxu0
  %v568 = vmax.f32 %v506, 0.0
  %v569 = vmax.f32 %v509, 0.0
  %v570 = vmax.f32 %v514, 0.0
  %v571 = vmax.f32 %v517, 0.0
  %v572 = vmax.f32 %v522, 0.0
  %v573 = vmax.f32 %v525, 0.0
  %v574 = vmax.f32 %v530, 0.0
  %v575 = vmax.f32 %v533, 0.0
  %v576 = vmax.f32 %v538, 0.0
  %v577 = vmax.f32 %v541, 0.0
  %v578 = vmax.f32 %v546, 0.0
  %v579 = vmax.f32 %v549, 0.0
  %v580 = vmax.f32 %v554, 0.0
  %v581 = vmax.f32 %v557, 0.0
  %v582 = vmax.f32 %v562, 0.0
  %v583 = vmax.f32 %v565, 0.0
  %v584 = vpack.c.bf16 %v569, %v568
  %v585 = vpack.c.bf16 %v571, %v570
  %v586 = vpack.c.bf16 %v573, %v572
  %v587 = vpack.c.bf16 %v575, %v574
  %v588 = vpack.c.bf16 %v577, %v576
  %v589 = vpack.c.bf16 %v579, %v578
  %v590 = vpack.c.bf16 %v581, %v580
  %v591 = vpack.c.bf16 %v583, %v582
  %v600 = vunpack.c.l.b16 %v584
  %v601 = vunpack.c.h.b16 %v584
  %v602 = vunpack.c.l.b16 %v585
  %v603 = vunpack.c.h.b16 %v585
  %v604 = vunpack.c.l.b16 %v586
  %v605 = vunpack.c.h.b16 %v586
  %v606 = vunpack.c.l.b16 %v587
  %v607 = vunpack.c.h.b16 %v587
  %v608 = vunpack.c.l.b16 %v588
  %v609 = vunpack.c.h.b16 %v588
  %v610 = vunpack.c.l.b16 %v589
  %v611 = vunpack.c.h.b16 %v589
  %v612 = vunpack.c.l.b16 %v590
  %v613 = vunpack.c.h.b16 %v590
  %v614 = vunpack.c.l.b16 %v591
  %v615 = vunpack.c.h.b16 %v591
  %v616 = vpack.c.b16 %v600, %v600
  %v617 = vpack.c.b16 %v601, %v601
  %v618 = vpack.c.b16 %v602, %v602
  %v619 = vpack.c.b16 %v603, %v603
  %v620 = vpack.c.b16 %v604, %v604
  %v621 = vpack.c.b16 %v605, %v605
  %v622 = vpack.c.b16 %v606, %v606
  %v623 = vpack.c.b16 %v607, %v607
  %v624 = vpack.c.b16 %v608, %v608
  %v625 = vpack.c.b16 %v609, %v609
  %v626 = vpack.c.b16 %v610, %v610
  %v627 = vpack.c.b16 %v611, %v611
  %v628 = vpack.c.b16 %v612, %v612
  %v629 = vpack.c.b16 %v613, %v613
  %v630 = vpack.c.b16 %v614, %v614
  %v631 = vpack.c.b16 %v615, %v615
  %648 = vst [vmem:[%s3] sm:$0xf] %v616
  %649 = vst [vmem:[%s3 + $0x4] sm:$0xf] %v617
  %650 = vst [vmem:[%s3 + $0x8] sm:$0xf] %v618
  %651 = vst [vmem:[%s3 + $0xc] sm:$0xf] %v619
  %652 = vst [vmem:[%s3 + $0x10] sm:$0xf] %v620
  %653 = vst [vmem:[%s3 + $0x14] sm:$0xf] %v621
  %654 = vst [vmem:[%s3 + $0x18] sm:$0xf] %v622
  %655 = vst [vmem:[%s3 + $0x1c] sm:$0xf] %v623
  %656 = vst [vmem:[%s3 + $0x20] sm:$0xf] %v624
  %657 = vst [vmem:[%s3 + $0x24] sm:$0xf] %v625
  %658 = vst [vmem:[%s3 + $0x28] sm:$0xf] %v626
  %659 = vst [vmem:[%s3 + $0x2c] sm:$0xf] %v627
  %660 = vst [vmem:[%s3 + $0x30] sm:$0xf] %v628
  %661 = vst [vmem:[%s3 + $0x34] sm:$0xf] %v629
  %662 = vst [vmem:[%s3 + $0x38] sm:$0xf] %v630
  %663 = vst [vmem:[%s3 + $0x3c] sm:$0xf] %v631
  // Predicated region
  $region14: #{_lambda_.26} parent=0 // pred_check
    _
  $region15: #{_lambda_.26} parent=0 // pred_check_branch
    %665 = sbr.rel (0) target = $region17
  $region16: #{_lambda_.26} parent=0 // pred_region
    _
  $region17: #{_lambda_.26} parent=0 // pred_fallthru
    _
  // Predicated region
  $region18: #{_lambda_.26} parent=0 // pred_check
    _
  $region19: #{_lambda_.26} parent=0 // pred_check_branch
    %667 = sbr.rel (0) target = $region21
  $region20: #{_lambda_.26} parent=0 // pred_region
    _
  $region21: #{_lambda_.26} parent=0 // pred_fallthru
    _

// kernel: _lambda_.27
$region0: #{_lambda_.27}
  #allocation0 [shape = 'u32[]', space=smem, size = 0x4, offset = 0x4, fixed_abs, tag = 'smem constant byte address 0x4 - core index']
  #allocation1 [shape = 'u32[144,128]{1,0:T(1,128)}', space=vmem, size = 0x12000, scoped, tag = 'internal scratch']
  %s0 = inlined_call_operand.vmem [shape: bf16[32,640], index: 0, kind: input, shape index: {}]
  %s1 = inlined_call_operand.vmem [shape: bf16[640,128], index: 1, kind: input, shape index: {}]
  %s2 = inlined_call_operand.vmem [shape: f32[1,128], index: 2, kind: input, shape index: {}]
  %s3 = inlined_call_operand.vmem [shape: bf16[32,128], index: 3, kind: output, shape index: {}]
  %s4 = sld [smem:[#allocation0]]
  $region22: #{_lambda_.27} parent=0
    _
  %s6 = ssub.s32 1, %s4
  %s7 = scalar_select 0, %s6, %s4
  // Predicated region
  $region2: #{_lambda_.27} parent=0 // pred_check
    _
  $region3: #{_lambda_.27} parent=0 // pred_check_branch
    %9 = sbr.rel (0) target = $region5
  $region4: #{_lambda_.27} parent=0 // pred_region
    _
  $region5: #{_lambda_.27} parent=0 // pred_fallthru
    _
  // Predicated region
  $region6: #{_lambda_.27} parent=0 // pred_check
    _
  $region7: #{_lambda_.27} parent=0 // pred_check_branch
    %11 = sbr.rel (0) target = $region9
  $region8: #{_lambda_.27} parent=0 // pred_region
    _
  $region9: #{_lambda_.27} parent=0 // pred_fallthru
    _
  // Predicated region
  $region10: #{_lambda_.27} parent=0 // pred_check
    _
  $region11: #{_lambda_.27} parent=0 // pred_check_branch
    %13 = sbr.rel (0) target = $region13
  $region12: #{_lambda_.27} parent=0 // pred_region
    _
  $region13: #{_lambda_.27} parent=0 // pred_fallthru
    _
  %v15 = vld [vmem:[%s0] sm:$0xff]
  %v16 = vld [vmem:[%s0 + $0x8] sm:$0xff]
  %v17 = vld [vmem:[%s0 + $0x10] sm:$0xf]
  %v18 = vld [vmem:[%s0 + $0x14] sm:$0xff]
  %v19 = vld [vmem:[%s0 + $0x1c] sm:$0xff]
  %v20 = vld [vmem:[%s0 + $0x24] sm:$0xf]
  %v21 = vld [vmem:[%s0 + $0x28] sm:$0xff]
  %v22 = vld [vmem:[%s0 + $0x30] sm:$0xff]
  %v23 = vld [vmem:[%s0 + $0x38] sm:$0xf]
  %v24 = vld [vmem:[%s0 + $0x3c] sm:$0xff]
  %v25 = vld [vmem:[%s0 + $0x44] sm:$0xff]
  %v26 = vld [vmem:[%s0 + $0x4c] sm:$0xf]
  %v27 = vld [vmem:[%s1] sm:$0xf]
  %v28 = vld [vmem:[%s1 + $0x4] sm:$0xf]
  %v29 = vld [vmem:[%s1 + $0x8] sm:$0xf]
  %v30 = vld [vmem:[%s1 + $0xc] sm:$0xf]
  %v31 = vld [vmem:[%s1 + $0x10] sm:$0xf]
  %v32 = vld [vmem:[%s1 + $0x14] sm:$0xf]
  %v33 = vld [vmem:[%s1 + $0x18] sm:$0xf]
  %v34 = vld [vmem:[%s1 + $0x1c] sm:$0xf]
  %v35 = vld [vmem:[%s1 + $0x20] sm:$0xf]
  %v36 = vld [vmem:[%s1 + $0x24] sm:$0xf]
  %v37 = vld [vmem:[%s1 + $0x28] sm:$0xf]
  %v38 = vld [vmem:[%s1 + $0x2c] sm:$0xf]
  %v39 = vld [vmem:[%s1 + $0x30] sm:$0xf]
  %v40 = vld [vmem:[%s1 + $0x34] sm:$0xf]
  %v41 = vld [vmem:[%s1 + $0x38] sm:$0xf]
  %v42 = vld [vmem:[%s1 + $0x3c] sm:$0xf]
  %v43 = vld [vmem:[%s1 + $0x40] sm:$0xf]
  %v44 = vld [vmem:[%s1 + $0x44] sm:$0xf]
  %v45 = vld [vmem:[%s1 + $0x48] sm:$0xf]
  %v46 = vld [vmem:[%s1 + $0x4c] sm:$0xf]
  %v47 = vld [vmem:[%s1 + $0x50] sm:$0xf]
  %v48 = vld [vmem:[%s1 + $0x54] sm:$0xf]
  %v49 = vld [vmem:[%s1 + $0x58] sm:$0xf]
  %v50 = vld [vmem:[%s1 + $0x5c] sm:$0xf]
  %v51 = vld [vmem:[%s1 + $0x60] sm:$0xf]
  %v52 = vld [vmem:[%s1 + $0x64] sm:$0xf]
  %v53 = vld [vmem:[%s1 + $0x68] sm:$0xf]
  %v54 = vld [vmem:[%s1 + $0x6c] sm:$0xf]
  %v55 = vld [vmem:[%s1 + $0x70] sm:$0xf]
  %v56 = vld [vmem:[%s1 + $0x74] sm:$0xf]
  %v57 = vld [vmem:[%s1 + $0x78] sm:$0xf]
  %v58 = vld [vmem:[%s1 + $0x7c] sm:$0xf]
  %v59 = vld [vmem:[%s1 + $0x80] sm:$0xf]
  %v60 = vld [vmem:[%s1 + $0x84] sm:$0xf]
  %v61 = vld [vmem:[%s1 + $0x88] sm:$0xf]
  %v62 = vld [vmem:[%s1 + $0x8c] sm:$0xf]
  %v63 = vld [vmem:[%s1 + $0x90] sm:$0xf]
  %v64 = vld [vmem:[%s1 + $0x94] sm:$0xf]
  %v65 = vld [vmem:[%s1 + $0x98] sm:$0xf]
  %v66 = vld [vmem:[%s1 + $0x9c] sm:$0xf]
  %v67 = vld [vmem:[%s1 + $0xa0] sm:$0xf]
  %v68 = vld [vmem:[%s1 + $0xa4] sm:$0xf]
  %v69 = vld [vmem:[%s1 + $0xa8] sm:$0xf]
  %v70 = vld [vmem:[%s1 + $0xac] sm:$0xf]
  %v71 = vld [vmem:[%s1 + $0xb0] sm:$0xf]
  %v72 = vld [vmem:[%s1 + $0xb4] sm:$0xf]
  %v73 = vld [vmem:[%s1 + $0xb8] sm:$0xf]
  %v74 = vld [vmem:[%s1 + $0xbc] sm:$0xf]
  %v75 = vld [vmem:[%s1 + $0xc0] sm:$0xf]
  %v76 = vld [vmem:[%s1 + $0xc4] sm:$0xf]
  %v77 = vld [vmem:[%s1 + $0xc8] sm:$0xf]
  %v78 = vld [vmem:[%s1 + $0xcc] sm:$0xf]
  %v79 = vld [vmem:[%s1 + $0xd0] sm:$0xf]
  %v80 = vld [vmem:[%s1 + $0xd4] sm:$0xf]
  %v81 = vld [vmem:[%s1 + $0xd8] sm:$0xf]
  %v82 = vld [vmem:[%s1 + $0xdc] sm:$0xf]
  %v83 = vld [vmem:[%s1 + $0xe0] sm:$0xf]
  %v84 = vld [vmem:[%s1 + $0xe4] sm:$0xf]
  %v85 = vld [vmem:[%s1 + $0xe8] sm:$0xf]
  %v86 = vld [vmem:[%s1 + $0xec] sm:$0xf]
  %v87 = vld [vmem:[%s1 + $0xf0] sm:$0xf]
  %v88 = vld [vmem:[%s1 + $0xf4] sm:$0xf]
  %v89 = vld [vmem:[%s1 + $0xf8] sm:$0xf]
  %v90 = vld [vmem:[%s1 + $0xfc] sm:$0xf]
  %v91 = vld [vmem:[%s1 + $0x100] sm:$0xf]
  %v92 = vld [vmem:[%s1 + $0x104] sm:$0xf]
  %v93 = vld [vmem:[%s1 + $0x108] sm:$0xf]
  %v94 = vld [vmem:[%s1 + $0x10c] sm:$0xf]
  %v95 = vld [vmem:[%s1 + $0x110] sm:$0xf]
  %v96 = vld [vmem:[%s1 + $0x114] sm:$0xf]
  %v97 = vld [vmem:[%s1 + $0x118] sm:$0xf]
  %v98 = vld [vmem:[%s1 + $0x11c] sm:$0xf]
  %v99 = vld [vmem:[%s1 + $0x120] sm:$0xf]
  %v100 = vld [vmem:[%s1 + $0x124] sm:$0xf]
  %v101 = vld [vmem:[%s1 + $0x128] sm:$0xf]
  %v102 = vld [vmem:[%s1 + $0x12c] sm:$0xf]
  %v103 = vld [vmem:[%s1 + $0x130] sm:$0xf]
  %v104 = vld [vmem:[%s1 + $0x134] sm:$0xf]
  %v105 = vld [vmem:[%s1 + $0x138] sm:$0xf]
  %v106 = vld [vmem:[%s1 + $0x13c] sm:$0xf]
  %v107 = vld [vmem:[%s2] sm:$0x1]
  %v109 = vlaneseq
  %v110 = vshrl.u32 %v109, 7
  %v111 = vsub.s32 0, %v110
  %v112 = vrot.slane %v107, %v111
  %v126 = vunpack.c.l.b16 %v15
  %v127 = vunpack.c.h.b16 %v15
  %v128 = vunpack.c.l.b16 %v16
  %v129 = vunpack.c.h.b16 %v16
  %v130 = vunpack.c.l.b16 %v17
  %v131 = vunpack.c.l.b16 %v18
  %v132 = vunpack.c.h.b16 %v18
  %v133 = vunpack.c.l.b16 %v19
  %v134 = vunpack.c.h.b16 %v19
  %v135 = vunpack.c.l.b16 %v20
  %v136 = vunpack.c.l.b16 %v21
  %v137 = vunpack.c.h.b16 %v21
  %v138 = vunpack.c.l.b16 %v22
  %v139 = vunpack.c.h.b16 %v22
  %v140 = vunpack.c.l.b16 %v23
  %v141 = vunpack.c.l.b16 %v24
  %v142 = vunpack.c.h.b16 %v24
  %v143 = vunpack.c.l.b16 %v25
  %v144 = vunpack.c.h.b16 %v25
  %v145 = vunpack.c.l.b16 %v26
  %v146 = vpack.c.b16 %v131, %v126
  %v147 = vpack.c.b16 %v132, %v127
  %v148 = vpack.c.b16 %v133, %v128
  %v149 = vpack.c.b16 %v134, %v129
  %v150 = vpack.c.b16 %v135, %v130
  %v151 = vpack.c.b16 %v141, %v136
  %v152 = vpack.c.b16 %v142, %v137
  %v153 = vpack.c.b16 %v143, %v138
  %v154 = vpack.c.b16 %v144, %v139
  %v155 = vpack.c.b16 %v145, %v140
  %v246 = vunpack.c.l.b16 %v27
  %v247 = vunpack.c.l.b16 %v28
  %v248 = vunpack.c.l.b16 %v29
  %v249 = vunpack.c.l.b16 %v30
  %v250 = vunpack.c.l.b16 %v31
  %v251 = vunpack.c.l.b16 %v32
  %v252 = vunpack.c.l.b16 %v33
  %v253 = vunpack.c.l.b16 %v34
  %v254 = vunpack.c.l.b16 %v35
  %v255 = vunpack.c.l.b16 %v36
  %v256 = vunpack.c.l.b16 %v37
  %v257 = vunpack.c.l.b16 %v38
  %v258 = vunpack.c.l.b16 %v39
  %v259 = vunpack.c.l.b16 %v40
  %v260 = vunpack.c.l.b16 %v41
  %v261 = vunpack.c.l.b16 %v42
  %v262 = vunpack.c.l.b16 %v43
  %v263 = vunpack.c.l.b16 %v44
  %v264 = vunpack.c.l.b16 %v45
  %v265 = vunpack.c.l.b16 %v46
  %v266 = vunpack.c.l.b16 %v47
  %v267 = vunpack.c.l.b16 %v48
  %v268 = vunpack.c.l.b16 %v49
  %v269 = vunpack.c.l.b16 %v50
  %v270 = vunpack.c.l.b16 %v51
  %v271 = vunpack.c.l.b16 %v52
  %v272 = vunpack.c.l.b16 %v53
  %v273 = vunpack.c.l.b16 %v54
  %v274 = vunpack.c.l.b16 %v55
  %v275 = vunpack.c.l.b16 %v56
  %v276 = vunpack.c.l.b16 %v57
  %v277 = vunpack.c.l.b16 %v58
  %v278 = vunpack.c.l.b16 %v59
  %v279 = vunpack.c.l.b16 %v60
  %v280 = vunpack.c.l.b16 %v61
  %v281 = vunpack.c.l.b16 %v62
  %v282 = vunpack.c.l.b16 %v63
  %v283 = vunpack.c.l.b16 %v64
  %v284 = vunpack.c.l.b16 %v65
  %v285 = vunpack.c.l.b16 %v66
  %v286 = vunpack.c.l.b16 %v67
  %v287 = vunpack.c.l.b16 %v68
  %v288 = vunpack.c.l.b16 %v69
  %v289 = vunpack.c.l.b16 %v70
  %v290 = vunpack.c.l.b16 %v71
  %v291 = vunpack.c.l.b16 %v72
  %v292 = vunpack.c.l.b16 %v73
  %v293 = vunpack.c.l.b16 %v74
  %v294 = vunpack.c.l.b16 %v75
  %v295 = vunpack.c.l.b16 %v76
  %v296 = vunpack.c.l.b16 %v77
  %v297 = vunpack.c.l.b16 %v78
  %v298 = vunpack.c.l.b16 %v79
  %v299 = vunpack.c.l.b16 %v80
  %v300 = vunpack.c.l.b16 %v81
  %v301 = vunpack.c.l.b16 %v82
  %v302 = vunpack.c.l.b16 %v83
  %v303 = vunpack.c.l.b16 %v84
  %v304 = vunpack.c.l.b16 %v85
  %v305 = vunpack.c.l.b16 %v86
  %v306 = vunpack.c.l.b16 %v87
  %v307 = vunpack.c.l.b16 %v88
  %v308 = vunpack.c.l.b16 %v89
  %v309 = vunpack.c.l.b16 %v90
  %v310 = vunpack.c.l.b16 %v91
  %v311 = vunpack.c.l.b16 %v92
  %v312 = vunpack.c.l.b16 %v93
  %v313 = vunpack.c.l.b16 %v94
  %v314 = vunpack.c.l.b16 %v95
  %v315 = vunpack.c.l.b16 %v96
  %v316 = vunpack.c.l.b16 %v97
  %v317 = vunpack.c.l.b16 %v98
  %v318 = vunpack.c.l.b16 %v99
  %v319 = vunpack.c.l.b16 %v100
  %v320 = vunpack.c.l.b16 %v101
  %v321 = vunpack.c.l.b16 %v102
  %v322 = vunpack.c.l.b16 %v103
  %v323 = vunpack.c.l.b16 %v104
  %v324 = vunpack.c.l.b16 %v105
  %v325 = vunpack.c.l.b16 %v106
  %v326 = vpack.c.b16 %v247, %v246
  %v327 = vpack.c.b16 %v249, %v248
  %v328 = vpack.c.b16 %v251, %v250
  %v329 = vpack.c.b16 %v253, %v252
  %v330 = vpack.c.b16 %v255, %v254
  %v331 = vpack.c.b16 %v257, %v256
  %v332 = vpack.c.b16 %v259, %v258
  %v333 = vpack.c.b16 %v261, %v260
  %v334 = vpack.c.b16 %v263, %v262
  %v335 = vpack.c.b16 %v265, %v264
  %v336 = vpack.c.b16 %v267, %v266
  %v337 = vpack.c.b16 %v269, %v268
  %v338 = vpack.c.b16 %v271, %v270
  %v339 = vpack.c.b16 %v273, %v272
  %v340 = vpack.c.b16 %v275, %v274
  %v341 = vpack.c.b16 %v277, %v276
  %v342 = vpack.c.b16 %v279, %v278
  %v343 = vpack.c.b16 %v281, %v280
  %v344 = vpack.c.b16 %v283, %v282
  %v345 = vpack.c.b16 %v285, %v284
  %v346 = vpack.c.b16 %v287, %v286
  %v347 = vpack.c.b16 %v289, %v288
  %v348 = vpack.c.b16 %v291, %v290
  %v349 = vpack.c.b16 %v293, %v292
  %v350 = vpack.c.b16 %v295, %v294
  %v351 = vpack.c.b16 %v297, %v296
  %v352 = vpack.c.b16 %v299, %v298
  %v353 = vpack.c.b16 %v301, %v300
  %v354 = vpack.c.b16 %v303, %v302
  %v355 = vpack.c.b16 %v305, %v304
  %v356 = vpack.c.b16 %v307, %v306
  %v357 = vpack.c.b16 %v309, %v308
  %v358 = vpack.c.b16 %v311, %v310
  %v359 = vpack.c.b16 %v313, %v312
  %v360 = vpack.c.b16 %v315, %v314
  %v361 = vpack.c.b16 %v317, %v316
  %v362 = vpack.c.b16 %v319, %v318
  %v363 = vpack.c.b16 %v321, %v320
  %v364 = vpack.c.b16 %v323, %v322
  %v365 = vpack.c.b16 %v325, %v324
  %406 = vmatprep.subr.bf16.mxu0 0
  %407 = vmatpush1.bf16.msra.mxu0 %v326
  %408 = vmatprep.subr.bf16.mxu0 0
  %409 = vmatpush1.bf16.msra.mxu0 %v327
  %410 = vmatprep.subr.bf16.mxu0 0
  %411 = vmatpush1.bf16.msra.mxu0 %v328
  %412 = vmatprep.subr.bf16.mxu0 0
  %413 = vmatpush1.bf16.msra.mxu0 %v329
  %414 = vmatprep.subr.bf16.mxu0 0
  %415 = vmatpush1.bf16.msra.mxu0 %v330
  %416 = vmatprep.subr.bf16.mxu0 0
  %417 = vmatpush1.bf16.msra.mxu0 %v331
  %418 = vmatprep.subr.bf16.mxu0 0
  %419 = vmatpush1.bf16.msra.mxu0 %v332
  %420 = vmatprep.subr.bf16.mxu0 0
  %421 = vmatpush1.bf16.msra.mxu0 %v333
  %422 = vmatprep.subr.bf16.mxu0 0
  %423 = vmatpush1.bf16.msra.mxu0 %v334
  %424 = vmatprep.subr.bf16.mxu0 0
  %425 = vmatpush1.bf16.msra.mxu0 %v335
  %426 = vmatprep.subr.bf16.mxu0 0
  %427 = vmatpush1.bf16.msra.mxu0 %v336
  %428 = vmatprep.subr.bf16.mxu0 0
  %429 = vmatpush1.bf16.msra.mxu0 %v337
  %430 = vmatprep.subr.bf16.mxu0 0
  %431 = vmatpush1.bf16.msra.mxu0 %v338
  %432 = vmatprep.subr.bf16.mxu0 0
  %433 = vmatpush1.bf16.msra.mxu0 %v339
  %434 = vmatprep.subr.bf16.mxu0 0
  %435 = vmatpush1.bf16.msra.mxu0 %v340
  %436 = vmatprep.subr.bf16.mxu0 0
  %437 = vmatpush1.bf16.msra.mxu0 %v341
  %438 = vmatprep.mubr.bf16.mxu0 %v147
  %439 = vmatmul.mubr.bf16.gmra.mrb[0].mxu0 %v146
  %v440 = vpop.f32.mrb[0].mxu0
  %v441 = vadd.f32 %v112, %v440
  %v442 = vpop.f32.mrb[0].mxu0
  %v443 = vpop.f32.mrb[0].mxu0
  %v444 = vadd.f32 %v112, %v443
  %v445 = vpop.f32.mrb[0].mxu0
  %446 = vmatprep.mubr.bf16.mxu0 %v152
  %447 = vmatmul.mubr.bf16.gmra.mrb[0].mxu0 %v151
  %v448 = vpop.f32.mrb[0].mxu0
  %v449 = vadd.f32 %v112, %v448
  %v450 = vpop.f32.mrb[0].mxu0
  %v451 = vpop.f32.mrb[0].mxu0
  %v452 = vadd.f32 %v112, %v451
  %v453 = vpop.f32.mrb[0].mxu0
  %454 = vdwg.mxu0
  %455 = vmatprep.subr.bf16.mxu0 0
  %456 = vmatpush1.bf16.msra.mxu0 %v342
  %457 = vmatprep.subr.bf16.mxu0 0
  %458 = vmatpush1.bf16.msra.mxu0 %v343
  %459 = vmatprep.subr.bf16.mxu0 0
  %460 = vmatpush1.bf16.msra.mxu0 %v344
  %461 = vmatprep.subr.bf16.mxu0 0
  %462 = vmatpush1.bf16.msra.mxu0 %v345
  %463 = vmatprep.subr.bf16.mxu0 0
  %464 = vmatpush1.bf16.msra.mxu0 %v346
  %465 = vmatprep.subr.bf16.mxu0 0
  %466 = vmatpush1.bf16.msra.mxu0 %v347
  %467 = vmatprep.subr.bf16.mxu0 0
  %468 = vmatpush1.bf16.msra.mxu0 %v348
  %469 = vmatprep.subr.bf16.mxu0 0
  %470 = vmatpush1.bf16.msra.mxu0 %v349
  %471 = vmatprep.subr.bf16.mxu0 0
  %472 = vmatpush1.bf16.msra.mxu0 %v350
  %473 = vmatprep.subr.bf16.mxu0 0
  %474 = vmatpush1.bf16.msra.mxu0 %v351
  %475 = vmatprep.subr.bf16.mxu0 0
  %476 = vmatpush1.bf16.msra.mxu0 %v352
  %477 = vmatprep.subr.bf16.mxu0 0
  %478 = vmatpush1.bf16.msra.mxu0 %v353
  %479 = vmatprep.subr.bf16.mxu0 0
  %480 = vmatpush1.bf16.msra.mxu0 %v354
  %481 = vmatprep.subr.bf16.mxu0 0
  %482 = vmatpush1.bf16.msra.mxu0 %v355
  %483 = vmatprep.subr.bf16.mxu0 0
  %484 = vmatpush1.bf16.msra.mxu0 %v356
  %485 = vmatprep.subr.bf16.mxu0 0
  %486 = vmatpush1.bf16.msra.mxu0 %v357
  %487 = vmatprep.mubr.bf16.mxu0 %v149
  %488 = vmatmul.mubr.bf16.gmra.mrb[0].mxu0 %v148
  %v489 = vpop.f32.mrb[0].mxu0
  %v490 = vadd.f32 %v441, %v489
  %v491 = vpop.f32.mrb[0].mxu0
  %v492 = vpop.f32.mrb[0].mxu0
  %v493 = vadd.f32 %v444, %v492
  %v494 = vpop.f32.mrb[0].mxu0
  %495 = vmatprep.mubr.bf16.mxu0 %v154
  %496 = vmatmul.mubr.bf16.gmra.mrb[0].mxu0 %v153
  %v497 = vpop.f32.mrb[0].mxu0
  %v498 = vadd.f32 %v449, %v497
  %v499 = vpop.f32.mrb[0].mxu0
  %v500 = vpop.f32.mrb[0].mxu0
  %v501 = vadd.f32 %v452, %v500
  %v502 = vpop.f32.mrb[0].mxu0
  %503 = vdwg.mxu0
  %504 = vmatprep.subr.bf16.mxu0 0
  %505 = vmatpush1.bf16.msra.mxu0 %v358
  %506 = vmatprep.subr.bf16.mxu0 0
  %507 = vmatpush1.bf16.msra.mxu0 %v359
  %508 = vmatprep.subr.bf16.mxu0 0
  %509 = vmatpush1.bf16.msra.mxu0 %v360
  %510 = vmatprep.subr.bf16.mxu0 0
  %511 = vmatpush1.bf16.msra.mxu0 %v361
  %512 = vmatprep.subr.bf16.mxu0 0
  %513 = vmatpush1.bf16.msra.mxu0 %v362
  %514 = vmatprep.subr.bf16.mxu0 0
  %515 = vmatpush1.bf16.msra.mxu0 %v363
  %516 = vmatprep.subr.bf16.mxu0 0
  %517 = vmatpush1.bf16.msra.mxu0 %v364
  %518 = vmatprep.subr.bf16.mxu0 0
  %519 = vmatpush1.bf16.msra.mxu0 %v365
  %520 = vmatprep.subr.bf16.mxu0 0
  %521 = vmatpush1.bf16.msra.mxu0 0
  %522 = vmatprep.subr.bf16.mxu0 0
  %523 = vmatpush1.bf16.msra.mxu0 0
  %524 = vmatprep.subr.bf16.mxu0 0
  %525 = vmatpush1.bf16.msra.mxu0 0
  %526 = vmatprep.subr.bf16.mxu0 0
  %527 = vmatpush1.bf16.msra.mxu0 0
  %528 = vmatprep.subr.bf16.mxu0 0
  %529 = vmatpush1.bf16.msra.mxu0 0
  %530 = vmatprep.subr.bf16.mxu0 0
  %531 = vmatpush1.bf16.msra.mxu0 0
  %532 = vmatprep.subr.bf16.mxu0 0
  %533 = vmatpush1.bf16.msra.mxu0 0
  %534 = vmatprep.subr.bf16.mxu0 0
  %535 = vmatpush1.bf16.msra.mxu0 0
  %536 = vmatprep.mubr.bf16.mxu0 0
  %537 = vmatmul.mubr.bf16.gmra.mrb[0].mxu0 %v150
  %v538 = vpop.f32.mrb[0].mxu0
  %v539 = vadd.f32 %v490, %v538
  %v540 = vpop.f32.mrb[0].mxu0
  %v541 = vpop.f32.mrb[0].mxu0
  %v542 = vadd.f32 %v493, %v541
  %v543 = vpop.f32.mrb[0].mxu0
  %544 = vmatprep.mubr.bf16.mxu0 0
  %545 = vmatmul.mubr.bf16.gmra.mrb[0].mxu0 %v155
  %v546 = vpop.f32.mrb[0].mxu0
  %v547 = vadd.f32 %v498, %v546
  %v548 = vpop.f32.mrb[0].mxu0
  %v549 = vpop.f32.mrb[0].mxu0
  %v550 = vadd.f32 %v501, %v549
  %v551 = vpop.f32.mrb[0].mxu0
  %552 = vdwg.mxu0
  %v553 = vmax.f32 %v539, 0.0
  %v554 = vmax.f32 %v542, 0.0
  %v555 = vmax.f32 %v547, 0.0
  %v556 = vmax.f32 %v550, 0.0
  %v557 = vpack.c.bf16 %v554, %v553
  %v558 = vpack.c.bf16 %v556, %v555
  %v561 = vunpack.c.l.b16 %v557
  %v562 = vunpack.c.h.b16 %v557
  %v563 = vunpack.c.l.b16 %v558
  %v564 = vunpack.c.h.b16 %v558
  %v565 = vpack.c.b16 %v561, %v561
  %v566 = vpack.c.b16 %v562, %v562
  %v567 = vpack.c.b16 %v563, %v563
  %v568 = vpack.c.b16 %v564, %v564
  %573 = vst [vmem:[%s3] sm:$0xf] %v565
  %574 = vst [vmem:[%s3 + $0x4] sm:$0xf] %v566
  %575 = vst [vmem:[%s3 + $0x8] sm:$0xf] %v567
  %576 = vst [vmem:[%s3 + $0xc] sm:$0xf] %v568
  // Predicated region
  $region14: #{_lambda_.27} parent=0 // pred_check
    _
  $region15: #{_lambda_.27} parent=0 // pred_check_branch
    %578 = sbr.rel (0) target = $region17
  $region16: #{_lambda_.27} parent=0 // pred_region
    _
  $region17: #{_lambda_.27} parent=0 // pred_fallthru
    _
  // Predicated region
  $region18: #{_lambda_.27} parent=0 // pred_check
    _
  $region19: #{_lambda_.27} parent=0 // pred_check_branch
    %580 = sbr.rel (0) target = $region21
  $region20: #{_lambda_.27} parent=0 // pred_region
    _
  $region21: #{_lambda_.27} parent=0 // pred_fallthru
    _

// kernel: _lambda_.28
$region0: #{_lambda_.28}
  #allocation0 [shape = 'u32[]', space=smem, size = 0x4, offset = 0x4, fixed_abs, tag = 'smem constant byte address 0x4 - core index']
  #allocation1 [shape = 'u32[144,128]{1,0:T(1,128)}', space=vmem, size = 0x12000, scoped, tag = 'internal scratch']
  %s0 = inlined_call_operand.vmem [shape: bf16[32,640], index: 0, kind: input, shape index: {}]
  %s1 = inlined_call_operand.vmem [shape: bf16[640,128], index: 1, kind: input, shape index: {}]
  %s2 = inlined_call_operand.vmem [shape: f32[1,128], index: 2, kind: input, shape index: {}]
  %s3 = inlined_call_operand.vmem [shape: bf16[32,128], index: 3, kind: input, shape index: {}]
  %s4 = inlined_call_operand.vmem [shape: bf16[32,128], index: 4, kind: output, shape index: {}]
  %s5 = sld [smem:[#allocation0]]
  $region26: #{_lambda_.28} parent=0
    _
  %s7 = ssub.s32 1, %s5
  %s8 = scalar_select 0, %s7, %s5
  // Predicated region
  $region2: #{_lambda_.28} parent=0 // pred_check
    _
  $region3: #{_lambda_.28} parent=0 // pred_check_branch
    %10 = sbr.rel (0) target = $region5
  $region4: #{_lambda_.28} parent=0 // pred_region
    _
  $region5: #{_lambda_.28} parent=0 // pred_fallthru
    _
  // Predicated region
  $region6: #{_lambda_.28} parent=0 // pred_check
    _
  $region7: #{_lambda_.28} parent=0 // pred_check_branch
    %12 = sbr.rel (0) target = $region9
  $region8: #{_lambda_.28} parent=0 // pred_region
    _
  $region9: #{_lambda_.28} parent=0 // pred_fallthru
    _
  // Predicated region
  $region10: #{_lambda_.28} parent=0 // pred_check
    _
  $region11: #{_lambda_.28} parent=0 // pred_check_branch
    %14 = sbr.rel (0) target = $region13
  $region12: #{_lambda_.28} parent=0 // pred_region
    _
  $region13: #{_lambda_.28} parent=0 // pred_fallthru
    _
  // Predicated region
  $region14: #{_lambda_.28} parent=0 // pred_check
    _
  $region15: #{_lambda_.28} parent=0 // pred_check_branch
    %16 = sbr.rel (0) target = $region17
  $region16: #{_lambda_.28} parent=0 // pred_region
    _
  $region17: #{_lambda_.28} parent=0 // pred_fallthru
    _
  %v18 = vld [vmem:[%s0] sm:$0xff]
  %v19 = vld [vmem:[%s0 + $0x8] sm:$0xff]
  %v20 = vld [vmem:[%s0 + $0x10] sm:$0xf]
  %v21 = vld [vmem:[%s0 + $0x14] sm:$0xff]
  %v22 = vld [vmem:[%s0 + $0x1c] sm:$0xff]
  %v23 = vld [vmem:[%s0 + $0x24] sm:$0xf]
  %v24 = vld [vmem:[%s0 + $0x28] sm:$0xff]
  %v25 = vld [vmem:[%s0 + $0x30] sm:$0xff]
  %v26 = vld [vmem:[%s0 + $0x38] sm:$0xf]
  %v27 = vld [vmem:[%s0 + $0x3c] sm:$0xff]
  %v28 = vld [vmem:[%s0 + $0x44] sm:$0xff]
  %v29 = vld [vmem:[%s0 + $0x4c] sm:$0xf]
  %v30 = vld [vmem:[%s1] sm:$0xf]
  %v31 = vld [vmem:[%s1 + $0x4] sm:$0xf]
  %v32 = vld [vmem:[%s1 + $0x8] sm:$0xf]
  %v33 = vld [vmem:[%s1 + $0xc] sm:$0xf]
  %v34 = vld [vmem:[%s1 + $0x10] sm:$0xf]
  %v35 = vld [vmem:[%s1 + $0x14] sm:$0xf]
  %v36 = vld [vmem:[%s1 + $0x18] sm:$0xf]
  %v37 = vld [vmem:[%s1 + $0x1c] sm:$0xf]
  %v38 = vld [vmem:[%s1 + $0x20] sm:$0xf]
  %v39 = vld [vmem:[%s1 + $0x24] sm:$0xf]
  %v40 = vld [vmem:[%s1 + $0x28] sm:$0xf]
  %v41 = vld [vmem:[%s1 + $0x2c] sm:$0xf]
  %v42 = vld [vmem:[%s1 + $0x30] sm:$0xf]
  %v43 = vld [vmem:[%s1 + $0x34] sm:$0xf]
  %v44 = vld [vmem:[%s1 + $0x38] sm:$0xf]
  %v45 = vld [vmem:[%s1 + $0x3c] sm:$0xf]
  %v46 = vld [vmem:[%s1 + $0x40] sm:$0xf]
  %v47 = vld [vmem:[%s1 + $0x44] sm:$0xf]
  %v48 = vld [vmem:[%s1 + $0x48] sm:$0xf]
  %v49 = vld [vmem:[%s1 + $0x4c] sm:$0xf]
  %v50 = vld [vmem:[%s1 + $0x50] sm:$0xf]
  %v51 = vld [vmem:[%s1 + $0x54] sm:$0xf]
  %v52 = vld [vmem:[%s1 + $0x58] sm:$0xf]
  %v53 = vld [vmem:[%s1 + $0x5c] sm:$0xf]
  %v54 = vld [vmem:[%s1 + $0x60] sm:$0xf]
  %v55 = vld [vmem:[%s1 + $0x64] sm:$0xf]
  %v56 = vld [vmem:[%s1 + $0x68] sm:$0xf]
  %v57 = vld [vmem:[%s1 + $0x6c] sm:$0xf]
  %v58 = vld [vmem:[%s1 + $0x70] sm:$0xf]
  %v59 = vld [vmem:[%s1 + $0x74] sm:$0xf]
  %v60 = vld [vmem:[%s1 + $0x78] sm:$0xf]
  %v61 = vld [vmem:[%s1 + $0x7c] sm:$0xf]
  %v62 = vld [vmem:[%s1 + $0x80] sm:$0xf]
  %v63 = vld [vmem:[%s1 + $0x84] sm:$0xf]
  %v64 = vld [vmem:[%s1 + $0x88] sm:$0xf]
  %v65 = vld [vmem:[%s1 + $0x8c] sm:$0xf]
  %v66 = vld [vmem:[%s1 + $0x90] sm:$0xf]
  %v67 = vld [vmem:[%s1 + $0x94] sm:$0xf]
  %v68 = vld [vmem:[%s1 + $0x98] sm:$0xf]
  %v69 = vld [vmem:[%s1 + $0x9c] sm:$0xf]
  %v70 = vld [vmem:[%s1 + $0xa0] sm:$0xf]
  %v71 = vld [vmem:[%s1 + $0xa4] sm:$0xf]
  %v72 = vld [vmem:[%s1 + $0xa8] sm:$0xf]
  %v73 = vld [vmem:[%s1 + $0xac] sm:$0xf]
  %v74 = vld [vmem:[%s1 + $0xb0] sm:$0xf]
  %v75 = vld [vmem:[%s1 + $0xb4] sm:$0xf]
  %v76 = vld [vmem:[%s1 + $0xb8] sm:$0xf]
  %v77 = vld [vmem:[%s1 + $0xbc] sm:$0xf]
  %v78 = vld [vmem:[%s1 + $0xc0] sm:$0xf]
  %v79 = vld [vmem:[%s1 + $0xc4] sm:$0xf]
  %v80 = vld [vmem:[%s1 + $0xc8] sm:$0xf]
  %v81 = vld [vmem:[%s1 + $0xcc] sm:$0xf]
  %v82 = vld [vmem:[%s1 + $0xd0] sm:$0xf]
  %v83 = vld [vmem:[%s1 + $0xd4] sm:$0xf]
  %v84 = vld [vmem:[%s1 + $0xd8] sm:$0xf]
  %v85 = vld [vmem:[%s1 + $0xdc] sm:$0xf]
  %v86 = vld [vmem:[%s1 + $0xe0] sm:$0xf]
  %v87 = vld [vmem:[%s1 + $0xe4] sm:$0xf]
  %v88 = vld [vmem:[%s1 + $0xe8] sm:$0xf]
  %v89 = vld [vmem:[%s1 + $0xec] sm:$0xf]
  %v90 = vld [vmem:[%s1 + $0xf0] sm:$0xf]
  %v91 = vld [vmem:[%s1 + $0xf4] sm:$0xf]
  %v92 = vld [vmem:[%s1 + $0xf8] sm:$0xf]
  %v93 = vld [vmem:[%s1 + $0xfc] sm:$0xf]
  %v94 = vld [vmem:[%s1 + $0x100] sm:$0xf]
  %v95 = vld [vmem:[%s1 + $0x104] sm:$0xf]
  %v96 = vld [vmem:[%s1 + $0x108] sm:$0xf]
  %v97 = vld [vmem:[%s1 + $0x10c] sm:$0xf]
  %v98 = vld [vmem:[%s1 + $0x110] sm:$0xf]
  %v99 = vld [vmem:[%s1 + $0x114] sm:$0xf]
  %v100 = vld [vmem:[%s1 + $0x118] sm:$0xf]
  %v101 = vld [vmem:[%s1 + $0x11c] sm:$0xf]
  %v102 = vld [vmem:[%s1 + $0x120] sm:$0xf]
  %v103 = vld [vmem:[%s1 + $0x124] sm:$0xf]
  %v104 = vld [vmem:[%s1 + $0x128] sm:$0xf]
  %v105 = vld [vmem:[%s1 + $0x12c] sm:$0xf]
  %v106 = vld [vmem:[%s1 + $0x130] sm:$0xf]
  %v107 = vld [vmem:[%s1 + $0x134] sm:$0xf]
  %v108 = vld [vmem:[%s1 + $0x138] sm:$0xf]
  %v109 = vld [vmem:[%s1 + $0x13c] sm:$0xf]
  %v110 = vld [vmem:[%s2] sm:$0x1]
  %v112 = vlaneseq
  %v113 = vshrl.u32 %v112, 7
  %v114 = vsub.s32 0, %v113
  %v115 = vrot.slane %v110, %v114
  %v129 = vunpack.c.l.b16 %v18
  %v130 = vunpack.c.h.b16 %v18
  %v131 = vunpack.c.l.b16 %v19
  %v132 = vunpack.c.h.b16 %v19
  %v133 = vunpack.c.l.b16 %v20
  %v134 = vunpack.c.l.b16 %v21
  %v135 = vunpack.c.h.b16 %v21
  %v136 = vunpack.c.l.b16 %v22
  %v137 = vunpack.c.h.b16 %v22
  %v138 = vunpack.c.l.b16 %v23
  %v139 = vunpack.c.l.b16 %v24
  %v140 = vunpack.c.h.b16 %v24
  %v141 = vunpack.c.l.b16 %v25
  %v142 = vunpack.c.h.b16 %v25
  %v143 = vunpack.c.l.b16 %v26
  %v144 = vunpack.c.l.b16 %v27
  %v145 = vunpack.c.h.b16 %v27
  %v146 = vunpack.c.l.b16 %v28
  %v147 = vunpack.c.h.b16 %v28
  %v148 = vunpack.c.l.b16 %v29
  %v149 = vpack.c.b16 %v134, %v129
  %v150 = vpack.c.b16 %v135, %v130
  %v151 = vpack.c.b16 %v136, %v131
  %v152 = vpack.c.b16 %v137, %v132
  %v153 = vpack.c.b16 %v138, %v133
  %v154 = vpack.c.b16 %v144, %v139
  %v155 = vpack.c.b16 %v145, %v140
  %v156 = vpack.c.b16 %v146, %v141
  %v157 = vpack.c.b16 %v147, %v142
  %v158 = vpack.c.b16 %v148, %v143
  %v249 = vunpack.c.l.b16 %v30
  %v250 = vunpack.c.l.b16 %v31
  %v251 = vunpack.c.l.b16 %v32
  %v252 = vunpack.c.l.b16 %v33
  %v253 = vunpack.c.l.b16 %v34
  %v254 = vunpack.c.l.b16 %v35
  %v255 = vunpack.c.l.b16 %v36
  %v256 = vunpack.c.l.b16 %v37
  %v257 = vunpack.c.l.b16 %v38
  %v258 = vunpack.c.l.b16 %v39
  %v259 = vunpack.c.l.b16 %v40
  %v260 = vunpack.c.l.b16 %v41
  %v261 = vunpack.c.l.b16 %v42
  %v262 = vunpack.c.l.b16 %v43
  %v263 = vunpack.c.l.b16 %v44
  %v264 = vunpack.c.l.b16 %v45
  %v265 = vunpack.c.l.b16 %v46
  %v266 = vunpack.c.l.b16 %v47
  %v267 = vunpack.c.l.b16 %v48
  %v268 = vunpack.c.l.b16 %v49
  %v269 = vunpack.c.l.b16 %v50
  %v270 = vunpack.c.l.b16 %v51
  %v271 = vunpack.c.l.b16 %v52
  %v272 = vunpack.c.l.b16 %v53
  %v273 = vunpack.c.l.b16 %v54
  %v274 = vunpack.c.l.b16 %v55
  %v275 = vunpack.c.l.b16 %v56
  %v276 = vunpack.c.l.b16 %v57
  %v277 = vunpack.c.l.b16 %v58
  %v278 = vunpack.c.l.b16 %v59
  %v279 = vunpack.c.l.b16 %v60
  %v280 = vunpack.c.l.b16 %v61
  %v281 = vunpack.c.l.b16 %v62
  %v282 = vunpack.c.l.b16 %v63
  %v283 = vunpack.c.l.b16 %v64
  %v284 = vunpack.c.l.b16 %v65
  %v285 = vunpack.c.l.b16 %v66
  %v286 = vunpack.c.l.b16 %v67
  %v287 = vunpack.c.l.b16 %v68
  %v288 = vunpack.c.l.b16 %v69
  %v289 = vunpack.c.l.b16 %v70
  %v290 = vunpack.c.l.b16 %v71
  %v291 = vunpack.c.l.b16 %v72
  %v292 = vunpack.c.l.b16 %v73
  %v293 = vunpack.c.l.b16 %v74
  %v294 = vunpack.c.l.b16 %v75
  %v295 = vunpack.c.l.b16 %v76
  %v296 = vunpack.c.l.b16 %v77
  %v297 = vunpack.c.l.b16 %v78
  %v298 = vunpack.c.l.b16 %v79
  %v299 = vunpack.c.l.b16 %v80
  %v300 = vunpack.c.l.b16 %v81
  %v301 = vunpack.c.l.b16 %v82
  %v302 = vunpack.c.l.b16 %v83
  %v303 = vunpack.c.l.b16 %v84
  %v304 = vunpack.c.l.b16 %v85
  %v305 = vunpack.c.l.b16 %v86
  %v306 = vunpack.c.l.b16 %v87
  %v307 = vunpack.c.l.b16 %v88
  %v308 = vunpack.c.l.b16 %v89
  %v309 = vunpack.c.l.b16 %v90
  %v310 = vunpack.c.l.b16 %v91
  %v311 = vunpack.c.l.b16 %v92
  %v312 = vunpack.c.l.b16 %v93
  %v313 = vunpack.c.l.b16 %v94
  %v314 = vunpack.c.l.b16 %v95
  %v315 = vunpack.c.l.b16 %v96
  %v316 = vunpack.c.l.b16 %v97
  %v317 = vunpack.c.l.b16 %v98
  %v318 = vunpack.c.l.b16 %v99
  %v319 = vunpack.c.l.b16 %v100
  %v320 = vunpack.c.l.b16 %v101
  %v321 = vunpack.c.l.b16 %v102
  %v322 = vunpack.c.l.b16 %v103
  %v323 = vunpack.c.l.b16 %v104
  %v324 = vunpack.c.l.b16 %v105
  %v325 = vunpack.c.l.b16 %v106
  %v326 = vunpack.c.l.b16 %v107
  %v327 = vunpack.c.l.b16 %v108
  %v328 = vunpack.c.l.b16 %v109
  %v329 = vpack.c.b16 %v250, %v249
  %v330 = vpack.c.b16 %v252, %v251
  %v331 = vpack.c.b16 %v254, %v253
  %v332 = vpack.c.b16 %v256, %v255
  %v333 = vpack.c.b16 %v258, %v257
  %v334 = vpack.c.b16 %v260, %v259
  %v335 = vpack.c.b16 %v262, %v261
  %v336 = vpack.c.b16 %v264, %v263
  %v337 = vpack.c.b16 %v266, %v265
  %v338 = vpack.c.b16 %v268, %v267
  %v339 = vpack.c.b16 %v270, %v269
  %v340 = vpack.c.b16 %v272, %v271
  %v341 = vpack.c.b16 %v274, %v273
  %v342 = vpack.c.b16 %v276, %v275
  %v343 = vpack.c.b16 %v278, %v277
  %v344 = vpack.c.b16 %v280, %v279
  %v345 = vpack.c.b16 %v282, %v281
  %v346 = vpack.c.b16 %v284, %v283
  %v347 = vpack.c.b16 %v286, %v285
  %v348 = vpack.c.b16 %v288, %v287
  %v349 = vpack.c.b16 %v290, %v289
  %v350 = vpack.c.b16 %v292, %v291
  %v351 = vpack.c.b16 %v294, %v293
  %v352 = vpack.c.b16 %v296, %v295
  %v353 = vpack.c.b16 %v298, %v297
  %v354 = vpack.c.b16 %v300, %v299
  %v355 = vpack.c.b16 %v302, %v301
  %v356 = vpack.c.b16 %v304, %v303
  %v357 = vpack.c.b16 %v306, %v305
  %v358 = vpack.c.b16 %v308, %v307
  %v359 = vpack.c.b16 %v310, %v309
  %v360 = vpack.c.b16 %v312, %v311
  %v361 = vpack.c.b16 %v314, %v313
  %v362 = vpack.c.b16 %v316, %v315
  %v363 = vpack.c.b16 %v318, %v317
  %v364 = vpack.c.b16 %v320, %v319
  %v365 = vpack.c.b16 %v322, %v321
  %v366 = vpack.c.b16 %v324, %v323
  %v367 = vpack.c.b16 %v326, %v325
  %v368 = vpack.c.b16 %v328, %v327
  %409 = vmatprep.subr.bf16.mxu0 0
  %410 = vmatpush1.bf16.msra.mxu0 %v329
  %411 = vmatprep.subr.bf16.mxu0 0
  %412 = vmatpush1.bf16.msra.mxu0 %v330
  %413 = vmatprep.subr.bf16.mxu0 0
  %414 = vmatpush1.bf16.msra.mxu0 %v331
  %415 = vmatprep.subr.bf16.mxu0 0
  %416 = vmatpush1.bf16.msra.mxu0 %v332
  %417 = vmatprep.subr.bf16.mxu0 0
  %418 = vmatpush1.bf16.msra.mxu0 %v333
  %419 = vmatprep.subr.bf16.mxu0 0
  %420 = vmatpush1.bf16.msra.mxu0 %v334
  %421 = vmatprep.subr.bf16.mxu0 0
  %422 = vmatpush1.bf16.msra.mxu0 %v335
  %423 = vmatprep.subr.bf16.mxu0 0
  %424 = vmatpush1.bf16.msra.mxu0 %v336
  %425 = vmatprep.subr.bf16.mxu0 0
  %426 = vmatpush1.bf16.msra.mxu0 %v337
  %427 = vmatprep.subr.bf16.mxu0 0
  %428 = vmatpush1.bf16.msra.mxu0 %v338
  %429 = vmatprep.subr.bf16.mxu0 0
  %430 = vmatpush1.bf16.msra.mxu0 %v339
  %431 = vmatprep.subr.bf16.mxu0 0
  %432 = vmatpush1.bf16.msra.mxu0 %v340
  %433 = vmatprep.subr.bf16.mxu0 0
  %434 = vmatpush1.bf16.msra.mxu0 %v341
  %435 = vmatprep.subr.bf16.mxu0 0
  %436 = vmatpush1.bf16.msra.mxu0 %v342
  %437 = vmatprep.subr.bf16.mxu0 0
  %438 = vmatpush1.bf16.msra.mxu0 %v343
  %439 = vmatprep.subr.bf16.mxu0 0
  %440 = vmatpush1.bf16.msra.mxu0 %v344
  %441 = vmatprep.mubr.bf16.mxu0 %v150
  %442 = vmatmul.mubr.bf16.gmra.mrb[0].mxu0 %v149
  %v443 = vpop.f32.mrb[0].mxu0
  %v444 = vadd.f32 %v115, %v443
  %v445 = vpop.f32.mrb[0].mxu0
  %v446 = vpop.f32.mrb[0].mxu0
  %v447 = vadd.f32 %v115, %v446
  %v448 = vpop.f32.mrb[0].mxu0
  %449 = vmatprep.mubr.bf16.mxu0 %v155
  %450 = vmatmul.mubr.bf16.gmra.mrb[0].mxu0 %v154
  %v451 = vpop.f32.mrb[0].mxu0
  %v452 = vadd.f32 %v115, %v451
  %v453 = vpop.f32.mrb[0].mxu0
  %v454 = vpop.f32.mrb[0].mxu0
  %v455 = vadd.f32 %v115, %v454
  %v456 = vpop.f32.mrb[0].mxu0
  %457 = vdwg.mxu0
  %458 = vmatprep.subr.bf16.mxu0 0
  %459 = vmatpush1.bf16.msra.mxu0 %v345
  %460 = vmatprep.subr.bf16.mxu0 0
  %461 = vmatpush1.bf16.msra.mxu0 %v346
  %462 = vmatprep.subr.bf16.mxu0 0
  %463 = vmatpush1.bf16.msra.mxu0 %v347
  %464 = vmatprep.subr.bf16.mxu0 0
  %465 = vmatpush1.bf16.msra.mxu0 %v348
  %466 = vmatprep.subr.bf16.mxu0 0
  %467 = vmatpush1.bf16.msra.mxu0 %v349
  %468 = vmatprep.subr.bf16.mxu0 0
  %469 = vmatpush1.bf16.msra.mxu0 %v350
  %470 = vmatprep.subr.bf16.mxu0 0
  %471 = vmatpush1.bf16.msra.mxu0 %v351
  %472 = vmatprep.subr.bf16.mxu0 0
  %473 = vmatpush1.bf16.msra.mxu0 %v352
  %474 = vmatprep.subr.bf16.mxu0 0
  %475 = vmatpush1.bf16.msra.mxu0 %v353
  %476 = vmatprep.subr.bf16.mxu0 0
  %477 = vmatpush1.bf16.msra.mxu0 %v354
  %478 = vmatprep.subr.bf16.mxu0 0
  %479 = vmatpush1.bf16.msra.mxu0 %v355
  %480 = vmatprep.subr.bf16.mxu0 0
  %481 = vmatpush1.bf16.msra.mxu0 %v356
  %482 = vmatprep.subr.bf16.mxu0 0
  %483 = vmatpush1.bf16.msra.mxu0 %v357
  %484 = vmatprep.subr.bf16.mxu0 0
  %485 = vmatpush1.bf16.msra.mxu0 %v358
  %486 = vmatprep.subr.bf16.mxu0 0
  %487 = vmatpush1.bf16.msra.mxu0 %v359
  %488 = vmatprep.subr.bf16.mxu0 0
  %489 = vmatpush1.bf16.msra.mxu0 %v360
  %490 = vmatprep.mubr.bf16.mxu0 %v152
  %491 = vmatmul.mubr.bf16.gmra.mrb[0].mxu0 %v151
  %v492 = vpop.f32.mrb[0].mxu0
  %v493 = vadd.f32 %v444, %v492
  %v494 = vpop.f32.mrb[0].mxu0
  %v495 = vpop.f32.mrb[0].mxu0
  %v496 = vadd.f32 %v447, %v495
  %v497 = vpop.f32.mrb[0].mxu0
  %498 = vmatprep.mubr.bf16.mxu0 %v157
  %499 = vmatmul.mubr.bf16.gmra.mrb[0].mxu0 %v156
  %v500 = vpop.f32.mrb[0].mxu0
  %v501 = vadd.f32 %v452, %v500
  %v502 = vpop.f32.mrb[0].mxu0
  %v503 = vpop.f32.mrb[0].mxu0
  %v504 = vadd.f32 %v455, %v503
  %v505 = vpop.f32.mrb[0].mxu0
  %506 = vdwg.mxu0
  %507 = vmatprep.subr.bf16.mxu0 0
  %508 = vmatpush1.bf16.msra.mxu0 %v361
  %509 = vmatprep.subr.bf16.mxu0 0
  %510 = vmatpush1.bf16.msra.mxu0 %v362
  %511 = vmatprep.subr.bf16.mxu0 0
  %512 = vmatpush1.bf16.msra.mxu0 %v363
  %513 = vmatprep.subr.bf16.mxu0 0
  %514 = vmatpush1.bf16.msra.mxu0 %v364
  %515 = vmatprep.subr.bf16.mxu0 0
  %516 = vmatpush1.bf16.msra.mxu0 %v365
  %517 = vmatprep.subr.bf16.mxu0 0
  %518 = vmatpush1.bf16.msra.mxu0 %v366
  %519 = vmatprep.subr.bf16.mxu0 0
  %520 = vmatpush1.bf16.msra.mxu0 %v367
  %521 = vmatprep.subr.bf16.mxu0 0
  %522 = vmatpush1.bf16.msra.mxu0 %v368
  %523 = vmatprep.subr.bf16.mxu0 0
  %524 = vmatpush1.bf16.msra.mxu0 0
  %525 = vmatprep.subr.bf16.mxu0 0
  %526 = vmatpush1.bf16.msra.mxu0 0
  %527 = vmatprep.subr.bf16.mxu0 0
  %528 = vmatpush1.bf16.msra.mxu0 0
  %529 = vmatprep.subr.bf16.mxu0 0
  %530 = vmatpush1.bf16.msra.mxu0 0
  %531 = vmatprep.subr.bf16.mxu0 0
  %532 = vmatpush1.bf16.msra.mxu0 0
  %533 = vmatprep.subr.bf16.mxu0 0
  %534 = vmatpush1.bf16.msra.mxu0 0
  %535 = vmatprep.subr.bf16.mxu0 0
  %536 = vmatpush1.bf16.msra.mxu0 0
  %537 = vmatprep.subr.bf16.mxu0 0
  %538 = vmatpush1.bf16.msra.mxu0 0
  %539 = vmatprep.mubr.bf16.mxu0 0
  %540 = vmatmul.mubr.bf16.gmra.mrb[0].mxu0 %v153
  %v541 = vpop.f32.mrb[0].mxu0
  %v542 = vadd.f32 %v493, %v541
  %v543 = vpop.f32.mrb[0].mxu0
  %v544 = vpop.f32.mrb[0].mxu0
  %v545 = vadd.f32 %v496, %v544
  %v546 = vpop.f32.mrb[0].mxu0
  %547 = vmatprep.mubr.bf16.mxu0 0
  %548 = vmatmul.mubr.bf16.gmra.mrb[0].mxu0 %v158
  %v549 = vpop.f32.mrb[0].mxu0
  %v550 = vadd.f32 %v501, %v549
  %v551 = vpop.f32.mrb[0].mxu0
  %v552 = vpop.f32.mrb[0].mxu0
  %v553 = vadd.f32 %v504, %v552
  %v554 = vpop.f32.mrb[0].mxu0
  %555 = vdwg.mxu0
  %v556 = vld [vmem:[%s3] sm:$0xf]
  %v557 = vld [vmem:[%s3 + $0x4] sm:$0xf]
  %v558 = vld [vmem:[%s3 + $0x8] sm:$0xf]
  %v559 = vld [vmem:[%s3 + $0xc] sm:$0xf]
  %v560 = vunpack.c.l.bf16 %v556
  %v561 = vunpack.c.l.bf16 %v557
  %v562 = vunpack.c.l.bf16 %v558
  %v563 = vunpack.c.l.bf16 %v559
  %v564 = vadd.f32 %v542, %v560
  %v565 = vadd.f32 %v545, %v561
  %v566 = vadd.f32 %v550, %v562
  %v567 = vadd.f32 %v553, %v563
  %v568 = vmax.f32 %v564, 0.0
  %v569 = vmax.f32 %v565, 0.0
  %v570 = vmax.f32 %v566, 0.0
  %v571 = vmax.f32 %v567, 0.0
  %v572 = vpack.c.bf16 %v569, %v568
  %v573 = vpack.c.bf16 %v571, %v570
  %v576 = vunpack.c.l.b16 %v572
  %v577 = vunpack.c.h.b16 %v572
  %v578 = vunpack.c.l.b16 %v573
  %v579 = vunpack.c.h.b16 %v573
  %v580 = vpack.c.b16 %v576, %v576
  %v581 = vpack.c.b16 %v577, %v577
  %v582 = vpack.c.b16 %v578, %v578
  %v583 = vpack.c.b16 %v579, %v579
  %588 = vst [vmem:[%s4] sm:$0xf] %v580
  %589 = vst [vmem:[%s4 + $0x4] sm:$0xf] %v581
  %590 = vst [vmem:[%s4 + $0x8] sm:$0xf] %v582
  %591 = vst [vmem:[%s4 + $0xc] sm:$0xf] %v583
  // Predicated region
  $region18: #{_lambda_.28} parent=0 // pred_check
    _
  $region19: #{_lambda_.28} parent=0 // pred_check_branch
    %593 = sbr.rel (0) target = $region21
  $region20: #{_lambda_.28} parent=0 // pred_region
    _
  $region21: #{_lambda_.28} parent=0 // pred_fallthru
    _
  // Predicated region
  $region22: #{_lambda_.28} parent=0 // pred_check
    _
  $region23: #{_lambda_.28} parent=0 // pred_check_branch
    %595 = sbr.rel (0) target = $region25
  $region24: #{_lambda_.28} parent=0 // pred_region
    _
  $region25: #{_lambda_.28} parent=0 // pred_fallthru
    _

// kernel: _lambda_.34
$region0: #{_lambda_.34}
  #allocation0 [shape = 'u32[]', space=smem, size = 0x4, offset = 0x4, fixed_abs, tag = 'smem constant byte address 0x4 - core index']
  #allocation1 [shape = 'u32[144,128]{1,0:T(1,128)}', space=vmem, size = 0x12000, scoped, tag = 'internal scratch']
  %s0 = inlined_call_operand.vmem [shape: bf16[16,128], index: 0, kind: input, shape index: {}]
  %s1 = inlined_call_operand.vmem [shape: bf16[128,128], index: 1, kind: input, shape index: {}]
  %s2 = inlined_call_operand.vmem [shape: f32[1,128], index: 2, kind: input, shape index: {}]
  %s3 = inlined_call_operand.vmem [shape: bf16[16,128], index: 3, kind: output, shape index: {}]
  %s4 = sld [smem:[#allocation0]]
  $region22: #{_lambda_.34} parent=0
    _
  %s6 = ssub.s32 1, %s4
  %s7 = scalar_select 0, %s6, %s4
  // Predicated region
  $region2: #{_lambda_.34} parent=0 // pred_check
    _
  $region3: #{_lambda_.34} parent=0 // pred_check_branch
    %9 = sbr.rel (0) target = $region5
  $region4: #{_lambda_.34} parent=0 // pred_region
    _
  $region5: #{_lambda_.34} parent=0 // pred_fallthru
    _
  // Predicated region
  $region6: #{_lambda_.34} parent=0 // pred_check
    _
  $region7: #{_lambda_.34} parent=0 // pred_check_branch
    %11 = sbr.rel (0) target = $region9
  $region8: #{_lambda_.34} parent=0 // pred_region
    _
  $region9: #{_lambda_.34} parent=0 // pred_fallthru
    _
  // Predicated region
  $region10: #{_lambda_.34} parent=0 // pred_check
    _
  $region11: #{_lambda_.34} parent=0 // pred_check_branch
    %13 = sbr.rel (0) target = $region13
  $region12: #{_lambda_.34} parent=0 // pred_region
    _
  $region13: #{_lambda_.34} parent=0 // pred_fallthru
    _
  %v15 = vld [vmem:[%s0] sm:$0xf]
  %v16 = vld [vmem:[%s0 + $0x4] sm:$0xf]
  %v17 = vld [vmem:[%s1] sm:$0xf]
  %v18 = vld [vmem:[%s1 + $0x4] sm:$0xf]
  %v19 = vld [vmem:[%s1 + $0x8] sm:$0xf]
  %v20 = vld [vmem:[%s1 + $0xc] sm:$0xf]
  %v21 = vld [vmem:[%s1 + $0x10] sm:$0xf]
  %v22 = vld [vmem:[%s1 + $0x14] sm:$0xf]
  %v23 = vld [vmem:[%s1 + $0x18] sm:$0xf]
  %v24 = vld [vmem:[%s1 + $0x1c] sm:$0xf]
  %v25 = vld [vmem:[%s1 + $0x20] sm:$0xf]
  %v26 = vld [vmem:[%s1 + $0x24] sm:$0xf]
  %v27 = vld [vmem:[%s1 + $0x28] sm:$0xf]
  %v28 = vld [vmem:[%s1 + $0x2c] sm:$0xf]
  %v29 = vld [vmem:[%s1 + $0x30] sm:$0xf]
  %v30 = vld [vmem:[%s1 + $0x34] sm:$0xf]
  %v31 = vld [vmem:[%s1 + $0x38] sm:$0xf]
  %v32 = vld [vmem:[%s1 + $0x3c] sm:$0xf]
  %v33 = vld [vmem:[%s2] sm:$0x1]
  %v35 = vlaneseq
  %v36 = vshrl.u32 %v35, 7
  %v37 = vsub.s32 0, %v36
  %v38 = vrot.slane %v33, %v37
  %v42 = vunpack.c.l.b16 %v15
  %v43 = vunpack.c.l.b16 %v16
  %v44 = vpack.c.b16 %v43, %v42
  %v62 = vunpack.c.l.b16 %v17
  %v63 = vunpack.c.l.b16 %v18
  %v64 = vunpack.c.l.b16 %v19
  %v65 = vunpack.c.l.b16 %v20
  %v66 = vunpack.c.l.b16 %v21
  %v67 = vunpack.c.l.b16 %v22
  %v68 = vunpack.c.l.b16 %v23
  %v69 = vunpack.c.l.b16 %v24
  %v70 = vunpack.c.l.b16 %v25
  %v71 = vunpack.c.l.b16 %v26
  %v72 = vunpack.c.l.b16 %v27
  %v73 = vunpack.c.l.b16 %v28
  %v74 = vunpack.c.l.b16 %v29
  %v75 = vunpack.c.l.b16 %v30
  %v76 = vunpack.c.l.b16 %v31
  %v77 = vunpack.c.l.b16 %v32
  %v78 = vpack.c.b16 %v63, %v62
  %v79 = vpack.c.b16 %v65, %v64
  %v80 = vpack.c.b16 %v67, %v66
  %v81 = vpack.c.b16 %v69, %v68
  %v82 = vpack.c.b16 %v71, %v70
  %v83 = vpack.c.b16 %v73, %v72
  %v84 = vpack.c.b16 %v75, %v74
  %v85 = vpack.c.b16 %v77, %v76
  %94 = vmatprep.subr.bf16.mxu0 0
  %95 = vmatpush1.bf16.msra.mxu0 %v78
  %96 = vmatprep.subr.bf16.mxu0 0
  %97 = vmatpush1.bf16.msra.mxu0 %v79
  %98 = vmatprep.subr.bf16.mxu0 0
  %99 = vmatpush1.bf16.msra.mxu0 %v80
  %100 = vmatprep.subr.bf16.mxu0 0
  %101 = vmatpush1.bf16.msra.mxu0 %v81
  %102 = vmatprep.subr.bf16.mxu0 0
  %103 = vmatpush1.bf16.msra.mxu0 %v82
  %104 = vmatprep.subr.bf16.mxu0 0
  %105 = vmatpush1.bf16.msra.mxu0 %v83
  %106 = vmatprep.subr.bf16.mxu0 0
  %107 = vmatpush1.bf16.msra.mxu0 %v84
  %108 = vmatprep.subr.bf16.mxu0 0
  %109 = vmatpush1.bf16.msra.mxu0 %v85
  %110 = vmatprep.subr.bf16.mxu0 0
  %111 = vmatpush1.bf16.msra.mxu0 0
  %112 = vmatprep.subr.bf16.mxu0 0
  %113 = vmatpush1.bf16.msra.mxu0 0
  %114 = vmatprep.subr.bf16.mxu0 0
  %115 = vmatpush1.bf16.msra.mxu0 0
  %116 = vmatprep.subr.bf16.mxu0 0
  %117 = vmatpush1.bf16.msra.mxu0 0
  %118 = vmatprep.subr.bf16.mxu0 0
  %119 = vmatpush1.bf16.msra.mxu0 0
  %120 = vmatprep.subr.bf16.mxu0 0
  %121 = vmatpush1.bf16.msra.mxu0 0
  %122 = vmatprep.subr.bf16.mxu0 0
  %123 = vmatpush1.bf16.msra.mxu0 0
  %124 = vmatprep.subr.bf16.mxu0 0
  %125 = vmatpush1.bf16.msra.mxu0 0
  %126 = vmatprep.mubr.bf16.mxu0 0
  %127 = vmatmul.mubr.bf16.gmra.mrb[0].mxu0 %v44
  %v128 = vpop.f32.mrb[0].mxu0
  %v129 = vadd.f32 %v38, %v128
  %v130 = vpop.f32.mrb[0].mxu0
  %v131 = vpop.f32.mrb[0].mxu0
  %v132 = vadd.f32 %v38, %v131
  %v133 = vpop.f32.mrb[0].mxu0
  %134 = vdwg.mxu0
  %v135 = vpack.c.bf16 %v132, %v129
  %v137 = vunpack.c.l.b16 %v135
  %v138 = vunpack.c.h.b16 %v135
  %v139 = vpack.c.b16 %v137, %v137
  %v140 = vpack.c.b16 %v138, %v138
  %143 = vst [vmem:[%s3] sm:$0xf] %v139
  %144 = vst [vmem:[%s3 + $0x4] sm:$0xf] %v140
  // Predicated region
  $region14: #{_lambda_.34} parent=0 // pred_check
    _
  $region15: #{_lambda_.34} parent=0 // pred_check_branch
    %146 = sbr.rel (0) target = $region17
  $region16: #{_lambda_.34} parent=0 // pred_region
    _
  $region17: #{_lambda_.34} parent=0 // pred_fallthru
    _
  // Predicated region
  $region18: #{_lambda_.34} parent=0 // pred_check
    _
  $region19: #{_lambda_.34} parent=0 // pred_check_branch
    %148 = sbr.rel (0) target = $region21
  $region20: #{_lambda_.34} parent=0 // pred_region
    _
  $region21: #{_lambda_.34} parent=0 // pred_fallthru
    _

// kernel: _lambda_.33
$region0: #{_lambda_.33}
  #allocation0 [shape = 'u32[]', space=smem, size = 0x4, offset = 0x4, fixed_abs, tag = 'smem constant byte address 0x4 - core index']
  #allocation1 [shape = 'u32[144,128]{1,0:T(1,128)}', space=vmem, size = 0x12000, scoped, tag = 'internal scratch']
  %s0 = inlined_call_operand.vmem [shape: bf16[16,640], index: 0, kind: input, shape index: {}]
  %s1 = inlined_call_operand.vmem [shape: bf16[640,128], index: 1, kind: input, shape index: {}]
  %s2 = inlined_call_operand.vmem [shape: f32[1,128], index: 2, kind: input, shape index: {}]
  %s3 = inlined_call_operand.vmem [shape: bf16[16,128], index: 3, kind: output, shape index: {}]
  %s4 = sld [smem:[#allocation0]]
  $region22: #{_lambda_.33} parent=0
    _
  %s6 = ssub.s32 1, %s4
  %s7 = scalar_select 0, %s6, %s4
  // Predicated region
  $region2: #{_lambda_.33} parent=0 // pred_check
    _
  $region3: #{_lambda_.33} parent=0 // pred_check_branch
    %9 = sbr.rel (0) target = $region5
  $region4: #{_lambda_.33} parent=0 // pred_region
    _
  $region5: #{_lambda_.33} parent=0 // pred_fallthru
    _
  // Predicated region
  $region6: #{_lambda_.33} parent=0 // pred_check
    _
  $region7: #{_lambda_.33} parent=0 // pred_check_branch
    %11 = sbr.rel (0) target = $region9
  $region8: #{_lambda_.33} parent=0 // pred_region
    _
  $region9: #{_lambda_.33} parent=0 // pred_fallthru
    _
  // Predicated region
  $region10: #{_lambda_.33} parent=0 // pred_check
    _
  $region11: #{_lambda_.33} parent=0 // pred_check_branch
    %13 = sbr.rel (0) target = $region13
  $region12: #{_lambda_.33} parent=0 // pred_region
    _
  $region13: #{_lambda_.33} parent=0 // pred_fallthru
    _
  %v15 = vld [vmem:[%s0] sm:$0xff]
  %v16 = vld [vmem:[%s0 + $0x8] sm:$0xff]
  %v17 = vld [vmem:[%s0 + $0x10] sm:$0xf]
  %v18 = vld [vmem:[%s0 + $0x14] sm:$0xff]
  %v19 = vld [vmem:[%s0 + $0x1c] sm:$0xff]
  %v20 = vld [vmem:[%s0 + $0x24] sm:$0xf]
  %v21 = vld [vmem:[%s1] sm:$0xf]
  %v22 = vld [vmem:[%s1 + $0x4] sm:$0xf]
  %v23 = vld [vmem:[%s1 + $0x8] sm:$0xf]
  %v24 = vld [vmem:[%s1 + $0xc] sm:$0xf]
  %v25 = vld [vmem:[%s1 + $0x10] sm:$0xf]
  %v26 = vld [vmem:[%s1 + $0x14] sm:$0xf]
  %v27 = vld [vmem:[%s1 + $0x18] sm:$0xf]
  %v28 = vld [vmem:[%s1 + $0x1c] sm:$0xf]
  %v29 = vld [vmem:[%s1 + $0x20] sm:$0xf]
  %v30 = vld [vmem:[%s1 + $0x24] sm:$0xf]
  %v31 = vld [vmem:[%s1 + $0x28] sm:$0xf]
  %v32 = vld [vmem:[%s1 + $0x2c] sm:$0xf]
  %v33 = vld [vmem:[%s1 + $0x30] sm:$0xf]
  %v34 = vld [vmem:[%s1 + $0x34] sm:$0xf]
  %v35 = vld [vmem:[%s1 + $0x38] sm:$0xf]
  %v36 = vld [vmem:[%s1 + $0x3c] sm:$0xf]
  %v37 = vld [vmem:[%s1 + $0x40] sm:$0xf]
  %v38 = vld [vmem:[%s1 + $0x44] sm:$0xf]
  %v39 = vld [vmem:[%s1 + $0x48] sm:$0xf]
  %v40 = vld [vmem:[%s1 + $0x4c] sm:$0xf]
  %v41 = vld [vmem:[%s1 + $0x50] sm:$0xf]
  %v42 = vld [vmem:[%s1 + $0x54] sm:$0xf]
  %v43 = vld [vmem:[%s1 + $0x58] sm:$0xf]
  %v44 = vld [vmem:[%s1 + $0x5c] sm:$0xf]
  %v45 = vld [vmem:[%s1 + $0x60] sm:$0xf]
  %v46 = vld [vmem:[%s1 + $0x64] sm:$0xf]
  %v47 = vld [vmem:[%s1 + $0x68] sm:$0xf]
  %v48 = vld [vmem:[%s1 + $0x6c] sm:$0xf]
  %v49 = vld [vmem:[%s1 + $0x70] sm:$0xf]
  %v50 = vld [vmem:[%s1 + $0x74] sm:$0xf]
  %v51 = vld [vmem:[%s1 + $0x78] sm:$0xf]
  %v52 = vld [vmem:[%s1 + $0x7c] sm:$0xf]
  %v53 = vld [vmem:[%s1 + $0x80] sm:$0xf]
  %v54 = vld [vmem:[%s1 + $0x84] sm:$0xf]
  %v55 = vld [vmem:[%s1 + $0x88] sm:$0xf]
  %v56 = vld [vmem:[%s1 + $0x8c] sm:$0xf]
  %v57 = vld [vmem:[%s1 + $0x90] sm:$0xf]
  %v58 = vld [vmem:[%s1 + $0x94] sm:$0xf]
  %v59 = vld [vmem:[%s1 + $0x98] sm:$0xf]
  %v60 = vld [vmem:[%s1 + $0x9c] sm:$0xf]
  %v61 = vld [vmem:[%s1 + $0xa0] sm:$0xf]
  %v62 = vld [vmem:[%s1 + $0xa4] sm:$0xf]
  %v63 = vld [vmem:[%s1 + $0xa8] sm:$0xf]
  %v64 = vld [vmem:[%s1 + $0xac] sm:$0xf]
  %v65 = vld [vmem:[%s1 + $0xb0] sm:$0xf]
  %v66 = vld [vmem:[%s1 + $0xb4] sm:$0xf]
  %v67 = vld [vmem:[%s1 + $0xb8] sm:$0xf]
  %v68 = vld [vmem:[%s1 + $0xbc] sm:$0xf]
  %v69 = vld [vmem:[%s1 + $0xc0] sm:$0xf]
  %v70 = vld [vmem:[%s1 + $0xc4] sm:$0xf]
  %v71 = vld [vmem:[%s1 + $0xc8] sm:$0xf]
  %v72 = vld [vmem:[%s1 + $0xcc] sm:$0xf]
  %v73 = vld [vmem:[%s1 + $0xd0] sm:$0xf]
  %v74 = vld [vmem:[%s1 + $0xd4] sm:$0xf]
  %v75 = vld [vmem:[%s1 + $0xd8] sm:$0xf]
  %v76 = vld [vmem:[%s1 + $0xdc] sm:$0xf]
  %v77 = vld [vmem:[%s1 + $0xe0] sm:$0xf]
  %v78 = vld [vmem:[%s1 + $0xe4] sm:$0xf]
  %v79 = vld [vmem:[%s1 + $0xe8] sm:$0xf]
  %v80 = vld [vmem:[%s1 + $0xec] sm:$0xf]
  %v81 = vld [vmem:[%s1 + $0xf0] sm:$0xf]
  %v82 = vld [vmem:[%s1 + $0xf4] sm:$0xf]
  %v83 = vld [vmem:[%s1 + $0xf8] sm:$0xf]
  %v84 = vld [vmem:[%s1 + $0xfc] sm:$0xf]
  %v85 = vld [vmem:[%s1 + $0x100] sm:$0xf]
  %v86 = vld [vmem:[%s1 + $0x104] sm:$0xf]
  %v87 = vld [vmem:[%s1 + $0x108] sm:$0xf]
  %v88 = vld [vmem:[%s1 + $0x10c] sm:$0xf]
  %v89 = vld [vmem:[%s1 + $0x110] sm:$0xf]
  %v90 = vld [vmem:[%s1 + $0x114] sm:$0xf]
  %v91 = vld [vmem:[%s1 + $0x118] sm:$0xf]
  %v92 = vld [vmem:[%s1 + $0x11c] sm:$0xf]
  %v93 = vld [vmem:[%s1 + $0x120] sm:$0xf]
  %v94 = vld [vmem:[%s1 + $0x124] sm:$0xf]
  %v95 = vld [vmem:[%s1 + $0x128] sm:$0xf]
  %v96 = vld [vmem:[%s1 + $0x12c] sm:$0xf]
  %v97 = vld [vmem:[%s1 + $0x130] sm:$0xf]
  %v98 = vld [vmem:[%s1 + $0x134] sm:$0xf]
  %v99 = vld [vmem:[%s1 + $0x138] sm:$0xf]
  %v100 = vld [vmem:[%s1 + $0x13c] sm:$0xf]
  %v101 = vld [vmem:[%s2] sm:$0x1]
  %v103 = vlaneseq
  %v104 = vshrl.u32 %v103, 7
  %v105 = vsub.s32 0, %v104
  %v106 = vrot.slane %v101, %v105
  %v114 = vunpack.c.l.b16 %v15
  %v115 = vunpack.c.h.b16 %v15
  %v116 = vunpack.c.l.b16 %v16
  %v117 = vunpack.c.h.b16 %v16
  %v118 = vunpack.c.l.b16 %v17
  %v119 = vunpack.c.l.b16 %v18
  %v120 = vunpack.c.h.b16 %v18
  %v121 = vunpack.c.l.b16 %v19
  %v122 = vunpack.c.h.b16 %v19
  %v123 = vunpack.c.l.b16 %v20
  %v124 = vpack.c.b16 %v119, %v114
  %v125 = vpack.c.b16 %v120, %v115
  %v126 = vpack.c.b16 %v121, %v116
  %v127 = vpack.c.b16 %v122, %v117
  %v128 = vpack.c.b16 %v123, %v118
  %v214 = vunpack.c.l.b16 %v21
  %v215 = vunpack.c.l.b16 %v22
  %v216 = vunpack.c.l.b16 %v23
  %v217 = vunpack.c.l.b16 %v24
  %v218 = vunpack.c.l.b16 %v25
  %v219 = vunpack.c.l.b16 %v26
  %v220 = vunpack.c.l.b16 %v27
  %v221 = vunpack.c.l.b16 %v28
  %v222 = vunpack.c.l.b16 %v29
  %v223 = vunpack.c.l.b16 %v30
  %v224 = vunpack.c.l.b16 %v31
  %v225 = vunpack.c.l.b16 %v32
  %v226 = vunpack.c.l.b16 %v33
  %v227 = vunpack.c.l.b16 %v34
  %v228 = vunpack.c.l.b16 %v35
  %v229 = vunpack.c.l.b16 %v36
  %v230 = vunpack.c.l.b16 %v37
  %v231 = vunpack.c.l.b16 %v38
  %v232 = vunpack.c.l.b16 %v39
  %v233 = vunpack.c.l.b16 %v40
  %v234 = vunpack.c.l.b16 %v41
  %v235 = vunpack.c.l.b16 %v42
  %v236 = vunpack.c.l.b16 %v43
  %v237 = vunpack.c.l.b16 %v44
  %v238 = vunpack.c.l.b16 %v45
  %v239 = vunpack.c.l.b16 %v46
  %v240 = vunpack.c.l.b16 %v47
  %v241 = vunpack.c.l.b16 %v48
  %v242 = vunpack.c.l.b16 %v49
  %v243 = vunpack.c.l.b16 %v50
  %v244 = vunpack.c.l.b16 %v51
  %v245 = vunpack.c.l.b16 %v52
  %v246 = vunpack.c.l.b16 %v53
  %v247 = vunpack.c.l.b16 %v54
  %v248 = vunpack.c.l.b16 %v55
  %v249 = vunpack.c.l.b16 %v56
  %v250 = vunpack.c.l.b16 %v57
  %v251 = vunpack.c.l.b16 %v58
  %v252 = vunpack.c.l.b16 %v59
  %v253 = vunpack.c.l.b16 %v60
  %v254 = vunpack.c.l.b16 %v61
  %v255 = vunpack.c.l.b16 %v62
  %v256 = vunpack.c.l.b16 %v63
  %v257 = vunpack.c.l.b16 %v64
  %v258 = vunpack.c.l.b16 %v65
  %v259 = vunpack.c.l.b16 %v66
  %v260 = vunpack.c.l.b16 %v67
  %v261 = vunpack.c.l.b16 %v68
  %v262 = vunpack.c.l.b16 %v69
  %v263 = vunpack.c.l.b16 %v70
  %v264 = vunpack.c.l.b16 %v71
  %v265 = vunpack.c.l.b16 %v72
  %v266 = vunpack.c.l.b16 %v73
  %v267 = vunpack.c.l.b16 %v74
  %v268 = vunpack.c.l.b16 %v75
  %v269 = vunpack.c.l.b16 %v76
  %v270 = vunpack.c.l.b16 %v77
  %v271 = vunpack.c.l.b16 %v78
  %v272 = vunpack.c.l.b16 %v79
  %v273 = vunpack.c.l.b16 %v80
  %v274 = vunpack.c.l.b16 %v81
  %v275 = vunpack.c.l.b16 %v82
  %v276 = vunpack.c.l.b16 %v83
  %v277 = vunpack.c.l.b16 %v84
  %v278 = vunpack.c.l.b16 %v85
  %v279 = vunpack.c.l.b16 %v86
  %v280 = vunpack.c.l.b16 %v87
  %v281 = vunpack.c.l.b16 %v88
  %v282 = vunpack.c.l.b16 %v89
  %v283 = vunpack.c.l.b16 %v90
  %v284 = vunpack.c.l.b16 %v91
  %v285 = vunpack.c.l.b16 %v92
  %v286 = vunpack.c.l.b16 %v93
  %v287 = vunpack.c.l.b16 %v94
  %v288 = vunpack.c.l.b16 %v95
  %v289 = vunpack.c.l.b16 %v96
  %v290 = vunpack.c.l.b16 %v97
  %v291 = vunpack.c.l.b16 %v98
  %v292 = vunpack.c.l.b16 %v99
  %v293 = vunpack.c.l.b16 %v100
  %v294 = vpack.c.b16 %v215, %v214
  %v295 = vpack.c.b16 %v217, %v216
  %v296 = vpack.c.b16 %v219, %v218
  %v297 = vpack.c.b16 %v221, %v220
  %v298 = vpack.c.b16 %v223, %v222
  %v299 = vpack.c.b16 %v225, %v224
  %v300 = vpack.c.b16 %v227, %v226
  %v301 = vpack.c.b16 %v229, %v228
  %v302 = vpack.c.b16 %v231, %v230
  %v303 = vpack.c.b16 %v233, %v232
  %v304 = vpack.c.b16 %v235, %v234
  %v305 = vpack.c.b16 %v237, %v236
  %v306 = vpack.c.b16 %v239, %v238
  %v307 = vpack.c.b16 %v241, %v240
  %v308 = vpack.c.b16 %v243, %v242
  %v309 = vpack.c.b16 %v245, %v244
  %v310 = vpack.c.b16 %v247, %v246
  %v311 = vpack.c.b16 %v249, %v248
  %v312 = vpack.c.b16 %v251, %v250
  %v313 = vpack.c.b16 %v253, %v252
  %v314 = vpack.c.b16 %v255, %v254
  %v315 = vpack.c.b16 %v257, %v256
  %v316 = vpack.c.b16 %v259, %v258
  %v317 = vpack.c.b16 %v261, %v260
  %v318 = vpack.c.b16 %v263, %v262
  %v319 = vpack.c.b16 %v265, %v264
  %v320 = vpack.c.b16 %v267, %v266
  %v321 = vpack.c.b16 %v269, %v268
  %v322 = vpack.c.b16 %v271, %v270
  %v323 = vpack.c.b16 %v273, %v272
  %v324 = vpack.c.b16 %v275, %v274
  %v325 = vpack.c.b16 %v277, %v276
  %v326 = vpack.c.b16 %v279, %v278
  %v327 = vpack.c.b16 %v281, %v280
  %v328 = vpack.c.b16 %v283, %v282
  %v329 = vpack.c.b16 %v285, %v284
  %v330 = vpack.c.b16 %v287, %v286
  %v331 = vpack.c.b16 %v289, %v288
  %v332 = vpack.c.b16 %v291, %v290
  %v333 = vpack.c.b16 %v293, %v292
  %374 = vmatprep.subr.bf16.mxu0 0
  %375 = vmatpush1.bf16.msra.mxu0 %v294
  %376 = vmatprep.subr.bf16.mxu0 0
  %377 = vmatpush1.bf16.msra.mxu0 %v295
  %378 = vmatprep.subr.bf16.mxu0 0
  %379 = vmatpush1.bf16.msra.mxu0 %v296
  %380 = vmatprep.subr.bf16.mxu0 0
  %381 = vmatpush1.bf16.msra.mxu0 %v297
  %382 = vmatprep.subr.bf16.mxu0 0
  %383 = vmatpush1.bf16.msra.mxu0 %v298
  %384 = vmatprep.subr.bf16.mxu0 0
  %385 = vmatpush1.bf16.msra.mxu0 %v299
  %386 = vmatprep.subr.bf16.mxu0 0
  %387 = vmatpush1.bf16.msra.mxu0 %v300
  %388 = vmatprep.subr.bf16.mxu0 0
  %389 = vmatpush1.bf16.msra.mxu0 %v301
  %390 = vmatprep.subr.bf16.mxu0 0
  %391 = vmatpush1.bf16.msra.mxu0 %v302
  %392 = vmatprep.subr.bf16.mxu0 0
  %393 = vmatpush1.bf16.msra.mxu0 %v303
  %394 = vmatprep.subr.bf16.mxu0 0
  %395 = vmatpush1.bf16.msra.mxu0 %v304
  %396 = vmatprep.subr.bf16.mxu0 0
  %397 = vmatpush1.bf16.msra.mxu0 %v305
  %398 = vmatprep.subr.bf16.mxu0 0
  %399 = vmatpush1.bf16.msra.mxu0 %v306
  %400 = vmatprep.subr.bf16.mxu0 0
  %401 = vmatpush1.bf16.msra.mxu0 %v307
  %402 = vmatprep.subr.bf16.mxu0 0
  %403 = vmatpush1.bf16.msra.mxu0 %v308
  %404 = vmatprep.subr.bf16.mxu0 0
  %405 = vmatpush1.bf16.msra.mxu0 %v309
  %406 = vmatprep.mubr.bf16.mxu0 %v125
  %407 = vmatmul.mubr.bf16.gmra.mrb[0].mxu0 %v124
  %v408 = vpop.f32.mrb[0].mxu0
  %v409 = vadd.f32 %v106, %v408
  %v410 = vpop.f32.mrb[0].mxu0
  %v411 = vpop.f32.mrb[0].mxu0
  %v412 = vadd.f32 %v106, %v411
  %v413 = vpop.f32.mrb[0].mxu0
  %414 = vdwg.mxu0
  %415 = vmatprep.subr.bf16.mxu0 0
  %416 = vmatpush1.bf16.msra.mxu0 %v310
  %417 = vmatprep.subr.bf16.mxu0 0
  %418 = vmatpush1.bf16.msra.mxu0 %v311
  %419 = vmatprep.subr.bf16.mxu0 0
  %420 = vmatpush1.bf16.msra.mxu0 %v312
  %421 = vmatprep.subr.bf16.mxu0 0
  %422 = vmatpush1.bf16.msra.mxu0 %v313
  %423 = vmatprep.subr.bf16.mxu0 0
  %424 = vmatpush1.bf16.msra.mxu0 %v314
  %425 = vmatprep.subr.bf16.mxu0 0
  %426 = vmatpush1.bf16.msra.mxu0 %v315
  %427 = vmatprep.subr.bf16.mxu0 0
  %428 = vmatpush1.bf16.msra.mxu0 %v316
  %429 = vmatprep.subr.bf16.mxu0 0
  %430 = vmatpush1.bf16.msra.mxu0 %v317
  %431 = vmatprep.subr.bf16.mxu0 0
  %432 = vmatpush1.bf16.msra.mxu0 %v318
  %433 = vmatprep.subr.bf16.mxu0 0
  %434 = vmatpush1.bf16.msra.mxu0 %v319
  %435 = vmatprep.subr.bf16.mxu0 0
  %436 = vmatpush1.bf16.msra.mxu0 %v320
  %437 = vmatprep.subr.bf16.mxu0 0
  %438 = vmatpush1.bf16.msra.mxu0 %v321
  %439 = vmatprep.subr.bf16.mxu0 0
  %440 = vmatpush1.bf16.msra.mxu0 %v322
  %441 = vmatprep.subr.bf16.mxu0 0
  %442 = vmatpush1.bf16.msra.mxu0 %v323
  %443 = vmatprep.subr.bf16.mxu0 0
  %444 = vmatpush1.bf16.msra.mxu0 %v324
  %445 = vmatprep.subr.bf16.mxu0 0
  %446 = vmatpush1.bf16.msra.mxu0 %v325
  %447 = vmatprep.mubr.bf16.mxu0 %v127
  %448 = vmatmul.mubr.bf16.gmra.mrb[0].mxu0 %v126
  %v449 = vpop.f32.mrb[0].mxu0
  %v450 = vadd.f32 %v409, %v449
  %v451 = vpop.f32.mrb[0].mxu0
  %v452 = vpop.f32.mrb[0].mxu0
  %v453 = vadd.f32 %v412, %v452
  %v454 = vpop.f32.mrb[0].mxu0
  %455 = vdwg.mxu0
  %456 = vmatprep.subr.bf16.mxu0 0
  %457 = vmatpush1.bf16.msra.mxu0 %v326
  %458 = vmatprep.subr.bf16.mxu0 0
  %459 = vmatpush1.bf16.msra.mxu0 %v327
  %460 = vmatprep.subr.bf16.mxu0 0
  %461 = vmatpush1.bf16.msra.mxu0 %v328
  %462 = vmatprep.subr.bf16.mxu0 0
  %463 = vmatpush1.bf16.msra.mxu0 %v329
  %464 = vmatprep.subr.bf16.mxu0 0
  %465 = vmatpush1.bf16.msra.mxu0 %v330
  %466 = vmatprep.subr.bf16.mxu0 0
  %467 = vmatpush1.bf16.msra.mxu0 %v331
  %468 = vmatprep.subr.bf16.mxu0 0
  %469 = vmatpush1.bf16.msra.mxu0 %v332
  %470 = vmatprep.subr.bf16.mxu0 0
  %471 = vmatpush1.bf16.msra.mxu0 %v333
  %472 = vmatprep.subr.bf16.mxu0 0
  %473 = vmatpush1.bf16.msra.mxu0 0
  %474 = vmatprep.subr.bf16.mxu0 0
  %475 = vmatpush1.bf16.msra.mxu0 0
  %476 = vmatprep.subr.bf16.mxu0 0
  %477 = vmatpush1.bf16.msra.mxu0 0
  %478 = vmatprep.subr.bf16.mxu0 0
  %479 = vmatpush1.bf16.msra.mxu0 0
  %480 = vmatprep.subr.bf16.mxu0 0
  %481 = vmatpush1.bf16.msra.mxu0 0
  %482 = vmatprep.subr.bf16.mxu0 0
  %483 = vmatpush1.bf16.msra.mxu0 0
  %484 = vmatprep.subr.bf16.mxu0 0
  %485 = vmatpush1.bf16.msra.mxu0 0
  %486 = vmatprep.subr.bf16.mxu0 0
  %487 = vmatpush1.bf16.msra.mxu0 0
  %488 = vmatprep.mubr.bf16.mxu0 0
  %489 = vmatmul.mubr.bf16.gmra.mrb[0].mxu0 %v128
  %v490 = vpop.f32.mrb[0].mxu0
  %v491 = vadd.f32 %v450, %v490
  %v492 = vpop.f32.mrb[0].mxu0
  %v493 = vpop.f32.mrb[0].mxu0
  %v494 = vadd.f32 %v453, %v493
  %v495 = vpop.f32.mrb[0].mxu0
  %496 = vdwg.mxu0
  %v497 = vmax.f32 %v491, 0.0
  %v498 = vmax.f32 %v494, 0.0
  %v499 = vpack.c.bf16 %v498, %v497
  %v501 = vunpack.c.l.b16 %v499
  %v502 = vunpack.c.h.b16 %v499
  %v503 = vpack.c.b16 %v501, %v501
  %v504 = vpack.c.b16 %v502, %v502
  %507 = vst [vmem:[%s3] sm:$0xf] %v503
  %508 = vst [vmem:[%s3 + $0x4] sm:$0xf] %v504
  // Predicated region
  $region14: #{_lambda_.33} parent=0 // pred_check
    _
  $region15: #{_lambda_.33} parent=0 // pred_check_branch
    %510 = sbr.rel (0) target = $region17
  $region16: #{_lambda_.33} parent=0 // pred_region
    _
  $region17: #{_lambda_.33} parent=0 // pred_fallthru
    _
  // Predicated region
  $region18: #{_lambda_.33} parent=0 // pred_check
    _
  $region19: #{_lambda_.33} parent=0 // pred_check_branch
    %512 = sbr.rel (0) target = $region21
  $region20: #{_lambda_.33} parent=0 // pred_region
    _
  $region21: #{_lambda_.33} parent=0 // pred_fallthru
    _

// kernel: _lambda_.35
$region0: #{_lambda_.35}
  #allocation0 [shape = 'u32[]', space=smem, size = 0x4, offset = 0x4, fixed_abs, tag = 'smem constant byte address 0x4 - core index']
  #allocation1 [shape = 'u32[144,128]{1,0:T(1,128)}', space=vmem, size = 0x12000, scoped, tag = 'internal scratch']
  %s0 = inlined_call_operand.vmem [shape: bf16[16,1152], index: 0, kind: input, shape index: {}]
  %s1 = inlined_call_operand.vmem [shape: bf16[1152,128], index: 1, kind: input, shape index: {}]
  %s2 = inlined_call_operand.vmem [shape: f32[1,128], index: 2, kind: input, shape index: {}]
  %s3 = inlined_call_operand.vmem [shape: bf16[16,128], index: 3, kind: input, shape index: {}]
  %s4 = inlined_call_operand.vmem [shape: bf16[16,128], index: 4, kind: output, shape index: {}]
  %s5 = sld [smem:[#allocation0]]
  $region26: #{_lambda_.35} parent=0
    _
  %s7 = ssub.s32 1, %s5
  %s8 = scalar_select 0, %s7, %s5
  // Predicated region
  $region2: #{_lambda_.35} parent=0 // pred_check
    _
  $region3: #{_lambda_.35} parent=0 // pred_check_branch
    %10 = sbr.rel (0) target = $region5
  $region4: #{_lambda_.35} parent=0 // pred_region
    _
  $region5: #{_lambda_.35} parent=0 // pred_fallthru
    _
  // Predicated region
  $region6: #{_lambda_.35} parent=0 // pred_check
    _
  $region7: #{_lambda_.35} parent=0 // pred_check_branch
    %12 = sbr.rel (0) target = $region9
  $region8: #{_lambda_.35} parent=0 // pred_region
    _
  $region9: #{_lambda_.35} parent=0 // pred_fallthru
    _
  // Predicated region
  $region10: #{_lambda_.35} parent=0 // pred_check
    _
  $region11: #{_lambda_.35} parent=0 // pred_check_branch
    %14 = sbr.rel (0) target = $region13
  $region12: #{_lambda_.35} parent=0 // pred_region
    _
  $region13: #{_lambda_.35} parent=0 // pred_fallthru
    _
  // Predicated region
  $region14: #{_lambda_.35} parent=0 // pred_check
    _
  $region15: #{_lambda_.35} parent=0 // pred_check_branch
    %16 = sbr.rel (0) target = $region17
  $region16: #{_lambda_.35} parent=0 // pred_region
    _
  $region17: #{_lambda_.35} parent=0 // pred_fallthru
    _
  %v18 = vld [vmem:[%s0] sm:$0xff]
  %v19 = vld [vmem:[%s0 + $0x8] sm:$0xff]
  %v20 = vld [vmem:[%s0 + $0x10] sm:$0xff]
  %v21 = vld [vmem:[%s0 + $0x18] sm:$0xff]
  %v22 = vld [vmem:[%s0 + $0x20] sm:$0xf]
  %v23 = vld [vmem:[%s0 + $0x24] sm:$0xff]
  %v24 = vld [vmem:[%s0 + $0x2c] sm:$0xff]
  %v25 = vld [vmem:[%s0 + $0x34] sm:$0xff]
  %v26 = vld [vmem:[%s0 + $0x3c] sm:$0xff]
  %v27 = vld [vmem:[%s0 + $0x44] sm:$0xf]
  %v28 = vld [vmem:[%s1] sm:$0xf]
  %v29 = vld [vmem:[%s1 + $0x4] sm:$0xf]
  %v30 = vld [vmem:[%s1 + $0x8] sm:$0xf]
  %v31 = vld [vmem:[%s1 + $0xc] sm:$0xf]
  %v32 = vld [vmem:[%s1 + $0x10] sm:$0xf]
  %v33 = vld [vmem:[%s1 + $0x14] sm:$0xf]
  %v34 = vld [vmem:[%s1 + $0x18] sm:$0xf]
  %v35 = vld [vmem:[%s1 + $0x1c] sm:$0xf]
  %v36 = vld [vmem:[%s1 + $0x20] sm:$0xf]
  %v37 = vld [vmem:[%s1 + $0x24] sm:$0xf]
  %v38 = vld [vmem:[%s1 + $0x28] sm:$0xf]
  %v39 = vld [vmem:[%s1 + $0x2c] sm:$0xf]
  %v40 = vld [vmem:[%s1 + $0x30] sm:$0xf]
  %v41 = vld [vmem:[%s1 + $0x34] sm:$0xf]
  %v42 = vld [vmem:[%s1 + $0x38] sm:$0xf]
  %v43 = vld [vmem:[%s1 + $0x3c] sm:$0xf]
  %v44 = vld [vmem:[%s1 + $0x40] sm:$0xf]
  %v45 = vld [vmem:[%s1 + $0x44] sm:$0xf]
  %v46 = vld [vmem:[%s1 + $0x48] sm:$0xf]
  %v47 = vld [vmem:[%s1 + $0x4c] sm:$0xf]
  %v48 = vld [vmem:[%s1 + $0x50] sm:$0xf]
  %v49 = vld [vmem:[%s1 + $0x54] sm:$0xf]
  %v50 = vld [vmem:[%s1 + $0x58] sm:$0xf]
  %v51 = vld [vmem:[%s1 + $0x5c] sm:$0xf]
  %v52 = vld [vmem:[%s1 + $0x60] sm:$0xf]
  %v53 = vld [vmem:[%s1 + $0x64] sm:$0xf]
  %v54 = vld [vmem:[%s1 + $0x68] sm:$0xf]
  %v55 = vld [vmem:[%s1 + $0x6c] sm:$0xf]
  %v56 = vld [vmem:[%s1 + $0x70] sm:$0xf]
  %v57 = vld [vmem:[%s1 + $0x74] sm:$0xf]
  %v58 = vld [vmem:[%s1 + $0x78] sm:$0xf]
  %v59 = vld [vmem:[%s1 + $0x7c] sm:$0xf]
  %v60 = vld [vmem:[%s1 + $0x80] sm:$0xf]
  %v61 = vld [vmem:[%s1 + $0x84] sm:$0xf]
  %v62 = vld [vmem:[%s1 + $0x88] sm:$0xf]
  %v63 = vld [vmem:[%s1 + $0x8c] sm:$0xf]
  %v64 = vld [vmem:[%s1 + $0x90] sm:$0xf]
  %v65 = vld [vmem:[%s1 + $0x94] sm:$0xf]
  %v66 = vld [vmem:[%s1 + $0x98] sm:$0xf]
  %v67 = vld [vmem:[%s1 + $0x9c] sm:$0xf]
  %v68 = vld [vmem:[%s1 + $0xa0] sm:$0xf]
  %v69 = vld [vmem:[%s1 + $0xa4] sm:$0xf]
  %v70 = vld [vmem:[%s1 + $0xa8] sm:$0xf]
  %v71 = vld [vmem:[%s1 + $0xac] sm:$0xf]
  %v72 = vld [vmem:[%s1 + $0xb0] sm:$0xf]
  %v73 = vld [vmem:[%s1 + $0xb4] sm:$0xf]
  %v74 = vld [vmem:[%s1 + $0xb8] sm:$0xf]
  %v75 = vld [vmem:[%s1 + $0xbc] sm:$0xf]
  %v76 = vld [vmem:[%s1 + $0xc0] sm:$0xf]
  %v77 = vld [vmem:[%s1 + $0xc4] sm:$0xf]
  %v78 = vld [vmem:[%s1 + $0xc8] sm:$0xf]
  %v79 = vld [vmem:[%s1 + $0xcc] sm:$0xf]
  %v80 = vld [vmem:[%s1 + $0xd0] sm:$0xf]
  %v81 = vld [vmem:[%s1 + $0xd4] sm:$0xf]
  %v82 = vld [vmem:[%s1 + $0xd8] sm:$0xf]
  %v83 = vld [vmem:[%s1 + $0xdc] sm:$0xf]
  %v84 = vld [vmem:[%s1 + $0xe0] sm:$0xf]
  %v85 = vld [vmem:[%s1 + $0xe4] sm:$0xf]
  %v86 = vld [vmem:[%s1 + $0xe8] sm:$0xf]
  %v87 = vld [vmem:[%s1 + $0xec] sm:$0xf]
  %v88 = vld [vmem:[%s1 + $0xf0] sm:$0xf]
  %v89 = vld [vmem:[%s1 + $0xf4] sm:$0xf]
  %v90 = vld [vmem:[%s1 + $0xf8] sm:$0xf]
  %v91 = vld [vmem:[%s1 + $0xfc] sm:$0xf]
  %v92 = vld [vmem:[%s1 + $0x100] sm:$0xf]
  %v93 = vld [vmem:[%s1 + $0x104] sm:$0xf]
  %v94 = vld [vmem:[%s1 + $0x108] sm:$0xf]
  %v95 = vld [vmem:[%s1 + $0x10c] sm:$0xf]
  %v96 = vld [vmem:[%s1 + $0x110] sm:$0xf]
  %v97 = vld [vmem:[%s1 + $0x114] sm:$0xf]
  %v98 = vld [vmem:[%s1 + $0x118] sm:$0xf]
  %v99 = vld [vmem:[%s1 + $0x11c] sm:$0xf]
  %v100 = vld [vmem:[%s1 + $0x120] sm:$0xf]
  %v101 = vld [vmem:[%s1 + $0x124] sm:$0xf]
  %v102 = vld [vmem:[%s1 + $0x128] sm:$0xf]
  %v103 = vld [vmem:[%s1 + $0x12c] sm:$0xf]
  %v104 = vld [vmem:[%s1 + $0x130] sm:$0xf]
  %v105 = vld [vmem:[%s1 + $0x134] sm:$0xf]
  %v106 = vld [vmem:[%s1 + $0x138] sm:$0xf]
  %v107 = vld [vmem:[%s1 + $0x13c] sm:$0xf]
  %v108 = vld [vmem:[%s1 + $0x140] sm:$0xf]
  %v109 = vld [vmem:[%s1 + $0x144] sm:$0xf]
  %v110 = vld [vmem:[%s1 + $0x148] sm:$0xf]
  %v111 = vld [vmem:[%s1 + $0x14c] sm:$0xf]
  %v112 = vld [vmem:[%s1 + $0x150] sm:$0xf]
  %v113 = vld [vmem:[%s1 + $0x154] sm:$0xf]
  %v114 = vld [vmem:[%s1 + $0x158] sm:$0xf]
  %v115 = vld [vmem:[%s1 + $0x15c] sm:$0xf]
  %v116 = vld [vmem:[%s1 + $0x160] sm:$0xf]
  %v117 = vld [vmem:[%s1 + $0x164] sm:$0xf]
  %v118 = vld [vmem:[%s1 + $0x168] sm:$0xf]
  %v119 = vld [vmem:[%s1 + $0x16c] sm:$0xf]
  %v120 = vld [vmem:[%s1 + $0x170] sm:$0xf]
  %v121 = vld [vmem:[%s1 + $0x174] sm:$0xf]
  %v122 = vld [vmem:[%s1 + $0x178] sm:$0xf]
  %v123 = vld [vmem:[%s1 + $0x17c] sm:$0xf]
  %v124 = vld [vmem:[%s1 + $0x180] sm:$0xf]
  %v125 = vld [vmem:[%s1 + $0x184] sm:$0xf]
  %v126 = vld [vmem:[%s1 + $0x188] sm:$0xf]
  %v127 = vld [vmem:[%s1 + $0x18c] sm:$0xf]
  %v128 = vld [vmem:[%s1 + $0x190] sm:$0xf]
  %v129 = vld [vmem:[%s1 + $0x194] sm:$0xf]
  %v130 = vld [vmem:[%s1 + $0x198] sm:$0xf]
  %v131 = vld [vmem:[%s1 + $0x19c] sm:$0xf]
  %v132 = vld [vmem:[%s1 + $0x1a0] sm:$0xf]
  %v133 = vld [vmem:[%s1 + $0x1a4] sm:$0xf]
  %v134 = vld [vmem:[%s1 + $0x1a8] sm:$0xf]
  %v135 = vld [vmem:[%s1 + $0x1ac] sm:$0xf]
  %v136 = vld [vmem:[%s1 + $0x1b0] sm:$0xf]
  %v137 = vld [vmem:[%s1 + $0x1b4] sm:$0xf]
  %v138 = vld [vmem:[%s1 + $0x1b8] sm:$0xf]
  %v139 = vld [vmem:[%s1 + $0x1bc] sm:$0xf]
  %v140 = vld [vmem:[%s1 + $0x1c0] sm:$0xf]
  %v141 = vld [vmem:[%s1 + $0x1c4] sm:$0xf]
  %v142 = vld [vmem:[%s1 + $0x1c8] sm:$0xf]
  %v143 = vld [vmem:[%s1 + $0x1cc] sm:$0xf]
  %v144 = vld [vmem:[%s1 + $0x1d0] sm:$0xf]
  %v145 = vld [vmem:[%s1 + $0x1d4] sm:$0xf]
  %v146 = vld [vmem:[%s1 + $0x1d8] sm:$0xf]
  %v147 = vld [vmem:[%s1 + $0x1dc] sm:$0xf]
  %v148 = vld [vmem:[%s1 + $0x1e0] sm:$0xf]
  %v149 = vld [vmem:[%s1 + $0x1e4] sm:$0xf]
  %v150 = vld [vmem:[%s1 + $0x1e8] sm:$0xf]
  %v151 = vld [vmem:[%s1 + $0x1ec] sm:$0xf]
  %v152 = vld [vmem:[%s1 + $0x1f0] sm:$0xf]
  %v153 = vld [vmem:[%s1 + $0x1f4] sm:$0xf]
  %v154 = vld [vmem:[%s1 + $0x1f8] sm:$0xf]
  %v155 = vld [vmem:[%s1 + $0x1fc] sm:$0xf]
  %v156 = vld [vmem:[%s1 + $0x200] sm:$0xf]
  %v157 = vld [vmem:[%s1 + $0x204] sm:$0xf]
  %v158 = vld [vmem:[%s1 + $0x208] sm:$0xf]
  %v159 = vld [vmem:[%s1 + $0x20c] sm:$0xf]
  %v160 = vld [vmem:[%s1 + $0x210] sm:$0xf]
  %v161 = vld [vmem:[%s1 + $0x214] sm:$0xf]
  %v162 = vld [vmem:[%s1 + $0x218] sm:$0xf]
  %v163 = vld [vmem:[%s1 + $0x21c] sm:$0xf]
  %v164 = vld [vmem:[%s1 + $0x220] sm:$0xf]
  %v165 = vld [vmem:[%s1 + $0x224] sm:$0xf]
  %v166 = vld [vmem:[%s1 + $0x228] sm:$0xf]
  %v167 = vld [vmem:[%s1 + $0x22c] sm:$0xf]
  %v168 = vld [vmem:[%s1 + $0x230] sm:$0xf]
  %v169 = vld [vmem:[%s1 + $0x234] sm:$0xf]
  %v170 = vld [vmem:[%s1 + $0x238] sm:$0xf]
  %v171 = vld [vmem:[%s1 + $0x23c] sm:$0xf]
  %v172 = vld [vmem:[%s2] sm:$0x1]
  %v174 = vlaneseq
  %v175 = vshrl.u32 %v174, 7
  %v176 = vsub.s32 0, %v175
  %v177 = vrot.slane %v172, %v176
  %v189 = vunpack.c.l.b16 %v18
  %v190 = vunpack.c.h.b16 %v18
  %v191 = vunpack.c.l.b16 %v19
  %v192 = vunpack.c.h.b16 %v19
  %v193 = vunpack.c.l.b16 %v20
  %v194 = vunpack.c.h.b16 %v20
  %v195 = vunpack.c.l.b16 %v21
  %v196 = vunpack.c.h.b16 %v21
  %v197 = vunpack.c.l.b16 %v22
  %v198 = vunpack.c.l.b16 %v23
  %v199 = vunpack.c.h.b16 %v23
  %v200 = vunpack.c.l.b16 %v24
  %v201 = vunpack.c.h.b16 %v24
  %v202 = vunpack.c.l.b16 %v25
  %v203 = vunpack.c.h.b16 %v25
  %v204 = vunpack.c.l.b16 %v26
  %v205 = vunpack.c.h.b16 %v26
  %v206 = vunpack.c.l.b16 %v27
  %v207 = vpack.c.b16 %v198, %v189
  %v208 = vpack.c.b16 %v199, %v190
  %v209 = vpack.c.b16 %v200, %v191
  %v210 = vpack.c.b16 %v201, %v192
  %v211 = vpack.c.b16 %v202, %v193
  %v212 = vpack.c.b16 %v203, %v194
  %v213 = vpack.c.b16 %v204, %v195
  %v214 = vpack.c.b16 %v205, %v196
  %v215 = vpack.c.b16 %v206, %v197
  %v369 = vunpack.c.l.b16 %v28
  %v370 = vunpack.c.l.b16 %v29
  %v371 = vunpack.c.l.b16 %v30
  %v372 = vunpack.c.l.b16 %v31
  %v373 = vunpack.c.l.b16 %v32
  %v374 = vunpack.c.l.b16 %v33
  %v375 = vunpack.c.l.b16 %v34
  %v376 = vunpack.c.l.b16 %v35
  %v377 = vunpack.c.l.b16 %v36
  %v378 = vunpack.c.l.b16 %v37
  %v379 = vunpack.c.l.b16 %v38
  %v380 = vunpack.c.l.b16 %v39
  %v381 = vunpack.c.l.b16 %v40
  %v382 = vunpack.c.l.b16 %v41
  %v383 = vunpack.c.l.b16 %v42
  %v384 = vunpack.c.l.b16 %v43
  %v385 = vunpack.c.l.b16 %v44
  %v386 = vunpack.c.l.b16 %v45
  %v387 = vunpack.c.l.b16 %v46
  %v388 = vunpack.c.l.b16 %v47
  %v389 = vunpack.c.l.b16 %v48
  %v390 = vunpack.c.l.b16 %v49
  %v391 = vunpack.c.l.b16 %v50
  %v392 = vunpack.c.l.b16 %v51
  %v393 = vunpack.c.l.b16 %v52
  %v394 = vunpack.c.l.b16 %v53
  %v395 = vunpack.c.l.b16 %v54
  %v396 = vunpack.c.l.b16 %v55
  %v397 = vunpack.c.l.b16 %v56
  %v398 = vunpack.c.l.b16 %v57
  %v399 = vunpack.c.l.b16 %v58
  %v400 = vunpack.c.l.b16 %v59
  %v401 = vunpack.c.l.b16 %v60
  %v402 = vunpack.c.l.b16 %v61
  %v403 = vunpack.c.l.b16 %v62
  %v404 = vunpack.c.l.b16 %v63
  %v405 = vunpack.c.l.b16 %v64
  %v406 = vunpack.c.l.b16 %v65
  %v407 = vunpack.c.l.b16 %v66
  %v408 = vunpack.c.l.b16 %v67
  %v409 = vunpack.c.l.b16 %v68
  %v410 = vunpack.c.l.b16 %v69
  %v411 = vunpack.c.l.b16 %v70
  %v412 = vunpack.c.l.b16 %v71
  %v413 = vunpack.c.l.b16 %v72
  %v414 = vunpack.c.l.b16 %v73
  %v415 = vunpack.c.l.b16 %v74
  %v416 = vunpack.c.l.b16 %v75
  %v417 = vunpack.c.l.b16 %v76
  %v418 = vunpack.c.l.b16 %v77
  %v419 = vunpack.c.l.b16 %v78
  %v420 = vunpack.c.l.b16 %v79
  %v421 = vunpack.c.l.b16 %v80
  %v422 = vunpack.c.l.b16 %v81
  %v423 = vunpack.c.l.b16 %v82
  %v424 = vunpack.c.l.b16 %v83
  %v425 = vunpack.c.l.b16 %v84
  %v426 = vunpack.c.l.b16 %v85
  %v427 = vunpack.c.l.b16 %v86
  %v428 = vunpack.c.l.b16 %v87
  %v429 = vunpack.c.l.b16 %v88
  %v430 = vunpack.c.l.b16 %v89
  %v431 = vunpack.c.l.b16 %v90
  %v432 = vunpack.c.l.b16 %v91
  %v433 = vunpack.c.l.b16 %v92
  %v434 = vunpack.c.l.b16 %v93
  %v435 = vunpack.c.l.b16 %v94
  %v436 = vunpack.c.l.b16 %v95
  %v437 = vunpack.c.l.b16 %v96
  %v438 = vunpack.c.l.b16 %v97
  %v439 = vunpack.c.l.b16 %v98
  %v440 = vunpack.c.l.b16 %v99
  %v441 = vunpack.c.l.b16 %v100
  %v442 = vunpack.c.l.b16 %v101
  %v443 = vunpack.c.l.b16 %v102
  %v444 = vunpack.c.l.b16 %v103
  %v445 = vunpack.c.l.b16 %v104
  %v446 = vunpack.c.l.b16 %v105
  %v447 = vunpack.c.l.b16 %v106
  %v448 = vunpack.c.l.b16 %v107
  %v449 = vunpack.c.l.b16 %v108
  %v450 = vunpack.c.l.b16 %v109
  %v451 = vunpack.c.l.b16 %v110
  %v452 = vunpack.c.l.b16 %v111
  %v453 = vunpack.c.l.b16 %v112
  %v454 = vunpack.c.l.b16 %v113
  %v455 = vunpack.c.l.b16 %v114
  %v456 = vunpack.c.l.b16 %v115
  %v457 = vunpack.c.l.b16 %v116
  %v458 = vunpack.c.l.b16 %v117
  %v459 = vunpack.c.l.b16 %v118
  %v460 = vunpack.c.l.b16 %v119
  %v461 = vunpack.c.l.b16 %v120
  %v462 = vunpack.c.l.b16 %v121
  %v463 = vunpack.c.l.b16 %v122
  %v464 = vunpack.c.l.b16 %v123
  %v465 = vunpack.c.l.b16 %v124
  %v466 = vunpack.c.l.b16 %v125
  %v467 = vunpack.c.l.b16 %v126
  %v468 = vunpack.c.l.b16 %v127
  %v469 = vunpack.c.l.b16 %v128
  %v470 = vunpack.c.l.b16 %v129
  %v471 = vunpack.c.l.b16 %v130
  %v472 = vunpack.c.l.b16 %v131
  %v473 = vunpack.c.l.b16 %v132
  %v474 = vunpack.c.l.b16 %v133
  %v475 = vunpack.c.l.b16 %v134
  %v476 = vunpack.c.l.b16 %v135
  %v477 = vunpack.c.l.b16 %v136
  %v478 = vunpack.c.l.b16 %v137
  %v479 = vunpack.c.l.b16 %v138
  %v480 = vunpack.c.l.b16 %v139
  %v481 = vunpack.c.l.b16 %v140
  %v482 = vunpack.c.l.b16 %v141
  %v483 = vunpack.c.l.b16 %v142
  %v484 = vunpack.c.l.b16 %v143
  %v485 = vunpack.c.l.b16 %v144
  %v486 = vunpack.c.l.b16 %v145
  %v487 = vunpack.c.l.b16 %v146
  %v488 = vunpack.c.l.b16 %v147
  %v489 = vunpack.c.l.b16 %v148
  %v490 = vunpack.c.l.b16 %v149
  %v491 = vunpack.c.l.b16 %v150
  %v492 = vunpack.c.l.b16 %v151
  %v493 = vunpack.c.l.b16 %v152
  %v494 = vunpack.c.l.b16 %v153
  %v495 = vunpack.c.l.b16 %v154
  %v496 = vunpack.c.l.b16 %v155
  %v497 = vunpack.c.l.b16 %v156
  %v498 = vunpack.c.l.b16 %v157
  %v499 = vunpack.c.l.b16 %v158
  %v500 = vunpack.c.l.b16 %v159
  %v501 = vunpack.c.l.b16 %v160
  %v502 = vunpack.c.l.b16 %v161
  %v503 = vunpack.c.l.b16 %v162
  %v504 = vunpack.c.l.b16 %v163
  %v505 = vunpack.c.l.b16 %v164
  %v506 = vunpack.c.l.b16 %v165
  %v507 = vunpack.c.l.b16 %v166
  %v508 = vunpack.c.l.b16 %v167
  %v509 = vunpack.c.l.b16 %v168
  %v510 = vunpack.c.l.b16 %v169
  %v511 = vunpack.c.l.b16 %v170
  %v512 = vunpack.c.l.b16 %v171
  %v513 = vpack.c.b16 %v370, %v369
  %v514 = vpack.c.b16 %v372, %v371
  %v515 = vpack.c.b16 %v374, %v373
  %v516 = vpack.c.b16 %v376, %v375
  %v517 = vpack.c.b16 %v378, %v377
  %v518 = vpack.c.b16 %v380, %v379
  %v519 = vpack.c.b16 %v382, %v381
  %v520 = vpack.c.b16 %v384, %v383
  %v521 = vpack.c.b16 %v386, %v385
  %v522 = vpack.c.b16 %v388, %v387
  %v523 = vpack.c.b16 %v390, %v389
  %v524 = vpack.c.b16 %v392, %v391
  %v525 = vpack.c.b16 %v394, %v393
  %v526 = vpack.c.b16 %v396, %v395
  %v527 = vpack.c.b16 %v398, %v397
  %v528 = vpack.c.b16 %v400, %v399
  %v529 = vpack.c.b16 %v402, %v401
  %v530 = vpack.c.b16 %v404, %v403
  %v531 = vpack.c.b16 %v406, %v405
  %v532 = vpack.c.b16 %v408, %v407
  %v533 = vpack.c.b16 %v410, %v409
  %v534 = vpack.c.b16 %v412, %v411
  %v535 = vpack.c.b16 %v414, %v413
  %v536 = vpack.c.b16 %v416, %v415
  %v537 = vpack.c.b16 %v418, %v417
  %v538 = vpack.c.b16 %v420, %v419
  %v539 = vpack.c.b16 %v422, %v421
  %v540 = vpack.c.b16 %v424, %v423
  %v541 = vpack.c.b16 %v426, %v425
  %v542 = vpack.c.b16 %v428, %v427
  %v543 = vpack.c.b16 %v430, %v429
  %v544 = vpack.c.b16 %v432, %v431
  %v545 = vpack.c.b16 %v434, %v433
  %v546 = vpack.c.b16 %v436, %v435
  %v547 = vpack.c.b16 %v438, %v437
  %v548 = vpack.c.b16 %v440, %v439
  %v549 = vpack.c.b16 %v442, %v441
  %v550 = vpack.c.b16 %v444, %v443
  %v551 = vpack.c.b16 %v446, %v445
  %v552 = vpack.c.b16 %v448, %v447
  %v553 = vpack.c.b16 %v450, %v449
  %v554 = vpack.c.b16 %v452, %v451
  %v555 = vpack.c.b16 %v454, %v453
  %v556 = vpack.c.b16 %v456, %v455
  %v557 = vpack.c.b16 %v458, %v457
  %v558 = vpack.c.b16 %v460, %v459
  %v559 = vpack.c.b16 %v462, %v461
  %v560 = vpack.c.b16 %v464, %v463
  %v561 = vpack.c.b16 %v466, %v465
  %v562 = vpack.c.b16 %v468, %v467
  %v563 = vpack.c.b16 %v470, %v469
  %v564 = vpack.c.b16 %v472, %v471
  %v565 = vpack.c.b16 %v474, %v473
  %v566 = vpack.c.b16 %v476, %v475
  %v567 = vpack.c.b16 %v478, %v477
  %v568 = vpack.c.b16 %v480, %v479
  %v569 = vpack.c.b16 %v482, %v481
  %v570 = vpack.c.b16 %v484, %v483
  %v571 = vpack.c.b16 %v486, %v485
  %v572 = vpack.c.b16 %v488, %v487
  %v573 = vpack.c.b16 %v490, %v489
  %v574 = vpack.c.b16 %v492, %v491
  %v575 = vpack.c.b16 %v494, %v493
  %v576 = vpack.c.b16 %v496, %v495
  %v577 = vpack.c.b16 %v498, %v497
  %v578 = vpack.c.b16 %v500, %v499
  %v579 = vpack.c.b16 %v502, %v501
  %v580 = vpack.c.b16 %v504, %v503
  %v581 = vpack.c.b16 %v506, %v505
  %v582 = vpack.c.b16 %v508, %v507
  %v583 = vpack.c.b16 %v510, %v509
  %v584 = vpack.c.b16 %v512, %v511
  %657 = vmatprep.subr.bf16.mxu0 0
  %658 = vmatpush1.bf16.msra.mxu0 %v513
  %659 = vmatprep.subr.bf16.mxu0 0
  %660 = vmatpush1.bf16.msra.mxu0 %v514
  %661 = vmatprep.subr.bf16.mxu0 0
  %662 = vmatpush1.bf16.msra.mxu0 %v515
  %663 = vmatprep.subr.bf16.mxu0 0
  %664 = vmatpush1.bf16.msra.mxu0 %v516
  %665 = vmatprep.subr.bf16.mxu0 0
  %666 = vmatpush1.bf16.msra.mxu0 %v517
  %667 = vmatprep.subr.bf16.mxu0 0
  %668 = vmatpush1.bf16.msra.mxu0 %v518
  %669 = vmatprep.subr.bf16.mxu0 0
  %670 = vmatpush1.bf16.msra.mxu0 %v519
  %671 = vmatprep.subr.bf16.mxu0 0
  %672 = vmatpush1.bf16.msra.mxu0 %v520
  %673 = vmatprep.subr.bf16.mxu0 0
  %674 = vmatpush1.bf16.msra.mxu0 %v521
  %675 = vmatprep.subr.bf16.mxu0 0
  %676 = vmatpush1.bf16.msra.mxu0 %v522
  %677 = vmatprep.subr.bf16.mxu0 0
  %678 = vmatpush1.bf16.msra.mxu0 %v523
  %679 = vmatprep.subr.bf16.mxu0 0
  %680 = vmatpush1.bf16.msra.mxu0 %v524
  %681 = vmatprep.subr.bf16.mxu0 0
  %682 = vmatpush1.bf16.msra.mxu0 %v525
  %683 = vmatprep.subr.bf16.mxu0 0
  %684 = vmatpush1.bf16.msra.mxu0 %v526
  %685 = vmatprep.subr.bf16.mxu0 0
  %686 = vmatpush1.bf16.msra.mxu0 %v527
  %687 = vmatprep.subr.bf16.mxu0 0
  %688 = vmatpush1.bf16.msra.mxu0 %v528
  %689 = vmatprep.mubr.bf16.mxu0 %v208
  %690 = vmatmul.mubr.bf16.gmra.mrb[0].mxu0 %v207
  %v691 = vpop.f32.mrb[0].mxu0
  %v692 = vadd.f32 %v177, %v691
  %v693 = vpop.f32.mrb[0].mxu0
  %v694 = vpop.f32.mrb[0].mxu0
  %v695 = vadd.f32 %v177, %v694
  %v696 = vpop.f32.mrb[0].mxu0
  %697 = vdwg.mxu0
  %698 = vmatprep.subr.bf16.mxu0 0
  %699 = vmatpush1.bf16.msra.mxu0 %v529
  %700 = vmatprep.subr.bf16.mxu0 0
  %701 = vmatpush1.bf16.msra.mxu0 %v530
  %702 = vmatprep.subr.bf16.mxu0 0
  %703 = vmatpush1.bf16.msra.mxu0 %v531
  %704 = vmatprep.subr.bf16.mxu0 0
  %705 = vmatpush1.bf16.msra.mxu0 %v532
  %706 = vmatprep.subr.bf16.mxu0 0
  %707 = vmatpush1.bf16.msra.mxu0 %v533
  %708 = vmatprep.subr.bf16.mxu0 0
  %709 = vmatpush1.bf16.msra.mxu0 %v534
  %710 = vmatprep.subr.bf16.mxu0 0
  %711 = vmatpush1.bf16.msra.mxu0 %v535
  %712 = vmatprep.subr.bf16.mxu0 0
  %713 = vmatpush1.bf16.msra.mxu0 %v536
  %714 = vmatprep.subr.bf16.mxu0 0
  %715 = vmatpush1.bf16.msra.mxu0 %v537
  %716 = vmatprep.subr.bf16.mxu0 0
  %717 = vmatpush1.bf16.msra.mxu0 %v538
  %718 = vmatprep.subr.bf16.mxu0 0
  %719 = vmatpush1.bf16.msra.mxu0 %v539
  %720 = vmatprep.subr.bf16.mxu0 0
  %721 = vmatpush1.bf16.msra.mxu0 %v540
  %722 = vmatprep.subr.bf16.mxu0 0
  %723 = vmatpush1.bf16.msra.mxu0 %v541
  %724 = vmatprep.subr.bf16.mxu0 0
  %725 = vmatpush1.bf16.msra.mxu0 %v542
  %726 = vmatprep.subr.bf16.mxu0 0
  %727 = vmatpush1.bf16.msra.mxu0 %v543
  %728 = vmatprep.subr.bf16.mxu0 0
  %729 = vmatpush1.bf16.msra.mxu0 %v544
  %730 = vmatprep.mubr.bf16.mxu0 %v210
  %731 = vmatmul.mubr.bf16.gmra.mrb[0].mxu0 %v209
  %v732 = vpop.f32.mrb[0].mxu0
  %v733 = vadd.f32 %v692, %v732
  %v734 = vpop.f32.mrb[0].mxu0
  %v735 = vpop.f32.mrb[0].mxu0
  %v736 = vadd.f32 %v695, %v735
  %v737 = vpop.f32.mrb[0].mxu0
  %738 = vdwg.mxu0
  %739 = vmatprep.subr.bf16.mxu0 0
  %740 = vmatpush1.bf16.msra.mxu0 %v545
  %741 = vmatprep.subr.bf16.mxu0 0
  %742 = vmatpush1.bf16.msra.mxu0 %v546
  %743 = vmatprep.subr.bf16.mxu0 0
  %744 = vmatpush1.bf16.msra.mxu0 %v547
  %745 = vmatprep.subr.bf16.mxu0 0
  %746 = vmatpush1.bf16.msra.mxu0 %v548
  %747 = vmatprep.subr.bf16.mxu0 0
  %748 = vmatpush1.bf16.msra.mxu0 %v549
  %749 = vmatprep.subr.bf16.mxu0 0
  %750 = vmatpush1.bf16.msra.mxu0 %v550
  %751 = vmatprep.subr.bf16.mxu0 0
  %752 = vmatpush1.bf16.msra.mxu0 %v551
  %753 = vmatprep.subr.bf16.mxu0 0
  %754 = vmatpush1.bf16.msra.mxu0 %v552
  %755 = vmatprep.subr.bf16.mxu0 0
  %756 = vmatpush1.bf16.msra.mxu0 %v553
  %757 = vmatprep.subr.bf16.mxu0 0
  %758 = vmatpush1.bf16.msra.mxu0 %v554
  %759 = vmatprep.subr.bf16.mxu0 0
  %760 = vmatpush1.bf16.msra.mxu0 %v555
  %761 = vmatprep.subr.bf16.mxu0 0
  %762 = vmatpush1.bf16.msra.mxu0 %v556
  %763 = vmatprep.subr.bf16.mxu0 0
  %764 = vmatpush1.bf16.msra.mxu0 %v557
  %765 = vmatprep.subr.bf16.mxu0 0
  %766 = vmatpush1.bf16.msra.mxu0 %v558
  %767 = vmatprep.subr.bf16.mxu0 0
  %768 = vmatpush1.bf16.msra.mxu0 %v559
  %769 = vmatprep.subr.bf16.mxu0 0
  %770 = vmatpush1.bf16.msra.mxu0 %v560
  %771 = vmatprep.mubr.bf16.mxu0 %v212
  %772 = vmatmul.mubr.bf16.gmra.mrb[0].mxu0 %v211
  %v773 = vpop.f32.mrb[0].mxu0
  %v774 = vadd.f32 %v733, %v773
  %v775 = vpop.f32.mrb[0].mxu0
  %v776 = vpop.f32.mrb[0].mxu0
  %v777 = vadd.f32 %v736, %v776
  %v778 = vpop.f32.mrb[0].mxu0
  %779 = vdwg.mxu0
  %780 = vmatprep.subr.bf16.mxu0 0
  %781 = vmatpush1.bf16.msra.mxu0 %v561
  %782 = vmatprep.subr.bf16.mxu0 0
  %783 = vmatpush1.bf16.msra.mxu0 %v562
  %784 = vmatprep.subr.bf16.mxu0 0
  %785 = vmatpush1.bf16.msra.mxu0 %v563
  %786 = vmatprep.subr.bf16.mxu0 0
  %787 = vmatpush1.bf16.msra.mxu0 %v564
  %788 = vmatprep.subr.bf16.mxu0 0
  %789 = vmatpush1.bf16.msra.mxu0 %v565
  %790 = vmatprep.subr.bf16.mxu0 0
  %791 = vmatpush1.bf16.msra.mxu0 %v566
  %792 = vmatprep.subr.bf16.mxu0 0
  %793 = vmatpush1.bf16.msra.mxu0 %v567
  %794 = vmatprep.subr.bf16.mxu0 0
  %795 = vmatpush1.bf16.msra.mxu0 %v568
  %796 = vmatprep.subr.bf16.mxu0 0
  %797 = vmatpush1.bf16.msra.mxu0 %v569
  %798 = vmatprep.subr.bf16.mxu0 0
  %799 = vmatpush1.bf16.msra.mxu0 %v570
  %800 = vmatprep.subr.bf16.mxu0 0
  %801 = vmatpush1.bf16.msra.mxu0 %v571
  %802 = vmatprep.subr.bf16.mxu0 0
  %803 = vmatpush1.bf16.msra.mxu0 %v572
  %804 = vmatprep.subr.bf16.mxu0 0
  %805 = vmatpush1.bf16.msra.mxu0 %v573
  %806 = vmatprep.subr.bf16.mxu0 0
  %807 = vmatpush1.bf16.msra.mxu0 %v574
  %808 = vmatprep.subr.bf16.mxu0 0
  %809 = vmatpush1.bf16.msra.mxu0 %v575
  %810 = vmatprep.subr.bf16.mxu0 0
  %811 = vmatpush1.bf16.msra.mxu0 %v576
  %812 = vmatprep.mubr.bf16.mxu0 %v214
  %813 = vmatmul.mubr.bf16.gmra.mrb[0].mxu0 %v213
  %v814 = vpop.f32.mrb[0].mxu0
  %v815 = vadd.f32 %v774, %v814
  %v816 = vpop.f32.mrb[0].mxu0
  %v817 = vpop.f32.mrb[0].mxu0
  %v818 = vadd.f32 %v777, %v817
  %v819 = vpop.f32.mrb[0].mxu0
  %820 = vdwg.mxu0
  %821 = vmatprep.subr.bf16.mxu0 0
  %822 = vmatpush1.bf16.msra.mxu0 %v577
  %823 = vmatprep.subr.bf16.mxu0 0
  %824 = vmatpush1.bf16.msra.mxu0 %v578
  %825 = vmatprep.subr.bf16.mxu0 0
  %826 = vmatpush1.bf16.msra.mxu0 %v579
  %827 = vmatprep.subr.bf16.mxu0 0
  %828 = vmatpush1.bf16.msra.mxu0 %v580
  %829 = vmatprep.subr.bf16.mxu0 0
  %830 = vmatpush1.bf16.msra.mxu0 %v581
  %831 = vmatprep.subr.bf16.mxu0 0
  %832 = vmatpush1.bf16.msra.mxu0 %v582
  %833 = vmatprep.subr.bf16.mxu0 0
  %834 = vmatpush1.bf16.msra.mxu0 %v583
  %835 = vmatprep.subr.bf16.mxu0 0
  %836 = vmatpush1.bf16.msra.mxu0 %v584
  %837 = vmatprep.subr.bf16.mxu0 0
  %838 = vmatpush1.bf16.msra.mxu0 0
  %839 = vmatprep.subr.bf16.mxu0 0
  %840 = vmatpush1.bf16.msra.mxu0 0
  %841 = vmatprep.subr.bf16.mxu0 0
  %842 = vmatpush1.bf16.msra.mxu0 0
  %843 = vmatprep.subr.bf16.mxu0 0
  %844 = vmatpush1.bf16.msra.mxu0 0
  %845 = vmatprep.subr.bf16.mxu0 0
  %846 = vmatpush1.bf16.msra.mxu0 0
  %847 = vmatprep.subr.bf16.mxu0 0
  %848 = vmatpush1.bf16.msra.mxu0 0
  %849 = vmatprep.subr.bf16.mxu0 0
  %850 = vmatpush1.bf16.msra.mxu0 0
  %851 = vmatprep.subr.bf16.mxu0 0
  %852 = vmatpush1.bf16.msra.mxu0 0
  %853 = vmatprep.mubr.bf16.mxu0 0
  %854 = vmatmul.mubr.bf16.gmra.mrb[0].mxu0 %v215
  %v855 = vpop.f32.mrb[0].mxu0
  %v856 = vadd.f32 %v815, %v855
  %v857 = vpop.f32.mrb[0].mxu0
  %v858 = vpop.f32.mrb[0].mxu0
  %v859 = vadd.f32 %v818, %v858
  %v860 = vpop.f32.mrb[0].mxu0
  %861 = vdwg.mxu0
  %v862 = vld [vmem:[%s3] sm:$0xf]
  %v863 = vld [vmem:[%s3 + $0x4] sm:$0xf]
  %v864 = vunpack.c.l.bf16 %v862
  %v865 = vunpack.c.l.bf16 %v863
  %v866 = vadd.f32 %v856, %v864
  %v867 = vadd.f32 %v859, %v865
  %v868 = vmax.f32 %v866, 0.0
  %v869 = vmax.f32 %v867, 0.0
  %v870 = vpack.c.bf16 %v869, %v868
  %v872 = vunpack.c.l.b16 %v870
  %v873 = vunpack.c.h.b16 %v870
  %v874 = vpack.c.b16 %v872, %v872
  %v875 = vpack.c.b16 %v873, %v873
  %878 = vst [vmem:[%s4] sm:$0xf] %v874
  %879 = vst [vmem:[%s4 + $0x4] sm:$0xf] %v875
  // Predicated region
  $region18: #{_lambda_.35} parent=0 // pred_check
    _
  $region19: #{_lambda_.35} parent=0 // pred_check_branch
    %881 = sbr.rel (0) target = $region21
  $region20: #{_lambda_.35} parent=0 // pred_region
    _
  $region21: #{_lambda_.35} parent=0 // pred_fallthru
    _
  // Predicated region
  $region22: #{_lambda_.35} parent=0 // pred_check
    _
  $region23: #{_lambda_.35} parent=0 // pred_check_branch
    %883 = sbr.rel (0) target = $region25
  $region24: #{_lambda_.35} parent=0 // pred_region
    _
  $region25: #{_lambda_.35} parent=0 // pred_fallthru
    _

// kernel: _lambda_.36
$region0: #{_lambda_.36}
  #allocation0 [shape = 'u32[]', space=smem, size = 0x4, offset = 0x4, fixed_abs, tag = 'smem constant byte address 0x4 - core index']
  #allocation1 [shape = 'u32[144,128]{1,0:T(1,128)}', space=vmem, size = 0x12000, scoped, tag = 'internal scratch']
  %s0 = inlined_call_operand.vmem [shape: bf16[16,1152], index: 0, kind: input, shape index: {}]
  %s1 = inlined_call_operand.vmem [shape: bf16[1152,128], index: 1, kind: input, shape index: {}]
  %s2 = inlined_call_operand.vmem [shape: f32[1,128], index: 2, kind: input, shape index: {}]
  %s3 = inlined_call_operand.vmem [shape: bf16[16,128], index: 3, kind: output, shape index: {}]
  %s4 = sld [smem:[#allocation0]]
  $region22: #{_lambda_.36} parent=0
    _
  %s6 = ssub.s32 1, %s4
  %s7 = scalar_select 0, %s6, %s4
  // Predicated region
  $region2: #{_lambda_.36} parent=0 // pred_check
    _
  $region3: #{_lambda_.36} parent=0 // pred_check_branch
    %9 = sbr.rel (0) target = $region5
  $region4: #{_lambda_.36} parent=0 // pred_region
    _
  $region5: #{_lambda_.36} parent=0 // pred_fallthru
    _
  // Predicated region
  $region6: #{_lambda_.36} parent=0 // pred_check
    _
  $region7: #{_lambda_.36} parent=0 // pred_check_branch
    %11 = sbr.rel (0) target = $region9
  $region8: #{_lambda_.36} parent=0 // pred_region
    _
  $region9: #{_lambda_.36} parent=0 // pred_fallthru
    _
  // Predicated region
  $region10: #{_lambda_.36} parent=0 // pred_check
    _
  $region11: #{_lambda_.36} parent=0 // pred_check_branch
    %13 = sbr.rel (0) target = $region13
  $region12: #{_lambda_.36} parent=0 // pred_region
    _
  $region13: #{_lambda_.36} parent=0 // pred_fallthru
    _
  %v15 = vld [vmem:[%s0] sm:$0xff]
  %v16 = vld [vmem:[%s0 + $0x8] sm:$0xff]
  %v17 = vld [vmem:[%s0 + $0x10] sm:$0xff]
  %v18 = vld [vmem:[%s0 + $0x18] sm:$0xff]
  %v19 = vld [vmem:[%s0 + $0x20] sm:$0xf]
  %v20 = vld [vmem:[%s0 + $0x24] sm:$0xff]
  %v21 = vld [vmem:[%s0 + $0x2c] sm:$0xff]
  %v22 = vld [vmem:[%s0 + $0x34] sm:$0xff]
  %v23 = vld [vmem:[%s0 + $0x3c] sm:$0xff]
  %v24 = vld [vmem:[%s0 + $0x44] sm:$0xf]
  %v25 = vld [vmem:[%s1] sm:$0xf]
  %v26 = vld [vmem:[%s1 + $0x4] sm:$0xf]
  %v27 = vld [vmem:[%s1 + $0x8] sm:$0xf]
  %v28 = vld [vmem:[%s1 + $0xc] sm:$0xf]
  %v29 = vld [vmem:[%s1 + $0x10] sm:$0xf]
  %v30 = vld [vmem:[%s1 + $0x14] sm:$0xf]
  %v31 = vld [vmem:[%s1 + $0x18] sm:$0xf]
  %v32 = vld [vmem:[%s1 + $0x1c] sm:$0xf]
  %v33 = vld [vmem:[%s1 + $0x20] sm:$0xf]
  %v34 = vld [vmem:[%s1 + $0x24] sm:$0xf]
  %v35 = vld [vmem:[%s1 + $0x28] sm:$0xf]
  %v36 = vld [vmem:[%s1 + $0x2c] sm:$0xf]
  %v37 = vld [vmem:[%s1 + $0x30] sm:$0xf]
  %v38 = vld [vmem:[%s1 + $0x34] sm:$0xf]
  %v39 = vld [vmem:[%s1 + $0x38] sm:$0xf]
  %v40 = vld [vmem:[%s1 + $0x3c] sm:$0xf]
  %v41 = vld [vmem:[%s1 + $0x40] sm:$0xf]
  %v42 = vld [vmem:[%s1 + $0x44] sm:$0xf]
  %v43 = vld [vmem:[%s1 + $0x48] sm:$0xf]
  %v44 = vld [vmem:[%s1 + $0x4c] sm:$0xf]
  %v45 = vld [vmem:[%s1 + $0x50] sm:$0xf]
  %v46 = vld [vmem:[%s1 + $0x54] sm:$0xf]
  %v47 = vld [vmem:[%s1 + $0x58] sm:$0xf]
  %v48 = vld [vmem:[%s1 + $0x5c] sm:$0xf]
  %v49 = vld [vmem:[%s1 + $0x60] sm:$0xf]
  %v50 = vld [vmem:[%s1 + $0x64] sm:$0xf]
  %v51 = vld [vmem:[%s1 + $0x68] sm:$0xf]
  %v52 = vld [vmem:[%s1 + $0x6c] sm:$0xf]
  %v53 = vld [vmem:[%s1 + $0x70] sm:$0xf]
  %v54 = vld [vmem:[%s1 + $0x74] sm:$0xf]
  %v55 = vld [vmem:[%s1 + $0x78] sm:$0xf]
  %v56 = vld [vmem:[%s1 + $0x7c] sm:$0xf]
  %v57 = vld [vmem:[%s1 + $0x80] sm:$0xf]
  %v58 = vld [vmem:[%s1 + $0x84] sm:$0xf]
  %v59 = vld [vmem:[%s1 + $0x88] sm:$0xf]
  %v60 = vld [vmem:[%s1 + $0x8c] sm:$0xf]
  %v61 = vld [vmem:[%s1 + $0x90] sm:$0xf]
  %v62 = vld [vmem:[%s1 + $0x94] sm:$0xf]
  %v63 = vld [vmem:[%s1 + $0x98] sm:$0xf]
  %v64 = vld [vmem:[%s1 + $0x9c] sm:$0xf]
  %v65 = vld [vmem:[%s1 + $0xa0] sm:$0xf]
  %v66 = vld [vmem:[%s1 + $0xa4] sm:$0xf]
  %v67 = vld [vmem:[%s1 + $0xa8] sm:$0xf]
  %v68 = vld [vmem:[%s1 + $0xac] sm:$0xf]
  %v69 = vld [vmem:[%s1 + $0xb0] sm:$0xf]
  %v70 = vld [vmem:[%s1 + $0xb4] sm:$0xf]
  %v71 = vld [vmem:[%s1 + $0xb8] sm:$0xf]
  %v72 = vld [vmem:[%s1 + $0xbc] sm:$0xf]
  %v73 = vld [vmem:[%s1 + $0xc0] sm:$0xf]
  %v74 = vld [vmem:[%s1 + $0xc4] sm:$0xf]
  %v75 = vld [vmem:[%s1 + $0xc8] sm:$0xf]
  %v76 = vld [vmem:[%s1 + $0xcc] sm:$0xf]
  %v77 = vld [vmem:[%s1 + $0xd0] sm:$0xf]
  %v78 = vld [vmem:[%s1 + $0xd4] sm:$0xf]
  %v79 = vld [vmem:[%s1 + $0xd8] sm:$0xf]
  %v80 = vld [vmem:[%s1 + $0xdc] sm:$0xf]
  %v81 = vld [vmem:[%s1 + $0xe0] sm:$0xf]
  %v82 = vld [vmem:[%s1 + $0xe4] sm:$0xf]
  %v83 = vld [vmem:[%s1 + $0xe8] sm:$0xf]
  %v84 = vld [vmem:[%s1 + $0xec] sm:$0xf]
  %v85 = vld [vmem:[%s1 + $0xf0] sm:$0xf]
  %v86 = vld [vmem:[%s1 + $0xf4] sm:$0xf]
  %v87 = vld [vmem:[%s1 + $0xf8] sm:$0xf]
  %v88 = vld [vmem:[%s1 + $0xfc] sm:$0xf]
  %v89 = vld [vmem:[%s1 + $0x100] sm:$0xf]
  %v90 = vld [vmem:[%s1 + $0x104] sm:$0xf]
  %v91 = vld [vmem:[%s1 + $0x108] sm:$0xf]
  %v92 = vld [vmem:[%s1 + $0x10c] sm:$0xf]
  %v93 = vld [vmem:[%s1 + $0x110] sm:$0xf]
  %v94 = vld [vmem:[%s1 + $0x114] sm:$0xf]
  %v95 = vld [vmem:[%s1 + $0x118] sm:$0xf]
  %v96 = vld [vmem:[%s1 + $0x11c] sm:$0xf]
  %v97 = vld [vmem:[%s1 + $0x120] sm:$0xf]
  %v98 = vld [vmem:[%s1 + $0x124] sm:$0xf]
  %v99 = vld [vmem:[%s1 + $0x128] sm:$0xf]
  %v100 = vld [vmem:[%s1 + $0x12c] sm:$0xf]
  %v101 = vld [vmem:[%s1 + $0x130] sm:$0xf]
  %v102 = vld [vmem:[%s1 + $0x134] sm:$0xf]
  %v103 = vld [vmem:[%s1 + $0x138] sm:$0xf]
  %v104 = vld [vmem:[%s1 + $0x13c] sm:$0xf]
  %v105 = vld [vmem:[%s1 + $0x140] sm:$0xf]
  %v106 = vld [vmem:[%s1 + $0x144] sm:$0xf]
  %v107 = vld [vmem:[%s1 + $0x148] sm:$0xf]
  %v108 = vld [vmem:[%s1 + $0x14c] sm:$0xf]
  %v109 = vld [vmem:[%s1 + $0x150] sm:$0xf]
  %v110 = vld [vmem:[%s1 + $0x154] sm:$0xf]
  %v111 = vld [vmem:[%s1 + $0x158] sm:$0xf]
  %v112 = vld [vmem:[%s1 + $0x15c] sm:$0xf]
  %v113 = vld [vmem:[%s1 + $0x160] sm:$0xf]
  %v114 = vld [vmem:[%s1 + $0x164] sm:$0xf]
  %v115 = vld [vmem:[%s1 + $0x168] sm:$0xf]
  %v116 = vld [vmem:[%s1 + $0x16c] sm:$0xf]
  %v117 = vld [vmem:[%s1 + $0x170] sm:$0xf]
  %v118 = vld [vmem:[%s1 + $0x174] sm:$0xf]
  %v119 = vld [vmem:[%s1 + $0x178] sm:$0xf]
  %v120 = vld [vmem:[%s1 + $0x17c] sm:$0xf]
  %v121 = vld [vmem:[%s1 + $0x180] sm:$0xf]
  %v122 = vld [vmem:[%s1 + $0x184] sm:$0xf]
  %v123 = vld [vmem:[%s1 + $0x188] sm:$0xf]
  %v124 = vld [vmem:[%s1 + $0x18c] sm:$0xf]
  %v125 = vld [vmem:[%s1 + $0x190] sm:$0xf]
  %v126 = vld [vmem:[%s1 + $0x194] sm:$0xf]
  %v127 = vld [vmem:[%s1 + $0x198] sm:$0xf]
  %v128 = vld [vmem:[%s1 + $0x19c] sm:$0xf]
  %v129 = vld [vmem:[%s1 + $0x1a0] sm:$0xf]
  %v130 = vld [vmem:[%s1 + $0x1a4] sm:$0xf]
  %v131 = vld [vmem:[%s1 + $0x1a8] sm:$0xf]
  %v132 = vld [vmem:[%s1 + $0x1ac] sm:$0xf]
  %v133 = vld [vmem:[%s1 + $0x1b0] sm:$0xf]
  %v134 = vld [vmem:[%s1 + $0x1b4] sm:$0xf]
  %v135 = vld [vmem:[%s1 + $0x1b8] sm:$0xf]
  %v136 = vld [vmem:[%s1 + $0x1bc] sm:$0xf]
  %v137 = vld [vmem:[%s1 + $0x1c0] sm:$0xf]
  %v138 = vld [vmem:[%s1 + $0x1c4] sm:$0xf]
  %v139 = vld [vmem:[%s1 + $0x1c8] sm:$0xf]
  %v140 = vld [vmem:[%s1 + $0x1cc] sm:$0xf]
  %v141 = vld [vmem:[%s1 + $0x1d0] sm:$0xf]
  %v142 = vld [vmem:[%s1 + $0x1d4] sm:$0xf]
  %v143 = vld [vmem:[%s1 + $0x1d8] sm:$0xf]
  %v144 = vld [vmem:[%s1 + $0x1dc] sm:$0xf]
  %v145 = vld [vmem:[%s1 + $0x1e0] sm:$0xf]
  %v146 = vld [vmem:[%s1 + $0x1e4] sm:$0xf]
  %v147 = vld [vmem:[%s1 + $0x1e8] sm:$0xf]
  %v148 = vld [vmem:[%s1 + $0x1ec] sm:$0xf]
  %v149 = vld [vmem:[%s1 + $0x1f0] sm:$0xf]
  %v150 = vld [vmem:[%s1 + $0x1f4] sm:$0xf]
  %v151 = vld [vmem:[%s1 + $0x1f8] sm:$0xf]
  %v152 = vld [vmem:[%s1 + $0x1fc] sm:$0xf]
  %v153 = vld [vmem:[%s1 + $0x200] sm:$0xf]
  %v154 = vld [vmem:[%s1 + $0x204] sm:$0xf]
  %v155 = vld [vmem:[%s1 + $0x208] sm:$0xf]
  %v156 = vld [vmem:[%s1 + $0x20c] sm:$0xf]
  %v157 = vld [vmem:[%s1 + $0x210] sm:$0xf]
  %v158 = vld [vmem:[%s1 + $0x214] sm:$0xf]
  %v159 = vld [vmem:[%s1 + $0x218] sm:$0xf]
  %v160 = vld [vmem:[%s1 + $0x21c] sm:$0xf]
  %v161 = vld [vmem:[%s1 + $0x220] sm:$0xf]
  %v162 = vld [vmem:[%s1 + $0x224] sm:$0xf]
  %v163 = vld [vmem:[%s1 + $0x228] sm:$0xf]
  %v164 = vld [vmem:[%s1 + $0x22c] sm:$0xf]
  %v165 = vld [vmem:[%s1 + $0x230] sm:$0xf]
  %v166 = vld [vmem:[%s1 + $0x234] sm:$0xf]
  %v167 = vld [vmem:[%s1 + $0x238] sm:$0xf]
  %v168 = vld [vmem:[%s1 + $0x23c] sm:$0xf]
  %v169 = vld [vmem:[%s2] sm:$0x1]
  %v171 = vlaneseq
  %v172 = vshrl.u32 %v171, 7
  %v173 = vsub.s32 0, %v172
  %v174 = vrot.slane %v169, %v173
  %v186 = vunpack.c.l.b16 %v15
  %v187 = vunpack.c.h.b16 %v15
  %v188 = vunpack.c.l.b16 %v16
  %v189 = vunpack.c.h.b16 %v16
  %v190 = vunpack.c.l.b16 %v17
  %v191 = vunpack.c.h.b16 %v17
  %v192 = vunpack.c.l.b16 %v18
  %v193 = vunpack.c.h.b16 %v18
  %v194 = vunpack.c.l.b16 %v19
  %v195 = vunpack.c.l.b16 %v20
  %v196 = vunpack.c.h.b16 %v20
  %v197 = vunpack.c.l.b16 %v21
  %v198 = vunpack.c.h.b16 %v21
  %v199 = vunpack.c.l.b16 %v22
  %v200 = vunpack.c.h.b16 %v22
  %v201 = vunpack.c.l.b16 %v23
  %v202 = vunpack.c.h.b16 %v23
  %v203 = vunpack.c.l.b16 %v24
  %v204 = vpack.c.b16 %v195, %v186
  %v205 = vpack.c.b16 %v196, %v187
  %v206 = vpack.c.b16 %v197, %v188
  %v207 = vpack.c.b16 %v198, %v189
  %v208 = vpack.c.b16 %v199, %v190
  %v209 = vpack.c.b16 %v200, %v191
  %v210 = vpack.c.b16 %v201, %v192
  %v211 = vpack.c.b16 %v202, %v193
  %v212 = vpack.c.b16 %v203, %v194
  %v366 = vunpack.c.l.b16 %v25
  %v367 = vunpack.c.l.b16 %v26
  %v368 = vunpack.c.l.b16 %v27
  %v369 = vunpack.c.l.b16 %v28
  %v370 = vunpack.c.l.b16 %v29
  %v371 = vunpack.c.l.b16 %v30
  %v372 = vunpack.c.l.b16 %v31
  %v373 = vunpack.c.l.b16 %v32
  %v374 = vunpack.c.l.b16 %v33
  %v375 = vunpack.c.l.b16 %v34
  %v376 = vunpack.c.l.b16 %v35
  %v377 = vunpack.c.l.b16 %v36
  %v378 = vunpack.c.l.b16 %v37
  %v379 = vunpack.c.l.b16 %v38
  %v380 = vunpack.c.l.b16 %v39
  %v381 = vunpack.c.l.b16 %v40
  %v382 = vunpack.c.l.b16 %v41
  %v383 = vunpack.c.l.b16 %v42
  %v384 = vunpack.c.l.b16 %v43
  %v385 = vunpack.c.l.b16 %v44
  %v386 = vunpack.c.l.b16 %v45
  %v387 = vunpack.c.l.b16 %v46
  %v388 = vunpack.c.l.b16 %v47
  %v389 = vunpack.c.l.b16 %v48
  %v390 = vunpack.c.l.b16 %v49
  %v391 = vunpack.c.l.b16 %v50
  %v392 = vunpack.c.l.b16 %v51
  %v393 = vunpack.c.l.b16 %v52
  %v394 = vunpack.c.l.b16 %v53
  %v395 = vunpack.c.l.b16 %v54
  %v396 = vunpack.c.l.b16 %v55
  %v397 = vunpack.c.l.b16 %v56
  %v398 = vunpack.c.l.b16 %v57
  %v399 = vunpack.c.l.b16 %v58
  %v400 = vunpack.c.l.b16 %v59
  %v401 = vunpack.c.l.b16 %v60
  %v402 = vunpack.c.l.b16 %v61
  %v403 = vunpack.c.l.b16 %v62
  %v404 = vunpack.c.l.b16 %v63
  %v405 = vunpack.c.l.b16 %v64
  %v406 = vunpack.c.l.b16 %v65
  %v407 = vunpack.c.l.b16 %v66
  %v408 = vunpack.c.l.b16 %v67
  %v409 = vunpack.c.l.b16 %v68
  %v410 = vunpack.c.l.b16 %v69
  %v411 = vunpack.c.l.b16 %v70
  %v412 = vunpack.c.l.b16 %v71
  %v413 = vunpack.c.l.b16 %v72
  %v414 = vunpack.c.l.b16 %v73
  %v415 = vunpack.c.l.b16 %v74
  %v416 = vunpack.c.l.b16 %v75
  %v417 = vunpack.c.l.b16 %v76
  %v418 = vunpack.c.l.b16 %v77
  %v419 = vunpack.c.l.b16 %v78
  %v420 = vunpack.c.l.b16 %v79
  %v421 = vunpack.c.l.b16 %v80
  %v422 = vunpack.c.l.b16 %v81
  %v423 = vunpack.c.l.b16 %v82
  %v424 = vunpack.c.l.b16 %v83
  %v425 = vunpack.c.l.b16 %v84
  %v426 = vunpack.c.l.b16 %v85
  %v427 = vunpack.c.l.b16 %v86
  %v428 = vunpack.c.l.b16 %v87
  %v429 = vunpack.c.l.b16 %v88
  %v430 = vunpack.c.l.b16 %v89
  %v431 = vunpack.c.l.b16 %v90
  %v432 = vunpack.c.l.b16 %v91
  %v433 = vunpack.c.l.b16 %v92
  %v434 = vunpack.c.l.b16 %v93
  %v435 = vunpack.c.l.b16 %v94
  %v436 = vunpack.c.l.b16 %v95
  %v437 = vunpack.c.l.b16 %v96
  %v438 = vunpack.c.l.b16 %v97
  %v439 = vunpack.c.l.b16 %v98
  %v440 = vunpack.c.l.b16 %v99
  %v441 = vunpack.c.l.b16 %v100
  %v442 = vunpack.c.l.b16 %v101
  %v443 = vunpack.c.l.b16 %v102
  %v444 = vunpack.c.l.b16 %v103
  %v445 = vunpack.c.l.b16 %v104
  %v446 = vunpack.c.l.b16 %v105
  %v447 = vunpack.c.l.b16 %v106
  %v448 = vunpack.c.l.b16 %v107
  %v449 = vunpack.c.l.b16 %v108
  %v450 = vunpack.c.l.b16 %v109
  %v451 = vunpack.c.l.b16 %v110
  %v452 = vunpack.c.l.b16 %v111
  %v453 = vunpack.c.l.b16 %v112
  %v454 = vunpack.c.l.b16 %v113
  %v455 = vunpack.c.l.b16 %v114
  %v456 = vunpack.c.l.b16 %v115
  %v457 = vunpack.c.l.b16 %v116
  %v458 = vunpack.c.l.b16 %v117
  %v459 = vunpack.c.l.b16 %v118
  %v460 = vunpack.c.l.b16 %v119
  %v461 = vunpack.c.l.b16 %v120
  %v462 = vunpack.c.l.b16 %v121
  %v463 = vunpack.c.l.b16 %v122
  %v464 = vunpack.c.l.b16 %v123
  %v465 = vunpack.c.l.b16 %v124
  %v466 = vunpack.c.l.b16 %v125
  %v467 = vunpack.c.l.b16 %v126
  %v468 = vunpack.c.l.b16 %v127
  %v469 = vunpack.c.l.b16 %v128
  %v470 = vunpack.c.l.b16 %v129
  %v471 = vunpack.c.l.b16 %v130
  %v472 = vunpack.c.l.b16 %v131
  %v473 = vunpack.c.l.b16 %v132
  %v474 = vunpack.c.l.b16 %v133
  %v475 = vunpack.c.l.b16 %v134
  %v476 = vunpack.c.l.b16 %v135
  %v477 = vunpack.c.l.b16 %v136
  %v478 = vunpack.c.l.b16 %v137
  %v479 = vunpack.c.l.b16 %v138
  %v480 = vunpack.c.l.b16 %v139
  %v481 = vunpack.c.l.b16 %v140
  %v482 = vunpack.c.l.b16 %v141
  %v483 = vunpack.c.l.b16 %v142
  %v484 = vunpack.c.l.b16 %v143
  %v485 = vunpack.c.l.b16 %v144
  %v486 = vunpack.c.l.b16 %v145
  %v487 = vunpack.c.l.b16 %v146
  %v488 = vunpack.c.l.b16 %v147
  %v489 = vunpack.c.l.b16 %v148
  %v490 = vunpack.c.l.b16 %v149
  %v491 = vunpack.c.l.b16 %v150
  %v492 = vunpack.c.l.b16 %v151
  %v493 = vunpack.c.l.b16 %v152
  %v494 = vunpack.c.l.b16 %v153
  %v495 = vunpack.c.l.b16 %v154
  %v496 = vunpack.c.l.b16 %v155
  %v497 = vunpack.c.l.b16 %v156
  %v498 = vunpack.c.l.b16 %v157
  %v499 = vunpack.c.l.b16 %v158
  %v500 = vunpack.c.l.b16 %v159
  %v501 = vunpack.c.l.b16 %v160
  %v502 = vunpack.c.l.b16 %v161
  %v503 = vunpack.c.l.b16 %v162
  %v504 = vunpack.c.l.b16 %v163
  %v505 = vunpack.c.l.b16 %v164
  %v506 = vunpack.c.l.b16 %v165
  %v507 = vunpack.c.l.b16 %v166
  %v508 = vunpack.c.l.b16 %v167
  %v509 = vunpack.c.l.b16 %v168
  %v510 = vpack.c.b16 %v367, %v366
  %v511 = vpack.c.b16 %v369, %v368
  %v512 = vpack.c.b16 %v371, %v370
  %v513 = vpack.c.b16 %v373, %v372
  %v514 = vpack.c.b16 %v375, %v374
  %v515 = vpack.c.b16 %v377, %v376
  %v516 = vpack.c.b16 %v379, %v378
  %v517 = vpack.c.b16 %v381, %v380
  %v518 = vpack.c.b16 %v383, %v382
  %v519 = vpack.c.b16 %v385, %v384
  %v520 = vpack.c.b16 %v387, %v386
  %v521 = vpack.c.b16 %v389, %v388
  %v522 = vpack.c.b16 %v391, %v390
  %v523 = vpack.c.b16 %v393, %v392
  %v524 = vpack.c.b16 %v395, %v394
  %v525 = vpack.c.b16 %v397, %v396
  %v526 = vpack.c.b16 %v399, %v398
  %v527 = vpack.c.b16 %v401, %v400
  %v528 = vpack.c.b16 %v403, %v402
  %v529 = vpack.c.b16 %v405, %v404
  %v530 = vpack.c.b16 %v407, %v406
  %v531 = vpack.c.b16 %v409, %v408
  %v532 = vpack.c.b16 %v411, %v410
  %v533 = vpack.c.b16 %v413, %v412
  %v534 = vpack.c.b16 %v415, %v414
  %v535 = vpack.c.b16 %v417, %v416
  %v536 = vpack.c.b16 %v419, %v418
  %v537 = vpack.c.b16 %v421, %v420
  %v538 = vpack.c.b16 %v423, %v422
  %v539 = vpack.c.b16 %v425, %v424
  %v540 = vpack.c.b16 %v427, %v426
  %v541 = vpack.c.b16 %v429, %v428
  %v542 = vpack.c.b16 %v431, %v430
  %v543 = vpack.c.b16 %v433, %v432
  %v544 = vpack.c.b16 %v435, %v434
  %v545 = vpack.c.b16 %v437, %v436
  %v546 = vpack.c.b16 %v439, %v438
  %v547 = vpack.c.b16 %v441, %v440
  %v548 = vpack.c.b16 %v443, %v442
  %v549 = vpack.c.b16 %v445, %v444
  %v550 = vpack.c.b16 %v447, %v446
  %v551 = vpack.c.b16 %v449, %v448
  %v552 = vpack.c.b16 %v451, %v450
  %v553 = vpack.c.b16 %v453, %v452
  %v554 = vpack.c.b16 %v455, %v454
  %v555 = vpack.c.b16 %v457, %v456
  %v556 = vpack.c.b16 %v459, %v458
  %v557 = vpack.c.b16 %v461, %v460
  %v558 = vpack.c.b16 %v463, %v462
  %v559 = vpack.c.b16 %v465, %v464
  %v560 = vpack.c.b16 %v467, %v466
  %v561 = vpack.c.b16 %v469, %v468
  %v562 = vpack.c.b16 %v471, %v470
  %v563 = vpack.c.b16 %v473, %v472
  %v564 = vpack.c.b16 %v475, %v474
  %v565 = vpack.c.b16 %v477, %v476
  %v566 = vpack.c.b16 %v479, %v478
  %v567 = vpack.c.b16 %v481, %v480
  %v568 = vpack.c.b16 %v483, %v482
  %v569 = vpack.c.b16 %v485, %v484
  %v570 = vpack.c.b16 %v487, %v486
  %v571 = vpack.c.b16 %v489, %v488
  %v572 = vpack.c.b16 %v491, %v490
  %v573 = vpack.c.b16 %v493, %v492
  %v574 = vpack.c.b16 %v495, %v494
  %v575 = vpack.c.b16 %v497, %v496
  %v576 = vpack.c.b16 %v499, %v498
  %v577 = vpack.c.b16 %v501, %v500
  %v578 = vpack.c.b16 %v503, %v502
  %v579 = vpack.c.b16 %v505, %v504
  %v580 = vpack.c.b16 %v507, %v506
  %v581 = vpack.c.b16 %v509, %v508
  %654 = vmatprep.subr.bf16.mxu0 0
  %655 = vmatpush1.bf16.msra.mxu0 %v510
  %656 = vmatprep.subr.bf16.mxu0 0
  %657 = vmatpush1.bf16.msra.mxu0 %v511
  %658 = vmatprep.subr.bf16.mxu0 0
  %659 = vmatpush1.bf16.msra.mxu0 %v512
  %660 = vmatprep.subr.bf16.mxu0 0
  %661 = vmatpush1.bf16.msra.mxu0 %v513
  %662 = vmatprep.subr.bf16.mxu0 0
  %663 = vmatpush1.bf16.msra.mxu0 %v514
  %664 = vmatprep.subr.bf16.mxu0 0
  %665 = vmatpush1.bf16.msra.mxu0 %v515
  %666 = vmatprep.subr.bf16.mxu0 0
  %667 = vmatpush1.bf16.msra.mxu0 %v516
  %668 = vmatprep.subr.bf16.mxu0 0
  %669 = vmatpush1.bf16.msra.mxu0 %v517
  %670 = vmatprep.subr.bf16.mxu0 0
  %671 = vmatpush1.bf16.msra.mxu0 %v518
  %672 = vmatprep.subr.bf16.mxu0 0
  %673 = vmatpush1.bf16.msra.mxu0 %v519
  %674 = vmatprep.subr.bf16.mxu0 0
  %675 = vmatpush1.bf16.msra.mxu0 %v520
  %676 = vmatprep.subr.bf16.mxu0 0
  %677 = vmatpush1.bf16.msra.mxu0 %v521
  %678 = vmatprep.subr.bf16.mxu0 0
  %679 = vmatpush1.bf16.msra.mxu0 %v522
  %680 = vmatprep.subr.bf16.mxu0 0
  %681 = vmatpush1.bf16.msra.mxu0 %v523
  %682 = vmatprep.subr.bf16.mxu0 0
  %683 = vmatpush1.bf16.msra.mxu0 %v524
  %684 = vmatprep.subr.bf16.mxu0 0
  %685 = vmatpush1.bf16.msra.mxu0 %v525
  %686 = vmatprep.mubr.bf16.mxu0 %v205
  %687 = vmatmul.mubr.bf16.gmra.mrb[0].mxu0 %v204
  %v688 = vpop.f32.mrb[0].mxu0
  %v689 = vadd.f32 %v174, %v688
  %v690 = vpop.f32.mrb[0].mxu0
  %v691 = vpop.f32.mrb[0].mxu0
  %v692 = vadd.f32 %v174, %v691
  %v693 = vpop.f32.mrb[0].mxu0
  %694 = vdwg.mxu0
  %695 = vmatprep.subr.bf16.mxu0 0
  %696 = vmatpush1.bf16.msra.mxu0 %v526
  %697 = vmatprep.subr.bf16.mxu0 0
  %698 = vmatpush1.bf16.msra.mxu0 %v527
  %699 = vmatprep.subr.bf16.mxu0 0
  %700 = vmatpush1.bf16.msra.mxu0 %v528
  %701 = vmatprep.subr.bf16.mxu0 0
  %702 = vmatpush1.bf16.msra.mxu0 %v529
  %703 = vmatprep.subr.bf16.mxu0 0
  %704 = vmatpush1.bf16.msra.mxu0 %v530
  %705 = vmatprep.subr.bf16.mxu0 0
  %706 = vmatpush1.bf16.msra.mxu0 %v531
  %707 = vmatprep.subr.bf16.mxu0 0
  %708 = vmatpush1.bf16.msra.mxu0 %v532
  %709 = vmatprep.subr.bf16.mxu0 0
  %710 = vmatpush1.bf16.msra.mxu0 %v533
  %711 = vmatprep.subr.bf16.mxu0 0
  %712 = vmatpush1.bf16.msra.mxu0 %v534
  %713 = vmatprep.subr.bf16.mxu0 0
  %714 = vmatpush1.bf16.msra.mxu0 %v535
  %715 = vmatprep.subr.bf16.mxu0 0
  %716 = vmatpush1.bf16.msra.mxu0 %v536
  %717 = vmatprep.subr.bf16.mxu0 0
  %718 = vmatpush1.bf16.msra.mxu0 %v537
  %719 = vmatprep.subr.bf16.mxu0 0
  %720 = vmatpush1.bf16.msra.mxu0 %v538
  %721 = vmatprep.subr.bf16.mxu0 0
  %722 = vmatpush1.bf16.msra.mxu0 %v539
  %723 = vmatprep.subr.bf16.mxu0 0
  %724 = vmatpush1.bf16.msra.mxu0 %v540
  %725 = vmatprep.subr.bf16.mxu0 0
  %726 = vmatpush1.bf16.msra.mxu0 %v541
  %727 = vmatprep.mubr.bf16.mxu0 %v207
  %728 = vmatmul.mubr.bf16.gmra.mrb[0].mxu0 %v206
  %v729 = vpop.f32.mrb[0].mxu0
  %v730 = vadd.f32 %v689, %v729
  %v731 = vpop.f32.mrb[0].mxu0
  %v732 = vpop.f32.mrb[0].mxu0
  %v733 = vadd.f32 %v692, %v732
  %v734 = vpop.f32.mrb[0].mxu0
  %735 = vdwg.mxu0
  %736 = vmatprep.subr.bf16.mxu0 0
  %737 = vmatpush1.bf16.msra.mxu0 %v542
  %738 = vmatprep.subr.bf16.mxu0 0
  %739 = vmatpush1.bf16.msra.mxu0 %v543
  %740 = vmatprep.subr.bf16.mxu0 0
  %741 = vmatpush1.bf16.msra.mxu0 %v544
  %742 = vmatprep.subr.bf16.mxu0 0
  %743 = vmatpush1.bf16.msra.mxu0 %v545
  %744 = vmatprep.subr.bf16.mxu0 0
  %745 = vmatpush1.bf16.msra.mxu0 %v546
  %746 = vmatprep.subr.bf16.mxu0 0
  %747 = vmatpush1.bf16.msra.mxu0 %v547
  %748 = vmatprep.subr.bf16.mxu0 0
  %749 = vmatpush1.bf16.msra.mxu0 %v548
  %750 = vmatprep.subr.bf16.mxu0 0
  %751 = vmatpush1.bf16.msra.mxu0 %v549
  %752 = vmatprep.subr.bf16.mxu0 0
  %753 = vmatpush1.bf16.msra.mxu0 %v550
  %754 = vmatprep.subr.bf16.mxu0 0
  %755 = vmatpush1.bf16.msra.mxu0 %v551
  %756 = vmatprep.subr.bf16.mxu0 0
  %757 = vmatpush1.bf16.msra.mxu0 %v552
  %758 = vmatprep.subr.bf16.mxu0 0
  %759 = vmatpush1.bf16.msra.mxu0 %v553
  %760 = vmatprep.subr.bf16.mxu0 0
  %761 = vmatpush1.bf16.msra.mxu0 %v554
  %762 = vmatprep.subr.bf16.mxu0 0
  %763 = vmatpush1.bf16.msra.mxu0 %v555
  %764 = vmatprep.subr.bf16.mxu0 0
  %765 = vmatpush1.bf16.msra.mxu0 %v556
  %766 = vmatprep.subr.bf16.mxu0 0
  %767 = vmatpush1.bf16.msra.mxu0 %v557
  %768 = vmatprep.mubr.bf16.mxu0 %v209
  %769 = vmatmul.mubr.bf16.gmra.mrb[0].mxu0 %v208
  %v770 = vpop.f32.mrb[0].mxu0
  %v771 = vadd.f32 %v730, %v770
  %v772 = vpop.f32.mrb[0].mxu0
  %v773 = vpop.f32.mrb[0].mxu0
  %v774 = vadd.f32 %v733, %v773
  %v775 = vpop.f32.mrb[0].mxu0
  %776 = vdwg.mxu0
  %777 = vmatprep.subr.bf16.mxu0 0
  %778 = vmatpush1.bf16.msra.mxu0 %v558
  %779 = vmatprep.subr.bf16.mxu0 0
  %780 = vmatpush1.bf16.msra.mxu0 %v559
  %781 = vmatprep.subr.bf16.mxu0 0
  %782 = vmatpush1.bf16.msra.mxu0 %v560
  %783 = vmatprep.subr.bf16.mxu0 0
  %784 = vmatpush1.bf16.msra.mxu0 %v561
  %785 = vmatprep.subr.bf16.mxu0 0
  %786 = vmatpush1.bf16.msra.mxu0 %v562
  %787 = vmatprep.subr.bf16.mxu0 0
  %788 = vmatpush1.bf16.msra.mxu0 %v563
  %789 = vmatprep.subr.bf16.mxu0 0
  %790 = vmatpush1.bf16.msra.mxu0 %v564
  %791 = vmatprep.subr.bf16.mxu0 0
  %792 = vmatpush1.bf16.msra.mxu0 %v565
  %793 = vmatprep.subr.bf16.mxu0 0
  %794 = vmatpush1.bf16.msra.mxu0 %v566
  %795 = vmatprep.subr.bf16.mxu0 0
  %796 = vmatpush1.bf16.msra.mxu0 %v567
  %797 = vmatprep.subr.bf16.mxu0 0
  %798 = vmatpush1.bf16.msra.mxu0 %v568
  %799 = vmatprep.subr.bf16.mxu0 0
  %800 = vmatpush1.bf16.msra.mxu0 %v569
  %801 = vmatprep.subr.bf16.mxu0 0
  %802 = vmatpush1.bf16.msra.mxu0 %v570
  %803 = vmatprep.subr.bf16.mxu0 0
  %804 = vmatpush1.bf16.msra.mxu0 %v571
  %805 = vmatprep.subr.bf16.mxu0 0
  %806 = vmatpush1.bf16.msra.mxu0 %v572
  %807 = vmatprep.subr.bf16.mxu0 0
  %808 = vmatpush1.bf16.msra.mxu0 %v573
  %809 = vmatprep.mubr.bf16.mxu0 %v211
  %810 = vmatmul.mubr.bf16.gmra.mrb[0].mxu0 %v210
  %v811 = vpop.f32.mrb[0].mxu0
  %v812 = vadd.f32 %v771, %v811
  %v813 = vpop.f32.mrb[0].mxu0
  %v814 = vpop.f32.mrb[0].mxu0
  %v815 = vadd.f32 %v774, %v814
  %v816 = vpop.f32.mrb[0].mxu0
  %817 = vdwg.mxu0
  %818 = vmatprep.subr.bf16.mxu0 0
  %819 = vmatpush1.bf16.msra.mxu0 %v574
  %820 = vmatprep.subr.bf16.mxu0 0
  %821 = vmatpush1.bf16.msra.mxu0 %v575
  %822 = vmatprep.subr.bf16.mxu0 0
  %823 = vmatpush1.bf16.msra.mxu0 %v576
  %824 = vmatprep.subr.bf16.mxu0 0
  %825 = vmatpush1.bf16.msra.mxu0 %v577
  %826 = vmatprep.subr.bf16.mxu0 0
  %827 = vmatpush1.bf16.msra.mxu0 %v578
  %828 = vmatprep.subr.bf16.mxu0 0
  %829 = vmatpush1.bf16.msra.mxu0 %v579
  %830 = vmatprep.subr.bf16.mxu0 0
  %831 = vmatpush1.bf16.msra.mxu0 %v580
  %832 = vmatprep.subr.bf16.mxu0 0
  %833 = vmatpush1.bf16.msra.mxu0 %v581
  %834 = vmatprep.subr.bf16.mxu0 0
  %835 = vmatpush1.bf16.msra.mxu0 0
  %836 = vmatprep.subr.bf16.mxu0 0
  %837 = vmatpush1.bf16.msra.mxu0 0
  %838 = vmatprep.subr.bf16.mxu0 0
  %839 = vmatpush1.bf16.msra.mxu0 0
  %840 = vmatprep.subr.bf16.mxu0 0
  %841 = vmatpush1.bf16.msra.mxu0 0
  %842 = vmatprep.subr.bf16.mxu0 0
  %843 = vmatpush1.bf16.msra.mxu0 0
  %844 = vmatprep.subr.bf16.mxu0 0
  %845 = vmatpush1.bf16.msra.mxu0 0
  %846 = vmatprep.subr.bf16.mxu0 0
  %847 = vmatpush1.bf16.msra.mxu0 0
  %848 = vmatprep.subr.bf16.mxu0 0
  %849 = vmatpush1.bf16.msra.mxu0 0
  %850 = vmatprep.mubr.bf16.mxu0 0
  %851 = vmatmul.mubr.bf16.gmra.mrb[0].mxu0 %v212
  %v852 = vpop.f32.mrb[0].mxu0
  %v853 = vadd.f32 %v812, %v852
  %v854 = vpop.f32.mrb[0].mxu0
  %v855 = vpop.f32.mrb[0].mxu0
  %v856 = vadd.f32 %v815, %v855
  %v857 = vpop.f32.mrb[0].mxu0
  %858 = vdwg.mxu0
  %v859 = vmax.f32 %v853, 0.0
  %v860 = vmax.f32 %v856, 0.0
  %v861 = vpack.c.bf16 %v860, %v859
  %v863 = vunpack.c.l.b16 %v861
  %v864 = vunpack.c.h.b16 %v861
  %v865 = vpack.c.b16 %v863, %v863
  %v866 = vpack.c.b16 %v864, %v864
  %869 = vst [vmem:[%s3] sm:$0xf] %v865
  %870 = vst [vmem:[%s3 + $0x4] sm:$0xf] %v866
  // Predicated region
  $region14: #{_lambda_.36} parent=0 // pred_check
    _
  $region15: #{_lambda_.36} parent=0 // pred_check_branch
    %872 = sbr.rel (0) target = $region17
  $region16: #{_lambda_.36} parent=0 // pred_region
    _
  $region17: #{_lambda_.36} parent=0 // pred_fallthru
    _
  // Predicated region
  $region18: #{_lambda_.36} parent=0 // pred_check
    _
  $region19: #{_lambda_.36} parent=0 // pred_check_branch
    %874 = sbr.rel (0) target = $region21
  $region20: #{_lambda_.36} parent=0 // pred_region
    _
  $region21: #{_lambda_.36} parent=0 // pred_fallthru
    _

// kernel: _lambda_.43
$region0: #{_lambda_.43}
  #allocation0 [shape = 'u32[]', space=smem, size = 0x4, offset = 0x4, fixed_abs, tag = 'smem constant byte address 0x4 - core index']
  #allocation1 [shape = 'u32[144,128]{1,0:T(1,128)}', space=vmem, size = 0x12000, scoped, tag = 'internal scratch']
  %s0 = inlined_call_operand.vmem [shape: bf16[16,256], index: 0, kind: input, shape index: {}, may-alias: {0,5}]
  %s1 = inlined_call_operand.vmem [shape: bf16[256,256], index: 1, kind: input, shape index: {}]
  %s2 = inlined_call_operand.vmem [shape: f32[1,256], index: 2, kind: input, shape index: {}]
  %s3 = inlined_call_operand.vmem [shape: bf16[256,256], index: 3, kind: input, shape index: {}]
  %s4 = inlined_call_operand.vmem [shape: f32[1,256], index: 4, kind: input, shape index: {}]
  %s5 = inlined_call_operand.vmem [shape: bf16[16,256], index: 5, kind: input, shape index: {}, may-alias: {0,5}]
  %s6 = inlined_call_operand.vmem [shape: bf16[16,256], index: 6, kind: output, shape index: {}]
  %s7 = sld [smem:[#allocation0]]
  $region34: #{_lambda_.43} parent=0
    _
  %s9 = ssub.s32 1, %s7
  %s10 = scalar_select 0, %s9, %s7
  // Predicated region
  $region2: #{_lambda_.43} parent=0 // pred_check
    _
  $region3: #{_lambda_.43} parent=0 // pred_check_branch
    %12 = sbr.rel (0) target = $region5
  $region4: #{_lambda_.43} parent=0 // pred_region
    _
  $region5: #{_lambda_.43} parent=0 // pred_fallthru
    _
  // Predicated region
  $region6: #{_lambda_.43} parent=0 // pred_check
    _
  $region7: #{_lambda_.43} parent=0 // pred_check_branch
    %14 = sbr.rel (0) target = $region9
  $region8: #{_lambda_.43} parent=0 // pred_region
    _
  $region9: #{_lambda_.43} parent=0 // pred_fallthru
    _
  // Predicated region
  $region10: #{_lambda_.43} parent=0 // pred_check
    _
  $region11: #{_lambda_.43} parent=0 // pred_check_branch
    %16 = sbr.rel (0) target = $region13
  $region12: #{_lambda_.43} parent=0 // pred_region
    _
  $region13: #{_lambda_.43} parent=0 // pred_fallthru
    _
  // Predicated region
  $region14: #{_lambda_.43} parent=0 // pred_check
    _
  $region15: #{_lambda_.43} parent=0 // pred_check_branch
    %18 = sbr.rel (0) target = $region17
  $region16: #{_lambda_.43} parent=0 // pred_region
    _
  $region17: #{_lambda_.43} parent=0 // pred_fallthru
    _
  // Predicated region
  $region18: #{_lambda_.43} parent=0 // pred_check
    _
  $region19: #{_lambda_.43} parent=0 // pred_check_branch
    %20 = sbr.rel (0) target = $region21
  $region20: #{_lambda_.43} parent=0 // pred_region
    _
  $region21: #{_lambda_.43} parent=0 // pred_fallthru
    _
  // Predicated region
  $region22: #{_lambda_.43} parent=0 // pred_check
    _
  $region23: #{_lambda_.43} parent=0 // pred_check_branch
    %22 = sbr.rel (0) target = $region25
  $region24: #{_lambda_.43} parent=0 // pred_region
    _
  $region25: #{_lambda_.43} parent=0 // pred_fallthru
    _
  %v23 = vld [vmem:[%s0] sm:$0xff]
  %v24 = vld [vmem:[%s0 + $0x8] sm:$0xff]
  %v25 = vld [vmem:[%s1] sm:$0xff]
  %v26 = vld [vmem:[%s1 + $0x8] sm:$0xff]
  %v27 = vld [vmem:[%s1 + $0x10] sm:$0xff]
  %v28 = vld [vmem:[%s1 + $0x18] sm:$0xff]
  %v29 = vld [vmem:[%s1 + $0x20] sm:$0xff]
  %v30 = vld [vmem:[%s1 + $0x28] sm:$0xff]
  %v31 = vld [vmem:[%s1 + $0x30] sm:$0xff]
  %v32 = vld [vmem:[%s1 + $0x38] sm:$0xff]
  %v33 = vld [vmem:[%s1 + $0x40] sm:$0xff]
  %v34 = vld [vmem:[%s1 + $0x48] sm:$0xff]
  %v35 = vld [vmem:[%s1 + $0x50] sm:$0xff]
  %v36 = vld [vmem:[%s1 + $0x58] sm:$0xff]
  %v37 = vld [vmem:[%s1 + $0x60] sm:$0xff]
  %v38 = vld [vmem:[%s1 + $0x68] sm:$0xff]
  %v39 = vld [vmem:[%s1 + $0x70] sm:$0xff]
  %v40 = vld [vmem:[%s1 + $0x78] sm:$0xff]
  %v41 = vld [vmem:[%s1 + $0x80] sm:$0xff]
  %v42 = vld [vmem:[%s1 + $0x88] sm:$0xff]
  %v43 = vld [vmem:[%s1 + $0x90] sm:$0xff]
  %v44 = vld [vmem:[%s1 + $0x98] sm:$0xff]
  %v45 = vld [vmem:[%s1 + $0xa0] sm:$0xff]
  %v46 = vld [vmem:[%s1 + $0xa8] sm:$0xff]
  %v47 = vld [vmem:[%s1 + $0xb0] sm:$0xff]
  %v48 = vld [vmem:[%s1 + $0xb8] sm:$0xff]
  %v49 = vld [vmem:[%s1 + $0xc0] sm:$0xff]
  %v50 = vld [vmem:[%s1 + $0xc8] sm:$0xff]
  %v51 = vld [vmem:[%s1 + $0xd0] sm:$0xff]
  %v52 = vld [vmem:[%s1 + $0xd8] sm:$0xff]
  %v53 = vld [vmem:[%s1 + $0xe0] sm:$0xff]
  %v54 = vld [vmem:[%s1 + $0xe8] sm:$0xff]
  %v55 = vld [vmem:[%s1 + $0xf0] sm:$0xff]
  %v56 = vld [vmem:[%s1 + $0xf8] sm:$0xff]
  %v57 = vld [vmem:[%s2] sm:$0x3]
  %v59 = vlaneseq
  %v60 = vshrl.u32 %v59, 7
  %v61 = vsub.s32 0, %v60
  %v62 = vrot.slane %v57, %v61
  %v63 = vlaneseq
  %v64 = vshrl.u32 %v63, 7
  %v65 = vsub.s32 1, %v64
  %v66 = vrot.slane %v57, %v65
  %v71 = vunpack.c.l.b16 %v23
  %v72 = vunpack.c.h.b16 %v23
  %v73 = vunpack.c.l.b16 %v24
  %v74 = vunpack.c.h.b16 %v24
  %v75 = vpack.c.b16 %v73, %v71
  %v76 = vpack.c.b16 %v74, %v72
  %v111 = vunpack.c.l.b16 %v25
  %v112 = vunpack.c.h.b16 %v25
  %v113 = vunpack.c.l.b16 %v26
  %v114 = vunpack.c.h.b16 %v26
  %v115 = vunpack.c.l.b16 %v27
  %v116 = vunpack.c.h.b16 %v27
  %v117 = vunpack.c.l.b16 %v28
  %v118 = vunpack.c.h.b16 %v28
  %v119 = vunpack.c.l.b16 %v29
  %v120 = vunpack.c.h.b16 %v29
  %v121 = vunpack.c.l.b16 %v30
  %v122 = vunpack.c.h.b16 %v30
  %v123 = vunpack.c.l.b16 %v31
  %v124 = vunpack.c.h.b16 %v31
  %v125 = vunpack.c.l.b16 %v32
  %v126 = vunpack.c.h.b16 %v32
  %v127 = vunpack.c.l.b16 %v33
  %v128 = vunpack.c.h.b16 %v33
  %v129 = vunpack.c.l.b16 %v34
  %v130 = vunpack.c.h.b16 %v34
  %v131 = vunpack.c.l.b16 %v35
  %v132 = vunpack.c.h.b16 %v35
  %v133 = vunpack.c.l.b16 %v36
  %v134 = vunpack.c.h.b16 %v36
  %v135 = vunpack.c.l.b16 %v37
  %v136 = vunpack.c.h.b16 %v37
  %v137 = vunpack.c.l.b16 %v38
  %v138 = vunpack.c.h.b16 %v38
  %v139 = vunpack.c.l.b16 %v39
  %v140 = vunpack.c.h.b16 %v39
  %v141 = vunpack.c.l.b16 %v40
  %v142 = vunpack.c.h.b16 %v40
  %v143 = vunpack.c.l.b16 %v41
  %v144 = vunpack.c.h.b16 %v41
  %v145 = vunpack.c.l.b16 %v42
  %v146 = vunpack.c.h.b16 %v42
  %v147 = vunpack.c.l.b16 %v43
  %v148 = vunpack.c.h.b16 %v43
  %v149 = vunpack.c.l.b16 %v44
  %v150 = vunpack.c.h.b16 %v44
  %v151 = vunpack.c.l.b16 %v45
  %v152 = vunpack.c.h.b16 %v45
  %v153 = vunpack.c.l.b16 %v46
  %v154 = vunpack.c.h.b16 %v46
  %v155 = vunpack.c.l.b16 %v47
  %v156 = vunpack.c.h.b16 %v47
  %v157 = vunpack.c.l.b16 %v48
  %v158 = vunpack.c.h.b16 %v48
  %v159 = vunpack.c.l.b16 %v49
  %v160 = vunpack.c.h.b16 %v49
  %v161 = vunpack.c.l.b16 %v50
  %v162 = vunpack.c.h.b16 %v50
  %v163 = vunpack.c.l.b16 %v51
  %v164 = vunpack.c.h.b16 %v51
  %v165 = vunpack.c.l.b16 %v52
  %v166 = vunpack.c.h.b16 %v52
  %v167 = vunpack.c.l.b16 %v53
  %v168 = vunpack.c.h.b16 %v53
  %v169 = vunpack.c.l.b16 %v54
  %v170 = vunpack.c.h.b16 %v54
  %v171 = vunpack.c.l.b16 %v55
  %v172 = vunpack.c.h.b16 %v55
  %v173 = vunpack.c.l.b16 %v56
  %v174 = vunpack.c.h.b16 %v56
  %v175 = vpack.c.b16 %v113, %v111
  %v176 = vpack.c.b16 %v114, %v112
  %v177 = vpack.c.b16 %v117, %v115
  %v178 = vpack.c.b16 %v118, %v116
  %v179 = vpack.c.b16 %v121, %v119
  %v180 = vpack.c.b16 %v122, %v120
  %v181 = vpack.c.b16 %v125, %v123
  %v182 = vpack.c.b16 %v126, %v124
  %v183 = vpack.c.b16 %v129, %v127
  %v184 = vpack.c.b16 %v130, %v128
  %v185 = vpack.c.b16 %v133, %v131
  %v186 = vpack.c.b16 %v134, %v132
  %v187 = vpack.c.b16 %v137, %v135
  %v188 = vpack.c.b16 %v138, %v136
  %v189 = vpack.c.b16 %v141, %v139
  %v190 = vpack.c.b16 %v142, %v140
  %v191 = vpack.c.b16 %v145, %v143
  %v192 = vpack.c.b16 %v146, %v144
  %v193 = vpack.c.b16 %v149, %v147
  %v194 = vpack.c.b16 %v150, %v148
  %v195 = vpack.c.b16 %v153, %v151
  %v196 = vpack.c.b16 %v154, %v152
  %v197 = vpack.c.b16 %v157, %v155
  %v198 = vpack.c.b16 %v158, %v156
  %v199 = vpack.c.b16 %v161, %v159
  %v200 = vpack.c.b16 %v162, %v160
  %v201 = vpack.c.b16 %v165, %v163
  %v202 = vpack.c.b16 %v166, %v164
  %v203 = vpack.c.b16 %v169, %v167
  %v204 = vpack.c.b16 %v170, %v168
  %v205 = vpack.c.b16 %v173, %v171
  %v206 = vpack.c.b16 %v174, %v172
  %239 = vmatprep.subr.bf16.mxu0 %v176
  %240 = vmatpush1.bf16.msra.mxu0 %v175
  %241 = vmatprep.subr.bf16.mxu0 %v178
  %242 = vmatpush1.bf16.msra.mxu0 %v177
  %243 = vmatprep.subr.bf16.mxu0 %v180
  %244 = vmatpush1.bf16.msra.mxu0 %v179
  %245 = vmatprep.subr.bf16.mxu0 %v182
  %246 = vmatpush1.bf16.msra.mxu0 %v181
  %247 = vmatprep.subr.bf16.mxu0 %v184
  %248 = vmatpush1.bf16.msra.mxu0 %v183
  %249 = vmatprep.subr.bf16.mxu0 %v186
  %250 = vmatpush1.bf16.msra.mxu0 %v185
  %251 = vmatprep.subr.bf16.mxu0 %v188
  %252 = vmatpush1.bf16.msra.mxu0 %v187
  %253 = vmatprep.subr.bf16.mxu0 %v190
  %254 = vmatpush1.bf16.msra.mxu0 %v189
  %255 = vmatprep.subr.bf16.mxu0 %v192
  %256 = vmatpush1.bf16.msra.mxu0 %v191
  %257 = vmatprep.subr.bf16.mxu0 %v194
  %258 = vmatpush1.bf16.msra.mxu0 %v193
  %259 = vmatprep.subr.bf16.mxu0 %v196
  %260 = vmatpush1.bf16.msra.mxu0 %v195
  %261 = vmatprep.subr.bf16.mxu0 %v198
  %262 = vmatpush1.bf16.msra.mxu0 %v197
  %263 = vmatprep.subr.bf16.mxu0 %v200
  %264 = vmatpush1.bf16.msra.mxu0 %v199
  %265 = vmatprep.subr.bf16.mxu0 %v202
  %266 = vmatpush1.bf16.msra.mxu0 %v201
  %267 = vmatprep.subr.bf16.mxu0 %v204
  %268 = vmatpush1.bf16.msra.mxu0 %v203
  %269 = vmatprep.subr.bf16.mxu0 %v206
  %270 = vmatpush1.bf16.msra.mxu0 %v205
  %271 = vmatprep.mubr.bf16.mxu0 %v76
  %272 = vmatmul.mubr.bf16.gmra.mrb[0].mxu0 %v75
  %v273 = vpop.f32.mrb[0].mxu0
  %v274 = vadd.f32 %v62, %v273
  %v275 = vpop.f32.mrb[0].mxu0
  %v276 = vadd.f32 %v66, %v275
  %v277 = vpop.f32.mrb[0].mxu0
  %v278 = vadd.f32 %v62, %v277
  %v279 = vpop.f32.mrb[0].mxu0
  %v280 = vadd.f32 %v66, %v279
  %281 = vdwg.mxu0
  %v282 = vmax.f32 %v274, 0.0
  %v283 = vmax.f32 %v276, 0.0
  %v284 = vmax.f32 %v278, 0.0
  %v285 = vmax.f32 %v280, 0.0
  %v286 = vpack.c.bf16 %v284, %v282
  %v287 = vpack.c.bf16 %v285, %v283
  %v288 = vld [vmem:[%s3] sm:$0xff]
  %v289 = vld [vmem:[%s3 + $0x8] sm:$0xff]
  %v290 = vld [vmem:[%s3 + $0x10] sm:$0xff]
  %v291 = vld [vmem:[%s3 + $0x18] sm:$0xff]
  %v292 = vld [vmem:[%s3 + $0x20] sm:$0xff]
  %v293 = vld [vmem:[%s3 + $0x28] sm:$0xff]
  %v294 = vld [vmem:[%s3 + $0x30] sm:$0xff]
  %v295 = vld [vmem:[%s3 + $0x38] sm:$0xff]
  %v296 = vld [vmem:[%s3 + $0x40] sm:$0xff]
  %v297 = vld [vmem:[%s3 + $0x48] sm:$0xff]
  %v298 = vld [vmem:[%s3 + $0x50] sm:$0xff]
  %v299 = vld [vmem:[%s3 + $0x58] sm:$0xff]
  %v300 = vld [vmem:[%s3 + $0x60] sm:$0xff]
  %v301 = vld [vmem:[%s3 + $0x68] sm:$0xff]
  %v302 = vld [vmem:[%s3 + $0x70] sm:$0xff]
  %v303 = vld [vmem:[%s3 + $0x78] sm:$0xff]
  %v304 = vld [vmem:[%s3 + $0x80] sm:$0xff]
  %v305 = vld [vmem:[%s3 + $0x88] sm:$0xff]
  %v306 = vld [vmem:[%s3 + $0x90] sm:$0xff]
  %v307 = vld [vmem:[%s3 + $0x98] sm:$0xff]
  %v308 = vld [vmem:[%s3 + $0xa0] sm:$0xff]
  %v309 = vld [vmem:[%s3 + $0xa8] sm:$0xff]
  %v310 = vld [vmem:[%s3 + $0xb0] sm:$0xff]
  %v311 = vld [vmem:[%s3 + $0xb8] sm:$0xff]
  %v312 = vld [vmem:[%s3 + $0xc0] sm:$0xff]
  %v313 = vld [vmem:[%s3 + $0xc8] sm:$0xff]
  %v314 = vld [vmem:[%s3 + $0xd0] sm:$0xff]
  %v315 = vld [vmem:[%s3 + $0xd8] sm:$0xff]
  %v316 = vld [vmem:[%s3 + $0xe0] sm:$0xff]
  %v317 = vld [vmem:[%s3 + $0xe8] sm:$0xff]
  %v318 = vld [vmem:[%s3 + $0xf0] sm:$0xff]
  %v319 = vld [vmem:[%s3 + $0xf8] sm:$0xff]
  %v320 = vld [vmem:[%s4] sm:$0x3]
  %v322 = vlaneseq
  %v323 = vshrl.u32 %v322, 7
  %v324 = vsub.s32 0, %v323
  %v325 = vrot.slane %v320, %v324
  %v326 = vlaneseq
  %v327 = vshrl.u32 %v326, 7
  %v328 = vsub.s32 1, %v327
  %v329 = vrot.slane %v320, %v328
  %v364 = vunpack.c.l.b16 %v288
  %v365 = vunpack.c.h.b16 %v288
  %v366 = vunpack.c.l.b16 %v289
  %v367 = vunpack.c.h.b16 %v289
  %v368 = vunpack.c.l.b16 %v290
  %v369 = vunpack.c.h.b16 %v290
  %v370 = vunpack.c.l.b16 %v291
  %v371 = vunpack.c.h.b16 %v291
  %v372 = vunpack.c.l.b16 %v292
  %v373 = vunpack.c.h.b16 %v292
  %v374 = vunpack.c.l.b16 %v293
  %v375 = vunpack.c.h.b16 %v293
  %v376 = vunpack.c.l.b16 %v294
  %v377 = vunpack.c.h.b16 %v294
  %v378 = vunpack.c.l.b16 %v295
  %v379 = vunpack.c.h.b16 %v295
  %v380 = vunpack.c.l.b16 %v296
  %v381 = vunpack.c.h.b16 %v296
  %v382 = vunpack.c.l.b16 %v297
  %v383 = vunpack.c.h.b16 %v297
  %v384 = vunpack.c.l.b16 %v298
  %v385 = vunpack.c.h.b16 %v298
  %v386 = vunpack.c.l.b16 %v299
  %v387 = vunpack.c.h.b16 %v299
  %v388 = vunpack.c.l.b16 %v300
  %v389 = vunpack.c.h.b16 %v300
  %v390 = vunpack.c.l.b16 %v301
  %v391 = vunpack.c.h.b16 %v301
  %v392 = vunpack.c.l.b16 %v302
  %v393 = vunpack.c.h.b16 %v302
  %v394 = vunpack.c.l.b16 %v303
  %v395 = vunpack.c.h.b16 %v303
  %v396 = vunpack.c.l.b16 %v304
  %v397 = vunpack.c.h.b16 %v304
  %v398 = vunpack.c.l.b16 %v305
  %v399 = vunpack.c.h.b16 %v305
  %v400 = vunpack.c.l.b16 %v306
  %v401 = vunpack.c.h.b16 %v306
  %v402 = vunpack.c.l.b16 %v307
  %v403 = vunpack.c.h.b16 %v307
  %v404 = vunpack.c.l.b16 %v308
  %v405 = vunpack.c.h.b16 %v308
  %v406 = vunpack.c.l.b16 %v309
  %v407 = vunpack.c.h.b16 %v309
  %v408 = vunpack.c.l.b16 %v310
  %v409 = vunpack.c.h.b16 %v310
  %v410 = vunpack.c.l.b16 %v311
  %v411 = vunpack.c.h.b16 %v311
  %v412 = vunpack.c.l.b16 %v312
  %v413 = vunpack.c.h.b16 %v312
  %v414 = vunpack.c.l.b16 %v313
  %v415 = vunpack.c.h.b16 %v313
  %v416 = vunpack.c.l.b16 %v314
  %v417 = vunpack.c.h.b16 %v314
  %v418 = vunpack.c.l.b16 %v315
  %v419 = vunpack.c.h.b16 %v315
  %v420 = vunpack.c.l.b16 %v316
  %v421 = vunpack.c.h.b16 %v316
  %v422 = vunpack.c.l.b16 %v317
  %v423 = vunpack.c.h.b16 %v317
  %v424 = vunpack.c.l.b16 %v318
  %v425 = vunpack.c.h.b16 %v318
  %v426 = vunpack.c.l.b16 %v319
  %v427 = vunpack.c.h.b16 %v319
  %v428 = vpack.c.b16 %v366, %v364
  %v429 = vpack.c.b16 %v367, %v365
  %v430 = vpack.c.b16 %v370, %v368
  %v431 = vpack.c.b16 %v371, %v369
  %v432 = vpack.c.b16 %v374, %v372
  %v433 = vpack.c.b16 %v375, %v373
  %v434 = vpack.c.b16 %v378, %v376
  %v435 = vpack.c.b16 %v379, %v377
  %v436 = vpack.c.b16 %v382, %v380
  %v437 = vpack.c.b16 %v383, %v381
  %v438 = vpack.c.b16 %v386, %v384
  %v439 = vpack.c.b16 %v387, %v385
  %v440 = vpack.c.b16 %v390, %v388
  %v441 = vpack.c.b16 %v391, %v389
  %v442 = vpack.c.b16 %v394, %v392
  %v443 = vpack.c.b16 %v395, %v393
  %v444 = vpack.c.b16 %v398, %v396
  %v445 = vpack.c.b16 %v399, %v397
  %v446 = vpack.c.b16 %v402, %v400
  %v447 = vpack.c.b16 %v403, %v401
  %v448 = vpack.c.b16 %v406, %v404
  %v449 = vpack.c.b16 %v407, %v405
  %v450 = vpack.c.b16 %v410, %v408
  %v451 = vpack.c.b16 %v411, %v409
  %v452 = vpack.c.b16 %v414, %v412
  %v453 = vpack.c.b16 %v415, %v413
  %v454 = vpack.c.b16 %v418, %v416
  %v455 = vpack.c.b16 %v419, %v417
  %v456 = vpack.c.b16 %v422, %v420
  %v457 = vpack.c.b16 %v423, %v421
  %v458 = vpack.c.b16 %v426, %v424
  %v459 = vpack.c.b16 %v427, %v425
  %492 = vmatprep.subr.bf16.mxu0 %v429
  %493 = vmatpush1.bf16.msra.mxu0 %v428
  %494 = vmatprep.subr.bf16.mxu0 %v431
  %495 = vmatpush1.bf16.msra.mxu0 %v430
  %496 = vmatprep.subr.bf16.mxu0 %v433
  %497 = vmatpush1.bf16.msra.mxu0 %v432
  %498 = vmatprep.subr.bf16.mxu0 %v435
  %499 = vmatpush1.bf16.msra.mxu0 %v434
  %500 = vmatprep.subr.bf16.mxu0 %v437
  %501 = vmatpush1.bf16.msra.mxu0 %v436
  %502 = vmatprep.subr.bf16.mxu0 %v439
  %503 = vmatpush1.bf16.msra.mxu0 %v438
  %504 = vmatprep.subr.bf16.mxu0 %v441
  %505 = vmatpush1.bf16.msra.mxu0 %v440
  %506 = vmatprep.subr.bf16.mxu0 %v443
  %507 = vmatpush1.bf16.msra.mxu0 %v442
  %508 = vmatprep.subr.bf16.mxu0 %v445
  %509 = vmatpush1.bf16.msra.mxu0 %v444
  %510 = vmatprep.subr.bf16.mxu0 %v447
  %511 = vmatpush1.bf16.msra.mxu0 %v446
  %512 = vmatprep.subr.bf16.mxu0 %v449
  %513 = vmatpush1.bf16.msra.mxu0 %v448
  %514 = vmatprep.subr.bf16.mxu0 %v451
  %515 = vmatpush1.bf16.msra.mxu0 %v450
  %516 = vmatprep.subr.bf16.mxu0 %v453
  %517 = vmatpush1.bf16.msra.mxu0 %v452
  %518 = vmatprep.subr.bf16.mxu0 %v455
  %519 = vmatpush1.bf16.msra.mxu0 %v454
  %520 = vmatprep.subr.bf16.mxu0 %v457
  %521 = vmatpush1.bf16.msra.mxu0 %v456
  %522 = vmatprep.subr.bf16.mxu0 %v459
  %523 = vmatpush1.bf16.msra.mxu0 %v458
  %524 = vmatprep.mubr.bf16.mxu0 %v287
  %525 = vmatmul.mubr.bf16.gmra.mrb[0].mxu0 %v286
  %v526 = vpop.f32.mrb[0].mxu0
  %v527 = vadd.f32 %v325, %v526
  %v528 = vpop.f32.mrb[0].mxu0
  %v529 = vadd.f32 %v329, %v528
  %v530 = vpop.f32.mrb[0].mxu0
  %v531 = vadd.f32 %v325, %v530
  %v532 = vpop.f32.mrb[0].mxu0
  %v533 = vadd.f32 %v329, %v532
  %534 = vdwg.mxu0
  %v535 = vld [vmem:[%s5] sm:$0xff]
  %v536 = vld [vmem:[%s5 + $0x8] sm:$0xff]
  %v537 = vunpack.c.l.bf16 %v535
  %v538 = vunpack.c.h.bf16 %v535
  %v539 = vunpack.c.l.bf16 %v536
  %v540 = vunpack.c.h.bf16 %v536
  %v541 = vadd.f32 %v527, %v537
  %v542 = vadd.f32 %v529, %v538
  %v543 = vadd.f32 %v531, %v539
  %v544 = vadd.f32 %v533, %v540
  %v545 = vmax.f32 %v541, 0.0
  %v546 = vmax.f32 %v542, 0.0
  %v547 = vmax.f32 %v543, 0.0
  %v548 = vmax.f32 %v544, 0.0
  %v549 = vpack.c.bf16 %v547, %v545
  %v550 = vpack.c.bf16 %v548, %v546
  %v553 = vunpack.c.l.b16 %v549
  %v554 = vunpack.c.l.b16 %v550
  %v555 = vunpack.c.h.b16 %v549
  %v556 = vunpack.c.h.b16 %v550
  %v557 = vpack.c.b16 %v554, %v553
  %v558 = vpack.c.b16 %v556, %v555
  %561 = vst [vmem:[%s6] sm:$0xff] %v557
  %562 = vst [vmem:[%s6 + $0x8] sm:$0xff] %v558
  // Predicated region
  $region26: #{_lambda_.43} parent=0 // pred_check
    _
  $region27: #{_lambda_.43} parent=0 // pred_check_branch
    %564 = sbr.rel (0) target = $region29
  $region28: #{_lambda_.43} parent=0 // pred_region
    _
  $region29: #{_lambda_.43} parent=0 // pred_fallthru
    _
  // Predicated region
  $region30: #{_lambda_.43} parent=0 // pred_check
    _
  $region31: #{_lambda_.43} parent=0 // pred_check_branch
    %566 = sbr.rel (0) target = $region33
  $region32: #{_lambda_.43} parent=0 // pred_region
    _
  $region33: #{_lambda_.43} parent=0 // pred_fallthru
    _

// kernel: _lambda_.42
$region0: #{_lambda_.42}
  #allocation0 [shape = 'u32[]', space=smem, size = 0x4, offset = 0x4, fixed_abs, tag = 'smem constant byte address 0x4 - core index']
  #allocation1 [shape = 'u32[144,128]{1,0:T(1,128)}', space=vmem, size = 0x12000, scoped, tag = 'internal scratch']
  %s0 = inlined_call_operand.vmem [shape: bf16[16,1152], index: 0, kind: input, shape index: {}]
  %s1 = inlined_call_operand.vmem [shape: bf16[1152,256], index: 1, kind: input, shape index: {}]
  %s2 = inlined_call_operand.vmem [shape: f32[1,256], index: 2, kind: input, shape index: {}]
  %s3 = inlined_call_operand.vmem [shape: bf16[16,128], index: 3, kind: input, shape index: {}]
  %s4 = inlined_call_operand.vmem [shape: bf16[128,256], index: 4, kind: input, shape index: {}]
  %s5 = inlined_call_operand.vmem [shape: f32[1,256], index: 5, kind: input, shape index: {}]
  %s6 = inlined_call_operand.vmem [shape: bf16[256,256], index: 6, kind: input, shape index: {}]
  %s7 = inlined_call_operand.vmem [shape: f32[1,256], index: 7, kind: input, shape index: {}]
  %s8 = inlined_call_operand.vmem [shape: bf16[16,256], index: 8, kind: output, shape index: {}]
  %s9 = sld [smem:[#allocation0]]
  $region42: #{_lambda_.42} parent=0
    _
  %s11 = ssub.s32 1, %s9
  %s12 = scalar_select 0, %s11, %s9
  // Predicated region
  $region2: #{_lambda_.42} parent=0 // pred_check
    _
  $region3: #{_lambda_.42} parent=0 // pred_check_branch
    %14 = sbr.rel (0) target = $region5
  $region4: #{_lambda_.42} parent=0 // pred_region
    _
  $region5: #{_lambda_.42} parent=0 // pred_fallthru
    _
  // Predicated region
  $region6: #{_lambda_.42} parent=0 // pred_check
    _
  $region7: #{_lambda_.42} parent=0 // pred_check_branch
    %16 = sbr.rel (0) target = $region9
  $region8: #{_lambda_.42} parent=0 // pred_region
    _
  $region9: #{_lambda_.42} parent=0 // pred_fallthru
    _
  // Predicated region
  $region10: #{_lambda_.42} parent=0 // pred_check
    _
  $region11: #{_lambda_.42} parent=0 // pred_check_branch
    %18 = sbr.rel (0) target = $region13
  $region12: #{_lambda_.42} parent=0 // pred_region
    _
  $region13: #{_lambda_.42} parent=0 // pred_fallthru
    _
  // Predicated region
  $region14: #{_lambda_.42} parent=0 // pred_check
    _
  $region15: #{_lambda_.42} parent=0 // pred_check_branch
    %20 = sbr.rel (0) target = $region17
  $region16: #{_lambda_.42} parent=0 // pred_region
    _
  $region17: #{_lambda_.42} parent=0 // pred_fallthru
    _
  // Predicated region
  $region18: #{_lambda_.42} parent=0 // pred_check
    _
  $region19: #{_lambda_.42} parent=0 // pred_check_branch
    %22 = sbr.rel (0) target = $region21
  $region20: #{_lambda_.42} parent=0 // pred_region
    _
  $region21: #{_lambda_.42} parent=0 // pred_fallthru
    _
  // Predicated region
  $region22: #{_lambda_.42} parent=0 // pred_check
    _
  $region23: #{_lambda_.42} parent=0 // pred_check_branch
    %24 = sbr.rel (0) target = $region25
  $region24: #{_lambda_.42} parent=0 // pred_region
    _
  $region25: #{_lambda_.42} parent=0 // pred_fallthru
    _
  // Predicated region
  $region26: #{_lambda_.42} parent=0 // pred_check
    _
  $region27: #{_lambda_.42} parent=0 // pred_check_branch
    %26 = sbr.rel (0) target = $region29
  $region28: #{_lambda_.42} parent=0 // pred_region
    _
  $region29: #{_lambda_.42} parent=0 // pred_fallthru
    _
  // Predicated region
  $region30: #{_lambda_.42} parent=0 // pred_check
    _
  $region31: #{_lambda_.42} parent=0 // pred_check_branch
    %28 = sbr.rel (0) target = $region33
  $region32: #{_lambda_.42} parent=0 // pred_region
    _
  $region33: #{_lambda_.42} parent=0 // pred_fallthru
    _
  %v30 = vld [vmem:[%s0] sm:$0xff]
  %v31 = vld [vmem:[%s0 + $0x8] sm:$0xff]
  %v32 = vld [vmem:[%s0 + $0x10] sm:$0xff]
  %v33 = vld [vmem:[%s0 + $0x18] sm:$0xff]
  %v34 = vld [vmem:[%s0 + $0x20] sm:$0xf]
  %v35 = vld [vmem:[%s0 + $0x24] sm:$0xff]
  %v36 = vld [vmem:[%s0 + $0x2c] sm:$0xff]
  %v37 = vld [vmem:[%s0 + $0x34] sm:$0xff]
  %v38 = vld [vmem:[%s0 + $0x3c] sm:$0xff]
  %v39 = vld [vmem:[%s0 + $0x44] sm:$0xf]
  %v40 = vld [vmem:[%s1] sm:$0xff]
  %v41 = vld [vmem:[%s1 + $0x8] sm:$0xff]
  %v42 = vld [vmem:[%s1 + $0x10] sm:$0xff]
  %v43 = vld [vmem:[%s1 + $0x18] sm:$0xff]
  %v44 = vld [vmem:[%s1 + $0x20] sm:$0xff]
  %v45 = vld [vmem:[%s1 + $0x28] sm:$0xff]
  %v46 = vld [vmem:[%s1 + $0x30] sm:$0xff]
  %v47 = vld [vmem:[%s1 + $0x38] sm:$0xff]
  %v48 = vld [vmem:[%s1 + $0x40] sm:$0xff]
  %v49 = vld [vmem:[%s1 + $0x48] sm:$0xff]
  %v50 = vld [vmem:[%s1 + $0x50] sm:$0xff]
  %v51 = vld [vmem:[%s1 + $0x58] sm:$0xff]
  %v52 = vld [vmem:[%s1 + $0x60] sm:$0xff]
  %v53 = vld [vmem:[%s1 + $0x68] sm:$0xff]
  %v54 = vld [vmem:[%s1 + $0x70] sm:$0xff]
  %v55 = vld [vmem:[%s1 + $0x78] sm:$0xff]
  %v56 = vld [vmem:[%s1 + $0x80] sm:$0xff]
  %v57 = vld [vmem:[%s1 + $0x88] sm:$0xff]
  %v58 = vld [vmem:[%s1 + $0x90] sm:$0xff]
  %v59 = vld [vmem:[%s1 + $0x98] sm:$0xff]
  %v60 = vld [vmem:[%s1 + $0xa0] sm:$0xff]
  %v61 = vld [vmem:[%s1 + $0xa8] sm:$0xff]
  %v62 = vld [vmem:[%s1 + $0xb0] sm:$0xff]
  %v63 = vld [vmem:[%s1 + $0xb8] sm:$0xff]
  %v64 = vld [vmem:[%s1 + $0xc0] sm:$0xff]
  %v65 = vld [vmem:[%s1 + $0xc8] sm:$0xff]
  %v66 = vld [vmem:[%s1 + $0xd0] sm:$0xff]
  %v67 = vld [vmem:[%s1 + $0xd8] sm:$0xff]
  %v68 = vld [vmem:[%s1 + $0xe0] sm:$0xff]
  %v69 = vld [vmem:[%s1 + $0xe8] sm:$0xff]
  %v70 = vld [vmem:[%s1 + $0xf0] sm:$0xff]
  %v71 = vld [vmem:[%s1 + $0xf8] sm:$0xff]
  %v72 = vld [vmem:[%s1 + $0x100] sm:$0xff]
  %v73 = vld [vmem:[%s1 + $0x108] sm:$0xff]
  %v74 = vld [vmem:[%s1 + $0x110] sm:$0xff]
  %v75 = vld [vmem:[%s1 + $0x118] sm:$0xff]
  %v76 = vld [vmem:[%s1 + $0x120] sm:$0xff]
  %v77 = vld [vmem:[%s1 + $0x128] sm:$0xff]
  %v78 = vld [vmem:[%s1 + $0x130] sm:$0xff]
  %v79 = vld [vmem:[%s1 + $0x138] sm:$0xff]
  %v80 = vld [vmem:[%s1 + $0x140] sm:$0xff]
  %v81 = vld [vmem:[%s1 + $0x148] sm:$0xff]
  %v82 = vld [vmem:[%s1 + $0x150] sm:$0xff]
  %v83 = vld [vmem:[%s1 + $0x158] sm:$0xff]
  %v84 = vld [vmem:[%s1 + $0x160] sm:$0xff]
  %v85 = vld [vmem:[%s1 + $0x168] sm:$0xff]
  %v86 = vld [vmem:[%s1 + $0x170] sm:$0xff]
  %v87 = vld [vmem:[%s1 + $0x178] sm:$0xff]
  %v88 = vld [vmem:[%s1 + $0x180] sm:$0xff]
  %v89 = vld [vmem:[%s1 + $0x188] sm:$0xff]
  %v90 = vld [vmem:[%s1 + $0x190] sm:$0xff]
  %v91 = vld [vmem:[%s1 + $0x198] sm:$0xff]
  %v92 = vld [vmem:[%s1 + $0x1a0] sm:$0xff]
  %v93 = vld [vmem:[%s1 + $0x1a8] sm:$0xff]
  %v94 = vld [vmem:[%s1 + $0x1b0] sm:$0xff]
  %v95 = vld [vmem:[%s1 + $0x1b8] sm:$0xff]
  %v96 = vld [vmem:[%s1 + $0x1c0] sm:$0xff]
  %v97 = vld [vmem:[%s1 + $0x1c8] sm:$0xff]
  %v98 = vld [vmem:[%s1 + $0x1d0] sm:$0xff]
  %v99 = vld [vmem:[%s1 + $0x1d8] sm:$0xff]
  %v100 = vld [vmem:[%s1 + $0x1e0] sm:$0xff]
  %v101 = vld [vmem:[%s1 + $0x1e8] sm:$0xff]
  %v102 = vld [vmem:[%s1 + $0x1f0] sm:$0xff]
  %v103 = vld [vmem:[%s1 + $0x1f8] sm:$0xff]
  %v104 = vld [vmem:[%s1 + $0x200] sm:$0xff]
  %v105 = vld [vmem:[%s1 + $0x208] sm:$0xff]
  %v106 = vld [vmem:[%s1 + $0x210] sm:$0xff]
  %v107 = vld [vmem:[%s1 + $0x218] sm:$0xff]
  %v108 = vld [vmem:[%s1 + $0x220] sm:$0xff]
  %v109 = vld [vmem:[%s1 + $0x228] sm:$0xff]
  %v110 = vld [vmem:[%s1 + $0x230] sm:$0xff]
  %v111 = vld [vmem:[%s1 + $0x238] sm:$0xff]
  %v112 = vld [vmem:[%s1 + $0x240] sm:$0xff]
  %v113 = vld [vmem:[%s1 + $0x248] sm:$0xff]
  %v114 = vld [vmem:[%s1 + $0x250] sm:$0xff]
  %v115 = vld [vmem:[%s1 + $0x258] sm:$0xff]
  %v116 = vld [vmem:[%s1 + $0x260] sm:$0xff]
  %v117 = vld [vmem:[%s1 + $0x268] sm:$0xff]
  %v118 = vld [vmem:[%s1 + $0x270] sm:$0xff]
  %v119 = vld [vmem:[%s1 + $0x278] sm:$0xff]
  %v120 = vld [vmem:[%s1 + $0x280] sm:$0xff]
  %v121 = vld [vmem:[%s1 + $0x288] sm:$0xff]
  %v122 = vld [vmem:[%s1 + $0x290] sm:$0xff]
  %v123 = vld [vmem:[%s1 + $0x298] sm:$0xff]
  %v124 = vld [vmem:[%s1 + $0x2a0] sm:$0xff]
  %v125 = vld [vmem:[%s1 + $0x2a8] sm:$0xff]
  %v126 = vld [vmem:[%s1 + $0x2b0] sm:$0xff]
  %v127 = vld [vmem:[%s1 + $0x2b8] sm:$0xff]
  %v128 = vld [vmem:[%s1 + $0x2c0] sm:$0xff]
  %v129 = vld [vmem:[%s1 + $0x2c8] sm:$0xff]
  %v130 = vld [vmem:[%s1 + $0x2d0] sm:$0xff]
  %v131 = vld [vmem:[%s1 + $0x2d8] sm:$0xff]
  %v132 = vld [vmem:[%s1 + $0x2e0] sm:$0xff]
  %v133 = vld [vmem:[%s1 + $0x2e8] sm:$0xff]
  %v134 = vld [vmem:[%s1 + $0x2f0] sm:$0xff]
  %v135 = vld [vmem:[%s1 + $0x2f8] sm:$0xff]
  %v136 = vld [vmem:[%s1 + $0x300] sm:$0xff]
  %v137 = vld [vmem:[%s1 + $0x308] sm:$0xff]
  %v138 = vld [vmem:[%s1 + $0x310] sm:$0xff]
  %v139 = vld [vmem:[%s1 + $0x318] sm:$0xff]
  %v140 = vld [vmem:[%s1 + $0x320] sm:$0xff]
  %v141 = vld [vmem:[%s1 + $0x328] sm:$0xff]
  %v142 = vld [vmem:[%s1 + $0x330] sm:$0xff]
  %v143 = vld [vmem:[%s1 + $0x338] sm:$0xff]
  %v144 = vld [vmem:[%s1 + $0x340] sm:$0xff]
  %v145 = vld [vmem:[%s1 + $0x348] sm:$0xff]
  %v146 = vld [vmem:[%s1 + $0x350] sm:$0xff]
  %v147 = vld [vmem:[%s1 + $0x358] sm:$0xff]
  %v148 = vld [vmem:[%s1 + $0x360] sm:$0xff]
  %v149 = vld [vmem:[%s1 + $0x368] sm:$0xff]
  %v150 = vld [vmem:[%s1 + $0x370] sm:$0xff]
  %v151 = vld [vmem:[%s1 + $0x378] sm:$0xff]
  %v152 = vld [vmem:[%s1 + $0x380] sm:$0xff]
  %v153 = vld [vmem:[%s1 + $0x388] sm:$0xff]
  %v154 = vld [vmem:[%s1 + $0x390] sm:$0xff]
  %v155 = vld [vmem:[%s1 + $0x398] sm:$0xff]
  %v156 = vld [vmem:[%s1 + $0x3a0] sm:$0xff]
  %v157 = vld [vmem:[%s1 + $0x3a8] sm:$0xff]
  %v158 = vld [vmem:[%s1 + $0x3b0] sm:$0xff]
  %v159 = vld [vmem:[%s1 + $0x3b8] sm:$0xff]
  %v160 = vld [vmem:[%s1 + $0x3c0] sm:$0xff]
  %v161 = vld [vmem:[%s1 + $0x3c8] sm:$0xff]
  %v162 = vld [vmem:[%s1 + $0x3d0] sm:$0xff]
  %v163 = vld [vmem:[%s1 + $0x3d8] sm:$0xff]
  %v164 = vld [vmem:[%s1 + $0x3e0] sm:$0xff]
  %v165 = vld [vmem:[%s1 + $0x3e8] sm:$0xff]
  %v166 = vld [vmem:[%s1 + $0x3f0] sm:$0xff]
  %v167 = vld [vmem:[%s1 + $0x3f8] sm:$0xff]
  %v168 = vld [vmem:[%s1 + $0x400] sm:$0xff]
  %v169 = vld [vmem:[%s1 + $0x408] sm:$0xff]
  %v170 = vld [vmem:[%s1 + $0x410] sm:$0xff]
  %v171 = vld [vmem:[%s1 + $0x418] sm:$0xff]
  %v172 = vld [vmem:[%s1 + $0x420] sm:$0xff]
  %v173 = vld [vmem:[%s1 + $0x428] sm:$0xff]
  %v174 = vld [vmem:[%s1 + $0x430] sm:$0xff]
  %v175 = vld [vmem:[%s1 + $0x438] sm:$0xff]
  %v176 = vld [vmem:[%s1 + $0x440] sm:$0xff]
  %v177 = vld [vmem:[%s1 + $0x448] sm:$0xff]
  %v178 = vld [vmem:[%s1 + $0x450] sm:$0xff]
  %v179 = vld [vmem:[%s1 + $0x458] sm:$0xff]
  %v180 = vld [vmem:[%s1 + $0x460] sm:$0xff]
  %v181 = vld [vmem:[%s1 + $0x468] sm:$0xff]
  %v182 = vld [vmem:[%s1 + $0x470] sm:$0xff]
  %v183 = vld [vmem:[%s1 + $0x478] sm:$0xff]
  %v184 = vld [vmem:[%s2] sm:$0x3]
  %v186 = vlaneseq
  %v187 = vshrl.u32 %v186, 7
  %v188 = vsub.s32 0, %v187
  %v189 = vrot.slane %v184, %v188
  %v190 = vlaneseq
  %v191 = vshrl.u32 %v190, 7
  %v192 = vsub.s32 1, %v191
  %v193 = vrot.slane %v184, %v192
  %v206 = vunpack.c.l.b16 %v30
  %v207 = vunpack.c.h.b16 %v30
  %v208 = vunpack.c.l.b16 %v31
  %v209 = vunpack.c.h.b16 %v31
  %v210 = vunpack.c.l.b16 %v32
  %v211 = vunpack.c.h.b16 %v32
  %v212 = vunpack.c.l.b16 %v33
  %v213 = vunpack.c.h.b16 %v33
  %v214 = vunpack.c.l.b16 %v34
  %v215 = vunpack.c.l.b16 %v35
  %v216 = vunpack.c.h.b16 %v35
  %v217 = vunpack.c.l.b16 %v36
  %v218 = vunpack.c.h.b16 %v36
  %v219 = vunpack.c.l.b16 %v37
  %v220 = vunpack.c.h.b16 %v37
  %v221 = vunpack.c.l.b16 %v38
  %v222 = vunpack.c.h.b16 %v38
  %v223 = vunpack.c.l.b16 %v39
  %v224 = vpack.c.b16 %v215, %v206
  %v225 = vpack.c.b16 %v216, %v207
  %v226 = vpack.c.b16 %v217, %v208
  %v227 = vpack.c.b16 %v218, %v209
  %v228 = vpack.c.b16 %v219, %v210
  %v229 = vpack.c.b16 %v220, %v211
  %v230 = vpack.c.b16 %v221, %v212
  %v231 = vpack.c.b16 %v222, %v213
  %v232 = vpack.c.b16 %v223, %v214
  %v386 = vunpack.c.l.b16 %v40
  %v387 = vunpack.c.h.b16 %v40
  %v388 = vunpack.c.l.b16 %v41
  %v389 = vunpack.c.h.b16 %v41
  %v390 = vunpack.c.l.b16 %v42
  %v391 = vunpack.c.h.b16 %v42
  %v392 = vunpack.c.l.b16 %v43
  %v393 = vunpack.c.h.b16 %v43
  %v394 = vunpack.c.l.b16 %v44
  %v395 = vunpack.c.h.b16 %v44
  %v396 = vunpack.c.l.b16 %v45
  %v397 = vunpack.c.h.b16 %v45
  %v398 = vunpack.c.l.b16 %v46
  %v399 = vunpack.c.h.b16 %v46
  %v400 = vunpack.c.l.b16 %v47
  %v401 = vunpack.c.h.b16 %v47
  %v402 = vunpack.c.l.b16 %v48
  %v403 = vunpack.c.h.b16 %v48
  %v404 = vunpack.c.l.b16 %v49
  %v405 = vunpack.c.h.b16 %v49
  %v406 = vunpack.c.l.b16 %v50
  %v407 = vunpack.c.h.b16 %v50
  %v408 = vunpack.c.l.b16 %v51
  %v409 = vunpack.c.h.b16 %v51
  %v410 = vunpack.c.l.b16 %v52
  %v411 = vunpack.c.h.b16 %v52
  %v412 = vunpack.c.l.b16 %v53
  %v413 = vunpack.c.h.b16 %v53
  %v414 = vunpack.c.l.b16 %v54
  %v415 = vunpack.c.h.b16 %v54
  %v416 = vunpack.c.l.b16 %v55
  %v417 = vunpack.c.h.b16 %v55
  %v418 = vunpack.c.l.b16 %v56
  %v419 = vunpack.c.h.b16 %v56
  %v420 = vunpack.c.l.b16 %v57
  %v421 = vunpack.c.h.b16 %v57
  %v422 = vunpack.c.l.b16 %v58
  %v423 = vunpack.c.h.b16 %v58
  %v424 = vunpack.c.l.b16 %v59
  %v425 = vunpack.c.h.b16 %v59
  %v426 = vunpack.c.l.b16 %v60
  %v427 = vunpack.c.h.b16 %v60
  %v428 = vunpack.c.l.b16 %v61
  %v429 = vunpack.c.h.b16 %v61
  %v430 = vunpack.c.l.b16 %v62
  %v431 = vunpack.c.h.b16 %v62
  %v432 = vunpack.c.l.b16 %v63
  %v433 = vunpack.c.h.b16 %v63
  %v434 = vunpack.c.l.b16 %v64
  %v435 = vunpack.c.h.b16 %v64
  %v436 = vunpack.c.l.b16 %v65
  %v437 = vunpack.c.h.b16 %v65
  %v438 = vunpack.c.l.b16 %v66
  %v439 = vunpack.c.h.b16 %v66
  %v440 = vunpack.c.l.b16 %v67
  %v441 = vunpack.c.h.b16 %v67
  %v442 = vunpack.c.l.b16 %v68
  %v443 = vunpack.c.h.b16 %v68
  %v444 = vunpack.c.l.b16 %v69
  %v445 = vunpack.c.h.b16 %v69
  %v446 = vunpack.c.l.b16 %v70
  %v447 = vunpack.c.h.b16 %v70
  %v448 = vunpack.c.l.b16 %v71
  %v449 = vunpack.c.h.b16 %v71
  %v450 = vunpack.c.l.b16 %v72
  %v451 = vunpack.c.h.b16 %v72
  %v452 = vunpack.c.l.b16 %v73
  %v453 = vunpack.c.h.b16 %v73
  %v454 = vunpack.c.l.b16 %v74
  %v455 = vunpack.c.h.b16 %v74
  %v456 = vunpack.c.l.b16 %v75
  %v457 = vunpack.c.h.b16 %v75
  %v458 = vunpack.c.l.b16 %v76
  %v459 = vunpack.c.h.b16 %v76
  %v460 = vunpack.c.l.b16 %v77
  %v461 = vunpack.c.h.b16 %v77
  %v462 = vunpack.c.l.b16 %v78
  %v463 = vunpack.c.h.b16 %v78
  %v464 = vunpack.c.l.b16 %v79
  %v465 = vunpack.c.h.b16 %v79
  %v466 = vunpack.c.l.b16 %v80
  %v467 = vunpack.c.h.b16 %v80
  %v468 = vunpack.c.l.b16 %v81
  %v469 = vunpack.c.h.b16 %v81
  %v470 = vunpack.c.l.b16 %v82
  %v471 = vunpack.c.h.b16 %v82
  %v472 = vunpack.c.l.b16 %v83
  %v473 = vunpack.c.h.b16 %v83
  %v474 = vunpack.c.l.b16 %v84
  %v475 = vunpack.c.h.b16 %v84
  %v476 = vunpack.c.l.b16 %v85
  %v477 = vunpack.c.h.b16 %v85
  %v478 = vunpack.c.l.b16 %v86
  %v479 = vunpack.c.h.b16 %v86
  %v480 = vunpack.c.l.b16 %v87
  %v481 = vunpack.c.h.b16 %v87
  %v482 = vunpack.c.l.b16 %v88
  %v483 = vunpack.c.h.b16 %v88
  %v484 = vunpack.c.l.b16 %v89
  %v485 = vunpack.c.h.b16 %v89
  %v486 = vunpack.c.l.b16 %v90
  %v487 = vunpack.c.h.b16 %v90
  %v488 = vunpack.c.l.b16 %v91
  %v489 = vunpack.c.h.b16 %v91
  %v490 = vunpack.c.l.b16 %v92
  %v491 = vunpack.c.h.b16 %v92
  %v492 = vunpack.c.l.b16 %v93
  %v493 = vunpack.c.h.b16 %v93
  %v494 = vunpack.c.l.b16 %v94
  %v495 = vunpack.c.h.b16 %v94
  %v496 = vunpack.c.l.b16 %v95
  %v497 = vunpack.c.h.b16 %v95
  %v498 = vunpack.c.l.b16 %v96
  %v499 = vunpack.c.h.b16 %v96
  %v500 = vunpack.c.l.b16 %v97
  %v501 = vunpack.c.h.b16 %v97
  %v502 = vunpack.c.l.b16 %v98
  %v503 = vunpack.c.h.b16 %v98
  %v504 = vunpack.c.l.b16 %v99
  %v505 = vunpack.c.h.b16 %v99
  %v506 = vunpack.c.l.b16 %v100
  %v507 = vunpack.c.h.b16 %v100
  %v508 = vunpack.c.l.b16 %v101
  %v509 = vunpack.c.h.b16 %v101
  %v510 = vunpack.c.l.b16 %v102
  %v511 = vunpack.c.h.b16 %v102
  %v512 = vunpack.c.l.b16 %v103
  %v513 = vunpack.c.h.b16 %v103
  %v514 = vunpack.c.l.b16 %v104
  %v515 = vunpack.c.h.b16 %v104
  %v516 = vunpack.c.l.b16 %v105
  %v517 = vunpack.c.h.b16 %v105
  %v518 = vunpack.c.l.b16 %v106
  %v519 = vunpack.c.h.b16 %v106
  %v520 = vunpack.c.l.b16 %v107
  %v521 = vunpack.c.h.b16 %v107
  %v522 = vunpack.c.l.b16 %v108
  %v523 = vunpack.c.h.b16 %v108
  %v524 = vunpack.c.l.b16 %v109
  %v525 = vunpack.c.h.b16 %v109
  %v526 = vunpack.c.l.b16 %v110
  %v527 = vunpack.c.h.b16 %v110
  %v528 = vunpack.c.l.b16 %v111
  %v529 = vunpack.c.h.b16 %v111
  %v530 = vunpack.c.l.b16 %v112
  %v531 = vunpack.c.h.b16 %v112
  %v532 = vunpack.c.l.b16 %v113
  %v533 = vunpack.c.h.b16 %v113
  %v534 = vunpack.c.l.b16 %v114
  %v535 = vunpack.c.h.b16 %v114
  %v536 = vunpack.c.l.b16 %v115
  %v537 = vunpack.c.h.b16 %v115
  %v538 = vunpack.c.l.b16 %v116
  %v539 = vunpack.c.h.b16 %v116
  %v540 = vunpack.c.l.b16 %v117
  %v541 = vunpack.c.h.b16 %v117
  %v542 = vunpack.c.l.b16 %v118
  %v543 = vunpack.c.h.b16 %v118
  %v544 = vunpack.c.l.b16 %v119
  %v545 = vunpack.c.h.b16 %v119
  %v546 = vunpack.c.l.b16 %v120
  %v547 = vunpack.c.h.b16 %v120
  %v548 = vunpack.c.l.b16 %v121
  %v549 = vunpack.c.h.b16 %v121
  %v550 = vunpack.c.l.b16 %v122
  %v551 = vunpack.c.h.b16 %v122
  %v552 = vunpack.c.l.b16 %v123
  %v553 = vunpack.c.h.b16 %v123
  %v554 = vunpack.c.l.b16 %v124
  %v555 = vunpack.c.h.b16 %v124
  %v556 = vunpack.c.l.b16 %v125
  %v557 = vunpack.c.h.b16 %v125
  %v558 = vunpack.c.l.b16 %v126
  %v559 = vunpack.c.h.b16 %v126
  %v560 = vunpack.c.l.b16 %v127
  %v561 = vunpack.c.h.b16 %v127
  %v562 = vunpack.c.l.b16 %v128
  %v563 = vunpack.c.h.b16 %v128
  %v564 = vunpack.c.l.b16 %v129
  %v565 = vunpack.c.h.b16 %v129
  %v566 = vunpack.c.l.b16 %v130
  %v567 = vunpack.c.h.b16 %v130
  %v568 = vunpack.c.l.b16 %v131
  %v569 = vunpack.c.h.b16 %v131
  %v570 = vunpack.c.l.b16 %v132
  %v571 = vunpack.c.h.b16 %v132
  %v572 = vunpack.c.l.b16 %v133
  %v573 = vunpack.c.h.b16 %v133
  %v574 = vunpack.c.l.b16 %v134
  %v575 = vunpack.c.h.b16 %v134
  %v576 = vunpack.c.l.b16 %v135
  %v577 = vunpack.c.h.b16 %v135
  %v578 = vunpack.c.l.b16 %v136
  %v579 = vunpack.c.h.b16 %v136
  %v580 = vunpack.c.l.b16 %v137
  %v581 = vunpack.c.h.b16 %v137
  %v582 = vunpack.c.l.b16 %v138
  %v583 = vunpack.c.h.b16 %v138
  %v584 = vunpack.c.l.b16 %v139
  %v585 = vunpack.c.h.b16 %v139
  %v586 = vunpack.c.l.b16 %v140
  %v587 = vunpack.c.h.b16 %v140
  %v588 = vunpack.c.l.b16 %v141
  %v589 = vunpack.c.h.b16 %v141
  %v590 = vunpack.c.l.b16 %v142
  %v591 = vunpack.c.h.b16 %v142
  %v592 = vunpack.c.l.b16 %v143
  %v593 = vunpack.c.h.b16 %v143
  %v594 = vunpack.c.l.b16 %v144
  %v595 = vunpack.c.h.b16 %v144
  %v596 = vunpack.c.l.b16 %v145
  %v597 = vunpack.c.h.b16 %v145
  %v598 = vunpack.c.l.b16 %v146
  %v599 = vunpack.c.h.b16 %v146
  %v600 = vunpack.c.l.b16 %v147
  %v601 = vunpack.c.h.b16 %v147
  %v602 = vunpack.c.l.b16 %v148
  %v603 = vunpack.c.h.b16 %v148
  %v604 = vunpack.c.l.b16 %v149
  %v605 = vunpack.c.h.b16 %v149
  %v606 = vunpack.c.l.b16 %v150
  %v607 = vunpack.c.h.b16 %v150
  %v608 = vunpack.c.l.b16 %v151
  %v609 = vunpack.c.h.b16 %v151
  %v610 = vunpack.c.l.b16 %v152
  %v611 = vunpack.c.h.b16 %v152
  %v612 = vunpack.c.l.b16 %v153
  %v613 = vunpack.c.h.b16 %v153
  %v614 = vunpack.c.l.b16 %v154
  %v615 = vunpack.c.h.b16 %v154
  %v616 = vunpack.c.l.b16 %v155
  %v617 = vunpack.c.h.b16 %v155
  %v618 = vunpack.c.l.b16 %v156
  %v619 = vunpack.c.h.b16 %v156
  %v620 = vunpack.c.l.b16 %v157
  %v621 = vunpack.c.h.b16 %v157
  %v622 = vunpack.c.l.b16 %v158
  %v623 = vunpack.c.h.b16 %v158
  %v624 = vunpack.c.l.b16 %v159
  %v625 = vunpack.c.h.b16 %v159
  %v626 = vunpack.c.l.b16 %v160
  %v627 = vunpack.c.h.b16 %v160
  %v628 = vunpack.c.l.b16 %v161
  %v629 = vunpack.c.h.b16 %v161
  %v630 = vunpack.c.l.b16 %v162
  %v631 = vunpack.c.h.b16 %v162
  %v632 = vunpack.c.l.b16 %v163
  %v633 = vunpack.c.h.b16 %v163
  %v634 = vunpack.c.l.b16 %v164
  %v635 = vunpack.c.h.b16 %v164
  %v636 = vunpack.c.l.b16 %v165
  %v637 = vunpack.c.h.b16 %v165
  %v638 = vunpack.c.l.b16 %v166
  %v639 = vunpack.c.h.b16 %v166
  %v640 = vunpack.c.l.b16 %v167
  %v641 = vunpack.c.h.b16 %v167
  %v642 = vunpack.c.l.b16 %v168
  %v643 = vunpack.c.h.b16 %v168
  %v644 = vunpack.c.l.b16 %v169
  %v645 = vunpack.c.h.b16 %v169
  %v646 = vunpack.c.l.b16 %v170
  %v647 = vunpack.c.h.b16 %v170
  %v648 = vunpack.c.l.b16 %v171
  %v649 = vunpack.c.h.b16 %v171
  %v650 = vunpack.c.l.b16 %v172
  %v651 = vunpack.c.h.b16 %v172
  %v652 = vunpack.c.l.b16 %v173
  %v653 = vunpack.c.h.b16 %v173
  %v654 = vunpack.c.l.b16 %v174
  %v655 = vunpack.c.h.b16 %v174
  %v656 = vunpack.c.l.b16 %v175
  %v657 = vunpack.c.h.b16 %v175
  %v658 = vunpack.c.l.b16 %v176
  %v659 = vunpack.c.h.b16 %v176
  %v660 = vunpack.c.l.b16 %v177
  %v661 = vunpack.c.h.b16 %v177
  %v662 = vunpack.c.l.b16 %v178
  %v663 = vunpack.c.h.b16 %v178
  %v664 = vunpack.c.l.b16 %v179
  %v665 = vunpack.c.h.b16 %v179
  %v666 = vunpack.c.l.b16 %v180
  %v667 = vunpack.c.h.b16 %v180
  %v668 = vunpack.c.l.b16 %v181
  %v669 = vunpack.c.h.b16 %v181
  %v670 = vunpack.c.l.b16 %v182
  %v671 = vunpack.c.h.b16 %v182
  %v672 = vunpack.c.l.b16 %v183
  %v673 = vunpack.c.h.b16 %v183
  %v674 = vpack.c.b16 %v388, %v386
  %v675 = vpack.c.b16 %v389, %v387
  %v676 = vpack.c.b16 %v392, %v390
  %v677 = vpack.c.b16 %v393, %v391
  %v678 = vpack.c.b16 %v396, %v394
  %v679 = vpack.c.b16 %v397, %v395
  %v680 = vpack.c.b16 %v400, %v398
  %v681 = vpack.c.b16 %v401, %v399
  %v682 = vpack.c.b16 %v404, %v402
  %v683 = vpack.c.b16 %v405, %v403
  %v684 = vpack.c.b16 %v408, %v406
  %v685 = vpack.c.b16 %v409, %v407
  %v686 = vpack.c.b16 %v412, %v410
  %v687 = vpack.c.b16 %v413, %v411
  %v688 = vpack.c.b16 %v416, %v414
  %v689 = vpack.c.b16 %v417, %v415
  %v690 = vpack.c.b16 %v420, %v418
  %v691 = vpack.c.b16 %v421, %v419
  %v692 = vpack.c.b16 %v424, %v422
  %v693 = vpack.c.b16 %v425, %v423
  %v694 = vpack.c.b16 %v428, %v426
  %v695 = vpack.c.b16 %v429, %v427
  %v696 = vpack.c.b16 %v432, %v430
  %v697 = vpack.c.b16 %v433, %v431
  %v698 = vpack.c.b16 %v436, %v434
  %v699 = vpack.c.b16 %v437, %v435
  %v700 = vpack.c.b16 %v440, %v438
  %v701 = vpack.c.b16 %v441, %v439
  %v702 = vpack.c.b16 %v444, %v442
  %v703 = vpack.c.b16 %v445, %v443
  %v704 = vpack.c.b16 %v448, %v446
  %v705 = vpack.c.b16 %v449, %v447
  %v706 = vpack.c.b16 %v452, %v450
  %v707 = vpack.c.b16 %v453, %v451
  %v708 = vpack.c.b16 %v456, %v454
  %v709 = vpack.c.b16 %v457, %v455
  %v710 = vpack.c.b16 %v460, %v458
  %v711 = vpack.c.b16 %v461, %v459
  %v712 = vpack.c.b16 %v464, %v462
  %v713 = vpack.c.b16 %v465, %v463
  %v714 = vpack.c.b16 %v468, %v466
  %v715 = vpack.c.b16 %v469, %v467
  %v716 = vpack.c.b16 %v472, %v470
  %v717 = vpack.c.b16 %v473, %v471
  %v718 = vpack.c.b16 %v476, %v474
  %v719 = vpack.c.b16 %v477, %v475
  %v720 = vpack.c.b16 %v480, %v478
  %v721 = vpack.c.b16 %v481, %v479
  %v722 = vpack.c.b16 %v484, %v482
  %v723 = vpack.c.b16 %v485, %v483
  %v724 = vpack.c.b16 %v488, %v486
  %v725 = vpack.c.b16 %v489, %v487
  %v726 = vpack.c.b16 %v492, %v490
  %v727 = vpack.c.b16 %v493, %v491
  %v728 = vpack.c.b16 %v496, %v494
  %v729 = vpack.c.b16 %v497, %v495
  %v730 = vpack.c.b16 %v500, %v498
  %v731 = vpack.c.b16 %v501, %v499
  %v732 = vpack.c.b16 %v504, %v502
  %v733 = vpack.c.b16 %v505, %v503
  %v734 = vpack.c.b16 %v508, %v506
  %v735 = vpack.c.b16 %v509, %v507
  %v736 = vpack.c.b16 %v512, %v510
  %v737 = vpack.c.b16 %v513, %v511
  %v738 = vpack.c.b16 %v516, %v514
  %v739 = vpack.c.b16 %v517, %v515
  %v740 = vpack.c.b16 %v520, %v518
  %v741 = vpack.c.b16 %v521, %v519
  %v742 = vpack.c.b16 %v524, %v522
  %v743 = vpack.c.b16 %v525, %v523
  %v744 = vpack.c.b16 %v528, %v526
  %v745 = vpack.c.b16 %v529, %v527
  %v746 = vpack.c.b16 %v532, %v530
  %v747 = vpack.c.b16 %v533, %v531
  %v748 = vpack.c.b16 %v536, %v534
  %v749 = vpack.c.b16 %v537, %v535
  %v750 = vpack.c.b16 %v540, %v538
  %v751 = vpack.c.b16 %v541, %v539
  %v752 = vpack.c.b16 %v544, %v542
  %v753 = vpack.c.b16 %v545, %v543
  %v754 = vpack.c.b16 %v548, %v546
  %v755 = vpack.c.b16 %v549, %v547
  %v756 = vpack.c.b16 %v552, %v550
  %v757 = vpack.c.b16 %v553, %v551
  %v758 = vpack.c.b16 %v556, %v554
  %v759 = vpack.c.b16 %v557, %v555
  %v760 = vpack.c.b16 %v560, %v558
  %v761 = vpack.c.b16 %v561, %v559
  %v762 = vpack.c.b16 %v564, %v562
  %v763 = vpack.c.b16 %v565, %v563
  %v764 = vpack.c.b16 %v568, %v566
  %v765 = vpack.c.b16 %v569, %v567
  %v766 = vpack.c.b16 %v572, %v570
  %v767 = vpack.c.b16 %v573, %v571
  %v768 = vpack.c.b16 %v576, %v574
  %v769 = vpack.c.b16 %v577, %v575
  %v770 = vpack.c.b16 %v580, %v578
  %v771 = vpack.c.b16 %v581, %v579
  %v772 = vpack.c.b16 %v584, %v582
  %v773 = vpack.c.b16 %v585, %v583
  %v774 = vpack.c.b16 %v588, %v586
  %v775 = vpack.c.b16 %v589, %v587
  %v776 = vpack.c.b16 %v592, %v590
  %v777 = vpack.c.b16 %v593, %v591
  %v778 = vpack.c.b16 %v596, %v594
  %v779 = vpack.c.b16 %v597, %v595
  %v780 = vpack.c.b16 %v600, %v598
  %v781 = vpack.c.b16 %v601, %v599
  %v782 = vpack.c.b16 %v604, %v602
  %v783 = vpack.c.b16 %v605, %v603
  %v784 = vpack.c.b16 %v608, %v606
  %v785 = vpack.c.b16 %v609, %v607
  %v786 = vpack.c.b16 %v612, %v610
  %v787 = vpack.c.b16 %v613, %v611
  %v788 = vpack.c.b16 %v616, %v614
  %v789 = vpack.c.b16 %v617, %v615
  %v790 = vpack.c.b16 %v620, %v618
  %v791 = vpack.c.b16 %v621, %v619
  %v792 = vpack.c.b16 %v624, %v622
  %v793 = vpack.c.b16 %v625, %v623
  %v794 = vpack.c.b16 %v628, %v626
  %v795 = vpack.c.b16 %v629, %v627
  %v796 = vpack.c.b16 %v632, %v630
  %v797 = vpack.c.b16 %v633, %v631
  %v798 = vpack.c.b16 %v636, %v634
  %v799 = vpack.c.b16 %v637, %v635
  %v800 = vpack.c.b16 %v640, %v638
  %v801 = vpack.c.b16 %v641, %v639
  %v802 = vpack.c.b16 %v644, %v642
  %v803 = vpack.c.b16 %v645, %v643
  %v804 = vpack.c.b16 %v648, %v646
  %v805 = vpack.c.b16 %v649, %v647
  %v806 = vpack.c.b16 %v652, %v650
  %v807 = vpack.c.b16 %v653, %v651
  %v808 = vpack.c.b16 %v656, %v654
  %v809 = vpack.c.b16 %v657, %v655
  %v810 = vpack.c.b16 %v660, %v658
  %v811 = vpack.c.b16 %v661, %v659
  %v812 = vpack.c.b16 %v664, %v662
  %v813 = vpack.c.b16 %v665, %v663
  %v814 = vpack.c.b16 %v668, %v666
  %v815 = vpack.c.b16 %v669, %v667
  %v816 = vpack.c.b16 %v672, %v670
  %v817 = vpack.c.b16 %v673, %v671
  %962 = vmatprep.subr.bf16.mxu0 %v675
  %963 = vmatpush1.bf16.msra.mxu0 %v674
  %964 = vmatprep.subr.bf16.mxu0 %v677
  %965 = vmatpush1.bf16.msra.mxu0 %v676
  %966 = vmatprep.subr.bf16.mxu0 %v679
  %967 = vmatpush1.bf16.msra.mxu0 %v678
  %968 = vmatprep.subr.bf16.mxu0 %v681
  %969 = vmatpush1.bf16.msra.mxu0 %v680
  %970 = vmatprep.subr.bf16.mxu0 %v683
  %971 = vmatpush1.bf16.msra.mxu0 %v682
  %972 = vmatprep.subr.bf16.mxu0 %v685
  %973 = vmatpush1.bf16.msra.mxu0 %v684
  %974 = vmatprep.subr.bf16.mxu0 %v687
  %975 = vmatpush1.bf16.msra.mxu0 %v686
  %976 = vmatprep.subr.bf16.mxu0 %v689
  %977 = vmatpush1.bf16.msra.mxu0 %v688
  %978 = vmatprep.subr.bf16.mxu0 %v691
  %979 = vmatpush1.bf16.msra.mxu0 %v690
  %980 = vmatprep.subr.bf16.mxu0 %v693
  %981 = vmatpush1.bf16.msra.mxu0 %v692
  %982 = vmatprep.subr.bf16.mxu0 %v695
  %983 = vmatpush1.bf16.msra.mxu0 %v694
  %984 = vmatprep.subr.bf16.mxu0 %v697
  %985 = vmatpush1.bf16.msra.mxu0 %v696
  %986 = vmatprep.subr.bf16.mxu0 %v699
  %987 = vmatpush1.bf16.msra.mxu0 %v698
  %988 = vmatprep.subr.bf16.mxu0 %v701
  %989 = vmatpush1.bf16.msra.mxu0 %v700
  %990 = vmatprep.subr.bf16.mxu0 %v703
  %991 = vmatpush1.bf16.msra.mxu0 %v702
  %992 = vmatprep.subr.bf16.mxu0 %v705
  %993 = vmatpush1.bf16.msra.mxu0 %v704
  %994 = vmatprep.mubr.bf16.mxu0 %v225
  %995 = vmatmul.mubr.bf16.gmra.mrb[0].mxu0 %v224
  %v996 = vpop.f32.mrb[0].mxu0
  %v997 = vadd.f32 %v189, %v996
  %v998 = vpop.f32.mrb[0].mxu0
  %v999 = vadd.f32 %v193, %v998
  %v1000 = vpop.f32.mrb[0].mxu0
  %v1001 = vadd.f32 %v189, %v1000
  %v1002 = vpop.f32.mrb[0].mxu0
  %v1003 = vadd.f32 %v193, %v1002
  %1004 = vdwg.mxu0
  %1005 = vmatprep.subr.bf16.mxu0 %v707
  %1006 = vmatpush1.bf16.msra.mxu0 %v706
  %1007 = vmatprep.subr.bf16.mxu0 %v709
  %1008 = vmatpush1.bf16.msra.mxu0 %v708
  %1009 = vmatprep.subr.bf16.mxu0 %v711
  %1010 = vmatpush1.bf16.msra.mxu0 %v710
  %1011 = vmatprep.subr.bf16.mxu0 %v713
  %1012 = vmatpush1.bf16.msra.mxu0 %v712
  %1013 = vmatprep.subr.bf16.mxu0 %v715
  %1014 = vmatpush1.bf16.msra.mxu0 %v714
  %1015 = vmatprep.subr.bf16.mxu0 %v717
  %1016 = vmatpush1.bf16.msra.mxu0 %v716
  %1017 = vmatprep.subr.bf16.mxu0 %v719
  %1018 = vmatpush1.bf16.msra.mxu0 %v718
  %1019 = vmatprep.subr.bf16.mxu0 %v721
  %1020 = vmatpush1.bf16.msra.mxu0 %v720
  %1021 = vmatprep.subr.bf16.mxu0 %v723
  %1022 = vmatpush1.bf16.msra.mxu0 %v722
  %1023 = vmatprep.subr.bf16.mxu0 %v725
  %1024 = vmatpush1.bf16.msra.mxu0 %v724
  %1025 = vmatprep.subr.bf16.mxu0 %v727
  %1026 = vmatpush1.bf16.msra.mxu0 %v726
  %1027 = vmatprep.subr.bf16.mxu0 %v729
  %1028 = vmatpush1.bf16.msra.mxu0 %v728
  %1029 = vmatprep.subr.bf16.mxu0 %v731
  %1030 = vmatpush1.bf16.msra.mxu0 %v730
  %1031 = vmatprep.subr.bf16.mxu0 %v733
  %1032 = vmatpush1.bf16.msra.mxu0 %v732
  %1033 = vmatprep.subr.bf16.mxu0 %v735
  %1034 = vmatpush1.bf16.msra.mxu0 %v734
  %1035 = vmatprep.subr.bf16.mxu0 %v737
  %1036 = vmatpush1.bf16.msra.mxu0 %v736
  %1037 = vmatprep.mubr.bf16.mxu0 %v227
  %1038 = vmatmul.mubr.bf16.gmra.mrb[0].mxu0 %v226
  %v1039 = vpop.f32.mrb[0].mxu0
  %v1040 = vadd.f32 %v997, %v1039
  %v1041 = vpop.f32.mrb[0].mxu0
  %v1042 = vadd.f32 %v999, %v1041
  %v1043 = vpop.f32.mrb[0].mxu0
  %v1044 = vadd.f32 %v1001, %v1043
  %v1045 = vpop.f32.mrb[0].mxu0
  %v1046 = vadd.f32 %v1003, %v1045
  %1047 = vdwg.mxu0
  %1048 = vmatprep.subr.bf16.mxu0 %v739
  %1049 = vmatpush1.bf16.msra.mxu0 %v738
  %1050 = vmatprep.subr.bf16.mxu0 %v741
  %1051 = vmatpush1.bf16.msra.mxu0 %v740
  %1052 = vmatprep.subr.bf16.mxu0 %v743
  %1053 = vmatpush1.bf16.msra.mxu0 %v742
  %1054 = vmatprep.subr.bf16.mxu0 %v745
  %1055 = vmatpush1.bf16.msra.mxu0 %v744
  %1056 = vmatprep.subr.bf16.mxu0 %v747
  %1057 = vmatpush1.bf16.msra.mxu0 %v746
  %1058 = vmatprep.subr.bf16.mxu0 %v749
  %1059 = vmatpush1.bf16.msra.mxu0 %v748
  %1060 = vmatprep.subr.bf16.mxu0 %v751
  %1061 = vmatpush1.bf16.msra.mxu0 %v750
  %1062 = vmatprep.subr.bf16.mxu0 %v753
  %1063 = vmatpush1.bf16.msra.mxu0 %v752
  %1064 = vmatprep.subr.bf16.mxu0 %v755
  %1065 = vmatpush1.bf16.msra.mxu0 %v754
  %1066 = vmatprep.subr.bf16.mxu0 %v757
  %1067 = vmatpush1.bf16.msra.mxu0 %v756
  %1068 = vmatprep.subr.bf16.mxu0 %v759
  %1069 = vmatpush1.bf16.msra.mxu0 %v758
  %1070 = vmatprep.subr.bf16.mxu0 %v761
  %1071 = vmatpush1.bf16.msra.mxu0 %v760
  %1072 = vmatprep.subr.bf16.mxu0 %v763
  %1073 = vmatpush1.bf16.msra.mxu0 %v762
  %1074 = vmatprep.subr.bf16.mxu0 %v765
  %1075 = vmatpush1.bf16.msra.mxu0 %v764
  %1076 = vmatprep.subr.bf16.mxu0 %v767
  %1077 = vmatpush1.bf16.msra.mxu0 %v766
  %1078 = vmatprep.subr.bf16.mxu0 %v769
  %1079 = vmatpush1.bf16.msra.mxu0 %v768
  %1080 = vmatprep.mubr.bf16.mxu0 %v229
  %1081 = vmatmul.mubr.bf16.gmra.mrb[0].mxu0 %v228
  %v1082 = vpop.f32.mrb[0].mxu0
  %v1083 = vadd.f32 %v1040, %v1082
  %v1084 = vpop.f32.mrb[0].mxu0
  %v1085 = vadd.f32 %v1042, %v1084
  %v1086 = vpop.f32.mrb[0].mxu0
  %v1087 = vadd.f32 %v1044, %v1086
  %v1088 = vpop.f32.mrb[0].mxu0
  %v1089 = vadd.f32 %v1046, %v1088
  %1090 = vdwg.mxu0
  %1091 = vmatprep.subr.bf16.mxu0 %v771
  %1092 = vmatpush1.bf16.msra.mxu0 %v770
  %1093 = vmatprep.subr.bf16.mxu0 %v773
  %1094 = vmatpush1.bf16.msra.mxu0 %v772
  %1095 = vmatprep.subr.bf16.mxu0 %v775
  %1096 = vmatpush1.bf16.msra.mxu0 %v774
  %1097 = vmatprep.subr.bf16.mxu0 %v777
  %1098 = vmatpush1.bf16.msra.mxu0 %v776
  %1099 = vmatprep.subr.bf16.mxu0 %v779
  %1100 = vmatpush1.bf16.msra.mxu0 %v778
  %1101 = vmatprep.subr.bf16.mxu0 %v781
  %1102 = vmatpush1.bf16.msra.mxu0 %v780
  %1103 = vmatprep.subr.bf16.mxu0 %v783
  %1104 = vmatpush1.bf16.msra.mxu0 %v782
  %1105 = vmatprep.subr.bf16.mxu0 %v785
  %1106 = vmatpush1.bf16.msra.mxu0 %v784
  %1107 = vmatprep.subr.bf16.mxu0 %v787
  %1108 = vmatpush1.bf16.msra.mxu0 %v786
  %1109 = vmatprep.subr.bf16.mxu0 %v789
  %1110 = vmatpush1.bf16.msra.mxu0 %v788
  %1111 = vmatprep.subr.bf16.mxu0 %v791
  %1112 = vmatpush1.bf16.msra.mxu0 %v790
  %1113 = vmatprep.subr.bf16.mxu0 %v793
  %1114 = vmatpush1.bf16.msra.mxu0 %v792
  %1115 = vmatprep.subr.bf16.mxu0 %v795
  %1116 = vmatpush1.bf16.msra.mxu0 %v794
  %1117 = vmatprep.subr.bf16.mxu0 %v797
  %1118 = vmatpush1.bf16.msra.mxu0 %v796
  %1119 = vmatprep.subr.bf16.mxu0 %v799
  %1120 = vmatpush1.bf16.msra.mxu0 %v798
  %1121 = vmatprep.subr.bf16.mxu0 %v801
  %1122 = vmatpush1.bf16.msra.mxu0 %v800
  %1123 = vmatprep.mubr.bf16.mxu0 %v231
  %1124 = vmatmul.mubr.bf16.gmra.mrb[0].mxu0 %v230
  %v1125 = vpop.f32.mrb[0].mxu0
  %v1126 = vadd.f32 %v1083, %v1125
  %v1127 = vpop.f32.mrb[0].mxu0
  %v1128 = vadd.f32 %v1085, %v1127
  %v1129 = vpop.f32.mrb[0].mxu0
  %v1130 = vadd.f32 %v1087, %v1129
  %v1131 = vpop.f32.mrb[0].mxu0
  %v1132 = vadd.f32 %v1089, %v1131
  %1133 = vdwg.mxu0
  %1134 = vmatprep.subr.bf16.mxu0 %v803
  %1135 = vmatpush1.bf16.msra.mxu0 %v802
  %1136 = vmatprep.subr.bf16.mxu0 %v805
  %1137 = vmatpush1.bf16.msra.mxu0 %v804
  %1138 = vmatprep.subr.bf16.mxu0 %v807
  %1139 = vmatpush1.bf16.msra.mxu0 %v806
  %1140 = vmatprep.subr.bf16.mxu0 %v809
  %1141 = vmatpush1.bf16.msra.mxu0 %v808
  %1142 = vmatprep.subr.bf16.mxu0 %v811
  %1143 = vmatpush1.bf16.msra.mxu0 %v810
  %1144 = vmatprep.subr.bf16.mxu0 %v813
  %1145 = vmatpush1.bf16.msra.mxu0 %v812
  %1146 = vmatprep.subr.bf16.mxu0 %v815
  %1147 = vmatpush1.bf16.msra.mxu0 %v814
  %1148 = vmatprep.subr.bf16.mxu0 %v817
  %1149 = vmatpush1.bf16.msra.mxu0 %v816
  %1150 = vmatprep.subr.bf16.mxu0 0
  %1151 = vmatpush1.bf16.msra.mxu0 0
  %1152 = vmatprep.subr.bf16.mxu0 0
  %1153 = vmatpush1.bf16.msra.mxu0 0
  %1154 = vmatprep.subr.bf16.mxu0 0
  %1155 = vmatpush1.bf16.msra.mxu0 0
  %1156 = vmatprep.subr.bf16.mxu0 0
  %1157 = vmatpush1.bf16.msra.mxu0 0
  %1158 = vmatprep.subr.bf16.mxu0 0
  %1159 = vmatpush1.bf16.msra.mxu0 0
  %1160 = vmatprep.subr.bf16.mxu0 0
  %1161 = vmatpush1.bf16.msra.mxu0 0
  %1162 = vmatprep.subr.bf16.mxu0 0
  %1163 = vmatpush1.bf16.msra.mxu0 0
  %1164 = vmatprep.subr.bf16.mxu0 0
  %1165 = vmatpush1.bf16.msra.mxu0 0
  %1166 = vmatprep.mubr.bf16.mxu0 0
  %1167 = vmatmul.mubr.bf16.gmra.mrb[0].mxu0 %v232
  %v1168 = vpop.f32.mrb[0].mxu0
  %v1169 = vadd.f32 %v1126, %v1168
  %v1170 = vpop.f32.mrb[0].mxu0
  %v1171 = vadd.f32 %v1128, %v1170
  %v1172 = vpop.f32.mrb[0].mxu0
  %v1173 = vadd.f32 %v1130, %v1172
  %v1174 = vpop.f32.mrb[0].mxu0
  %v1175 = vadd.f32 %v1132, %v1174
  %1176 = vdwg.mxu0
  %v1177 = vmax.f32 %v1169, 0.0
  %v1178 = vmax.f32 %v1171, 0.0
  %v1179 = vmax.f32 %v1173, 0.0
  %v1180 = vmax.f32 %v1175, 0.0
  %v1181 = vpack.c.bf16 %v1179, %v1177
  %v1182 = vpack.c.bf16 %v1180, %v1178
  %v1183 = vld [vmem:[%s3] sm:$0xf]
  %v1184 = vld [vmem:[%s3 + $0x4] sm:$0xf]
  %v1185 = vld [vmem:[%s4] sm:$0xff]
  %v1186 = vld [vmem:[%s4 + $0x8] sm:$0xff]
  %v1187 = vld [vmem:[%s4 + $0x10] sm:$0xff]
  %v1188 = vld [vmem:[%s4 + $0x18] sm:$0xff]
  %v1189 = vld [vmem:[%s4 + $0x20] sm:$0xff]
  %v1190 = vld [vmem:[%s4 + $0x28] sm:$0xff]
  %v1191 = vld [vmem:[%s4 + $0x30] sm:$0xff]
  %v1192 = vld [vmem:[%s4 + $0x38] sm:$0xff]
  %v1193 = vld [vmem:[%s4 + $0x40] sm:$0xff]
  %v1194 = vld [vmem:[%s4 + $0x48] sm:$0xff]
  %v1195 = vld [vmem:[%s4 + $0x50] sm:$0xff]
  %v1196 = vld [vmem:[%s4 + $0x58] sm:$0xff]
  %v1197 = vld [vmem:[%s4 + $0x60] sm:$0xff]
  %v1198 = vld [vmem:[%s4 + $0x68] sm:$0xff]
  %v1199 = vld [vmem:[%s4 + $0x70] sm:$0xff]
  %v1200 = vld [vmem:[%s4 + $0x78] sm:$0xff]
  %v1201 = vld [vmem:[%s5] sm:$0x3]
  %v1203 = vlaneseq
  %v1204 = vshrl.u32 %v1203, 7
  %v1205 = vsub.s32 0, %v1204
  %v1206 = vrot.slane %v1201, %v1205
  %v1207 = vlaneseq
  %v1208 = vshrl.u32 %v1207, 7
  %v1209 = vsub.s32 1, %v1208
  %v1210 = vrot.slane %v1201, %v1209
  %v1215 = vunpack.c.l.b16 %v1183
  %v1216 = vunpack.c.l.b16 %v1184
  %v1217 = vpack.c.b16 %v1216, %v1215
  %v1235 = vunpack.c.l.b16 %v1185
  %v1236 = vunpack.c.h.b16 %v1185
  %v1237 = vunpack.c.l.b16 %v1186
  %v1238 = vunpack.c.h.b16 %v1186
  %v1239 = vunpack.c.l.b16 %v1187
  %v1240 = vunpack.c.h.b16 %v1187
  %v1241 = vunpack.c.l.b16 %v1188
  %v1242 = vunpack.c.h.b16 %v1188
  %v1243 = vunpack.c.l.b16 %v1189
  %v1244 = vunpack.c.h.b16 %v1189
  %v1245 = vunpack.c.l.b16 %v1190
  %v1246 = vunpack.c.h.b16 %v1190
  %v1247 = vunpack.c.l.b16 %v1191
  %v1248 = vunpack.c.h.b16 %v1191
  %v1249 = vunpack.c.l.b16 %v1192
  %v1250 = vunpack.c.h.b16 %v1192
  %v1251 = vunpack.c.l.b16 %v1193
  %v1252 = vunpack.c.h.b16 %v1193
  %v1253 = vunpack.c.l.b16 %v1194
  %v1254 = vunpack.c.h.b16 %v1194
  %v1255 = vunpack.c.l.b16 %v1195
  %v1256 = vunpack.c.h.b16 %v1195
  %v1257 = vunpack.c.l.b16 %v1196
  %v1258 = vunpack.c.h.b16 %v1196
  %v1259 = vunpack.c.l.b16 %v1197
  %v1260 = vunpack.c.h.b16 %v1197
  %v1261 = vunpack.c.l.b16 %v1198
  %v1262 = vunpack.c.h.b16 %v1198
  %v1263 = vunpack.c.l.b16 %v1199
  %v1264 = vunpack.c.h.b16 %v1199
  %v1265 = vunpack.c.l.b16 %v1200
  %v1266 = vunpack.c.h.b16 %v1200
  %v1267 = vpack.c.b16 %v1237, %v1235
  %v1268 = vpack.c.b16 %v1238, %v1236
  %v1269 = vpack.c.b16 %v1241, %v1239
  %v1270 = vpack.c.b16 %v1242, %v1240
  %v1271 = vpack.c.b16 %v1245, %v1243
  %v1272 = vpack.c.b16 %v1246, %v1244
  %v1273 = vpack.c.b16 %v1249, %v1247
  %v1274 = vpack.c.b16 %v1250, %v1248
  %v1275 = vpack.c.b16 %v1253, %v1251
  %v1276 = vpack.c.b16 %v1254, %v1252
  %v1277 = vpack.c.b16 %v1257, %v1255
  %v1278 = vpack.c.b16 %v1258, %v1256
  %v1279 = vpack.c.b16 %v1261, %v1259
  %v1280 = vpack.c.b16 %v1262, %v1260
  %v1281 = vpack.c.b16 %v1265, %v1263
  %v1282 = vpack.c.b16 %v1266, %v1264
  %1299 = vmatprep.subr.bf16.mxu0 %v1268
  %1300 = vmatpush1.bf16.msra.mxu0 %v1267
  %1301 = vmatprep.subr.bf16.mxu0 %v1270
  %1302 = vmatpush1.bf16.msra.mxu0 %v1269
  %1303 = vmatprep.subr.bf16.mxu0 %v1272
  %1304 = vmatpush1.bf16.msra.mxu0 %v1271
  %1305 = vmatprep.subr.bf16.mxu0 %v1274
  %1306 = vmatpush1.bf16.msra.mxu0 %v1273
  %1307 = vmatprep.subr.bf16.mxu0 %v1276
  %1308 = vmatpush1.bf16.msra.mxu0 %v1275
  %1309 = vmatprep.subr.bf16.mxu0 %v1278
  %1310 = vmatpush1.bf16.msra.mxu0 %v1277
  %1311 = vmatprep.subr.bf16.mxu0 %v1280
  %1312 = vmatpush1.bf16.msra.mxu0 %v1279
  %1313 = vmatprep.subr.bf16.mxu0 %v1282
  %1314 = vmatpush1.bf16.msra.mxu0 %v1281
  %1315 = vmatprep.subr.bf16.mxu0 0
  %1316 = vmatpush1.bf16.msra.mxu0 0
  %1317 = vmatprep.subr.bf16.mxu0 0
  %1318 = vmatpush1.bf16.msra.mxu0 0
  %1319 = vmatprep.subr.bf16.mxu0 0
  %1320 = vmatpush1.bf16.msra.mxu0 0
  %1321 = vmatprep.subr.bf16.mxu0 0
  %1322 = vmatpush1.bf16.msra.mxu0 0
  %1323 = vmatprep.subr.bf16.mxu0 0
  %1324 = vmatpush1.bf16.msra.mxu0 0
  %1325 = vmatprep.subr.bf16.mxu0 0
  %1326 = vmatpush1.bf16.msra.mxu0 0
  %1327 = vmatprep.subr.bf16.mxu0 0
  %1328 = vmatpush1.bf16.msra.mxu0 0
  %1329 = vmatprep.subr.bf16.mxu0 0
  %1330 = vmatpush1.bf16.msra.mxu0 0
  %1331 = vmatprep.mubr.bf16.mxu0 0
  %1332 = vmatmul.mubr.bf16.gmra.mrb[0].mxu0 %v1217
  %v1333 = vpop.f32.mrb[0].mxu0
  %v1334 = vadd.f32 %v1206, %v1333
  %v1335 = vpop.f32.mrb[0].mxu0
  %v1336 = vadd.f32 %v1210, %v1335
  %v1337 = vpop.f32.mrb[0].mxu0
  %v1338 = vadd.f32 %v1206, %v1337
  %v1339 = vpop.f32.mrb[0].mxu0
  %v1340 = vadd.f32 %v1210, %v1339
  %1341 = vdwg.mxu0
  %v1342 = vld [vmem:[%s6] sm:$0xff]
  %v1343 = vld [vmem:[%s6 + $0x8] sm:$0xff]
  %v1344 = vld [vmem:[%s6 + $0x10] sm:$0xff]
  %v1345 = vld [vmem:[%s6 + $0x18] sm:$0xff]
  %v1346 = vld [vmem:[%s6 + $0x20] sm:$0xff]
  %v1347 = vld [vmem:[%s6 + $0x28] sm:$0xff]
  %v1348 = vld [vmem:[%s6 + $0x30] sm:$0xff]
  %v1349 = vld [vmem:[%s6 + $0x38] sm:$0xff]
  %v1350 = vld [vmem:[%s6 + $0x40] sm:$0xff]
  %v1351 = vld [vmem:[%s6 + $0x48] sm:$0xff]
  %v1352 = vld [vmem:[%s6 + $0x50] sm:$0xff]
  %v1353 = vld [vmem:[%s6 + $0x58] sm:$0xff]
  %v1354 = vld [vmem:[%s6 + $0x60] sm:$0xff]
  %v1355 = vld [vmem:[%s6 + $0x68] sm:$0xff]
  %v1356 = vld [vmem:[%s6 + $0x70] sm:$0xff]
  %v1357 = vld [vmem:[%s6 + $0x78] sm:$0xff]
  %v1358 = vld [vmem:[%s6 + $0x80] sm:$0xff]
  %v1359 = vld [vmem:[%s6 + $0x88] sm:$0xff]
  %v1360 = vld [vmem:[%s6 + $0x90] sm:$0xff]
  %v1361 = vld [vmem:[%s6 + $0x98] sm:$0xff]
  %v1362 = vld [vmem:[%s6 + $0xa0] sm:$0xff]
  %v1363 = vld [vmem:[%s6 + $0xa8] sm:$0xff]
  %v1364 = vld [vmem:[%s6 + $0xb0] sm:$0xff]
  %v1365 = vld [vmem:[%s6 + $0xb8] sm:$0xff]
  %v1366 = vld [vmem:[%s6 + $0xc0] sm:$0xff]
  %v1367 = vld [vmem:[%s6 + $0xc8] sm:$0xff]
  %v1368 = vld [vmem:[%s6 + $0xd0] sm:$0xff]
  %v1369 = vld [vmem:[%s6 + $0xd8] sm:$0xff]
  %v1370 = vld [vmem:[%s6 + $0xe0] sm:$0xff]
  %v1371 = vld [vmem:[%s6 + $0xe8] sm:$0xff]
  %v1372 = vld [vmem:[%s6 + $0xf0] sm:$0xff]
  %v1373 = vld [vmem:[%s6 + $0xf8] sm:$0xff]
  %v1374 = vld [vmem:[%s7] sm:$0x3]
  %v1376 = vlaneseq
  %v1377 = vshrl.u32 %v1376, 7
  %v1378 = vsub.s32 0, %v1377
  %v1379 = vrot.slane %v1374, %v1378
  %v1380 = vlaneseq
  %v1381 = vshrl.u32 %v1380, 7
  %v1382 = vsub.s32 1, %v1381
  %v1383 = vrot.slane %v1374, %v1382
  %v1418 = vunpack.c.l.b16 %v1342
  %v1419 = vunpack.c.h.b16 %v1342
  %v1420 = vunpack.c.l.b16 %v1343
  %v1421 = vunpack.c.h.b16 %v1343
  %v1422 = vunpack.c.l.b16 %v1344
  %v1423 = vunpack.c.h.b16 %v1344
  %v1424 = vunpack.c.l.b16 %v1345
  %v1425 = vunpack.c.h.b16 %v1345
  %v1426 = vunpack.c.l.b16 %v1346
  %v1427 = vunpack.c.h.b16 %v1346
  %v1428 = vunpack.c.l.b16 %v1347
  %v1429 = vunpack.c.h.b16 %v1347
  %v1430 = vunpack.c.l.b16 %v1348
  %v1431 = vunpack.c.h.b16 %v1348
  %v1432 = vunpack.c.l.b16 %v1349
  %v1433 = vunpack.c.h.b16 %v1349
  %v1434 = vunpack.c.l.b16 %v1350
  %v1435 = vunpack.c.h.b16 %v1350
  %v1436 = vunpack.c.l.b16 %v1351
  %v1437 = vunpack.c.h.b16 %v1351
  %v1438 = vunpack.c.l.b16 %v1352
  %v1439 = vunpack.c.h.b16 %v1352
  %v1440 = vunpack.c.l.b16 %v1353
  %v1441 = vunpack.c.h.b16 %v1353
  %v1442 = vunpack.c.l.b16 %v1354
  %v1443 = vunpack.c.h.b16 %v1354
  %v1444 = vunpack.c.l.b16 %v1355
  %v1445 = vunpack.c.h.b16 %v1355
  %v1446 = vunpack.c.l.b16 %v1356
  %v1447 = vunpack.c.h.b16 %v1356
  %v1448 = vunpack.c.l.b16 %v1357
  %v1449 = vunpack.c.h.b16 %v1357
  %v1450 = vunpack.c.l.b16 %v1358
  %v1451 = vunpack.c.h.b16 %v1358
  %v1452 = vunpack.c.l.b16 %v1359
  %v1453 = vunpack.c.h.b16 %v1359
  %v1454 = vunpack.c.l.b16 %v1360
  %v1455 = vunpack.c.h.b16 %v1360
  %v1456 = vunpack.c.l.b16 %v1361
  %v1457 = vunpack.c.h.b16 %v1361
  %v1458 = vunpack.c.l.b16 %v1362
  %v1459 = vunpack.c.h.b16 %v1362
  %v1460 = vunpack.c.l.b16 %v1363
  %v1461 = vunpack.c.h.b16 %v1363
  %v1462 = vunpack.c.l.b16 %v1364
  %v1463 = vunpack.c.h.b16 %v1364
  %v1464 = vunpack.c.l.b16 %v1365
  %v1465 = vunpack.c.h.b16 %v1365
  %v1466 = vunpack.c.l.b16 %v1366
  %v1467 = vunpack.c.h.b16 %v1366
  %v1468 = vunpack.c.l.b16 %v1367
  %v1469 = vunpack.c.h.b16 %v1367
  %v1470 = vunpack.c.l.b16 %v1368
  %v1471 = vunpack.c.h.b16 %v1368
  %v1472 = vunpack.c.l.b16 %v1369
  %v1473 = vunpack.c.h.b16 %v1369
  %v1474 = vunpack.c.l.b16 %v1370
  %v1475 = vunpack.c.h.b16 %v1370
  %v1476 = vunpack.c.l.b16 %v1371
  %v1477 = vunpack.c.h.b16 %v1371
  %v1478 = vunpack.c.l.b16 %v1372
  %v1479 = vunpack.c.h.b16 %v1372
  %v1480 = vunpack.c.l.b16 %v1373
  %v1481 = vunpack.c.h.b16 %v1373
  %v1482 = vpack.c.b16 %v1420, %v1418
  %v1483 = vpack.c.b16 %v1421, %v1419
  %v1484 = vpack.c.b16 %v1424, %v1422
  %v1485 = vpack.c.b16 %v1425, %v1423
  %v1486 = vpack.c.b16 %v1428, %v1426
  %v1487 = vpack.c.b16 %v1429, %v1427
  %v1488 = vpack.c.b16 %v1432, %v1430
  %v1489 = vpack.c.b16 %v1433, %v1431
  %v1490 = vpack.c.b16 %v1436, %v1434
  %v1491 = vpack.c.b16 %v1437, %v1435
  %v1492 = vpack.c.b16 %v1440, %v1438
  %v1493 = vpack.c.b16 %v1441, %v1439
  %v1494 = vpack.c.b16 %v1444, %v1442
  %v1495 = vpack.c.b16 %v1445, %v1443
  %v1496 = vpack.c.b16 %v1448, %v1446
  %v1497 = vpack.c.b16 %v1449, %v1447
  %v1498 = vpack.c.b16 %v1452, %v1450
  %v1499 = vpack.c.b16 %v1453, %v1451
  %v1500 = vpack.c.b16 %v1456, %v1454
  %v1501 = vpack.c.b16 %v1457, %v1455
  %v1502 = vpack.c.b16 %v1460, %v1458
  %v1503 = vpack.c.b16 %v1461, %v1459
  %v1504 = vpack.c.b16 %v1464, %v1462
  %v1505 = vpack.c.b16 %v1465, %v1463
  %v1506 = vpack.c.b16 %v1468, %v1466
  %v1507 = vpack.c.b16 %v1469, %v1467
  %v1508 = vpack.c.b16 %v1472, %v1470
  %v1509 = vpack.c.b16 %v1473, %v1471
  %v1510 = vpack.c.b16 %v1476, %v1474
  %v1511 = vpack.c.b16 %v1477, %v1475
  %v1512 = vpack.c.b16 %v1480, %v1478
  %v1513 = vpack.c.b16 %v1481, %v1479
  %1546 = vmatprep.subr.bf16.mxu0 %v1483
  %1547 = vmatpush1.bf16.msra.mxu0 %v1482
  %1548 = vmatprep.subr.bf16.mxu0 %v1485
  %1549 = vmatpush1.bf16.msra.mxu0 %v1484
  %1550 = vmatprep.subr.bf16.mxu0 %v1487
  %1551 = vmatpush1.bf16.msra.mxu0 %v1486
  %1552 = vmatprep.subr.bf16.mxu0 %v1489
  %1553 = vmatpush1.bf16.msra.mxu0 %v1488
  %1554 = vmatprep.subr.bf16.mxu0 %v1491
  %1555 = vmatpush1.bf16.msra.mxu0 %v1490
  %1556 = vmatprep.subr.bf16.mxu0 %v1493
  %1557 = vmatpush1.bf16.msra.mxu0 %v1492
  %1558 = vmatprep.subr.bf16.mxu0 %v1495
  %1559 = vmatpush1.bf16.msra.mxu0 %v1494
  %1560 = vmatprep.subr.bf16.mxu0 %v1497
  %1561 = vmatpush1.bf16.msra.mxu0 %v1496
  %1562 = vmatprep.subr.bf16.mxu0 %v1499
  %1563 = vmatpush1.bf16.msra.mxu0 %v1498
  %1564 = vmatprep.subr.bf16.mxu0 %v1501
  %1565 = vmatpush1.bf16.msra.mxu0 %v1500
  %1566 = vmatprep.subr.bf16.mxu0 %v1503
  %1567 = vmatpush1.bf16.msra.mxu0 %v1502
  %1568 = vmatprep.subr.bf16.mxu0 %v1505
  %1569 = vmatpush1.bf16.msra.mxu0 %v1504
  %1570 = vmatprep.subr.bf16.mxu0 %v1507
  %1571 = vmatpush1.bf16.msra.mxu0 %v1506
  %1572 = vmatprep.subr.bf16.mxu0 %v1509
  %1573 = vmatpush1.bf16.msra.mxu0 %v1508
  %1574 = vmatprep.subr.bf16.mxu0 %v1511
  %1575 = vmatpush1.bf16.msra.mxu0 %v1510
  %1576 = vmatprep.subr.bf16.mxu0 %v1513
  %1577 = vmatpush1.bf16.msra.mxu0 %v1512
  %1578 = vmatprep.mubr.bf16.mxu0 %v1182
  %1579 = vmatmul.mubr.bf16.gmra.mrb[0].mxu0 %v1181
  %v1580 = vpop.f32.mrb[0].mxu0
  %v1581 = vadd.f32 %v1379, %v1580
  %v1582 = vpop.f32.mrb[0].mxu0
  %v1583 = vadd.f32 %v1383, %v1582
  %v1584 = vpop.f32.mrb[0].mxu0
  %v1585 = vadd.f32 %v1379, %v1584
  %v1586 = vpop.f32.mrb[0].mxu0
  %v1587 = vadd.f32 %v1383, %v1586
  %1588 = vdwg.mxu0
  %v1589 = vadd.f32 %v1581, %v1334
  %v1590 = vadd.f32 %v1583, %v1336
  %v1591 = vadd.f32 %v1585, %v1338
  %v1592 = vadd.f32 %v1587, %v1340
  %v1593 = vmax.f32 %v1589, 0.0
  %v1594 = vmax.f32 %v1590, 0.0
  %v1595 = vmax.f32 %v1591, 0.0
  %v1596 = vmax.f32 %v1592, 0.0
  %v1597 = vpack.c.bf16 %v1595, %v1593
  %v1598 = vpack.c.bf16 %v1596, %v1594
  %v1601 = vunpack.c.l.b16 %v1597
  %v1602 = vunpack.c.l.b16 %v1598
  %v1603 = vunpack.c.h.b16 %v1597
  %v1604 = vunpack.c.h.b16 %v1598
  %v1605 = vpack.c.b16 %v1602, %v1601
  %v1606 = vpack.c.b16 %v1604, %v1603
  %1609 = vst [vmem:[%s8] sm:$0xff] %v1605
  %1610 = vst [vmem:[%s8 + $0x8] sm:$0xff] %v1606
  // Predicated region
  $region34: #{_lambda_.42} parent=0 // pred_check
    _
  $region35: #{_lambda_.42} parent=0 // pred_check_branch
    %1612 = sbr.rel (0) target = $region37
  $region36: #{_lambda_.42} parent=0 // pred_region
    _
  $region37: #{_lambda_.42} parent=0 // pred_fallthru
    _
  // Predicated region
  $region38: #{_lambda_.42} parent=0 // pred_check
    _
  $region39: #{_lambda_.42} parent=0 // pred_check_branch
    %1614 = sbr.rel (0) target = $region41
  $region40: #{_lambda_.42} parent=0 // pred_region
    _
  $region41: #{_lambda_.42} parent=0 // pred_fallthru
    _

// kernel: _lambda_.48
$region0: #{_lambda_.48}
  #allocation0 [shape = 'u32[]', space=smem, size = 0x4, offset = 0x4, fixed_abs, tag = 'smem constant byte address 0x4 - core index']
  #allocation1 [shape = 'u32[144,128]{1,0:T(1,128)}', space=vmem, size = 0x12000, scoped, tag = 'internal scratch']
  %s0 = inlined_call_operand.vmem [shape: bf16[16,256], index: 0, kind: input, shape index: {}, may-alias: {0,3}]
  %s1 = inlined_call_operand.vmem [shape: bf16[256,512], index: 1, kind: input, shape index: {}]
  %s2 = inlined_call_operand.vmem [shape: f32[1,512], index: 2, kind: input, shape index: {}]
  %s3 = inlined_call_operand.vmem [shape: bf16[16,256], index: 3, kind: input, shape index: {}, may-alias: {0,3}]
  %s4 = inlined_call_operand.vmem [shape: bf16[256,512], index: 4, kind: input, shape index: {}]
  %s5 = inlined_call_operand.vmem [shape: f32[1,512], index: 5, kind: input, shape index: {}]
  %s6 = inlined_call_operand.vmem [shape: bf16[512,512], index: 6, kind: input, shape index: {}]
  %s7 = inlined_call_operand.vmem [shape: f32[1,512], index: 7, kind: input, shape index: {}]
  %s8 = inlined_call_operand.vmem [shape: bf16[16,512], index: 8, kind: output, shape index: {}]
  %s9 = sld [smem:[#allocation0]]
  $region42: #{_lambda_.48} parent=0
    _
  %s11 = ssub.s32 1, %s9
  %s12 = scalar_select 0, %s11, %s9
  // Predicated region
  $region2: #{_lambda_.48} parent=0 // pred_check
    _
  $region3: #{_lambda_.48} parent=0 // pred_check_branch
    %14 = sbr.rel (0) target = $region5
  $region4: #{_lambda_.48} parent=0 // pred_region
    _
  $region5: #{_lambda_.48} parent=0 // pred_fallthru
    _
  // Predicated region
  $region6: #{_lambda_.48} parent=0 // pred_check
    _
  $region7: #{_lambda_.48} parent=0 // pred_check_branch
    %16 = sbr.rel (0) target = $region9
  $region8: #{_lambda_.48} parent=0 // pred_region
    _
  $region9: #{_lambda_.48} parent=0 // pred_fallthru
    _
  // Predicated region
  $region10: #{_lambda_.48} parent=0 // pred_check
    _
  $region11: #{_lambda_.48} parent=0 // pred_check_branch
    %18 = sbr.rel (0) target = $region13
  $region12: #{_lambda_.48} parent=0 // pred_region
    _
  $region13: #{_lambda_.48} parent=0 // pred_fallthru
    _
  // Predicated region
  $region14: #{_lambda_.48} parent=0 // pred_check
    _
  $region15: #{_lambda_.48} parent=0 // pred_check_branch
    %20 = sbr.rel (0) target = $region17
  $region16: #{_lambda_.48} parent=0 // pred_region
    _
  $region17: #{_lambda_.48} parent=0 // pred_fallthru
    _
  // Predicated region
  $region18: #{_lambda_.48} parent=0 // pred_check
    _
  $region19: #{_lambda_.48} parent=0 // pred_check_branch
    %22 = sbr.rel (0) target = $region21
  $region20: #{_lambda_.48} parent=0 // pred_region
    _
  $region21: #{_lambda_.48} parent=0 // pred_fallthru
    _
  // Predicated region
  $region22: #{_lambda_.48} parent=0 // pred_check
    _
  $region23: #{_lambda_.48} parent=0 // pred_check_branch
    %24 = sbr.rel (0) target = $region25
  $region24: #{_lambda_.48} parent=0 // pred_region
    _
  $region25: #{_lambda_.48} parent=0 // pred_fallthru
    _
  // Predicated region
  $region26: #{_lambda_.48} parent=0 // pred_check
    _
  $region27: #{_lambda_.48} parent=0 // pred_check_branch
    %26 = sbr.rel (0) target = $region29
  $region28: #{_lambda_.48} parent=0 // pred_region
    _
  $region29: #{_lambda_.48} parent=0 // pred_fallthru
    _
  // Predicated region
  $region30: #{_lambda_.48} parent=0 // pred_check
    _
  $region31: #{_lambda_.48} parent=0 // pred_check_branch
    %28 = sbr.rel (0) target = $region33
  $region32: #{_lambda_.48} parent=0 // pred_region
    _
  $region33: #{_lambda_.48} parent=0 // pred_fallthru
    _
  %v29 = vld [vmem:[%s0] sm:$0xff]
  %v30 = vld [vmem:[%s0 + $0x8] sm:$0xff]
  %v31 = vld [vmem:[%s1] sm:$0xff]
  %v32 = vld [vmem:[%s1 + $0x8] sm:$0xff]
  %v33 = vld [vmem:[%s1 + $0x10] sm:$0xff]
  %v34 = vld [vmem:[%s1 + $0x18] sm:$0xff]
  %v35 = vld [vmem:[%s1 + $0x20] sm:$0xff]
  %v36 = vld [vmem:[%s1 + $0x28] sm:$0xff]
  %v37 = vld [vmem:[%s1 + $0x30] sm:$0xff]
  %v38 = vld [vmem:[%s1 + $0x38] sm:$0xff]
  %v39 = vld [vmem:[%s1 + $0x40] sm:$0xff]
  %v40 = vld [vmem:[%s1 + $0x48] sm:$0xff]
  %v41 = vld [vmem:[%s1 + $0x50] sm:$0xff]
  %v42 = vld [vmem:[%s1 + $0x58] sm:$0xff]
  %v43 = vld [vmem:[%s1 + $0x60] sm:$0xff]
  %v44 = vld [vmem:[%s1 + $0x68] sm:$0xff]
  %v45 = vld [vmem:[%s1 + $0x70] sm:$0xff]
  %v46 = vld [vmem:[%s1 + $0x78] sm:$0xff]
  %v47 = vld [vmem:[%s1 + $0x80] sm:$0xff]
  %v48 = vld [vmem:[%s1 + $0x88] sm:$0xff]
  %v49 = vld [vmem:[%s1 + $0x90] sm:$0xff]
  %v50 = vld [vmem:[%s1 + $0x98] sm:$0xff]
  %v51 = vld [vmem:[%s1 + $0xa0] sm:$0xff]
  %v52 = vld [vmem:[%s1 + $0xa8] sm:$0xff]
  %v53 = vld [vmem:[%s1 + $0xb0] sm:$0xff]
  %v54 = vld [vmem:[%s1 + $0xb8] sm:$0xff]
  %v55 = vld [vmem:[%s1 + $0xc0] sm:$0xff]
  %v56 = vld [vmem:[%s1 + $0xc8] sm:$0xff]
  %v57 = vld [vmem:[%s1 + $0xd0] sm:$0xff]
  %v58 = vld [vmem:[%s1 + $0xd8] sm:$0xff]
  %v59 = vld [vmem:[%s1 + $0xe0] sm:$0xff]
  %v60 = vld [vmem:[%s1 + $0xe8] sm:$0xff]
  %v61 = vld [vmem:[%s1 + $0xf0] sm:$0xff]
  %v62 = vld [vmem:[%s1 + $0xf8] sm:$0xff]
  %v63 = vld [vmem:[%s1 + $0x100] sm:$0xff]
  %v64 = vld [vmem:[%s1 + $0x108] sm:$0xff]
  %v65 = vld [vmem:[%s1 + $0x110] sm:$0xff]
  %v66 = vld [vmem:[%s1 + $0x118] sm:$0xff]
  %v67 = vld [vmem:[%s1 + $0x120] sm:$0xff]
  %v68 = vld [vmem:[%s1 + $0x128] sm:$0xff]
  %v69 = vld [vmem:[%s1 + $0x130] sm:$0xff]
  %v70 = vld [vmem:[%s1 + $0x138] sm:$0xff]
  %v71 = vld [vmem:[%s1 + $0x140] sm:$0xff]
  %v72 = vld [vmem:[%s1 + $0x148] sm:$0xff]
  %v73 = vld [vmem:[%s1 + $0x150] sm:$0xff]
  %v74 = vld [vmem:[%s1 + $0x158] sm:$0xff]
  %v75 = vld [vmem:[%s1 + $0x160] sm:$0xff]
  %v76 = vld [vmem:[%s1 + $0x168] sm:$0xff]
  %v77 = vld [vmem:[%s1 + $0x170] sm:$0xff]
  %v78 = vld [vmem:[%s1 + $0x178] sm:$0xff]
  %v79 = vld [vmem:[%s1 + $0x180] sm:$0xff]
  %v80 = vld [vmem:[%s1 + $0x188] sm:$0xff]
  %v81 = vld [vmem:[%s1 + $0x190] sm:$0xff]
  %v82 = vld [vmem:[%s1 + $0x198] sm:$0xff]
  %v83 = vld [vmem:[%s1 + $0x1a0] sm:$0xff]
  %v84 = vld [vmem:[%s1 + $0x1a8] sm:$0xff]
  %v85 = vld [vmem:[%s1 + $0x1b0] sm:$0xff]
  %v86 = vld [vmem:[%s1 + $0x1b8] sm:$0xff]
  %v87 = vld [vmem:[%s1 + $0x1c0] sm:$0xff]
  %v88 = vld [vmem:[%s1 + $0x1c8] sm:$0xff]
  %v89 = vld [vmem:[%s1 + $0x1d0] sm:$0xff]
  %v90 = vld [vmem:[%s1 + $0x1d8] sm:$0xff]
  %v91 = vld [vmem:[%s1 + $0x1e0] sm:$0xff]
  %v92 = vld [vmem:[%s1 + $0x1e8] sm:$0xff]
  %v93 = vld [vmem:[%s1 + $0x1f0] sm:$0xff]
  %v94 = vld [vmem:[%s1 + $0x1f8] sm:$0xff]
  %v95 = vld [vmem:[%s2] sm:$0xf]
  %v97 = vlaneseq
  %v98 = vshrl.u32 %v97, 7
  %v99 = vsub.s32 0, %v98
  %v100 = vrot.slane %v95, %v99
  %v101 = vlaneseq
  %v102 = vshrl.u32 %v101, 7
  %v103 = vsub.s32 1, %v102
  %v104 = vrot.slane %v95, %v103
  %v105 = vlaneseq
  %v106 = vshrl.u32 %v105, 7
  %v107 = vsub.s32 2, %v106
  %v108 = vrot.slane %v95, %v107
  %v109 = vlaneseq
  %v110 = vshrl.u32 %v109, 7
  %v111 = vsub.s32 3, %v110
  %v112 = vrot.slane %v95, %v111
  %v119 = vunpack.c.l.b16 %v29
  %v120 = vunpack.c.h.b16 %v29
  %v121 = vunpack.c.l.b16 %v30
  %v122 = vunpack.c.h.b16 %v30
  %v123 = vpack.c.b16 %v121, %v119
  %v124 = vpack.c.b16 %v122, %v120
  %v191 = vunpack.c.l.b16 %v31
  %v192 = vunpack.c.h.b16 %v31
  %v193 = vunpack.c.l.b16 %v32
  %v194 = vunpack.c.h.b16 %v32
  %v195 = vunpack.c.l.b16 %v33
  %v196 = vunpack.c.h.b16 %v33
  %v197 = vunpack.c.l.b16 %v34
  %v198 = vunpack.c.h.b16 %v34
  %v199 = vunpack.c.l.b16 %v35
  %v200 = vunpack.c.h.b16 %v35
  %v201 = vunpack.c.l.b16 %v36
  %v202 = vunpack.c.h.b16 %v36
  %v203 = vunpack.c.l.b16 %v37
  %v204 = vunpack.c.h.b16 %v37
  %v205 = vunpack.c.l.b16 %v38
  %v206 = vunpack.c.h.b16 %v38
  %v207 = vunpack.c.l.b16 %v39
  %v208 = vunpack.c.h.b16 %v39
  %v209 = vunpack.c.l.b16 %v40
  %v210 = vunpack.c.h.b16 %v40
  %v211 = vunpack.c.l.b16 %v41
  %v212 = vunpack.c.h.b16 %v41
  %v213 = vunpack.c.l.b16 %v42
  %v214 = vunpack.c.h.b16 %v42
  %v215 = vunpack.c.l.b16 %v43
  %v216 = vunpack.c.h.b16 %v43
  %v217 = vunpack.c.l.b16 %v44
  %v218 = vunpack.c.h.b16 %v44
  %v219 = vunpack.c.l.b16 %v45
  %v220 = vunpack.c.h.b16 %v45
  %v221 = vunpack.c.l.b16 %v46
  %v222 = vunpack.c.h.b16 %v46
  %v223 = vunpack.c.l.b16 %v47
  %v224 = vunpack.c.h.b16 %v47
  %v225 = vunpack.c.l.b16 %v48
  %v226 = vunpack.c.h.b16 %v48
  %v227 = vunpack.c.l.b16 %v49
  %v228 = vunpack.c.h.b16 %v49
  %v229 = vunpack.c.l.b16 %v50
  %v230 = vunpack.c.h.b16 %v50
  %v231 = vunpack.c.l.b16 %v51
  %v232 = vunpack.c.h.b16 %v51
  %v233 = vunpack.c.l.b16 %v52
  %v234 = vunpack.c.h.b16 %v52
  %v235 = vunpack.c.l.b16 %v53
  %v236 = vunpack.c.h.b16 %v53
  %v237 = vunpack.c.l.b16 %v54
  %v238 = vunpack.c.h.b16 %v54
  %v239 = vunpack.c.l.b16 %v55
  %v240 = vunpack.c.h.b16 %v55
  %v241 = vunpack.c.l.b16 %v56
  %v242 = vunpack.c.h.b16 %v56
  %v243 = vunpack.c.l.b16 %v57
  %v244 = vunpack.c.h.b16 %v57
  %v245 = vunpack.c.l.b16 %v58
  %v246 = vunpack.c.h.b16 %v58
  %v247 = vunpack.c.l.b16 %v59
  %v248 = vunpack.c.h.b16 %v59
  %v249 = vunpack.c.l.b16 %v60
  %v250 = vunpack.c.h.b16 %v60
  %v251 = vunpack.c.l.b16 %v61
  %v252 = vunpack.c.h.b16 %v61
  %v253 = vunpack.c.l.b16 %v62
  %v254 = vunpack.c.h.b16 %v62
  %v255 = vunpack.c.l.b16 %v63
  %v256 = vunpack.c.h.b16 %v63
  %v257 = vunpack.c.l.b16 %v64
  %v258 = vunpack.c.h.b16 %v64
  %v259 = vunpack.c.l.b16 %v65
  %v260 = vunpack.c.h.b16 %v65
  %v261 = vunpack.c.l.b16 %v66
  %v262 = vunpack.c.h.b16 %v66
  %v263 = vunpack.c.l.b16 %v67
  %v264 = vunpack.c.h.b16 %v67
  %v265 = vunpack.c.l.b16 %v68
  %v266 = vunpack.c.h.b16 %v68
  %v267 = vunpack.c.l.b16 %v69
  %v268 = vunpack.c.h.b16 %v69
  %v269 = vunpack.c.l.b16 %v70
  %v270 = vunpack.c.h.b16 %v70
  %v271 = vunpack.c.l.b16 %v71
  %v272 = vunpack.c.h.b16 %v71
  %v273 = vunpack.c.l.b16 %v72
  %v274 = vunpack.c.h.b16 %v72
  %v275 = vunpack.c.l.b16 %v73
  %v276 = vunpack.c.h.b16 %v73
  %v277 = vunpack.c.l.b16 %v74
  %v278 = vunpack.c.h.b16 %v74
  %v279 = vunpack.c.l.b16 %v75
  %v280 = vunpack.c.h.b16 %v75
  %v281 = vunpack.c.l.b16 %v76
  %v282 = vunpack.c.h.b16 %v76
  %v283 = vunpack.c.l.b16 %v77
  %v284 = vunpack.c.h.b16 %v77
  %v285 = vunpack.c.l.b16 %v78
  %v286 = vunpack.c.h.b16 %v78
  %v287 = vunpack.c.l.b16 %v79
  %v288 = vunpack.c.h.b16 %v79
  %v289 = vunpack.c.l.b16 %v80
  %v290 = vunpack.c.h.b16 %v80
  %v291 = vunpack.c.l.b16 %v81
  %v292 = vunpack.c.h.b16 %v81
  %v293 = vunpack.c.l.b16 %v82
  %v294 = vunpack.c.h.b16 %v82
  %v295 = vunpack.c.l.b16 %v83
  %v296 = vunpack.c.h.b16 %v83
  %v297 = vunpack.c.l.b16 %v84
  %v298 = vunpack.c.h.b16 %v84
  %v299 = vunpack.c.l.b16 %v85
  %v300 = vunpack.c.h.b16 %v85
  %v301 = vunpack.c.l.b16 %v86
  %v302 = vunpack.c.h.b16 %v86
  %v303 = vunpack.c.l.b16 %v87
  %v304 = vunpack.c.h.b16 %v87
  %v305 = vunpack.c.l.b16 %v88
  %v306 = vunpack.c.h.b16 %v88
  %v307 = vunpack.c.l.b16 %v89
  %v308 = vunpack.c.h.b16 %v89
  %v309 = vunpack.c.l.b16 %v90
  %v310 = vunpack.c.h.b16 %v90
  %v311 = vunpack.c.l.b16 %v91
  %v312 = vunpack.c.h.b16 %v91
  %v313 = vunpack.c.l.b16 %v92
  %v314 = vunpack.c.h.b16 %v92
  %v315 = vunpack.c.l.b16 %v93
  %v316 = vunpack.c.h.b16 %v93
  %v317 = vunpack.c.l.b16 %v94
  %v318 = vunpack.c.h.b16 %v94
  %v319 = vpack.c.b16 %v195, %v191
  %v320 = vpack.c.b16 %v196, %v192
  %v321 = vpack.c.b16 %v197, %v193
  %v322 = vpack.c.b16 %v198, %v194
  %v323 = vpack.c.b16 %v203, %v199
  %v324 = vpack.c.b16 %v204, %v200
  %v325 = vpack.c.b16 %v205, %v201
  %v326 = vpack.c.b16 %v206, %v202
  %v327 = vpack.c.b16 %v211, %v207
  %v328 = vpack.c.b16 %v212, %v208
  %v329 = vpack.c.b16 %v213, %v209
  %v330 = vpack.c.b16 %v214, %v210
  %v331 = vpack.c.b16 %v219, %v215
  %v332 = vpack.c.b16 %v220, %v216
  %v333 = vpack.c.b16 %v221, %v217
  %v334 = vpack.c.b16 %v222, %v218
  %v335 = vpack.c.b16 %v227, %v223
  %v336 = vpack.c.b16 %v228, %v224
  %v337 = vpack.c.b16 %v229, %v225
  %v338 = vpack.c.b16 %v230, %v226
  %v339 = vpack.c.b16 %v235, %v231
  %v340 = vpack.c.b16 %v236, %v232
  %v341 = vpack.c.b16 %v237, %v233
  %v342 = vpack.c.b16 %v238, %v234
  %v343 = vpack.c.b16 %v243, %v239
  %v344 = vpack.c.b16 %v244, %v240
  %v345 = vpack.c.b16 %v245, %v241
  %v346 = vpack.c.b16 %v246, %v242
  %v347 = vpack.c.b16 %v251, %v247
  %v348 = vpack.c.b16 %v252, %v248
  %v349 = vpack.c.b16 %v253, %v249
  %v350 = vpack.c.b16 %v254, %v250
  %v351 = vpack.c.b16 %v259, %v255
  %v352 = vpack.c.b16 %v260, %v256
  %v353 = vpack.c.b16 %v261, %v257
  %v354 = vpack.c.b16 %v262, %v258
  %v355 = vpack.c.b16 %v267, %v263
  %v356 = vpack.c.b16 %v268, %v264
  %v357 = vpack.c.b16 %v269, %v265
  %v358 = vpack.c.b16 %v270, %v266
  %v359 = vpack.c.b16 %v275, %v271
  %v360 = vpack.c.b16 %v276, %v272
  %v361 = vpack.c.b16 %v277, %v273
  %v362 = vpack.c.b16 %v278, %v274
  %v363 = vpack.c.b16 %v283, %v279
  %v364 = vpack.c.b16 %v284, %v280
  %v365 = vpack.c.b16 %v285, %v281
  %v366 = vpack.c.b16 %v286, %v282
  %v367 = vpack.c.b16 %v291, %v287
  %v368 = vpack.c.b16 %v292, %v288
  %v369 = vpack.c.b16 %v293, %v289
  %v370 = vpack.c.b16 %v294, %v290
  %v371 = vpack.c.b16 %v299, %v295
  %v372 = vpack.c.b16 %v300, %v296
  %v373 = vpack.c.b16 %v301, %v297
  %v374 = vpack.c.b16 %v302, %v298
  %v375 = vpack.c.b16 %v307, %v303
  %v376 = vpack.c.b16 %v308, %v304
  %v377 = vpack.c.b16 %v309, %v305
  %v378 = vpack.c.b16 %v310, %v306
  %v379 = vpack.c.b16 %v315, %v311
  %v380 = vpack.c.b16 %v316, %v312
  %v381 = vpack.c.b16 %v317, %v313
  %v382 = vpack.c.b16 %v318, %v314
  %447 = vmatprep.subr.bf16.mxu0 %v320
  %448 = vmatpush1.bf16.msra.mxu0 %v319
  %449 = vmatprep.subr.bf16.mxu0 %v324
  %450 = vmatpush1.bf16.msra.mxu0 %v323
  %451 = vmatprep.subr.bf16.mxu0 %v328
  %452 = vmatpush1.bf16.msra.mxu0 %v327
  %453 = vmatprep.subr.bf16.mxu0 %v332
  %454 = vmatpush1.bf16.msra.mxu0 %v331
  %455 = vmatprep.subr.bf16.mxu0 %v336
  %456 = vmatpush1.bf16.msra.mxu0 %v335
  %457 = vmatprep.subr.bf16.mxu0 %v340
  %458 = vmatpush1.bf16.msra.mxu0 %v339
  %459 = vmatprep.subr.bf16.mxu0 %v344
  %460 = vmatpush1.bf16.msra.mxu0 %v343
  %461 = vmatprep.subr.bf16.mxu0 %v348
  %462 = vmatpush1.bf16.msra.mxu0 %v347
  %463 = vmatprep.subr.bf16.mxu0 %v352
  %464 = vmatpush1.bf16.msra.mxu0 %v351
  %465 = vmatprep.subr.bf16.mxu0 %v356
  %466 = vmatpush1.bf16.msra.mxu0 %v355
  %467 = vmatprep.subr.bf16.mxu0 %v360
  %468 = vmatpush1.bf16.msra.mxu0 %v359
  %469 = vmatprep.subr.bf16.mxu0 %v364
  %470 = vmatpush1.bf16.msra.mxu0 %v363
  %471 = vmatprep.subr.bf16.mxu0 %v368
  %472 = vmatpush1.bf16.msra.mxu0 %v367
  %473 = vmatprep.subr.bf16.mxu0 %v372
  %474 = vmatpush1.bf16.msra.mxu0 %v371
  %475 = vmatprep.subr.bf16.mxu0 %v376
  %476 = vmatpush1.bf16.msra.mxu0 %v375
  %477 = vmatprep.subr.bf16.mxu0 %v380
  %478 = vmatpush1.bf16.msra.mxu0 %v379
  %479 = vmatprep.mubr.bf16.mxu0 %v124
  %480 = vmatmul.mubr.bf16.gmra.mrb[0].mxu0 %v123
  %v481 = vpop.f32.mrb[0].mxu0
  %v482 = vadd.f32 %v100, %v481
  %v483 = vpop.f32.mrb[0].mxu0
  %v484 = vadd.f32 %v104, %v483
  %v485 = vpop.f32.mrb[0].mxu0
  %v486 = vadd.f32 %v100, %v485
  %v487 = vpop.f32.mrb[0].mxu0
  %v488 = vadd.f32 %v104, %v487
  %489 = vdwg.mxu0
  %490 = vmatprep.subr.bf16.mxu0 %v322
  %491 = vmatpush1.bf16.msra.mxu0 %v321
  %492 = vmatprep.subr.bf16.mxu0 %v326
  %493 = vmatpush1.bf16.msra.mxu0 %v325
  %494 = vmatprep.subr.bf16.mxu0 %v330
  %495 = vmatpush1.bf16.msra.mxu0 %v329
  %496 = vmatprep.subr.bf16.mxu0 %v334
  %497 = vmatpush1.bf16.msra.mxu0 %v333
  %498 = vmatprep.subr.bf16.mxu0 %v338
  %499 = vmatpush1.bf16.msra.mxu0 %v337
  %500 = vmatprep.subr.bf16.mxu0 %v342
  %501 = vmatpush1.bf16.msra.mxu0 %v341
  %502 = vmatprep.subr.bf16.mxu0 %v346
  %503 = vmatpush1.bf16.msra.mxu0 %v345
  %504 = vmatprep.subr.bf16.mxu0 %v350
  %505 = vmatpush1.bf16.msra.mxu0 %v349
  %506 = vmatprep.subr.bf16.mxu0 %v354
  %507 = vmatpush1.bf16.msra.mxu0 %v353
  %508 = vmatprep.subr.bf16.mxu0 %v358
  %509 = vmatpush1.bf16.msra.mxu0 %v357
  %510 = vmatprep.subr.bf16.mxu0 %v362
  %511 = vmatpush1.bf16.msra.mxu0 %v361
  %512 = vmatprep.subr.bf16.mxu0 %v366
  %513 = vmatpush1.bf16.msra.mxu0 %v365
  %514 = vmatprep.subr.bf16.mxu0 %v370
  %515 = vmatpush1.bf16.msra.mxu0 %v369
  %516 = vmatprep.subr.bf16.mxu0 %v374
  %517 = vmatpush1.bf16.msra.mxu0 %v373
  %518 = vmatprep.subr.bf16.mxu0 %v378
  %519 = vmatpush1.bf16.msra.mxu0 %v377
  %520 = vmatprep.subr.bf16.mxu0 %v382
  %521 = vmatpush1.bf16.msra.mxu0 %v381
  %522 = vmatprep.mubr.bf16.mxu0 %v124
  %523 = vmatmul.mubr.bf16.gmra.mrb[0].mxu0 %v123
  %v524 = vpop.f32.mrb[0].mxu0
  %v525 = vadd.f32 %v108, %v524
  %v526 = vpop.f32.mrb[0].mxu0
  %v527 = vadd.f32 %v112, %v526
  %v528 = vpop.f32.mrb[0].mxu0
  %v529 = vadd.f32 %v108, %v528
  %v530 = vpop.f32.mrb[0].mxu0
  %v531 = vadd.f32 %v112, %v530
  %532 = vdwg.mxu0
  %v533 = vmax.f32 %v482, 0.0
  %v534 = vmax.f32 %v484, 0.0
  %v535 = vmax.f32 %v525, 0.0
  %v536 = vmax.f32 %v527, 0.0
  %v537 = vmax.f32 %v486, 0.0
  %v538 = vmax.f32 %v488, 0.0
  %v539 = vmax.f32 %v529, 0.0
  %v540 = vmax.f32 %v531, 0.0
  %v541 = vpack.c.bf16 %v537, %v533
  %v542 = vpack.c.bf16 %v538, %v534
  %v543 = vpack.c.bf16 %v539, %v535
  %v544 = vpack.c.bf16 %v540, %v536
  %v545 = vld [vmem:[%s3] sm:$0xff]
  %v546 = vld [vmem:[%s3 + $0x8] sm:$0xff]
  %v547 = vld [vmem:[%s4] sm:$0xff]
  %v548 = vld [vmem:[%s4 + $0x8] sm:$0xff]
  %v549 = vld [vmem:[%s4 + $0x10] sm:$0xff]
  %v550 = vld [vmem:[%s4 + $0x18] sm:$0xff]
  %v551 = vld [vmem:[%s4 + $0x20] sm:$0xff]
  %v552 = vld [vmem:[%s4 + $0x28] sm:$0xff]
  %v553 = vld [vmem:[%s4 + $0x30] sm:$0xff]
  %v554 = vld [vmem:[%s4 + $0x38] sm:$0xff]
  %v555 = vld [vmem:[%s4 + $0x40] sm:$0xff]
  %v556 = vld [vmem:[%s4 + $0x48] sm:$0xff]
  %v557 = vld [vmem:[%s4 + $0x50] sm:$0xff]
  %v558 = vld [vmem:[%s4 + $0x58] sm:$0xff]
  %v559 = vld [vmem:[%s4 + $0x60] sm:$0xff]
  %v560 = vld [vmem:[%s4 + $0x68] sm:$0xff]
  %v561 = vld [vmem:[%s4 + $0x70] sm:$0xff]
  %v562 = vld [vmem:[%s4 + $0x78] sm:$0xff]
  %v563 = vld [vmem:[%s4 + $0x80] sm:$0xff]
  %v564 = vld [vmem:[%s4 + $0x88] sm:$0xff]
  %v565 = vld [vmem:[%s4 + $0x90] sm:$0xff]
  %v566 = vld [vmem:[%s4 + $0x98] sm:$0xff]
  %v567 = vld [vmem:[%s4 + $0xa0] sm:$0xff]
  %v568 = vld [vmem:[%s4 + $0xa8] sm:$0xff]
  %v569 = vld [vmem:[%s4 + $0xb0] sm:$0xff]
  %v570 = vld [vmem:[%s4 + $0xb8] sm:$0xff]
  %v571 = vld [vmem:[%s4 + $0xc0] sm:$0xff]
  %v572 = vld [vmem:[%s4 + $0xc8] sm:$0xff]
  %v573 = vld [vmem:[%s4 + $0xd0] sm:$0xff]
  %v574 = vld [vmem:[%s4 + $0xd8] sm:$0xff]
  %v575 = vld [vmem:[%s4 + $0xe0] sm:$0xff]
  %v576 = vld [vmem:[%s4 + $0xe8] sm:$0xff]
  %v577 = vld [vmem:[%s4 + $0xf0] sm:$0xff]
  %v578 = vld [vmem:[%s4 + $0xf8] sm:$0xff]
  %v579 = vld [vmem:[%s4 + $0x100] sm:$0xff]
  %v580 = vld [vmem:[%s4 + $0x108] sm:$0xff]
  %v581 = vld [vmem:[%s4 + $0x110] sm:$0xff]
  %v582 = vld [vmem:[%s4 + $0x118] sm:$0xff]
  %v583 = vld [vmem:[%s4 + $0x120] sm:$0xff]
  %v584 = vld [vmem:[%s4 + $0x128] sm:$0xff]
  %v585 = vld [vmem:[%s4 + $0x130] sm:$0xff]
  %v586 = vld [vmem:[%s4 + $0x138] sm:$0xff]
  %v587 = vld [vmem:[%s4 + $0x140] sm:$0xff]
  %v588 = vld [vmem:[%s4 + $0x148] sm:$0xff]
  %v589 = vld [vmem:[%s4 + $0x150] sm:$0xff]
  %v590 = vld [vmem:[%s4 + $0x158] sm:$0xff]
  %v591 = vld [vmem:[%s4 + $0x160] sm:$0xff]
  %v592 = vld [vmem:[%s4 + $0x168] sm:$0xff]
  %v593 = vld [vmem:[%s4 + $0x170] sm:$0xff]
  %v594 = vld [vmem:[%s4 + $0x178] sm:$0xff]
  %v595 = vld [vmem:[%s4 + $0x180] sm:$0xff]
  %v596 = vld [vmem:[%s4 + $0x188] sm:$0xff]
  %v597 = vld [vmem:[%s4 + $0x190] sm:$0xff]
  %v598 = vld [vmem:[%s4 + $0x198] sm:$0xff]
  %v599 = vld [vmem:[%s4 + $0x1a0] sm:$0xff]
  %v600 = vld [vmem:[%s4 + $0x1a8] sm:$0xff]
  %v601 = vld [vmem:[%s4 + $0x1b0] sm:$0xff]
  %v602 = vld [vmem:[%s4 + $0x1b8] sm:$0xff]
  %v603 = vld [vmem:[%s4 + $0x1c0] sm:$0xff]
  %v604 = vld [vmem:[%s4 + $0x1c8] sm:$0xff]
  %v605 = vld [vmem:[%s4 + $0x1d0] sm:$0xff]
  %v606 = vld [vmem:[%s4 + $0x1d8] sm:$0xff]
  %v607 = vld [vmem:[%s4 + $0x1e0] sm:$0xff]
  %v608 = vld [vmem:[%s4 + $0x1e8] sm:$0xff]
  %v609 = vld [vmem:[%s4 + $0x1f0] sm:$0xff]
  %v610 = vld [vmem:[%s4 + $0x1f8] sm:$0xff]
  %v611 = vld [vmem:[%s5] sm:$0xf]
  %v613 = vlaneseq
  %v614 = vshrl.u32 %v613, 7
  %v615 = vsub.s32 0, %v614
  %v616 = vrot.slane %v611, %v615
  %v617 = vlaneseq
  %v618 = vshrl.u32 %v617, 7
  %v619 = vsub.s32 1, %v618
  %v620 = vrot.slane %v611, %v619
  %v621 = vlaneseq
  %v622 = vshrl.u32 %v621, 7
  %v623 = vsub.s32 2, %v622
  %v624 = vrot.slane %v611, %v623
  %v625 = vlaneseq
  %v626 = vshrl.u32 %v625, 7
  %v627 = vsub.s32 3, %v626
  %v628 = vrot.slane %v611, %v627
  %v635 = vunpack.c.l.b16 %v545
  %v636 = vunpack.c.h.b16 %v545
  %v637 = vunpack.c.l.b16 %v546
  %v638 = vunpack.c.h.b16 %v546
  %v639 = vpack.c.b16 %v637, %v635
  %v640 = vpack.c.b16 %v638, %v636
  %v707 = vunpack.c.l.b16 %v547
  %v708 = vunpack.c.h.b16 %v547
  %v709 = vunpack.c.l.b16 %v548
  %v710 = vunpack.c.h.b16 %v548
  %v711 = vunpack.c.l.b16 %v549
  %v712 = vunpack.c.h.b16 %v549
  %v713 = vunpack.c.l.b16 %v550
  %v714 = vunpack.c.h.b16 %v550
  %v715 = vunpack.c.l.b16 %v551
  %v716 = vunpack.c.h.b16 %v551
  %v717 = vunpack.c.l.b16 %v552
  %v718 = vunpack.c.h.b16 %v552
  %v719 = vunpack.c.l.b16 %v553
  %v720 = vunpack.c.h.b16 %v553
  %v721 = vunpack.c.l.b16 %v554
  %v722 = vunpack.c.h.b16 %v554
  %v723 = vunpack.c.l.b16 %v555
  %v724 = vunpack.c.h.b16 %v555
  %v725 = vunpack.c.l.b16 %v556
  %v726 = vunpack.c.h.b16 %v556
  %v727 = vunpack.c.l.b16 %v557
  %v728 = vunpack.c.h.b16 %v557
  %v729 = vunpack.c.l.b16 %v558
  %v730 = vunpack.c.h.b16 %v558
  %v731 = vunpack.c.l.b16 %v559
  %v732 = vunpack.c.h.b16 %v559
  %v733 = vunpack.c.l.b16 %v560
  %v734 = vunpack.c.h.b16 %v560
  %v735 = vunpack.c.l.b16 %v561
  %v736 = vunpack.c.h.b16 %v561
  %v737 = vunpack.c.l.b16 %v562
  %v738 = vunpack.c.h.b16 %v562
  %v739 = vunpack.c.l.b16 %v563
  %v740 = vunpack.c.h.b16 %v563
  %v741 = vunpack.c.l.b16 %v564
  %v742 = vunpack.c.h.b16 %v564
  %v743 = vunpack.c.l.b16 %v565
  %v744 = vunpack.c.h.b16 %v565
  %v745 = vunpack.c.l.b16 %v566
  %v746 = vunpack.c.h.b16 %v566
  %v747 = vunpack.c.l.b16 %v567
  %v748 = vunpack.c.h.b16 %v567
  %v749 = vunpack.c.l.b16 %v568
  %v750 = vunpack.c.h.b16 %v568
  %v751 = vunpack.c.l.b16 %v569
  %v752 = vunpack.c.h.b16 %v569
  %v753 = vunpack.c.l.b16 %v570
  %v754 = vunpack.c.h.b16 %v570
  %v755 = vunpack.c.l.b16 %v571
  %v756 = vunpack.c.h.b16 %v571
  %v757 = vunpack.c.l.b16 %v572
  %v758 = vunpack.c.h.b16 %v572
  %v759 = vunpack.c.l.b16 %v573
  %v760 = vunpack.c.h.b16 %v573
  %v761 = vunpack.c.l.b16 %v574
  %v762 = vunpack.c.h.b16 %v574
  %v763 = vunpack.c.l.b16 %v575
  %v764 = vunpack.c.h.b16 %v575
  %v765 = vunpack.c.l.b16 %v576
  %v766 = vunpack.c.h.b16 %v576
  %v767 = vunpack.c.l.b16 %v577
  %v768 = vunpack.c.h.b16 %v577
  %v769 = vunpack.c.l.b16 %v578
  %v770 = vunpack.c.h.b16 %v578
  %v771 = vunpack.c.l.b16 %v579
  %v772 = vunpack.c.h.b16 %v579
  %v773 = vunpack.c.l.b16 %v580
  %v774 = vunpack.c.h.b16 %v580
  %v775 = vunpack.c.l.b16 %v581
  %v776 = vunpack.c.h.b16 %v581
  %v777 = vunpack.c.l.b16 %v582
  %v778 = vunpack.c.h.b16 %v582
  %v779 = vunpack.c.l.b16 %v583
  %v780 = vunpack.c.h.b16 %v583
  %v781 = vunpack.c.l.b16 %v584
  %v782 = vunpack.c.h.b16 %v584
  %v783 = vunpack.c.l.b16 %v585
  %v784 = vunpack.c.h.b16 %v585
  %v785 = vunpack.c.l.b16 %v586
  %v786 = vunpack.c.h.b16 %v586
  %v787 = vunpack.c.l.b16 %v587
  %v788 = vunpack.c.h.b16 %v587
  %v789 = vunpack.c.l.b16 %v588
  %v790 = vunpack.c.h.b16 %v588
  %v791 = vunpack.c.l.b16 %v589
  %v792 = vunpack.c.h.b16 %v589
  %v793 = vunpack.c.l.b16 %v590
  %v794 = vunpack.c.h.b16 %v590
  %v795 = vunpack.c.l.b16 %v591
  %v796 = vunpack.c.h.b16 %v591
  %v797 = vunpack.c.l.b16 %v592
  %v798 = vunpack.c.h.b16 %v592
  %v799 = vunpack.c.l.b16 %v593
  %v800 = vunpack.c.h.b16 %v593
  %v801 = vunpack.c.l.b16 %v594
  %v802 = vunpack.c.h.b16 %v594
  %v803 = vunpack.c.l.b16 %v595
  %v804 = vunpack.c.h.b16 %v595
  %v805 = vunpack.c.l.b16 %v596
  %v806 = vunpack.c.h.b16 %v596
  %v807 = vunpack.c.l.b16 %v597
  %v808 = vunpack.c.h.b16 %v597
  %v809 = vunpack.c.l.b16 %v598
  %v810 = vunpack.c.h.b16 %v598
  %v811 = vunpack.c.l.b16 %v599
  %v812 = vunpack.c.h.b16 %v599
  %v813 = vunpack.c.l.b16 %v600
  %v814 = vunpack.c.h.b16 %v600
  %v815 = vunpack.c.l.b16 %v601
  %v816 = vunpack.c.h.b16 %v601
  %v817 = vunpack.c.l.b16 %v602
  %v818 = vunpack.c.h.b16 %v602
  %v819 = vunpack.c.l.b16 %v603
  %v820 = vunpack.c.h.b16 %v603
  %v821 = vunpack.c.l.b16 %v604
  %v822 = vunpack.c.h.b16 %v604
  %v823 = vunpack.c.l.b16 %v605
  %v824 = vunpack.c.h.b16 %v605
  %v825 = vunpack.c.l.b16 %v606
  %v826 = vunpack.c.h.b16 %v606
  %v827 = vunpack.c.l.b16 %v607
  %v828 = vunpack.c.h.b16 %v607
  %v829 = vunpack.c.l.b16 %v608
  %v830 = vunpack.c.h.b16 %v608
  %v831 = vunpack.c.l.b16 %v609
  %v832 = vunpack.c.h.b16 %v609
  %v833 = vunpack.c.l.b16 %v610
  %v834 = vunpack.c.h.b16 %v610
  %v835 = vpack.c.b16 %v711, %v707
  %v836 = vpack.c.b16 %v712, %v708
  %v837 = vpack.c.b16 %v713, %v709
  %v838 = vpack.c.b16 %v714, %v710
  %v839 = vpack.c.b16 %v719, %v715
  %v840 = vpack.c.b16 %v720, %v716
  %v841 = vpack.c.b16 %v721, %v717
  %v842 = vpack.c.b16 %v722, %v718
  %v843 = vpack.c.b16 %v727, %v723
  %v844 = vpack.c.b16 %v728, %v724
  %v845 = vpack.c.b16 %v729, %v725
  %v846 = vpack.c.b16 %v730, %v726
  %v847 = vpack.c.b16 %v735, %v731
  %v848 = vpack.c.b16 %v736, %v732
  %v849 = vpack.c.b16 %v737, %v733
  %v850 = vpack.c.b16 %v738, %v734
  %v851 = vpack.c.b16 %v743, %v739
  %v852 = vpack.c.b16 %v744, %v740
  %v853 = vpack.c.b16 %v745, %v741
  %v854 = vpack.c.b16 %v746, %v742
  %v855 = vpack.c.b16 %v751, %v747
  %v856 = vpack.c.b16 %v752, %v748
  %v857 = vpack.c.b16 %v753, %v749
  %v858 = vpack.c.b16 %v754, %v750
  %v859 = vpack.c.b16 %v759, %v755
  %v860 = vpack.c.b16 %v760, %v756
  %v861 = vpack.c.b16 %v761, %v757
  %v862 = vpack.c.b16 %v762, %v758
  %v863 = vpack.c.b16 %v767, %v763
  %v864 = vpack.c.b16 %v768, %v764
  %v865 = vpack.c.b16 %v769, %v765
  %v866 = vpack.c.b16 %v770, %v766
  %v867 = vpack.c.b16 %v775, %v771
  %v868 = vpack.c.b16 %v776, %v772
  %v869 = vpack.c.b16 %v777, %v773
  %v870 = vpack.c.b16 %v778, %v774
  %v871 = vpack.c.b16 %v783, %v779
  %v872 = vpack.c.b16 %v784, %v780
  %v873 = vpack.c.b16 %v785, %v781
  %v874 = vpack.c.b16 %v786, %v782
  %v875 = vpack.c.b16 %v791, %v787
  %v876 = vpack.c.b16 %v792, %v788
  %v877 = vpack.c.b16 %v793, %v789
  %v878 = vpack.c.b16 %v794, %v790
  %v879 = vpack.c.b16 %v799, %v795
  %v880 = vpack.c.b16 %v800, %v796
  %v881 = vpack.c.b16 %v801, %v797
  %v882 = vpack.c.b16 %v802, %v798
  %v883 = vpack.c.b16 %v807, %v803
  %v884 = vpack.c.b16 %v808, %v804
  %v885 = vpack.c.b16 %v809, %v805
  %v886 = vpack.c.b16 %v810, %v806
  %v887 = vpack.c.b16 %v815, %v811
  %v888 = vpack.c.b16 %v816, %v812
  %v889 = vpack.c.b16 %v817, %v813
  %v890 = vpack.c.b16 %v818, %v814
  %v891 = vpack.c.b16 %v823, %v819
  %v892 = vpack.c.b16 %v824, %v820
  %v893 = vpack.c.b16 %v825, %v821
  %v894 = vpack.c.b16 %v826, %v822
  %v895 = vpack.c.b16 %v831, %v827
  %v896 = vpack.c.b16 %v832, %v828
  %v897 = vpack.c.b16 %v833, %v829
  %v898 = vpack.c.b16 %v834, %v830
  %963 = vmatprep.subr.bf16.mxu0 %v836
  %964 = vmatpush1.bf16.msra.mxu0 %v835
  %965 = vmatprep.subr.bf16.mxu0 %v840
  %966 = vmatpush1.bf16.msra.mxu0 %v839
  %967 = vmatprep.subr.bf16.mxu0 %v844
  %968 = vmatpush1.bf16.msra.mxu0 %v843
  %969 = vmatprep.subr.bf16.mxu0 %v848
  %970 = vmatpush1.bf16.msra.mxu0 %v847
  %971 = vmatprep.subr.bf16.mxu0 %v852
  %972 = vmatpush1.bf16.msra.mxu0 %v851
  %973 = vmatprep.subr.bf16.mxu0 %v856
  %974 = vmatpush1.bf16.msra.mxu0 %v855
  %975 = vmatprep.subr.bf16.mxu0 %v860
  %976 = vmatpush1.bf16.msra.mxu0 %v859
  %977 = vmatprep.subr.bf16.mxu0 %v864
  %978 = vmatpush1.bf16.msra.mxu0 %v863
  %979 = vmatprep.subr.bf16.mxu0 %v868
  %980 = vmatpush1.bf16.msra.mxu0 %v867
  %981 = vmatprep.subr.bf16.mxu0 %v872
  %982 = vmatpush1.bf16.msra.mxu0 %v871
  %983 = vmatprep.subr.bf16.mxu0 %v876
  %984 = vmatpush1.bf16.msra.mxu0 %v875
  %985 = vmatprep.subr.bf16.mxu0 %v880
  %986 = vmatpush1.bf16.msra.mxu0 %v879
  %987 = vmatprep.subr.bf16.mxu0 %v884
  %988 = vmatpush1.bf16.msra.mxu0 %v883
  %989 = vmatprep.subr.bf16.mxu0 %v888
  %990 = vmatpush1.bf16.msra.mxu0 %v887
  %991 = vmatprep.subr.bf16.mxu0 %v892
  %992 = vmatpush1.bf16.msra.mxu0 %v891
  %993 = vmatprep.subr.bf16.mxu0 %v896
  %994 = vmatpush1.bf16.msra.mxu0 %v895
  %995 = vmatprep.mubr.bf16.mxu0 %v640
  %996 = vmatmul.mubr.bf16.gmra.mrb[0].mxu0 %v639
  %v997 = vpop.f32.mrb[0].mxu0
  %v998 = vadd.f32 %v616, %v997
  %v999 = vpop.f32.mrb[0].mxu0
  %v1000 = vadd.f32 %v620, %v999
  %v1001 = vpop.f32.mrb[0].mxu0
  %v1002 = vadd.f32 %v616, %v1001
  %v1003 = vpop.f32.mrb[0].mxu0
  %v1004 = vadd.f32 %v620, %v1003
  %1005 = vdwg.mxu0
  %1006 = vmatprep.subr.bf16.mxu0 %v838
  %1007 = vmatpush1.bf16.msra.mxu0 %v837
  %1008 = vmatprep.subr.bf16.mxu0 %v842
  %1009 = vmatpush1.bf16.msra.mxu0 %v841
  %1010 = vmatprep.subr.bf16.mxu0 %v846
  %1011 = vmatpush1.bf16.msra.mxu0 %v845
  %1012 = vmatprep.subr.bf16.mxu0 %v850
  %1013 = vmatpush1.bf16.msra.mxu0 %v849
  %1014 = vmatprep.subr.bf16.mxu0 %v854
  %1015 = vmatpush1.bf16.msra.mxu0 %v853
  %1016 = vmatprep.subr.bf16.mxu0 %v858
  %1017 = vmatpush1.bf16.msra.mxu0 %v857
  %1018 = vmatprep.subr.bf16.mxu0 %v862
  %1019 = vmatpush1.bf16.msra.mxu0 %v861
  %1020 = vmatprep.subr.bf16.mxu0 %v866
  %1021 = vmatpush1.bf16.msra.mxu0 %v865
  %1022 = vmatprep.subr.bf16.mxu0 %v870
  %1023 = vmatpush1.bf16.msra.mxu0 %v869
  %1024 = vmatprep.subr.bf16.mxu0 %v874
  %1025 = vmatpush1.bf16.msra.mxu0 %v873
  %1026 = vmatprep.subr.bf16.mxu0 %v878
  %1027 = vmatpush1.bf16.msra.mxu0 %v877
  %1028 = vmatprep.subr.bf16.mxu0 %v882
  %1029 = vmatpush1.bf16.msra.mxu0 %v881
  %1030 = vmatprep.subr.bf16.mxu0 %v886
  %1031 = vmatpush1.bf16.msra.mxu0 %v885
  %1032 = vmatprep.subr.bf16.mxu0 %v890
  %1033 = vmatpush1.bf16.msra.mxu0 %v889
  %1034 = vmatprep.subr.bf16.mxu0 %v894
  %1035 = vmatpush1.bf16.msra.mxu0 %v893
  %1036 = vmatprep.subr.bf16.mxu0 %v898
  %1037 = vmatpush1.bf16.msra.mxu0 %v897
  %1038 = vmatprep.mubr.bf16.mxu0 %v640
  %1039 = vmatmul.mubr.bf16.gmra.mrb[0].mxu0 %v639
  %v1040 = vpop.f32.mrb[0].mxu0
  %v1041 = vadd.f32 %v624, %v1040
  %v1042 = vpop.f32.mrb[0].mxu0
  %v1043 = vadd.f32 %v628, %v1042
  %v1044 = vpop.f32.mrb[0].mxu0
  %v1045 = vadd.f32 %v624, %v1044
  %v1046 = vpop.f32.mrb[0].mxu0
  %v1047 = vadd.f32 %v628, %v1046
  %1048 = vdwg.mxu0
  %v1049 = vld [vmem:[%s6] sm:$0xff]
  %v1050 = vld [vmem:[%s6 + $0x8] sm:$0xff]
  %v1051 = vld [vmem:[%s6 + $0x10] sm:$0xff]
  %v1052 = vld [vmem:[%s6 + $0x18] sm:$0xff]
  %v1053 = vld [vmem:[%s6 + $0x20] sm:$0xff]
  %v1054 = vld [vmem:[%s6 + $0x28] sm:$0xff]
  %v1055 = vld [vmem:[%s6 + $0x30] sm:$0xff]
  %v1056 = vld [vmem:[%s6 + $0x38] sm:$0xff]
  %v1057 = vld [vmem:[%s6 + $0x40] sm:$0xff]
  %v1058 = vld [vmem:[%s6 + $0x48] sm:$0xff]
  %v1059 = vld [vmem:[%s6 + $0x50] sm:$0xff]
  %v1060 = vld [vmem:[%s6 + $0x58] sm:$0xff]
  %v1061 = vld [vmem:[%s6 + $0x60] sm:$0xff]
  %v1062 = vld [vmem:[%s6 + $0x68] sm:$0xff]
  %v1063 = vld [vmem:[%s6 + $0x70] sm:$0xff]
  %v1064 = vld [vmem:[%s6 + $0x78] sm:$0xff]
  %v1065 = vld [vmem:[%s6 + $0x80] sm:$0xff]
  %v1066 = vld [vmem:[%s6 + $0x88] sm:$0xff]
  %v1067 = vld [vmem:[%s6 + $0x90] sm:$0xff]
  %v1068 = vld [vmem:[%s6 + $0x98] sm:$0xff]
  %v1069 = vld [vmem:[%s6 + $0xa0] sm:$0xff]
  %v1070 = vld [vmem:[%s6 + $0xa8] sm:$0xff]
  %v1071 = vld [vmem:[%s6 + $0xb0] sm:$0xff]
  %v1072 = vld [vmem:[%s6 + $0xb8] sm:$0xff]
  %v1073 = vld [vmem:[%s6 + $0xc0] sm:$0xff]
  %v1074 = vld [vmem:[%s6 + $0xc8] sm:$0xff]
  %v1075 = vld [vmem:[%s6 + $0xd0] sm:$0xff]
  %v1076 = vld [vmem:[%s6 + $0xd8] sm:$0xff]
  %v1077 = vld [vmem:[%s6 + $0xe0] sm:$0xff]
  %v1078 = vld [vmem:[%s6 + $0xe8] sm:$0xff]
  %v1079 = vld [vmem:[%s6 + $0xf0] sm:$0xff]
  %v1080 = vld [vmem:[%s6 + $0xf8] sm:$0xff]
  %v1081 = vld [vmem:[%s6 + $0x100] sm:$0xff]
  %v1082 = vld [vmem:[%s6 + $0x108] sm:$0xff]
  %v1083 = vld [vmem:[%s6 + $0x110] sm:$0xff]
  %v1084 = vld [vmem:[%s6 + $0x118] sm:$0xff]
  %v1085 = vld [vmem:[%s6 + $0x120] sm:$0xff]
  %v1086 = vld [vmem:[%s6 + $0x128] sm:$0xff]
  %v1087 = vld [vmem:[%s6 + $0x130] sm:$0xff]
  %v1088 = vld [vmem:[%s6 + $0x138] sm:$0xff]
  %v1089 = vld [vmem:[%s6 + $0x140] sm:$0xff]
  %v1090 = vld [vmem:[%s6 + $0x148] sm:$0xff]
  %v1091 = vld [vmem:[%s6 + $0x150] sm:$0xff]
  %v1092 = vld [vmem:[%s6 + $0x158] sm:$0xff]
  %v1093 = vld [vmem:[%s6 + $0x160] sm:$0xff]
  %v1094 = vld [vmem:[%s6 + $0x168] sm:$0xff]
  %v1095 = vld [vmem:[%s6 + $0x170] sm:$0xff]
  %v1096 = vld [vmem:[%s6 + $0x178] sm:$0xff]
  %v1097 = vld [vmem:[%s6 + $0x180] sm:$0xff]
  %v1098 = vld [vmem:[%s6 + $0x188] sm:$0xff]
  %v1099 = vld [vmem:[%s6 + $0x190] sm:$0xff]
  %v1100 = vld [vmem:[%s6 + $0x198] sm:$0xff]
  %v1101 = vld [vmem:[%s6 + $0x1a0] sm:$0xff]
  %v1102 = vld [vmem:[%s6 + $0x1a8] sm:$0xff]
  %v1103 = vld [vmem:[%s6 + $0x1b0] sm:$0xff]
  %v1104 = vld [vmem:[%s6 + $0x1b8] sm:$0xff]
  %v1105 = vld [vmem:[%s6 + $0x1c0] sm:$0xff]
  %v1106 = vld [vmem:[%s6 + $0x1c8] sm:$0xff]
  %v1107 = vld [vmem:[%s6 + $0x1d0] sm:$0xff]
  %v1108 = vld [vmem:[%s6 + $0x1d8] sm:$0xff]
  %v1109 = vld [vmem:[%s6 + $0x1e0] sm:$0xff]
  %v1110 = vld [vmem:[%s6 + $0x1e8] sm:$0xff]
  %v1111 = vld [vmem:[%s6 + $0x1f0] sm:$0xff]
  %v1112 = vld [vmem:[%s6 + $0x1f8] sm:$0xff]
  %v1113 = vld [vmem:[%s6 + $0x200] sm:$0xff]
  %v1114 = vld [vmem:[%s6 + $0x208] sm:$0xff]
  %v1115 = vld [vmem:[%s6 + $0x210] sm:$0xff]
  %v1116 = vld [vmem:[%s6 + $0x218] sm:$0xff]
  %v1117 = vld [vmem:[%s6 + $0x220] sm:$0xff]
  %v1118 = vld [vmem:[%s6 + $0x228] sm:$0xff]
  %v1119 = vld [vmem:[%s6 + $0x230] sm:$0xff]
  %v1120 = vld [vmem:[%s6 + $0x238] sm:$0xff]
  %v1121 = vld [vmem:[%s6 + $0x240] sm:$0xff]
  %v1122 = vld [vmem:[%s6 + $0x248] sm:$0xff]
  %v1123 = vld [vmem:[%s6 + $0x250] sm:$0xff]
  %v1124 = vld [vmem:[%s6 + $0x258] sm:$0xff]
  %v1125 = vld [vmem:[%s6 + $0x260] sm:$0xff]
  %v1126 = vld [vmem:[%s6 + $0x268] sm:$0xff]
  %v1127 = vld [vmem:[%s6 + $0x270] sm:$0xff]
  %v1128 = vld [vmem:[%s6 + $0x278] sm:$0xff]
  %v1129 = vld [vmem:[%s6 + $0x280] sm:$0xff]
  %v1130 = vld [vmem:[%s6 + $0x288] sm:$0xff]
  %v1131 = vld [vmem:[%s6 + $0x290] sm:$0xff]
  %v1132 = vld [vmem:[%s6 + $0x298] sm:$0xff]
  %v1133 = vld [vmem:[%s6 + $0x2a0] sm:$0xff]
  %v1134 = vld [vmem:[%s6 + $0x2a8] sm:$0xff]
  %v1135 = vld [vmem:[%s6 + $0x2b0] sm:$0xff]
  %v1136 = vld [vmem:[%s6 + $0x2b8] sm:$0xff]
  %v1137 = vld [vmem:[%s6 + $0x2c0] sm:$0xff]
  %v1138 = vld [vmem:[%s6 + $0x2c8] sm:$0xff]
  %v1139 = vld [vmem:[%s6 + $0x2d0] sm:$0xff]
  %v1140 = vld [vmem:[%s6 + $0x2d8] sm:$0xff]
  %v1141 = vld [vmem:[%s6 + $0x2e0] sm:$0xff]
  %v1142 = vld [vmem:[%s6 + $0x2e8] sm:$0xff]
  %v1143 = vld [vmem:[%s6 + $0x2f0] sm:$0xff]
  %v1144 = vld [vmem:[%s6 + $0x2f8] sm:$0xff]
  %v1145 = vld [vmem:[%s6 + $0x300] sm:$0xff]
  %v1146 = vld [vmem:[%s6 + $0x308] sm:$0xff]
  %v1147 = vld [vmem:[%s6 + $0x310] sm:$0xff]
  %v1148 = vld [vmem:[%s6 + $0x318] sm:$0xff]
  %v1149 = vld [vmem:[%s6 + $0x320] sm:$0xff]
  %v1150 = vld [vmem:[%s6 + $0x328] sm:$0xff]
  %v1151 = vld [vmem:[%s6 + $0x330] sm:$0xff]
  %v1152 = vld [vmem:[%s6 + $0x338] sm:$0xff]
  %v1153 = vld [vmem:[%s6 + $0x340] sm:$0xff]
  %v1154 = vld [vmem:[%s6 + $0x348] sm:$0xff]
  %v1155 = vld [vmem:[%s6 + $0x350] sm:$0xff]
  %v1156 = vld [vmem:[%s6 + $0x358] sm:$0xff]
  %v1157 = vld [vmem:[%s6 + $0x360] sm:$0xff]
  %v1158 = vld [vmem:[%s6 + $0x368] sm:$0xff]
  %v1159 = vld [vmem:[%s6 + $0x370] sm:$0xff]
  %v1160 = vld [vmem:[%s6 + $0x378] sm:$0xff]
  %v1161 = vld [vmem:[%s6 + $0x380] sm:$0xff]
  %v1162 = vld [vmem:[%s6 + $0x388] sm:$0xff]
  %v1163 = vld [vmem:[%s6 + $0x390] sm:$0xff]
  %v1164 = vld [vmem:[%s6 + $0x398] sm:$0xff]
  %v1165 = vld [vmem:[%s6 + $0x3a0] sm:$0xff]
  %v1166 = vld [vmem:[%s6 + $0x3a8] sm:$0xff]
  %v1167 = vld [vmem:[%s6 + $0x3b0] sm:$0xff]
  %v1168 = vld [vmem:[%s6 + $0x3b8] sm:$0xff]
  %v1169 = vld [vmem:[%s6 + $0x3c0] sm:$0xff]
  %v1170 = vld [vmem:[%s6 + $0x3c8] sm:$0xff]
  %v1171 = vld [vmem:[%s6 + $0x3d0] sm:$0xff]
  %v1172 = vld [vmem:[%s6 + $0x3d8] sm:$0xff]
  %v1173 = vld [vmem:[%s6 + $0x3e0] sm:$0xff]
  %v1174 = vld [vmem:[%s6 + $0x3e8] sm:$0xff]
  %v1175 = vld [vmem:[%s6 + $0x3f0] sm:$0xff]
  %v1176 = vld [vmem:[%s6 + $0x3f8] sm:$0xff]
  %v1177 = vld [vmem:[%s7] sm:$0xf]
  %v1179 = vlaneseq
  %v1180 = vshrl.u32 %v1179, 7
  %v1181 = vsub.s32 0, %v1180
  %v1182 = vrot.slane %v1177, %v1181
  %v1183 = vlaneseq
  %v1184 = vshrl.u32 %v1183, 7
  %v1185 = vsub.s32 1, %v1184
  %v1186 = vrot.slane %v1177, %v1185
  %v1187 = vlaneseq
  %v1188 = vshrl.u32 %v1187, 7
  %v1189 = vsub.s32 2, %v1188
  %v1190 = vrot.slane %v1177, %v1189
  %v1191 = vlaneseq
  %v1192 = vshrl.u32 %v1191, 7
  %v1193 = vsub.s32 3, %v1192
  %v1194 = vrot.slane %v1177, %v1193
  %v1327 = vunpack.c.l.b16 %v1049
  %v1328 = vunpack.c.h.b16 %v1049
  %v1329 = vunpack.c.l.b16 %v1050
  %v1330 = vunpack.c.h.b16 %v1050
  %v1331 = vunpack.c.l.b16 %v1051
  %v1332 = vunpack.c.h.b16 %v1051
  %v1333 = vunpack.c.l.b16 %v1052
  %v1334 = vunpack.c.h.b16 %v1052
  %v1335 = vunpack.c.l.b16 %v1053
  %v1336 = vunpack.c.h.b16 %v1053
  %v1337 = vunpack.c.l.b16 %v1054
  %v1338 = vunpack.c.h.b16 %v1054
  %v1339 = vunpack.c.l.b16 %v1055
  %v1340 = vunpack.c.h.b16 %v1055
  %v1341 = vunpack.c.l.b16 %v1056
  %v1342 = vunpack.c.h.b16 %v1056
  %v1343 = vunpack.c.l.b16 %v1057
  %v1344 = vunpack.c.h.b16 %v1057
  %v1345 = vunpack.c.l.b16 %v1058
  %v1346 = vunpack.c.h.b16 %v1058
  %v1347 = vunpack.c.l.b16 %v1059
  %v1348 = vunpack.c.h.b16 %v1059
  %v1349 = vunpack.c.l.b16 %v1060
  %v1350 = vunpack.c.h.b16 %v1060
  %v1351 = vunpack.c.l.b16 %v1061
  %v1352 = vunpack.c.h.b16 %v1061
  %v1353 = vunpack.c.l.b16 %v1062
  %v1354 = vunpack.c.h.b16 %v1062
  %v1355 = vunpack.c.l.b16 %v1063
  %v1356 = vunpack.c.h.b16 %v1063
  %v1357 = vunpack.c.l.b16 %v1064
  %v1358 = vunpack.c.h.b16 %v1064
  %v1359 = vunpack.c.l.b16 %v1065
  %v1360 = vunpack.c.h.b16 %v1065
  %v1361 = vunpack.c.l.b16 %v1066
  %v1362 = vunpack.c.h.b16 %v1066
  %v1363 = vunpack.c.l.b16 %v1067
  %v1364 = vunpack.c.h.b16 %v1067
  %v1365 = vunpack.c.l.b16 %v1068
  %v1366 = vunpack.c.h.b16 %v1068
  %v1367 = vunpack.c.l.b16 %v1069
  %v1368 = vunpack.c.h.b16 %v1069
  %v1369 = vunpack.c.l.b16 %v1070
  %v1370 = vunpack.c.h.b16 %v1070
  %v1371 = vunpack.c.l.b16 %v1071
  %v1372 = vunpack.c.h.b16 %v1071
  %v1373 = vunpack.c.l.b16 %v1072
  %v1374 = vunpack.c.h.b16 %v1072
  %v1375 = vunpack.c.l.b16 %v1073
  %v1376 = vunpack.c.h.b16 %v1073
  %v1377 = vunpack.c.l.b16 %v1074
  %v1378 = vunpack.c.h.b16 %v1074
  %v1379 = vunpack.c.l.b16 %v1075
  %v1380 = vunpack.c.h.b16 %v1075
  %v1381 = vunpack.c.l.b16 %v1076
  %v1382 = vunpack.c.h.b16 %v1076
  %v1383 = vunpack.c.l.b16 %v1077
  %v1384 = vunpack.c.h.b16 %v1077
  %v1385 = vunpack.c.l.b16 %v1078
  %v1386 = vunpack.c.h.b16 %v1078
  %v1387 = vunpack.c.l.b16 %v1079
  %v1388 = vunpack.c.h.b16 %v1079
  %v1389 = vunpack.c.l.b16 %v1080
  %v1390 = vunpack.c.h.b16 %v1080
  %v1391 = vunpack.c.l.b16 %v1081
  %v1392 = vunpack.c.h.b16 %v1081
  %v1393 = vunpack.c.l.b16 %v1082
  %v1394 = vunpack.c.h.b16 %v1082
  %v1395 = vunpack.c.l.b16 %v1083
  %v1396 = vunpack.c.h.b16 %v1083
  %v1397 = vunpack.c.l.b16 %v1084
  %v1398 = vunpack.c.h.b16 %v1084
  %v1399 = vunpack.c.l.b16 %v1085
  %v1400 = vunpack.c.h.b16 %v1085
  %v1401 = vunpack.c.l.b16 %v1086
  %v1402 = vunpack.c.h.b16 %v1086
  %v1403 = vunpack.c.l.b16 %v1087
  %v1404 = vunpack.c.h.b16 %v1087
  %v1405 = vunpack.c.l.b16 %v1088
  %v1406 = vunpack.c.h.b16 %v1088
  %v1407 = vunpack.c.l.b16 %v1089
  %v1408 = vunpack.c.h.b16 %v1089
  %v1409 = vunpack.c.l.b16 %v1090
  %v1410 = vunpack.c.h.b16 %v1090
  %v1411 = vunpack.c.l.b16 %v1091
  %v1412 = vunpack.c.h.b16 %v1091
  %v1413 = vunpack.c.l.b16 %v1092
  %v1414 = vunpack.c.h.b16 %v1092
  %v1415 = vunpack.c.l.b16 %v1093
  %v1416 = vunpack.c.h.b16 %v1093
  %v1417 = vunpack.c.l.b16 %v1094
  %v1418 = vunpack.c.h.b16 %v1094
  %v1419 = vunpack.c.l.b16 %v1095
  %v1420 = vunpack.c.h.b16 %v1095
  %v1421 = vunpack.c.l.b16 %v1096
  %v1422 = vunpack.c.h.b16 %v1096
  %v1423 = vunpack.c.l.b16 %v1097
  %v1424 = vunpack.c.h.b16 %v1097
  %v1425 = vunpack.c.l.b16 %v1098
  %v1426 = vunpack.c.h.b16 %v1098
  %v1427 = vunpack.c.l.b16 %v1099
  %v1428 = vunpack.c.h.b16 %v1099
  %v1429 = vunpack.c.l.b16 %v1100
  %v1430 = vunpack.c.h.b16 %v1100
  %v1431 = vunpack.c.l.b16 %v1101
  %v1432 = vunpack.c.h.b16 %v1101
  %v1433 = vunpack.c.l.b16 %v1102
  %v1434 = vunpack.c.h.b16 %v1102
  %v1435 = vunpack.c.l.b16 %v1103
  %v1436 = vunpack.c.h.b16 %v1103
  %v1437 = vunpack.c.l.b16 %v1104
  %v1438 = vunpack.c.h.b16 %v1104
  %v1439 = vunpack.c.l.b16 %v1105
  %v1440 = vunpack.c.h.b16 %v1105
  %v1441 = vunpack.c.l.b16 %v1106
  %v1442 = vunpack.c.h.b16 %v1106
  %v1443 = vunpack.c.l.b16 %v1107
  %v1444 = vunpack.c.h.b16 %v1107
  %v1445 = vunpack.c.l.b16 %v1108
  %v1446 = vunpack.c.h.b16 %v1108
  %v1447 = vunpack.c.l.b16 %v1109
  %v1448 = vunpack.c.h.b16 %v1109
  %v1449 = vunpack.c.l.b16 %v1110
  %v1450 = vunpack.c.h.b16 %v1110
  %v1451 = vunpack.c.l.b16 %v1111
  %v1452 = vunpack.c.h.b16 %v1111
  %v1453 = vunpack.c.l.b16 %v1112
  %v1454 = vunpack.c.h.b16 %v1112
  %v1455 = vunpack.c.l.b16 %v1113
  %v1456 = vunpack.c.h.b16 %v1113
  %v1457 = vunpack.c.l.b16 %v1114
  %v1458 = vunpack.c.h.b16 %v1114
  %v1459 = vunpack.c.l.b16 %v1115
  %v1460 = vunpack.c.h.b16 %v1115
  %v1461 = vunpack.c.l.b16 %v1116
  %v1462 = vunpack.c.h.b16 %v1116
  %v1463 = vunpack.c.l.b16 %v1117
  %v1464 = vunpack.c.h.b16 %v1117
  %v1465 = vunpack.c.l.b16 %v1118
  %v1466 = vunpack.c.h.b16 %v1118
  %v1467 = vunpack.c.l.b16 %v1119
  %v1468 = vunpack.c.h.b16 %v1119
  %v1469 = vunpack.c.l.b16 %v1120
  %v1470 = vunpack.c.h.b16 %v1120
  %v1471 = vunpack.c.l.b16 %v1121
  %v1472 = vunpack.c.h.b16 %v1121
  %v1473 = vunpack.c.l.b16 %v1122
  %v1474 = vunpack.c.h.b16 %v1122
  %v1475 = vunpack.c.l.b16 %v1123
  %v1476 = vunpack.c.h.b16 %v1123
  %v1477 = vunpack.c.l.b16 %v1124
  %v1478 = vunpack.c.h.b16 %v1124
  %v1479 = vunpack.c.l.b16 %v1125
  %v1480 = vunpack.c.h.b16 %v1125
  %v1481 = vunpack.c.l.b16 %v1126
  %v1482 = vunpack.c.h.b16 %v1126
  %v1483 = vunpack.c.l.b16 %v1127
  %v1484 = vunpack.c.h.b16 %v1127
  %v1485 = vunpack.c.l.b16 %v1128
  %v1486 = vunpack.c.h.b16 %v1128
  %v1487 = vunpack.c.l.b16 %v1129
  %v1488 = vunpack.c.h.b16 %v1129
  %v1489 = vunpack.c.l.b16 %v1130
  %v1490 = vunpack.c.h.b16 %v1130
  %v1491 = vunpack.c.l.b16 %v1131
  %v1492 = vunpack.c.h.b16 %v1131
  %v1493 = vunpack.c.l.b16 %v1132
  %v1494 = vunpack.c.h.b16 %v1132
  %v1495 = vunpack.c.l.b16 %v1133
  %v1496 = vunpack.c.h.b16 %v1133
  %v1497 = vunpack.c.l.b16 %v1134
  %v1498 = vunpack.c.h.b16 %v1134
  %v1499 = vunpack.c.l.b16 %v1135
  %v1500 = vunpack.c.h.b16 %v1135
  %v1501 = vunpack.c.l.b16 %v1136
  %v1502 = vunpack.c.h.b16 %v1136
  %v1503 = vunpack.c.l.b16 %v1137
  %v1504 = vunpack.c.h.b16 %v1137
  %v1505 = vunpack.c.l.b16 %v1138
  %v1506 = vunpack.c.h.b16 %v1138
  %v1507 = vunpack.c.l.b16 %v1139
  %v1508 = vunpack.c.h.b16 %v1139
  %v1509 = vunpack.c.l.b16 %v1140
  %v1510 = vunpack.c.h.b16 %v1140
  %v1511 = vunpack.c.l.b16 %v1141
  %v1512 = vunpack.c.h.b16 %v1141
  %v1513 = vunpack.c.l.b16 %v1142
  %v1514 = vunpack.c.h.b16 %v1142
  %v1515 = vunpack.c.l.b16 %v1143
  %v1516 = vunpack.c.h.b16 %v1143
  %v1517 = vunpack.c.l.b16 %v1144
  %v1518 = vunpack.c.h.b16 %v1144
  %v1519 = vunpack.c.l.b16 %v1145
  %v1520 = vunpack.c.h.b16 %v1145
  %v1521 = vunpack.c.l.b16 %v1146
  %v1522 = vunpack.c.h.b16 %v1146
  %v1523 = vunpack.c.l.b16 %v1147
  %v1524 = vunpack.c.h.b16 %v1147
  %v1525 = vunpack.c.l.b16 %v1148
  %v1526 = vunpack.c.h.b16 %v1148
  %v1527 = vunpack.c.l.b16 %v1149
  %v1528 = vunpack.c.h.b16 %v1149
  %v1529 = vunpack.c.l.b16 %v1150
  %v1530 = vunpack.c.h.b16 %v1150
  %v1531 = vunpack.c.l.b16 %v1151
  %v1532 = vunpack.c.h.b16 %v1151
  %v1533 = vunpack.c.l.b16 %v1152
  %v1534 = vunpack.c.h.b16 %v1152
  %v1535 = vunpack.c.l.b16 %v1153
  %v1536 = vunpack.c.h.b16 %v1153
  %v1537 = vunpack.c.l.b16 %v1154
  %v1538 = vunpack.c.h.b16 %v1154
  %v1539 = vunpack.c.l.b16 %v1155
  %v1540 = vunpack.c.h.b16 %v1155
  %v1541 = vunpack.c.l.b16 %v1156
  %v1542 = vunpack.c.h.b16 %v1156
  %v1543 = vunpack.c.l.b16 %v1157
  %v1544 = vunpack.c.h.b16 %v1157
  %v1545 = vunpack.c.l.b16 %v1158
  %v1546 = vunpack.c.h.b16 %v1158
  %v1547 = vunpack.c.l.b16 %v1159
  %v1548 = vunpack.c.h.b16 %v1159
  %v1549 = vunpack.c.l.b16 %v1160
  %v1550 = vunpack.c.h.b16 %v1160
  %v1551 = vunpack.c.l.b16 %v1161
  %v1552 = vunpack.c.h.b16 %v1161
  %v1553 = vunpack.c.l.b16 %v1162
  %v1554 = vunpack.c.h.b16 %v1162
  %v1555 = vunpack.c.l.b16 %v1163
  %v1556 = vunpack.c.h.b16 %v1163
  %v1557 = vunpack.c.l.b16 %v1164
  %v1558 = vunpack.c.h.b16 %v1164
  %v1559 = vunpack.c.l.b16 %v1165
  %v1560 = vunpack.c.h.b16 %v1165
  %v1561 = vunpack.c.l.b16 %v1166
  %v1562 = vunpack.c.h.b16 %v1166
  %v1563 = vunpack.c.l.b16 %v1167
  %v1564 = vunpack.c.h.b16 %v1167
  %v1565 = vunpack.c.l.b16 %v1168
  %v1566 = vunpack.c.h.b16 %v1168
  %v1567 = vunpack.c.l.b16 %v1169
  %v1568 = vunpack.c.h.b16 %v1169
  %v1569 = vunpack.c.l.b16 %v1170
  %v1570 = vunpack.c.h.b16 %v1170
  %v1571 = vunpack.c.l.b16 %v1171
  %v1572 = vunpack.c.h.b16 %v1171
  %v1573 = vunpack.c.l.b16 %v1172
  %v1574 = vunpack.c.h.b16 %v1172
  %v1575 = vunpack.c.l.b16 %v1173
  %v1576 = vunpack.c.h.b16 %v1173
  %v1577 = vunpack.c.l.b16 %v1174
  %v1578 = vunpack.c.h.b16 %v1174
  %v1579 = vunpack.c.l.b16 %v1175
  %v1580 = vunpack.c.h.b16 %v1175
  %v1581 = vunpack.c.l.b16 %v1176
  %v1582 = vunpack.c.h.b16 %v1176
  %v1583 = vpack.c.b16 %v1331, %v1327
  %v1584 = vpack.c.b16 %v1332, %v1328
  %v1585 = vpack.c.b16 %v1333, %v1329
  %v1586 = vpack.c.b16 %v1334, %v1330
  %v1587 = vpack.c.b16 %v1339, %v1335
  %v1588 = vpack.c.b16 %v1340, %v1336
  %v1589 = vpack.c.b16 %v1341, %v1337
  %v1590 = vpack.c.b16 %v1342, %v1338
  %v1591 = vpack.c.b16 %v1347, %v1343
  %v1592 = vpack.c.b16 %v1348, %v1344
  %v1593 = vpack.c.b16 %v1349, %v1345
  %v1594 = vpack.c.b16 %v1350, %v1346
  %v1595 = vpack.c.b16 %v1355, %v1351
  %v1596 = vpack.c.b16 %v1356, %v1352
  %v1597 = vpack.c.b16 %v1357, %v1353
  %v1598 = vpack.c.b16 %v1358, %v1354
  %v1599 = vpack.c.b16 %v1363, %v1359
  %v1600 = vpack.c.b16 %v1364, %v1360
  %v1601 = vpack.c.b16 %v1365, %v1361
  %v1602 = vpack.c.b16 %v1366, %v1362
  %v1603 = vpack.c.b16 %v1371, %v1367
  %v1604 = vpack.c.b16 %v1372, %v1368
  %v1605 = vpack.c.b16 %v1373, %v1369
  %v1606 = vpack.c.b16 %v1374, %v1370
  %v1607 = vpack.c.b16 %v1379, %v1375
  %v1608 = vpack.c.b16 %v1380, %v1376
  %v1609 = vpack.c.b16 %v1381, %v1377
  %v1610 = vpack.c.b16 %v1382, %v1378
  %v1611 = vpack.c.b16 %v1387, %v1383
  %v1612 = vpack.c.b16 %v1388, %v1384
  %v1613 = vpack.c.b16 %v1389, %v1385
  %v1614 = vpack.c.b16 %v1390, %v1386
  %v1615 = vpack.c.b16 %v1395, %v1391
  %v1616 = vpack.c.b16 %v1396, %v1392
  %v1617 = vpack.c.b16 %v1397, %v1393
  %v1618 = vpack.c.b16 %v1398, %v1394
  %v1619 = vpack.c.b16 %v1403, %v1399
  %v1620 = vpack.c.b16 %v1404, %v1400
  %v1621 = vpack.c.b16 %v1405, %v1401
  %v1622 = vpack.c.b16 %v1406, %v1402
  %v1623 = vpack.c.b16 %v1411, %v1407
  %v1624 = vpack.c.b16 %v1412, %v1408
  %v1625 = vpack.c.b16 %v1413, %v1409
  %v1626 = vpack.c.b16 %v1414, %v1410
  %v1627 = vpack.c.b16 %v1419, %v1415
  %v1628 = vpack.c.b16 %v1420, %v1416
  %v1629 = vpack.c.b16 %v1421, %v1417
  %v1630 = vpack.c.b16 %v1422, %v1418
  %v1631 = vpack.c.b16 %v1427, %v1423
  %v1632 = vpack.c.b16 %v1428, %v1424
  %v1633 = vpack.c.b16 %v1429, %v1425
  %v1634 = vpack.c.b16 %v1430, %v1426
  %v1635 = vpack.c.b16 %v1435, %v1431
  %v1636 = vpack.c.b16 %v1436, %v1432
  %v1637 = vpack.c.b16 %v1437, %v1433
  %v1638 = vpack.c.b16 %v1438, %v1434
  %v1639 = vpack.c.b16 %v1443, %v1439
  %v1640 = vpack.c.b16 %v1444, %v1440
  %v1641 = vpack.c.b16 %v1445, %v1441
  %v1642 = vpack.c.b16 %v1446, %v1442
  %v1643 = vpack.c.b16 %v1451, %v1447
  %v1644 = vpack.c.b16 %v1452, %v1448
  %v1645 = vpack.c.b16 %v1453, %v1449
  %v1646 = vpack.c.b16 %v1454, %v1450
  %v1647 = vpack.c.b16 %v1459, %v1455
  %v1648 = vpack.c.b16 %v1460, %v1456
  %v1649 = vpack.c.b16 %v1461, %v1457
  %v1650 = vpack.c.b16 %v1462, %v1458
  %v1651 = vpack.c.b16 %v1467, %v1463
  %v1652 = vpack.c.b16 %v1468, %v1464
  %v1653 = vpack.c.b16 %v1469, %v1465
  %v1654 = vpack.c.b16 %v1470, %v1466
  %v1655 = vpack.c.b16 %v1475, %v1471
  %v1656 = vpack.c.b16 %v1476, %v1472
  %v1657 = vpack.c.b16 %v1477, %v1473
  %v1658 = vpack.c.b16 %v1478, %v1474
  %v1659 = vpack.c.b16 %v1483, %v1479
  %v1660 = vpack.c.b16 %v1484, %v1480
  %v1661 = vpack.c.b16 %v1485, %v1481
  %v1662 = vpack.c.b16 %v1486, %v1482
  %v1663 = vpack.c.b16 %v1491, %v1487
  %v1664 = vpack.c.b16 %v1492, %v1488
  %v1665 = vpack.c.b16 %v1493, %v1489
  %v1666 = vpack.c.b16 %v1494, %v1490
  %v1667 = vpack.c.b16 %v1499, %v1495
  %v1668 = vpack.c.b16 %v1500, %v1496
  %v1669 = vpack.c.b16 %v1501, %v1497
  %v1670 = vpack.c.b16 %v1502, %v1498
  %v1671 = vpack.c.b16 %v1507, %v1503
  %v1672 = vpack.c.b16 %v1508, %v1504
  %v1673 = vpack.c.b16 %v1509, %v1505
  %v1674 = vpack.c.b16 %v1510, %v1506
  %v1675 = vpack.c.b16 %v1515, %v1511
  %v1676 = vpack.c.b16 %v1516, %v1512
  %v1677 = vpack.c.b16 %v1517, %v1513
  %v1678 = vpack.c.b16 %v1518, %v1514
  %v1679 = vpack.c.b16 %v1523, %v1519
  %v1680 = vpack.c.b16 %v1524, %v1520
  %v1681 = vpack.c.b16 %v1525, %v1521
  %v1682 = vpack.c.b16 %v1526, %v1522
  %v1683 = vpack.c.b16 %v1531, %v1527
  %v1684 = vpack.c.b16 %v1532, %v1528
  %v1685 = vpack.c.b16 %v1533, %v1529
  %v1686 = vpack.c.b16 %v1534, %v1530
  %v1687 = vpack.c.b16 %v1539, %v1535
  %v1688 = vpack.c.b16 %v1540, %v1536
  %v1689 = vpack.c.b16 %v1541, %v1537
  %v1690 = vpack.c.b16 %v1542, %v1538
  %v1691 = vpack.c.b16 %v1547, %v1543
  %v1692 = vpack.c.b16 %v1548, %v1544
  %v1693 = vpack.c.b16 %v1549, %v1545
  %v1694 = vpack.c.b16 %v1550, %v1546
  %v1695 = vpack.c.b16 %v1555, %v1551
  %v1696 = vpack.c.b16 %v1556, %v1552
  %v1697 = vpack.c.b16 %v1557, %v1553
  %v1698 = vpack.c.b16 %v1558, %v1554
  %v1699 = vpack.c.b16 %v1563, %v1559
  %v1700 = vpack.c.b16 %v1564, %v1560
  %v1701 = vpack.c.b16 %v1565, %v1561
  %v1702 = vpack.c.b16 %v1566, %v1562
  %v1703 = vpack.c.b16 %v1571, %v1567
  %v1704 = vpack.c.b16 %v1572, %v1568
  %v1705 = vpack.c.b16 %v1573, %v1569
  %v1706 = vpack.c.b16 %v1574, %v1570
  %v1707 = vpack.c.b16 %v1579, %v1575
  %v1708 = vpack.c.b16 %v1580, %v1576
  %v1709 = vpack.c.b16 %v1581, %v1577
  %v1710 = vpack.c.b16 %v1582, %v1578
  %1839 = vmatprep.subr.bf16.mxu0 %v1584
  %1840 = vmatpush1.bf16.msra.mxu0 %v1583
  %1841 = vmatprep.subr.bf16.mxu0 %v1588
  %1842 = vmatpush1.bf16.msra.mxu0 %v1587
  %1843 = vmatprep.subr.bf16.mxu0 %v1592
  %1844 = vmatpush1.bf16.msra.mxu0 %v1591
  %1845 = vmatprep.subr.bf16.mxu0 %v1596
  %1846 = vmatpush1.bf16.msra.mxu0 %v1595
  %1847 = vmatprep.subr.bf16.mxu0 %v1600
  %1848 = vmatpush1.bf16.msra.mxu0 %v1599
  %1849 = vmatprep.subr.bf16.mxu0 %v1604
  %1850 = vmatpush1.bf16.msra.mxu0 %v1603
  %1851 = vmatprep.subr.bf16.mxu0 %v1608
  %1852 = vmatpush1.bf16.msra.mxu0 %v1607
  %1853 = vmatprep.subr.bf16.mxu0 %v1612
  %1854 = vmatpush1.bf16.msra.mxu0 %v1611
  %1855 = vmatprep.subr.bf16.mxu0 %v1616
  %1856 = vmatpush1.bf16.msra.mxu0 %v1615
  %1857 = vmatprep.subr.bf16.mxu0 %v1620
  %1858 = vmatpush1.bf16.msra.mxu0 %v1619
  %1859 = vmatprep.subr.bf16.mxu0 %v1624
  %1860 = vmatpush1.bf16.msra.mxu0 %v1623
  %1861 = vmatprep.subr.bf16.mxu0 %v1628
  %1862 = vmatpush1.bf16.msra.mxu0 %v1627
  %1863 = vmatprep.subr.bf16.mxu0 %v1632
  %1864 = vmatpush1.bf16.msra.mxu0 %v1631
  %1865 = vmatprep.subr.bf16.mxu0 %v1636
  %1866 = vmatpush1.bf16.msra.mxu0 %v1635
  %1867 = vmatprep.subr.bf16.mxu0 %v1640
  %1868 = vmatpush1.bf16.msra.mxu0 %v1639
  %1869 = vmatprep.subr.bf16.mxu0 %v1644
  %1870 = vmatpush1.bf16.msra.mxu0 %v1643
  %1871 = vmatprep.mubr.bf16.mxu0 %v542
  %1872 = vmatmul.mubr.bf16.gmra.mrb[0].mxu0 %v541
  %v1873 = vpop.f32.mrb[0].mxu0
  %v1874 = vadd.f32 %v1182, %v1873
  %v1875 = vpop.f32.mrb[0].mxu0
  %v1876 = vadd.f32 %v1186, %v1875
  %v1877 = vpop.f32.mrb[0].mxu0
  %v1878 = vadd.f32 %v1182, %v1877
  %v1879 = vpop.f32.mrb[0].mxu0
  %v1880 = vadd.f32 %v1186, %v1879
  %1881 = vdwg.mxu0
  %1882 = vmatprep.subr.bf16.mxu0 %v1648
  %1883 = vmatpush1.bf16.msra.mxu0 %v1647
  %1884 = vmatprep.subr.bf16.mxu0 %v1652
  %1885 = vmatpush1.bf16.msra.mxu0 %v1651
  %1886 = vmatprep.subr.bf16.mxu0 %v1656
  %1887 = vmatpush1.bf16.msra.mxu0 %v1655
  %1888 = vmatprep.subr.bf16.mxu0 %v1660
  %1889 = vmatpush1.bf16.msra.mxu0 %v1659
  %1890 = vmatprep.subr.bf16.mxu0 %v1664
  %1891 = vmatpush1.bf16.msra.mxu0 %v1663
  %1892 = vmatprep.subr.bf16.mxu0 %v1668
  %1893 = vmatpush1.bf16.msra.mxu0 %v1667
  %1894 = vmatprep.subr.bf16.mxu0 %v1672
  %1895 = vmatpush1.bf16.msra.mxu0 %v1671
  %1896 = vmatprep.subr.bf16.mxu0 %v1676
  %1897 = vmatpush1.bf16.msra.mxu0 %v1675
  %1898 = vmatprep.subr.bf16.mxu0 %v1680
  %1899 = vmatpush1.bf16.msra.mxu0 %v1679
  %1900 = vmatprep.subr.bf16.mxu0 %v1684
  %1901 = vmatpush1.bf16.msra.mxu0 %v1683
  %1902 = vmatprep.subr.bf16.mxu0 %v1688
  %1903 = vmatpush1.bf16.msra.mxu0 %v1687
  %1904 = vmatprep.subr.bf16.mxu0 %v1692
  %1905 = vmatpush1.bf16.msra.mxu0 %v1691
  %1906 = vmatprep.subr.bf16.mxu0 %v1696
  %1907 = vmatpush1.bf16.msra.mxu0 %v1695
  %1908 = vmatprep.subr.bf16.mxu0 %v1700
  %1909 = vmatpush1.bf16.msra.mxu0 %v1699
  %1910 = vmatprep.subr.bf16.mxu0 %v1704
  %1911 = vmatpush1.bf16.msra.mxu0 %v1703
  %1912 = vmatprep.subr.bf16.mxu0 %v1708
  %1913 = vmatpush1.bf16.msra.mxu0 %v1707
  %1914 = vmatprep.mubr.bf16.mxu0 %v544
  %1915 = vmatmul.mubr.bf16.gmra.mrb[0].mxu0 %v543
  %v1916 = vpop.f32.mrb[0].mxu0
  %v1917 = vadd.f32 %v1874, %v1916
  %v1918 = vpop.f32.mrb[0].mxu0
  %v1919 = vadd.f32 %v1876, %v1918
  %v1920 = vpop.f32.mrb[0].mxu0
  %v1921 = vadd.f32 %v1878, %v1920
  %v1922 = vpop.f32.mrb[0].mxu0
  %v1923 = vadd.f32 %v1880, %v1922
  %1924 = vdwg.mxu0
  %1925 = vmatprep.subr.bf16.mxu0 %v1586
  %1926 = vmatpush1.bf16.msra.mxu0 %v1585
  %1927 = vmatprep.subr.bf16.mxu0 %v1590
  %1928 = vmatpush1.bf16.msra.mxu0 %v1589
  %1929 = vmatprep.subr.bf16.mxu0 %v1594
  %1930 = vmatpush1.bf16.msra.mxu0 %v1593
  %1931 = vmatprep.subr.bf16.mxu0 %v1598
  %1932 = vmatpush1.bf16.msra.mxu0 %v1597
  %1933 = vmatprep.subr.bf16.mxu0 %v1602
  %1934 = vmatpush1.bf16.msra.mxu0 %v1601
  %1935 = vmatprep.subr.bf16.mxu0 %v1606
  %1936 = vmatpush1.bf16.msra.mxu0 %v1605
  %1937 = vmatprep.subr.bf16.mxu0 %v1610
  %1938 = vmatpush1.bf16.msra.mxu0 %v1609
  %1939 = vmatprep.subr.bf16.mxu0 %v1614
  %1940 = vmatpush1.bf16.msra.mxu0 %v1613
  %1941 = vmatprep.subr.bf16.mxu0 %v1618
  %1942 = vmatpush1.bf16.msra.mxu0 %v1617
  %1943 = vmatprep.subr.bf16.mxu0 %v1622
  %1944 = vmatpush1.bf16.msra.mxu0 %v1621
  %1945 = vmatprep.subr.bf16.mxu0 %v1626
  %1946 = vmatpush1.bf16.msra.mxu0 %v1625
  %1947 = vmatprep.subr.bf16.mxu0 %v1630
  %1948 = vmatpush1.bf16.msra.mxu0 %v1629
  %1949 = vmatprep.subr.bf16.mxu0 %v1634
  %1950 = vmatpush1.bf16.msra.mxu0 %v1633
  %1951 = vmatprep.subr.bf16.mxu0 %v1638
  %1952 = vmatpush1.bf16.msra.mxu0 %v1637
  %1953 = vmatprep.subr.bf16.mxu0 %v1642
  %1954 = vmatpush1.bf16.msra.mxu0 %v1641
  %1955 = vmatprep.subr.bf16.mxu0 %v1646
  %1956 = vmatpush1.bf16.msra.mxu0 %v1645
  %1957 = vmatprep.mubr.bf16.mxu0 %v542
  %1958 = vmatmul.mubr.bf16.gmra.mrb[0].mxu0 %v541
  %v1959 = vpop.f32.mrb[0].mxu0
  %v1960 = vadd.f32 %v1190, %v1959
  %v1961 = vpop.f32.mrb[0].mxu0
  %v1962 = vadd.f32 %v1194, %v1961
  %v1963 = vpop.f32.mrb[0].mxu0
  %v1964 = vadd.f32 %v1190, %v1963
  %v1965 = vpop.f32.mrb[0].mxu0
  %v1966 = vadd.f32 %v1194, %v1965
  %1967 = vdwg.mxu0
  %1968 = vmatprep.subr.bf16.mxu0 %v1650
  %1969 = vmatpush1.bf16.msra.mxu0 %v1649
  %1970 = vmatprep.subr.bf16.mxu0 %v1654
  %1971 = vmatpush1.bf16.msra.mxu0 %v1653
  %1972 = vmatprep.subr.bf16.mxu0 %v1658
  %1973 = vmatpush1.bf16.msra.mxu0 %v1657
  %1974 = vmatprep.subr.bf16.mxu0 %v1662
  %1975 = vmatpush1.bf16.msra.mxu0 %v1661
  %1976 = vmatprep.subr.bf16.mxu0 %v1666
  %1977 = vmatpush1.bf16.msra.mxu0 %v1665
  %1978 = vmatprep.subr.bf16.mxu0 %v1670
  %1979 = vmatpush1.bf16.msra.mxu0 %v1669
  %1980 = vmatprep.subr.bf16.mxu0 %v1674
  %1981 = vmatpush1.bf16.msra.mxu0 %v1673
  %1982 = vmatprep.subr.bf16.mxu0 %v1678
  %1983 = vmatpush1.bf16.msra.mxu0 %v1677
  %1984 = vmatprep.subr.bf16.mxu0 %v1682
  %1985 = vmatpush1.bf16.msra.mxu0 %v1681
  %1986 = vmatprep.subr.bf16.mxu0 %v1686
  %1987 = vmatpush1.bf16.msra.mxu0 %v1685
  %1988 = vmatprep.subr.bf16.mxu0 %v1690
  %1989 = vmatpush1.bf16.msra.mxu0 %v1689
  %1990 = vmatprep.subr.bf16.mxu0 %v1694
  %1991 = vmatpush1.bf16.msra.mxu0 %v1693
  %1992 = vmatprep.subr.bf16.mxu0 %v1698
  %1993 = vmatpush1.bf16.msra.mxu0 %v1697
  %1994 = vmatprep.subr.bf16.mxu0 %v1702
  %1995 = vmatpush1.bf16.msra.mxu0 %v1701
  %1996 = vmatprep.subr.bf16.mxu0 %v1706
  %1997 = vmatpush1.bf16.msra.mxu0 %v1705
  %1998 = vmatprep.subr.bf16.mxu0 %v1710
  %1999 = vmatpush1.bf16.msra.mxu0 %v1709
  %2000 = vmatprep.mubr.bf16.mxu0 %v544
  %2001 = vmatmul.mubr.bf16.gmra.mrb[0].mxu0 %v543
  %v2002 = vpop.f32.mrb[0].mxu0
  %v2003 = vadd.f32 %v1960, %v2002
  %v2004 = vpop.f32.mrb[0].mxu0
  %v2005 = vadd.f32 %v1962, %v2004
  %v2006 = vpop.f32.mrb[0].mxu0
  %v2007 = vadd.f32 %v1964, %v2006
  %v2008 = vpop.f32.mrb[0].mxu0
  %v2009 = vadd.f32 %v1966, %v2008
  %2010 = vdwg.mxu0
  %v2011 = vadd.f32 %v1917, %v998
  %v2012 = vadd.f32 %v1919, %v1000
  %v2013 = vadd.f32 %v2003, %v1041
  %v2014 = vadd.f32 %v2005, %v1043
  %v2015 = vadd.f32 %v1921, %v1002
  %v2016 = vadd.f32 %v1923, %v1004
  %v2017 = vadd.f32 %v2007, %v1045
  %v2018 = vadd.f32 %v2009, %v1047
  %v2019 = vmax.f32 %v2011, 0.0
  %v2020 = vmax.f32 %v2012, 0.0
  %v2021 = vmax.f32 %v2013, 0.0
  %v2022 = vmax.f32 %v2014, 0.0
  %v2023 = vmax.f32 %v2015, 0.0
  %v2024 = vmax.f32 %v2016, 0.0
  %v2025 = vmax.f32 %v2017, 0.0
  %v2026 = vmax.f32 %v2018, 0.0
  %v2027 = vpack.c.bf16 %v2023, %v2019
  %v2028 = vpack.c.bf16 %v2024, %v2020
  %v2029 = vpack.c.bf16 %v2025, %v2021
  %v2030 = vpack.c.bf16 %v2026, %v2022
  %v2035 = vunpack.c.l.b16 %v2027
  %v2036 = vunpack.c.l.b16 %v2028
  %v2037 = vunpack.c.l.b16 %v2029
  %v2038 = vunpack.c.l.b16 %v2030
  %v2039 = vunpack.c.h.b16 %v2027
  %v2040 = vunpack.c.h.b16 %v2028
  %v2041 = vunpack.c.h.b16 %v2029
  %v2042 = vunpack.c.h.b16 %v2030
  %v2043 = vpack.c.b16 %v2036, %v2035
  %v2044 = vpack.c.b16 %v2038, %v2037
  %v2045 = vpack.c.b16 %v2040, %v2039
  %v2046 = vpack.c.b16 %v2042, %v2041
  %2051 = vst [vmem:[%s8] sm:$0xff] %v2043
  %2052 = vst [vmem:[%s8 + $0x8] sm:$0xff] %v2044
  %2053 = vst [vmem:[%s8 + $0x10] sm:$0xff] %v2045
  %2054 = vst [vmem:[%s8 + $0x18] sm:$0xff] %v2046
  // Predicated region
  $region34: #{_lambda_.48} parent=0 // pred_check
    _
  $region35: #{_lambda_.48} parent=0 // pred_check_branch
    %2056 = sbr.rel (0) target = $region37
  $region36: #{_lambda_.48} parent=0 // pred_region
    _
  $region37: #{_lambda_.48} parent=0 // pred_fallthru
    _
  // Predicated region
  $region38: #{_lambda_.48} parent=0 // pred_check
    _
  $region39: #{_lambda_.48} parent=0 // pred_check_branch
    %2058 = sbr.rel (0) target = $region41
  $region40: #{_lambda_.48} parent=0 // pred_region
    _
  $region41: #{_lambda_.48} parent=0 // pred_fallthru
    _

// kernel: _lambda_.51
$region0: #{_lambda_.51}
  #allocation0 [shape = 'u32[]', space=smem, size = 0x4, offset = 0x4, fixed_abs, tag = 'smem constant byte address 0x4 - core index']
  #allocation1 [shape = 'u32[144,128]{1,0:T(1,128)}', space=vmem, size = 0x12000, scoped, tag = 'internal scratch']
  %s0 = inlined_call_operand.vmem [shape: f32[8,512], index: 0, kind: input, shape index: {}]
  %s1 = inlined_call_operand.vmem [shape: f32[1,512], index: 1, kind: input, shape index: {}]
  %s2 = inlined_call_operand.vmem [shape: f32[1,512], index: 2, kind: input, shape index: {}]
  %s3 = inlined_call_operand.vmem [shape: bf16[512,128], index: 3, kind: input, shape index: {}]
  %s4 = inlined_call_operand.vmem [shape: f32[1,128], index: 4, kind: input, shape index: {}]
  %s5 = inlined_call_operand.vmem [shape: bf16[128,128], index: 5, kind: input, shape index: {}]
  %s6 = inlined_call_operand.vmem [shape: f32[8,128], index: 6, kind: output, shape index: {}]
  %s7 = sld [smem:[#allocation0]]
  $region34: #{_lambda_.51} parent=0
    _
  %s9 = ssub.s32 1, %s7
  %s10 = scalar_select 0, %s9, %s7
  // Predicated region
  $region2: #{_lambda_.51} parent=0 // pred_check
    _
  $region3: #{_lambda_.51} parent=0 // pred_check_branch
    %12 = sbr.rel (0) target = $region5
  $region4: #{_lambda_.51} parent=0 // pred_region
    _
  $region5: #{_lambda_.51} parent=0 // pred_fallthru
    _
  // Predicated region
  $region6: #{_lambda_.51} parent=0 // pred_check
    _
  $region7: #{_lambda_.51} parent=0 // pred_check_branch
    %14 = sbr.rel (0) target = $region9
  $region8: #{_lambda_.51} parent=0 // pred_region
    _
  $region9: #{_lambda_.51} parent=0 // pred_fallthru
    _
  // Predicated region
  $region10: #{_lambda_.51} parent=0 // pred_check
    _
  $region11: #{_lambda_.51} parent=0 // pred_check_branch
    %16 = sbr.rel (0) target = $region13
  $region12: #{_lambda_.51} parent=0 // pred_region
    _
  $region13: #{_lambda_.51} parent=0 // pred_fallthru
    _
  // Predicated region
  $region14: #{_lambda_.51} parent=0 // pred_check
    _
  $region15: #{_lambda_.51} parent=0 // pred_check_branch
    %18 = sbr.rel (0) target = $region17
  $region16: #{_lambda_.51} parent=0 // pred_region
    _
  $region17: #{_lambda_.51} parent=0 // pred_fallthru
    _
  // Predicated region
  $region18: #{_lambda_.51} parent=0 // pred_check
    _
  $region19: #{_lambda_.51} parent=0 // pred_check_branch
    %20 = sbr.rel (0) target = $region21
  $region20: #{_lambda_.51} parent=0 // pred_region
    _
  $region21: #{_lambda_.51} parent=0 // pred_fallthru
    _
  // Predicated region
  $region22: #{_lambda_.51} parent=0 // pred_check
    _
  $region23: #{_lambda_.51} parent=0 // pred_check_branch
    %22 = sbr.rel (0) target = $region25
  $region24: #{_lambda_.51} parent=0 // pred_region
    _
  $region25: #{_lambda_.51} parent=0 // pred_fallthru
    _
  %v24 = vld [vmem:[%s0] sm:$0xff]
  %v25 = vld [vmem:[%s0 + $0x8] sm:$0xff]
  %v26 = vld [vmem:[%s0 + $0x10] sm:$0xff]
  %v27 = vld [vmem:[%s0 + $0x18] sm:$0xff]
  %v28 = vld [vmem:[%s1] sm:$0xf]
  %v30 = vlaneseq
  %v31 = vshrl.u32 %v30, 7
  %v32 = vsub.s32 0, %v31
  %v33 = vrot.slane %v28, %v32
  %v34 = vlaneseq
  %v35 = vshrl.u32 %v34, 7
  %v36 = vsub.s32 1, %v35
  %v37 = vrot.slane %v28, %v36
  %v38 = vlaneseq
  %v39 = vshrl.u32 %v38, 7
  %v40 = vsub.s32 2, %v39
  %v41 = vrot.slane %v28, %v40
  %v42 = vlaneseq
  %v43 = vshrl.u32 %v42, 7
  %v44 = vsub.s32 3, %v43
  %v45 = vrot.slane %v28, %v44
  %v50 = vmul.f32 %v24, %v33
  %v51 = vmul.f32 %v25, %v37
  %v52 = vmul.f32 %v26, %v41
  %v53 = vmul.f32 %v27, %v45
  %v54 = vld [vmem:[%s2] sm:$0xf]
  %v56 = vlaneseq
  %v57 = vshrl.u32 %v56, 7
  %v58 = vsub.s32 0, %v57
  %v59 = vrot.slane %v54, %v58
  %v60 = vlaneseq
  %v61 = vshrl.u32 %v60, 7
  %v62 = vsub.s32 1, %v61
  %v63 = vrot.slane %v54, %v62
  %v64 = vlaneseq
  %v65 = vshrl.u32 %v64, 7
  %v66 = vsub.s32 2, %v65
  %v67 = vrot.slane %v54, %v66
  %v68 = vlaneseq
  %v69 = vshrl.u32 %v68, 7
  %v70 = vsub.s32 3, %v69
  %v71 = vrot.slane %v54, %v70
  %v76 = vadd.f32 %v50, %v59
  %v77 = vadd.f32 %v51, %v63
  %v78 = vadd.f32 %v52, %v67
  %v79 = vadd.f32 %v53, %v71
  %v80 = vmax.f32 %v76, 0.0
  %v81 = vmax.f32 %v77, 0.0
  %v82 = vmax.f32 %v78, 0.0
  %v83 = vmax.f32 %v79, 0.0
  %v84 = vpack.c.bf16 %v80, %v80
  %v85 = vpack.c.bf16 %v81, %v81
  %v86 = vpack.c.bf16 %v82, %v82
  %v87 = vpack.c.bf16 %v83, %v83
  %v88 = vld [vmem:[%s3] sm:$0xf]
  %v89 = vld [vmem:[%s3 + $0x4] sm:$0xf]
  %v90 = vld [vmem:[%s3 + $0x8] sm:$0xf]
  %v91 = vld [vmem:[%s3 + $0xc] sm:$0xf]
  %v92 = vld [vmem:[%s3 + $0x10] sm:$0xf]
  %v93 = vld [vmem:[%s3 + $0x14] sm:$0xf]
  %v94 = vld [vmem:[%s3 + $0x18] sm:$0xf]
  %v95 = vld [vmem:[%s3 + $0x1c] sm:$0xf]
  %v96 = vld [vmem:[%s3 + $0x20] sm:$0xf]
  %v97 = vld [vmem:[%s3 + $0x24] sm:$0xf]
  %v98 = vld [vmem:[%s3 + $0x28] sm:$0xf]
  %v99 = vld [vmem:[%s3 + $0x2c] sm:$0xf]
  %v100 = vld [vmem:[%s3 + $0x30] sm:$0xf]
  %v101 = vld [vmem:[%s3 + $0x34] sm:$0xf]
  %v102 = vld [vmem:[%s3 + $0x38] sm:$0xf]
  %v103 = vld [vmem:[%s3 + $0x3c] sm:$0xf]
  %v104 = vld [vmem:[%s3 + $0x40] sm:$0xf]
  %v105 = vld [vmem:[%s3 + $0x44] sm:$0xf]
  %v106 = vld [vmem:[%s3 + $0x48] sm:$0xf]
  %v107 = vld [vmem:[%s3 + $0x4c] sm:$0xf]
  %v108 = vld [vmem:[%s3 + $0x50] sm:$0xf]
  %v109 = vld [vmem:[%s3 + $0x54] sm:$0xf]
  %v110 = vld [vmem:[%s3 + $0x58] sm:$0xf]
  %v111 = vld [vmem:[%s3 + $0x5c] sm:$0xf]
  %v112 = vld [vmem:[%s3 + $0x60] sm:$0xf]
  %v113 = vld [vmem:[%s3 + $0x64] sm:$0xf]
  %v114 = vld [vmem:[%s3 + $0x68] sm:$0xf]
  %v115 = vld [vmem:[%s3 + $0x6c] sm:$0xf]
  %v116 = vld [vmem:[%s3 + $0x70] sm:$0xf]
  %v117 = vld [vmem:[%s3 + $0x74] sm:$0xf]
  %v118 = vld [vmem:[%s3 + $0x78] sm:$0xf]
  %v119 = vld [vmem:[%s3 + $0x7c] sm:$0xf]
  %v120 = vld [vmem:[%s3 + $0x80] sm:$0xf]
  %v121 = vld [vmem:[%s3 + $0x84] sm:$0xf]
  %v122 = vld [vmem:[%s3 + $0x88] sm:$0xf]
  %v123 = vld [vmem:[%s3 + $0x8c] sm:$0xf]
  %v124 = vld [vmem:[%s3 + $0x90] sm:$0xf]
  %v125 = vld [vmem:[%s3 + $0x94] sm:$0xf]
  %v126 = vld [vmem:[%s3 + $0x98] sm:$0xf]
  %v127 = vld [vmem:[%s3 + $0x9c] sm:$0xf]
  %v128 = vld [vmem:[%s3 + $0xa0] sm:$0xf]
  %v129 = vld [vmem:[%s3 + $0xa4] sm:$0xf]
  %v130 = vld [vmem:[%s3 + $0xa8] sm:$0xf]
  %v131 = vld [vmem:[%s3 + $0xac] sm:$0xf]
  %v132 = vld [vmem:[%s3 + $0xb0] sm:$0xf]
  %v133 = vld [vmem:[%s3 + $0xb4] sm:$0xf]
  %v134 = vld [vmem:[%s3 + $0xb8] sm:$0xf]
  %v135 = vld [vmem:[%s3 + $0xbc] sm:$0xf]
  %v136 = vld [vmem:[%s3 + $0xc0] sm:$0xf]
  %v137 = vld [vmem:[%s3 + $0xc4] sm:$0xf]
  %v138 = vld [vmem:[%s3 + $0xc8] sm:$0xf]
  %v139 = vld [vmem:[%s3 + $0xcc] sm:$0xf]
  %v140 = vld [vmem:[%s3 + $0xd0] sm:$0xf]
  %v141 = vld [vmem:[%s3 + $0xd4] sm:$0xf]
  %v142 = vld [vmem:[%s3 + $0xd8] sm:$0xf]
  %v143 = vld [vmem:[%s3 + $0xdc] sm:$0xf]
  %v144 = vld [vmem:[%s3 + $0xe0] sm:$0xf]
  %v145 = vld [vmem:[%s3 + $0xe4] sm:$0xf]
  %v146 = vld [vmem:[%s3 + $0xe8] sm:$0xf]
  %v147 = vld [vmem:[%s3 + $0xec] sm:$0xf]
  %v148 = vld [vmem:[%s3 + $0xf0] sm:$0xf]
  %v149 = vld [vmem:[%s3 + $0xf4] sm:$0xf]
  %v150 = vld [vmem:[%s3 + $0xf8] sm:$0xf]
  %v151 = vld [vmem:[%s3 + $0xfc] sm:$0xf]
  %v152 = vld [vmem:[%s4] sm:$0x1]
  %v154 = vlaneseq
  %v155 = vshrl.u32 %v154, 7
  %v156 = vsub.s32 0, %v155
  %v157 = vrot.slane %v152, %v156
  %v223 = vunpack.c.l.b16 %v88
  %v224 = vunpack.c.l.b16 %v89
  %v225 = vunpack.c.l.b16 %v90
  %v226 = vunpack.c.l.b16 %v91
  %v227 = vunpack.c.l.b16 %v92
  %v228 = vunpack.c.l.b16 %v93
  %v229 = vunpack.c.l.b16 %v94
  %v230 = vunpack.c.l.b16 %v95
  %v231 = vunpack.c.l.b16 %v96
  %v232 = vunpack.c.l.b16 %v97
  %v233 = vunpack.c.l.b16 %v98
  %v234 = vunpack.c.l.b16 %v99
  %v235 = vunpack.c.l.b16 %v100
  %v236 = vunpack.c.l.b16 %v101
  %v237 = vunpack.c.l.b16 %v102
  %v238 = vunpack.c.l.b16 %v103
  %v239 = vunpack.c.l.b16 %v104
  %v240 = vunpack.c.l.b16 %v105
  %v241 = vunpack.c.l.b16 %v106
  %v242 = vunpack.c.l.b16 %v107
  %v243 = vunpack.c.l.b16 %v108
  %v244 = vunpack.c.l.b16 %v109
  %v245 = vunpack.c.l.b16 %v110
  %v246 = vunpack.c.l.b16 %v111
  %v247 = vunpack.c.l.b16 %v112
  %v248 = vunpack.c.l.b16 %v113
  %v249 = vunpack.c.l.b16 %v114
  %v250 = vunpack.c.l.b16 %v115
  %v251 = vunpack.c.l.b16 %v116
  %v252 = vunpack.c.l.b16 %v117
  %v253 = vunpack.c.l.b16 %v118
  %v254 = vunpack.c.l.b16 %v119
  %v255 = vunpack.c.l.b16 %v120
  %v256 = vunpack.c.l.b16 %v121
  %v257 = vunpack.c.l.b16 %v122
  %v258 = vunpack.c.l.b16 %v123
  %v259 = vunpack.c.l.b16 %v124
  %v260 = vunpack.c.l.b16 %v125
  %v261 = vunpack.c.l.b16 %v126
  %v262 = vunpack.c.l.b16 %v127
  %v263 = vunpack.c.l.b16 %v128
  %v264 = vunpack.c.l.b16 %v129
  %v265 = vunpack.c.l.b16 %v130
  %v266 = vunpack.c.l.b16 %v131
  %v267 = vunpack.c.l.b16 %v132
  %v268 = vunpack.c.l.b16 %v133
  %v269 = vunpack.c.l.b16 %v134
  %v270 = vunpack.c.l.b16 %v135
  %v271 = vunpack.c.l.b16 %v136
  %v272 = vunpack.c.l.b16 %v137
  %v273 = vunpack.c.l.b16 %v138
  %v274 = vunpack.c.l.b16 %v139
  %v275 = vunpack.c.l.b16 %v140
  %v276 = vunpack.c.l.b16 %v141
  %v277 = vunpack.c.l.b16 %v142
  %v278 = vunpack.c.l.b16 %v143
  %v279 = vunpack.c.l.b16 %v144
  %v280 = vunpack.c.l.b16 %v145
  %v281 = vunpack.c.l.b16 %v146
  %v282 = vunpack.c.l.b16 %v147
  %v283 = vunpack.c.l.b16 %v148
  %v284 = vunpack.c.l.b16 %v149
  %v285 = vunpack.c.l.b16 %v150
  %v286 = vunpack.c.l.b16 %v151
  %v287 = vpack.c.b16 %v224, %v223
  %v288 = vpack.c.b16 %v226, %v225
  %v289 = vpack.c.b16 %v228, %v227
  %v290 = vpack.c.b16 %v230, %v229
  %v291 = vpack.c.b16 %v232, %v231
  %v292 = vpack.c.b16 %v234, %v233
  %v293 = vpack.c.b16 %v236, %v235
  %v294 = vpack.c.b16 %v238, %v237
  %v295 = vpack.c.b16 %v240, %v239
  %v296 = vpack.c.b16 %v242, %v241
  %v297 = vpack.c.b16 %v244, %v243
  %v298 = vpack.c.b16 %v246, %v245
  %v299 = vpack.c.b16 %v248, %v247
  %v300 = vpack.c.b16 %v250, %v249
  %v301 = vpack.c.b16 %v252, %v251
  %v302 = vpack.c.b16 %v254, %v253
  %v303 = vpack.c.b16 %v256, %v255
  %v304 = vpack.c.b16 %v258, %v257
  %v305 = vpack.c.b16 %v260, %v259
  %v306 = vpack.c.b16 %v262, %v261
  %v307 = vpack.c.b16 %v264, %v263
  %v308 = vpack.c.b16 %v266, %v265
  %v309 = vpack.c.b16 %v268, %v267
  %v310 = vpack.c.b16 %v270, %v269
  %v311 = vpack.c.b16 %v272, %v271
  %v312 = vpack.c.b16 %v274, %v273
  %v313 = vpack.c.b16 %v276, %v275
  %v314 = vpack.c.b16 %v278, %v277
  %v315 = vpack.c.b16 %v280, %v279
  %v316 = vpack.c.b16 %v282, %v281
  %v317 = vpack.c.b16 %v284, %v283
  %v318 = vpack.c.b16 %v286, %v285
  %351 = vmatprep.subr.bf16.mxu0 0
  %352 = vmatpush1.bf16.msra.mxu0 %v287
  %353 = vmatprep.subr.bf16.mxu0 0
  %354 = vmatpush1.bf16.msra.mxu0 %v288
  %355 = vmatprep.subr.bf16.mxu0 0
  %356 = vmatpush1.bf16.msra.mxu0 %v289
  %357 = vmatprep.subr.bf16.mxu0 0
  %358 = vmatpush1.bf16.msra.mxu0 %v290
  %359 = vmatprep.subr.bf16.mxu0 0
  %360 = vmatpush1.bf16.msra.mxu0 %v291
  %361 = vmatprep.subr.bf16.mxu0 0
  %362 = vmatpush1.bf16.msra.mxu0 %v292
  %363 = vmatprep.subr.bf16.mxu0 0
  %364 = vmatpush1.bf16.msra.mxu0 %v293
  %365 = vmatprep.subr.bf16.mxu0 0
  %366 = vmatpush1.bf16.msra.mxu0 %v294
  %367 = vmatprep.subr.bf16.mxu0 0
  %368 = vmatpush1.bf16.msra.mxu0 %v295
  %369 = vmatprep.subr.bf16.mxu0 0
  %370 = vmatpush1.bf16.msra.mxu0 %v296
  %371 = vmatprep.subr.bf16.mxu0 0
  %372 = vmatpush1.bf16.msra.mxu0 %v297
  %373 = vmatprep.subr.bf16.mxu0 0
  %374 = vmatpush1.bf16.msra.mxu0 %v298
  %375 = vmatprep.subr.bf16.mxu0 0
  %376 = vmatpush1.bf16.msra.mxu0 %v299
  %377 = vmatprep.subr.bf16.mxu0 0
  %378 = vmatpush1.bf16.msra.mxu0 %v300
  %379 = vmatprep.subr.bf16.mxu0 0
  %380 = vmatpush1.bf16.msra.mxu0 %v301
  %381 = vmatprep.subr.bf16.mxu0 0
  %382 = vmatpush1.bf16.msra.mxu0 %v302
  %383 = vmatprep.mubr.bf16.mxu0 %v85
  %384 = vmatmul.mubr.bf16.gmra.mrb[0].mxu0 %v84
  %v385 = vpop.f32.mrb[0].mxu0
  %v386 = vadd.f32 %v157, %v385
  %v387 = vpop.f32.mrb[0].mxu0
  %v388 = vpop.f32.mrb[0].mxu0
  %v389 = vpop.f32.mrb[0].mxu0
  %390 = vdwg.mxu0
  %391 = vmatprep.subr.bf16.mxu0 0
  %392 = vmatpush1.bf16.msra.mxu0 %v303
  %393 = vmatprep.subr.bf16.mxu0 0
  %394 = vmatpush1.bf16.msra.mxu0 %v304
  %395 = vmatprep.subr.bf16.mxu0 0
  %396 = vmatpush1.bf16.msra.mxu0 %v305
  %397 = vmatprep.subr.bf16.mxu0 0
  %398 = vmatpush1.bf16.msra.mxu0 %v306
  %399 = vmatprep.subr.bf16.mxu0 0
  %400 = vmatpush1.bf16.msra.mxu0 %v307
  %401 = vmatprep.subr.bf16.mxu0 0
  %402 = vmatpush1.bf16.msra.mxu0 %v308
  %403 = vmatprep.subr.bf16.mxu0 0
  %404 = vmatpush1.bf16.msra.mxu0 %v309
  %405 = vmatprep.subr.bf16.mxu0 0
  %406 = vmatpush1.bf16.msra.mxu0 %v310
  %407 = vmatprep.subr.bf16.mxu0 0
  %408 = vmatpush1.bf16.msra.mxu0 %v311
  %409 = vmatprep.subr.bf16.mxu0 0
  %410 = vmatpush1.bf16.msra.mxu0 %v312
  %411 = vmatprep.subr.bf16.mxu0 0
  %412 = vmatpush1.bf16.msra.mxu0 %v313
  %413 = vmatprep.subr.bf16.mxu0 0
  %414 = vmatpush1.bf16.msra.mxu0 %v314
  %415 = vmatprep.subr.bf16.mxu0 0
  %416 = vmatpush1.bf16.msra.mxu0 %v315
  %417 = vmatprep.subr.bf16.mxu0 0
  %418 = vmatpush1.bf16.msra.mxu0 %v316
  %419 = vmatprep.subr.bf16.mxu0 0
  %420 = vmatpush1.bf16.msra.mxu0 %v317
  %421 = vmatprep.subr.bf16.mxu0 0
  %422 = vmatpush1.bf16.msra.mxu0 %v318
  %423 = vmatprep.mubr.bf16.mxu0 %v87
  %424 = vmatmul.mubr.bf16.gmra.mrb[0].mxu0 %v86
  %v425 = vpop.f32.mrb[0].mxu0
  %v426 = vadd.f32 %v386, %v425
  %v427 = vpop.f32.mrb[0].mxu0
  %v428 = vpop.f32.mrb[0].mxu0
  %v429 = vpop.f32.mrb[0].mxu0
  %430 = vdwg.mxu0
  %v431 = vmul.f32 %v426, %v426
  %432 = vadd.xlane.f32.xlu0 %v431
  %v433 = vpop.xlane.xlu0 %432
  %v434 = vmax.f32 %v433, 1e-24
  %v435 = vrsqrt.pop %v434
  %v436 = vmul.f32 %v426, %v435
  %v437 = vpack.c.bf16 %v436, %v436
  %v438 = vld [vmem:[%s5] sm:$0xf]
  %v439 = vld [vmem:[%s5 + $0x4] sm:$0xf]
  %v440 = vld [vmem:[%s5 + $0x8] sm:$0xf]
  %v441 = vld [vmem:[%s5 + $0xc] sm:$0xf]
  %v442 = vld [vmem:[%s5 + $0x10] sm:$0xf]
  %v443 = vld [vmem:[%s5 + $0x14] sm:$0xf]
  %v444 = vld [vmem:[%s5 + $0x18] sm:$0xf]
  %v445 = vld [vmem:[%s5 + $0x1c] sm:$0xf]
  %v446 = vld [vmem:[%s5 + $0x20] sm:$0xf]
  %v447 = vld [vmem:[%s5 + $0x24] sm:$0xf]
  %v448 = vld [vmem:[%s5 + $0x28] sm:$0xf]
  %v449 = vld [vmem:[%s5 + $0x2c] sm:$0xf]
  %v450 = vld [vmem:[%s5 + $0x30] sm:$0xf]
  %v451 = vld [vmem:[%s5 + $0x34] sm:$0xf]
  %v452 = vld [vmem:[%s5 + $0x38] sm:$0xf]
  %v453 = vld [vmem:[%s5 + $0x3c] sm:$0xf]
  %v470 = vunpack.c.l.b16 %v438
  %v471 = vunpack.c.l.b16 %v439
  %v472 = vunpack.c.l.b16 %v440
  %v473 = vunpack.c.l.b16 %v441
  %v474 = vunpack.c.l.b16 %v442
  %v475 = vunpack.c.l.b16 %v443
  %v476 = vunpack.c.l.b16 %v444
  %v477 = vunpack.c.l.b16 %v445
  %v478 = vunpack.c.l.b16 %v446
  %v479 = vunpack.c.l.b16 %v447
  %v480 = vunpack.c.l.b16 %v448
  %v481 = vunpack.c.l.b16 %v449
  %v482 = vunpack.c.l.b16 %v450
  %v483 = vunpack.c.l.b16 %v451
  %v484 = vunpack.c.l.b16 %v452
  %v485 = vunpack.c.l.b16 %v453
  %v486 = vpack.c.b16 %v471, %v470
  %v487 = vpack.c.b16 %v473, %v472
  %v488 = vpack.c.b16 %v475, %v474
  %v489 = vpack.c.b16 %v477, %v476
  %v490 = vpack.c.b16 %v479, %v478
  %v491 = vpack.c.b16 %v481, %v480
  %v492 = vpack.c.b16 %v483, %v482
  %v493 = vpack.c.b16 %v485, %v484
  %502 = vmatprep.subr.bf16.mxu0 0
  %503 = vmatpush1.bf16.msra.mxu0 %v486
  %504 = vmatprep.subr.bf16.mxu0 0
  %505 = vmatpush1.bf16.msra.mxu0 %v487
  %506 = vmatprep.subr.bf16.mxu0 0
  %507 = vmatpush1.bf16.msra.mxu0 %v488
  %508 = vmatprep.subr.bf16.mxu0 0
  %509 = vmatpush1.bf16.msra.mxu0 %v489
  %510 = vmatprep.subr.bf16.mxu0 0
  %511 = vmatpush1.bf16.msra.mxu0 %v490
  %512 = vmatprep.subr.bf16.mxu0 0
  %513 = vmatpush1.bf16.msra.mxu0 %v491
  %514 = vmatprep.subr.bf16.mxu0 0
  %515 = vmatpush1.bf16.msra.mxu0 %v492
  %516 = vmatprep.subr.bf16.mxu0 0
  %517 = vmatpush1.bf16.msra.mxu0 %v493
  %518 = vmatprep.subr.bf16.mxu0 0
  %519 = vmatpush1.bf16.msra.mxu0 0
  %520 = vmatprep.subr.bf16.mxu0 0
  %521 = vmatpush1.bf16.msra.mxu0 0
  %522 = vmatprep.subr.bf16.mxu0 0
  %523 = vmatpush1.bf16.msra.mxu0 0
  %524 = vmatprep.subr.bf16.mxu0 0
  %525 = vmatpush1.bf16.msra.mxu0 0
  %526 = vmatprep.subr.bf16.mxu0 0
  %527 = vmatpush1.bf16.msra.mxu0 0
  %528 = vmatprep.subr.bf16.mxu0 0
  %529 = vmatpush1.bf16.msra.mxu0 0
  %530 = vmatprep.subr.bf16.mxu0 0
  %531 = vmatpush1.bf16.msra.mxu0 0
  %532 = vmatprep.subr.bf16.mxu0 0
  %533 = vmatpush1.bf16.msra.mxu0 0
  %534 = vmatprep.mubr.bf16.mxu0 0
  %535 = vmatmul.mubr.bf16.gmra.mrb[0].mxu0 %v437
  %v536 = vpop.f32.mrb[0].mxu0
  %v537 = vadd.f32 0.0, %v536
  %v538 = vpop.f32.mrb[0].mxu0
  %v539 = vpop.f32.mrb[0].mxu0
  %v540 = vpop.f32.mrb[0].mxu0
  %541 = vdwg.mxu0
  %542 = vst [vmem:[%s6] sm:$0xff] %v537
  // Predicated region
  $region26: #{_lambda_.51} parent=0 // pred_check
    _
  $region27: #{_lambda_.51} parent=0 // pred_check_branch
    %544 = sbr.rel (0) target = $region29
  $region28: #{_lambda_.51} parent=0 // pred_region
    _
  $region29: #{_lambda_.51} parent=0 // pred_fallthru
    _
  // Predicated region
  $region30: #{_lambda_.51} parent=0 // pred_check
    _
  $region31: #{_lambda_.51} parent=0 // pred_check_branch
    %546 = sbr.rel (0) target = $region33
  $region32: #{_lambda_.51} parent=0 // pred_region
    _
  $region33: #{_lambda_.51} parent=0 // pred_fallthru
    _

// kernel: _lambda_.49
$region0: #{_lambda_.49}
  #allocation0 [shape = 'u32[]', space=smem, size = 0x4, offset = 0x4, fixed_abs, tag = 'smem constant byte address 0x4 - core index']
  #allocation1 [shape = 'u32[144,128]{1,0:T(1,128)}', space=vmem, size = 0x12000, scoped, tag = 'internal scratch']
  %s0 = inlined_call_operand.vmem [shape: bf16[16,512], index: 0, kind: input, shape index: {}, may-alias: {0,5}]
  %s1 = inlined_call_operand.vmem [shape: bf16[512,512], index: 1, kind: input, shape index: {}]
  %s2 = inlined_call_operand.vmem [shape: f32[1,512], index: 2, kind: input, shape index: {}]
  %s3 = inlined_call_operand.vmem [shape: bf16[512,512], index: 3, kind: input, shape index: {}]
  %s4 = inlined_call_operand.vmem [shape: f32[1,512], index: 4, kind: input, shape index: {}]
  %s5 = inlined_call_operand.vmem [shape: bf16[16,512], index: 5, kind: input, shape index: {}, may-alias: {0,5}]
  %s6 = inlined_call_operand.vmem [shape: bf16[16,512], index: 6, kind: output, shape index: {}]
  %s7 = sld [smem:[#allocation0]]
  $region34: #{_lambda_.49} parent=0
    _
  %s9 = ssub.s32 1, %s7
  %s10 = scalar_select 0, %s9, %s7
  // Predicated region
  $region2: #{_lambda_.49} parent=0 // pred_check
    _
  $region3: #{_lambda_.49} parent=0 // pred_check_branch
    %12 = sbr.rel (0) target = $region5
  $region4: #{_lambda_.49} parent=0 // pred_region
    _
  $region5: #{_lambda_.49} parent=0 // pred_fallthru
    _
  // Predicated region
  $region6: #{_lambda_.49} parent=0 // pred_check
    _
  $region7: #{_lambda_.49} parent=0 // pred_check_branch
    %14 = sbr.rel (0) target = $region9
  $region8: #{_lambda_.49} parent=0 // pred_region
    _
  $region9: #{_lambda_.49} parent=0 // pred_fallthru
    _
  // Predicated region
  $region10: #{_lambda_.49} parent=0 // pred_check
    _
  $region11: #{_lambda_.49} parent=0 // pred_check_branch
    %16 = sbr.rel (0) target = $region13
  $region12: #{_lambda_.49} parent=0 // pred_region
    _
  $region13: #{_lambda_.49} parent=0 // pred_fallthru
    _
  // Predicated region
  $region14: #{_lambda_.49} parent=0 // pred_check
    _
  $region15: #{_lambda_.49} parent=0 // pred_check_branch
    %18 = sbr.rel (0) target = $region17
  $region16: #{_lambda_.49} parent=0 // pred_region
    _
  $region17: #{_lambda_.49} parent=0 // pred_fallthru
    _
  // Predicated region
  $region18: #{_lambda_.49} parent=0 // pred_check
    _
  $region19: #{_lambda_.49} parent=0 // pred_check_branch
    %20 = sbr.rel (0) target = $region21
  $region20: #{_lambda_.49} parent=0 // pred_region
    _
  $region21: #{_lambda_.49} parent=0 // pred_fallthru
    _
  // Predicated region
  $region22: #{_lambda_.49} parent=0 // pred_check
    _
  $region23: #{_lambda_.49} parent=0 // pred_check_branch
    %22 = sbr.rel (0) target = $region25
  $region24: #{_lambda_.49} parent=0 // pred_region
    _
  $region25: #{_lambda_.49} parent=0 // pred_fallthru
    _
  %v23 = vld [vmem:[%s0] sm:$0xff]
  %v24 = vld [vmem:[%s0 + $0x8] sm:$0xff]
  %v25 = vld [vmem:[%s0 + $0x10] sm:$0xff]
  %v26 = vld [vmem:[%s0 + $0x18] sm:$0xff]
  %v27 = vld [vmem:[%s1] sm:$0xff]
  %v28 = vld [vmem:[%s1 + $0x8] sm:$0xff]
  %v29 = vld [vmem:[%s1 + $0x10] sm:$0xff]
  %v30 = vld [vmem:[%s1 + $0x18] sm:$0xff]
  %v31 = vld [vmem:[%s1 + $0x20] sm:$0xff]
  %v32 = vld [vmem:[%s1 + $0x28] sm:$0xff]
  %v33 = vld [vmem:[%s1 + $0x30] sm:$0xff]
  %v34 = vld [vmem:[%s1 + $0x38] sm:$0xff]
  %v35 = vld [vmem:[%s1 + $0x40] sm:$0xff]
  %v36 = vld [vmem:[%s1 + $0x48] sm:$0xff]
  %v37 = vld [vmem:[%s1 + $0x50] sm:$0xff]
  %v38 = vld [vmem:[%s1 + $0x58] sm:$0xff]
  %v39 = vld [vmem:[%s1 + $0x60] sm:$0xff]
  %v40 = vld [vmem:[%s1 + $0x68] sm:$0xff]
  %v41 = vld [vmem:[%s1 + $0x70] sm:$0xff]
  %v42 = vld [vmem:[%s1 + $0x78] sm:$0xff]
  %v43 = vld [vmem:[%s1 + $0x80] sm:$0xff]
  %v44 = vld [vmem:[%s1 + $0x88] sm:$0xff]
  %v45 = vld [vmem:[%s1 + $0x90] sm:$0xff]
  %v46 = vld [vmem:[%s1 + $0x98] sm:$0xff]
  %v47 = vld [vmem:[%s1 + $0xa0] sm:$0xff]
  %v48 = vld [vmem:[%s1 + $0xa8] sm:$0xff]
  %v49 = vld [vmem:[%s1 + $0xb0] sm:$0xff]
  %v50 = vld [vmem:[%s1 + $0xb8] sm:$0xff]
  %v51 = vld [vmem:[%s1 + $0xc0] sm:$0xff]
  %v52 = vld [vmem:[%s1 + $0xc8] sm:$0xff]
  %v53 = vld [vmem:[%s1 + $0xd0] sm:$0xff]
  %v54 = vld [vmem:[%s1 + $0xd8] sm:$0xff]
  %v55 = vld [vmem:[%s1 + $0xe0] sm:$0xff]
  %v56 = vld [vmem:[%s1 + $0xe8] sm:$0xff]
  %v57 = vld [vmem:[%s1 + $0xf0] sm:$0xff]
  %v58 = vld [vmem:[%s1 + $0xf8] sm:$0xff]
  %v59 = vld [vmem:[%s1 + $0x100] sm:$0xff]
  %v60 = vld [vmem:[%s1 + $0x108] sm:$0xff]
  %v61 = vld [vmem:[%s1 + $0x110] sm:$0xff]
  %v62 = vld [vmem:[%s1 + $0x118] sm:$0xff]
  %v63 = vld [vmem:[%s1 + $0x120] sm:$0xff]
  %v64 = vld [vmem:[%s1 + $0x128] sm:$0xff]
  %v65 = vld [vmem:[%s1 + $0x130] sm:$0xff]
  %v66 = vld [vmem:[%s1 + $0x138] sm:$0xff]
  %v67 = vld [vmem:[%s1 + $0x140] sm:$0xff]
  %v68 = vld [vmem:[%s1 + $0x148] sm:$0xff]
  %v69 = vld [vmem:[%s1 + $0x150] sm:$0xff]
  %v70 = vld [vmem:[%s1 + $0x158] sm:$0xff]
  %v71 = vld [vmem:[%s1 + $0x160] sm:$0xff]
  %v72 = vld [vmem:[%s1 + $0x168] sm:$0xff]
  %v73 = vld [vmem:[%s1 + $0x170] sm:$0xff]
  %v74 = vld [vmem:[%s1 + $0x178] sm:$0xff]
  %v75 = vld [vmem:[%s1 + $0x180] sm:$0xff]
  %v76 = vld [vmem:[%s1 + $0x188] sm:$0xff]
  %v77 = vld [vmem:[%s1 + $0x190] sm:$0xff]
  %v78 = vld [vmem:[%s1 + $0x198] sm:$0xff]
  %v79 = vld [vmem:[%s1 + $0x1a0] sm:$0xff]
  %v80 = vld [vmem:[%s1 + $0x1a8] sm:$0xff]
  %v81 = vld [vmem:[%s1 + $0x1b0] sm:$0xff]
  %v82 = vld [vmem:[%s1 + $0x1b8] sm:$0xff]
  %v83 = vld [vmem:[%s1 + $0x1c0] sm:$0xff]
  %v84 = vld [vmem:[%s1 + $0x1c8] sm:$0xff]
  %v85 = vld [vmem:[%s1 + $0x1d0] sm:$0xff]
  %v86 = vld [vmem:[%s1 + $0x1d8] sm:$0xff]
  %v87 = vld [vmem:[%s1 + $0x1e0] sm:$0xff]
  %v88 = vld [vmem:[%s1 + $0x1e8] sm:$0xff]
  %v89 = vld [vmem:[%s1 + $0x1f0] sm:$0xff]
  %v90 = vld [vmem:[%s1 + $0x1f8] sm:$0xff]
  %v91 = vld [vmem:[%s1 + $0x200] sm:$0xff]
  %v92 = vld [vmem:[%s1 + $0x208] sm:$0xff]
  %v93 = vld [vmem:[%s1 + $0x210] sm:$0xff]
  %v94 = vld [vmem:[%s1 + $0x218] sm:$0xff]
  %v95 = vld [vmem:[%s1 + $0x220] sm:$0xff]
  %v96 = vld [vmem:[%s1 + $0x228] sm:$0xff]
  %v97 = vld [vmem:[%s1 + $0x230] sm:$0xff]
  %v98 = vld [vmem:[%s1 + $0x238] sm:$0xff]
  %v99 = vld [vmem:[%s1 + $0x240] sm:$0xff]
  %v100 = vld [vmem:[%s1 + $0x248] sm:$0xff]
  %v101 = vld [vmem:[%s1 + $0x250] sm:$0xff]
  %v102 = vld [vmem:[%s1 + $0x258] sm:$0xff]
  %v103 = vld [vmem:[%s1 + $0x260] sm:$0xff]
  %v104 = vld [vmem:[%s1 + $0x268] sm:$0xff]
  %v105 = vld [vmem:[%s1 + $0x270] sm:$0xff]
  %v106 = vld [vmem:[%s1 + $0x278] sm:$0xff]
  %v107 = vld [vmem:[%s1 + $0x280] sm:$0xff]
  %v108 = vld [vmem:[%s1 + $0x288] sm:$0xff]
  %v109 = vld [vmem:[%s1 + $0x290] sm:$0xff]
  %v110 = vld [vmem:[%s1 + $0x298] sm:$0xff]
  %v111 = vld [vmem:[%s1 + $0x2a0] sm:$0xff]
  %v112 = vld [vmem:[%s1 + $0x2a8] sm:$0xff]
  %v113 = vld [vmem:[%s1 + $0x2b0] sm:$0xff]
  %v114 = vld [vmem:[%s1 + $0x2b8] sm:$0xff]
  %v115 = vld [vmem:[%s1 + $0x2c0] sm:$0xff]
  %v116 = vld [vmem:[%s1 + $0x2c8] sm:$0xff]
  %v117 = vld [vmem:[%s1 + $0x2d0] sm:$0xff]
  %v118 = vld [vmem:[%s1 + $0x2d8] sm:$0xff]
  %v119 = vld [vmem:[%s1 + $0x2e0] sm:$0xff]
  %v120 = vld [vmem:[%s1 + $0x2e8] sm:$0xff]
  %v121 = vld [vmem:[%s1 + $0x2f0] sm:$0xff]
  %v122 = vld [vmem:[%s1 + $0x2f8] sm:$0xff]
  %v123 = vld [vmem:[%s1 + $0x300] sm:$0xff]
  %v124 = vld [vmem:[%s1 + $0x308] sm:$0xff]
  %v125 = vld [vmem:[%s1 + $0x310] sm:$0xff]
  %v126 = vld [vmem:[%s1 + $0x318] sm:$0xff]
  %v127 = vld [vmem:[%s1 + $0x320] sm:$0xff]
  %v128 = vld [vmem:[%s1 + $0x328] sm:$0xff]
  %v129 = vld [vmem:[%s1 + $0x330] sm:$0xff]
  %v130 = vld [vmem:[%s1 + $0x338] sm:$0xff]
  %v131 = vld [vmem:[%s1 + $0x340] sm:$0xff]
  %v132 = vld [vmem:[%s1 + $0x348] sm:$0xff]
  %v133 = vld [vmem:[%s1 + $0x350] sm:$0xff]
  %v134 = vld [vmem:[%s1 + $0x358] sm:$0xff]
  %v135 = vld [vmem:[%s1 + $0x360] sm:$0xff]
  %v136 = vld [vmem:[%s1 + $0x368] sm:$0xff]
  %v137 = vld [vmem:[%s1 + $0x370] sm:$0xff]
  %v138 = vld [vmem:[%s1 + $0x378] sm:$0xff]
  %v139 = vld [vmem:[%s1 + $0x380] sm:$0xff]
  %v140 = vld [vmem:[%s1 + $0x388] sm:$0xff]
  %v141 = vld [vmem:[%s1 + $0x390] sm:$0xff]
  %v142 = vld [vmem:[%s1 + $0x398] sm:$0xff]
  %v143 = vld [vmem:[%s1 + $0x3a0] sm:$0xff]
  %v144 = vld [vmem:[%s1 + $0x3a8] sm:$0xff]
  %v145 = vld [vmem:[%s1 + $0x3b0] sm:$0xff]
  %v146 = vld [vmem:[%s1 + $0x3b8] sm:$0xff]
  %v147 = vld [vmem:[%s1 + $0x3c0] sm:$0xff]
  %v148 = vld [vmem:[%s1 + $0x3c8] sm:$0xff]
  %v149 = vld [vmem:[%s1 + $0x3d0] sm:$0xff]
  %v150 = vld [vmem:[%s1 + $0x3d8] sm:$0xff]
  %v151 = vld [vmem:[%s1 + $0x3e0] sm:$0xff]
  %v152 = vld [vmem:[%s1 + $0x3e8] sm:$0xff]
  %v153 = vld [vmem:[%s1 + $0x3f0] sm:$0xff]
  %v154 = vld [vmem:[%s1 + $0x3f8] sm:$0xff]
  %v155 = vld [vmem:[%s2] sm:$0xf]
  %v157 = vlaneseq
  %v158 = vshrl.u32 %v157, 7
  %v159 = vsub.s32 0, %v158
  %v160 = vrot.slane %v155, %v159
  %v161 = vlaneseq
  %v162 = vshrl.u32 %v161, 7
  %v163 = vsub.s32 1, %v162
  %v164 = vrot.slane %v155, %v163
  %v165 = vlaneseq
  %v166 = vshrl.u32 %v165, 7
  %v167 = vsub.s32 2, %v166
  %v168 = vrot.slane %v155, %v167
  %v169 = vlaneseq
  %v170 = vshrl.u32 %v169, 7
  %v171 = vsub.s32 3, %v170
  %v172 = vrot.slane %v155, %v171
  %v181 = vunpack.c.l.b16 %v23
  %v182 = vunpack.c.h.b16 %v23
  %v183 = vunpack.c.l.b16 %v24
  %v184 = vunpack.c.h.b16 %v24
  %v185 = vunpack.c.l.b16 %v25
  %v186 = vunpack.c.h.b16 %v25
  %v187 = vunpack.c.l.b16 %v26
  %v188 = vunpack.c.h.b16 %v26
  %v189 = vpack.c.b16 %v185, %v181
  %v190 = vpack.c.b16 %v186, %v182
  %v191 = vpack.c.b16 %v187, %v183
  %v192 = vpack.c.b16 %v188, %v184
  %v325 = vunpack.c.l.b16 %v27
  %v326 = vunpack.c.h.b16 %v27
  %v327 = vunpack.c.l.b16 %v28
  %v328 = vunpack.c.h.b16 %v28
  %v329 = vunpack.c.l.b16 %v29
  %v330 = vunpack.c.h.b16 %v29
  %v331 = vunpack.c.l.b16 %v30
  %v332 = vunpack.c.h.b16 %v30
  %v333 = vunpack.c.l.b16 %v31
  %v334 = vunpack.c.h.b16 %v31
  %v335 = vunpack.c.l.b16 %v32
  %v336 = vunpack.c.h.b16 %v32
  %v337 = vunpack.c.l.b16 %v33
  %v338 = vunpack.c.h.b16 %v33
  %v339 = vunpack.c.l.b16 %v34
  %v340 = vunpack.c.h.b16 %v34
  %v341 = vunpack.c.l.b16 %v35
  %v342 = vunpack.c.h.b16 %v35
  %v343 = vunpack.c.l.b16 %v36
  %v344 = vunpack.c.h.b16 %v36
  %v345 = vunpack.c.l.b16 %v37
  %v346 = vunpack.c.h.b16 %v37
  %v347 = vunpack.c.l.b16 %v38
  %v348 = vunpack.c.h.b16 %v38
  %v349 = vunpack.c.l.b16 %v39
  %v350 = vunpack.c.h.b16 %v39
  %v351 = vunpack.c.l.b16 %v40
  %v352 = vunpack.c.h.b16 %v40
  %v353 = vunpack.c.l.b16 %v41
  %v354 = vunpack.c.h.b16 %v41
  %v355 = vunpack.c.l.b16 %v42
  %v356 = vunpack.c.h.b16 %v42
  %v357 = vunpack.c.l.b16 %v43
  %v358 = vunpack.c.h.b16 %v43
  %v359 = vunpack.c.l.b16 %v44
  %v360 = vunpack.c.h.b16 %v44
  %v361 = vunpack.c.l.b16 %v45
  %v362 = vunpack.c.h.b16 %v45
  %v363 = vunpack.c.l.b16 %v46
  %v364 = vunpack.c.h.b16 %v46
  %v365 = vunpack.c.l.b16 %v47
  %v366 = vunpack.c.h.b16 %v47
  %v367 = vunpack.c.l.b16 %v48
  %v368 = vunpack.c.h.b16 %v48
  %v369 = vunpack.c.l.b16 %v49
  %v370 = vunpack.c.h.b16 %v49
  %v371 = vunpack.c.l.b16 %v50
  %v372 = vunpack.c.h.b16 %v50
  %v373 = vunpack.c.l.b16 %v51
  %v374 = vunpack.c.h.b16 %v51
  %v375 = vunpack.c.l.b16 %v52
  %v376 = vunpack.c.h.b16 %v52
  %v377 = vunpack.c.l.b16 %v53
  %v378 = vunpack.c.h.b16 %v53
  %v379 = vunpack.c.l.b16 %v54
  %v380 = vunpack.c.h.b16 %v54
  %v381 = vunpack.c.l.b16 %v55
  %v382 = vunpack.c.h.b16 %v55
  %v383 = vunpack.c.l.b16 %v56
  %v384 = vunpack.c.h.b16 %v56
  %v385 = vunpack.c.l.b16 %v57
  %v386 = vunpack.c.h.b16 %v57
  %v387 = vunpack.c.l.b16 %v58
  %v388 = vunpack.c.h.b16 %v58
  %v389 = vunpack.c.l.b16 %v59
  %v390 = vunpack.c.h.b16 %v59
  %v391 = vunpack.c.l.b16 %v60
  %v392 = vunpack.c.h.b16 %v60
  %v393 = vunpack.c.l.b16 %v61
  %v394 = vunpack.c.h.b16 %v61
  %v395 = vunpack.c.l.b16 %v62
  %v396 = vunpack.c.h.b16 %v62
  %v397 = vunpack.c.l.b16 %v63
  %v398 = vunpack.c.h.b16 %v63
  %v399 = vunpack.c.l.b16 %v64
  %v400 = vunpack.c.h.b16 %v64
  %v401 = vunpack.c.l.b16 %v65
  %v402 = vunpack.c.h.b16 %v65
  %v403 = vunpack.c.l.b16 %v66
  %v404 = vunpack.c.h.b16 %v66
  %v405 = vunpack.c.l.b16 %v67
  %v406 = vunpack.c.h.b16 %v67
  %v407 = vunpack.c.l.b16 %v68
  %v408 = vunpack.c.h.b16 %v68
  %v409 = vunpack.c.l.b16 %v69
  %v410 = vunpack.c.h.b16 %v69
  %v411 = vunpack.c.l.b16 %v70
  %v412 = vunpack.c.h.b16 %v70
  %v413 = vunpack.c.l.b16 %v71
  %v414 = vunpack.c.h.b16 %v71
  %v415 = vunpack.c.l.b16 %v72
  %v416 = vunpack.c.h.b16 %v72
  %v417 = vunpack.c.l.b16 %v73
  %v418 = vunpack.c.h.b16 %v73
  %v419 = vunpack.c.l.b16 %v74
  %v420 = vunpack.c.h.b16 %v74
  %v421 = vunpack.c.l.b16 %v75
  %v422 = vunpack.c.h.b16 %v75
  %v423 = vunpack.c.l.b16 %v76
  %v424 = vunpack.c.h.b16 %v76
  %v425 = vunpack.c.l.b16 %v77
  %v426 = vunpack.c.h.b16 %v77
  %v427 = vunpack.c.l.b16 %v78
  %v428 = vunpack.c.h.b16 %v78
  %v429 = vunpack.c.l.b16 %v79
  %v430 = vunpack.c.h.b16 %v79
  %v431 = vunpack.c.l.b16 %v80
  %v432 = vunpack.c.h.b16 %v80
  %v433 = vunpack.c.l.b16 %v81
  %v434 = vunpack.c.h.b16 %v81
  %v435 = vunpack.c.l.b16 %v82
  %v436 = vunpack.c.h.b16 %v82
  %v437 = vunpack.c.l.b16 %v83
  %v438 = vunpack.c.h.b16 %v83
  %v439 = vunpack.c.l.b16 %v84
  %v440 = vunpack.c.h.b16 %v84
  %v441 = vunpack.c.l.b16 %v85
  %v442 = vunpack.c.h.b16 %v85
  %v443 = vunpack.c.l.b16 %v86
  %v444 = vunpack.c.h.b16 %v86
  %v445 = vunpack.c.l.b16 %v87
  %v446 = vunpack.c.h.b16 %v87
  %v447 = vunpack.c.l.b16 %v88
  %v448 = vunpack.c.h.b16 %v88
  %v449 = vunpack.c.l.b16 %v89
  %v450 = vunpack.c.h.b16 %v89
  %v451 = vunpack.c.l.b16 %v90
  %v452 = vunpack.c.h.b16 %v90
  %v453 = vunpack.c.l.b16 %v91
  %v454 = vunpack.c.h.b16 %v91
  %v455 = vunpack.c.l.b16 %v92
  %v456 = vunpack.c.h.b16 %v92
  %v457 = vunpack.c.l.b16 %v93
  %v458 = vunpack.c.h.b16 %v93
  %v459 = vunpack.c.l.b16 %v94
  %v460 = vunpack.c.h.b16 %v94
  %v461 = vunpack.c.l.b16 %v95
  %v462 = vunpack.c.h.b16 %v95
  %v463 = vunpack.c.l.b16 %v96
  %v464 = vunpack.c.h.b16 %v96
  %v465 = vunpack.c.l.b16 %v97
  %v466 = vunpack.c.h.b16 %v97
  %v467 = vunpack.c.l.b16 %v98
  %v468 = vunpack.c.h.b16 %v98
  %v469 = vunpack.c.l.b16 %v99
  %v470 = vunpack.c.h.b16 %v99
  %v471 = vunpack.c.l.b16 %v100
  %v472 = vunpack.c.h.b16 %v100
  %v473 = vunpack.c.l.b16 %v101
  %v474 = vunpack.c.h.b16 %v101
  %v475 = vunpack.c.l.b16 %v102
  %v476 = vunpack.c.h.b16 %v102
  %v477 = vunpack.c.l.b16 %v103
  %v478 = vunpack.c.h.b16 %v103
  %v479 = vunpack.c.l.b16 %v104
  %v480 = vunpack.c.h.b16 %v104
  %v481 = vunpack.c.l.b16 %v105
  %v482 = vunpack.c.h.b16 %v105
  %v483 = vunpack.c.l.b16 %v106
  %v484 = vunpack.c.h.b16 %v106
  %v485 = vunpack.c.l.b16 %v107
  %v486 = vunpack.c.h.b16 %v107
  %v487 = vunpack.c.l.b16 %v108
  %v488 = vunpack.c.h.b16 %v108
  %v489 = vunpack.c.l.b16 %v109
  %v490 = vunpack.c.h.b16 %v109
  %v491 = vunpack.c.l.b16 %v110
  %v492 = vunpack.c.h.b16 %v110
  %v493 = vunpack.c.l.b16 %v111
  %v494 = vunpack.c.h.b16 %v111
  %v495 = vunpack.c.l.b16 %v112
  %v496 = vunpack.c.h.b16 %v112
  %v497 = vunpack.c.l.b16 %v113
  %v498 = vunpack.c.h.b16 %v113
  %v499 = vunpack.c.l.b16 %v114
  %v500 = vunpack.c.h.b16 %v114
  %v501 = vunpack.c.l.b16 %v115
  %v502 = vunpack.c.h.b16 %v115
  %v503 = vunpack.c.l.b16 %v116
  %v504 = vunpack.c.h.b16 %v116
  %v505 = vunpack.c.l.b16 %v117
  %v506 = vunpack.c.h.b16 %v117
  %v507 = vunpack.c.l.b16 %v118
  %v508 = vunpack.c.h.b16 %v118
  %v509 = vunpack.c.l.b16 %v119
  %v510 = vunpack.c.h.b16 %v119
  %v511 = vunpack.c.l.b16 %v120
  %v512 = vunpack.c.h.b16 %v120
  %v513 = vunpack.c.l.b16 %v121
  %v514 = vunpack.c.h.b16 %v121
  %v515 = vunpack.c.l.b16 %v122
  %v516 = vunpack.c.h.b16 %v122
  %v517 = vunpack.c.l.b16 %v123
  %v518 = vunpack.c.h.b16 %v123
  %v519 = vunpack.c.l.b16 %v124
  %v520 = vunpack.c.h.b16 %v124
  %v521 = vunpack.c.l.b16 %v125
  %v522 = vunpack.c.h.b16 %v125
  %v523 = vunpack.c.l.b16 %v126
  %v524 = vunpack.c.h.b16 %v126
  %v525 = vunpack.c.l.b16 %v127
  %v526 = vunpack.c.h.b16 %v127
  %v527 = vunpack.c.l.b16 %v128
  %v528 = vunpack.c.h.b16 %v128
  %v529 = vunpack.c.l.b16 %v129
  %v530 = vunpack.c.h.b16 %v129
  %v531 = vunpack.c.l.b16 %v130
  %v532 = vunpack.c.h.b16 %v130
  %v533 = vunpack.c.l.b16 %v131
  %v534 = vunpack.c.h.b16 %v131
  %v535 = vunpack.c.l.b16 %v132
  %v536 = vunpack.c.h.b16 %v132
  %v537 = vunpack.c.l.b16 %v133
  %v538 = vunpack.c.h.b16 %v133
  %v539 = vunpack.c.l.b16 %v134
  %v540 = vunpack.c.h.b16 %v134
  %v541 = vunpack.c.l.b16 %v135
  %v542 = vunpack.c.h.b16 %v135
  %v543 = vunpack.c.l.b16 %v136
  %v544 = vunpack.c.h.b16 %v136
  %v545 = vunpack.c.l.b16 %v137
  %v546 = vunpack.c.h.b16 %v137
  %v547 = vunpack.c.l.b16 %v138
  %v548 = vunpack.c.h.b16 %v138
  %v549 = vunpack.c.l.b16 %v139
  %v550 = vunpack.c.h.b16 %v139
  %v551 = vunpack.c.l.b16 %v140
  %v552 = vunpack.c.h.b16 %v140
  %v553 = vunpack.c.l.b16 %v141
  %v554 = vunpack.c.h.b16 %v141
  %v555 = vunpack.c.l.b16 %v142
  %v556 = vunpack.c.h.b16 %v142
  %v557 = vunpack.c.l.b16 %v143
  %v558 = vunpack.c.h.b16 %v143
  %v559 = vunpack.c.l.b16 %v144
  %v560 = vunpack.c.h.b16 %v144
  %v561 = vunpack.c.l.b16 %v145
  %v562 = vunpack.c.h.b16 %v145
  %v563 = vunpack.c.l.b16 %v146
  %v564 = vunpack.c.h.b16 %v146
  %v565 = vunpack.c.l.b16 %v147
  %v566 = vunpack.c.h.b16 %v147
  %v567 = vunpack.c.l.b16 %v148
  %v568 = vunpack.c.h.b16 %v148
  %v569 = vunpack.c.l.b16 %v149
  %v570 = vunpack.c.h.b16 %v149
  %v571 = vunpack.c.l.b16 %v150
  %v572 = vunpack.c.h.b16 %v150
  %v573 = vunpack.c.l.b16 %v151
  %v574 = vunpack.c.h.b16 %v151
  %v575 = vunpack.c.l.b16 %v152
  %v576 = vunpack.c.h.b16 %v152
  %v577 = vunpack.c.l.b16 %v153
  %v578 = vunpack.c.h.b16 %v153
  %v579 = vunpack.c.l.b16 %v154
  %v580 = vunpack.c.h.b16 %v154
  %v581 = vpack.c.b16 %v329, %v325
  %v582 = vpack.c.b16 %v330, %v326
  %v583 = vpack.c.b16 %v331, %v327
  %v584 = vpack.c.b16 %v332, %v328
  %v585 = vpack.c.b16 %v337, %v333
  %v586 = vpack.c.b16 %v338, %v334
  %v587 = vpack.c.b16 %v339, %v335
  %v588 = vpack.c.b16 %v340, %v336
  %v589 = vpack.c.b16 %v345, %v341
  %v590 = vpack.c.b16 %v346, %v342
  %v591 = vpack.c.b16 %v347, %v343
  %v592 = vpack.c.b16 %v348, %v344
  %v593 = vpack.c.b16 %v353, %v349
  %v594 = vpack.c.b16 %v354, %v350
  %v595 = vpack.c.b16 %v355, %v351
  %v596 = vpack.c.b16 %v356, %v352
  %v597 = vpack.c.b16 %v361, %v357
  %v598 = vpack.c.b16 %v362, %v358
  %v599 = vpack.c.b16 %v363, %v359
  %v600 = vpack.c.b16 %v364, %v360
  %v601 = vpack.c.b16 %v369, %v365
  %v602 = vpack.c.b16 %v370, %v366
  %v603 = vpack.c.b16 %v371, %v367
  %v604 = vpack.c.b16 %v372, %v368
  %v605 = vpack.c.b16 %v377, %v373
  %v606 = vpack.c.b16 %v378, %v374
  %v607 = vpack.c.b16 %v379, %v375
  %v608 = vpack.c.b16 %v380, %v376
  %v609 = vpack.c.b16 %v385, %v381
  %v610 = vpack.c.b16 %v386, %v382
  %v611 = vpack.c.b16 %v387, %v383
  %v612 = vpack.c.b16 %v388, %v384
  %v613 = vpack.c.b16 %v393, %v389
  %v614 = vpack.c.b16 %v394, %v390
  %v615 = vpack.c.b16 %v395, %v391
  %v616 = vpack.c.b16 %v396, %v392
  %v617 = vpack.c.b16 %v401, %v397
  %v618 = vpack.c.b16 %v402, %v398
  %v619 = vpack.c.b16 %v403, %v399
  %v620 = vpack.c.b16 %v404, %v400
  %v621 = vpack.c.b16 %v409, %v405
  %v622 = vpack.c.b16 %v410, %v406
  %v623 = vpack.c.b16 %v411, %v407
  %v624 = vpack.c.b16 %v412, %v408
  %v625 = vpack.c.b16 %v417, %v413
  %v626 = vpack.c.b16 %v418, %v414
  %v627 = vpack.c.b16 %v419, %v415
  %v628 = vpack.c.b16 %v420, %v416
  %v629 = vpack.c.b16 %v425, %v421
  %v630 = vpack.c.b16 %v426, %v422
  %v631 = vpack.c.b16 %v427, %v423
  %v632 = vpack.c.b16 %v428, %v424
  %v633 = vpack.c.b16 %v433, %v429
  %v634 = vpack.c.b16 %v434, %v430
  %v635 = vpack.c.b16 %v435, %v431
  %v636 = vpack.c.b16 %v436, %v432
  %v637 = vpack.c.b16 %v441, %v437
  %v638 = vpack.c.b16 %v442, %v438
  %v639 = vpack.c.b16 %v443, %v439
  %v640 = vpack.c.b16 %v444, %v440
  %v641 = vpack.c.b16 %v449, %v445
  %v642 = vpack.c.b16 %v450, %v446
  %v643 = vpack.c.b16 %v451, %v447
  %v644 = vpack.c.b16 %v452, %v448
  %v645 = vpack.c.b16 %v457, %v453
  %v646 = vpack.c.b16 %v458, %v454
  %v647 = vpack.c.b16 %v459, %v455
  %v648 = vpack.c.b16 %v460, %v456
  %v649 = vpack.c.b16 %v465, %v461
  %v650 = vpack.c.b16 %v466, %v462
  %v651 = vpack.c.b16 %v467, %v463
  %v652 = vpack.c.b16 %v468, %v464
  %v653 = vpack.c.b16 %v473, %v469
  %v654 = vpack.c.b16 %v474, %v470
  %v655 = vpack.c.b16 %v475, %v471
  %v656 = vpack.c.b16 %v476, %v472
  %v657 = vpack.c.b16 %v481, %v477
  %v658 = vpack.c.b16 %v482, %v478
  %v659 = vpack.c.b16 %v483, %v479
  %v660 = vpack.c.b16 %v484, %v480
  %v661 = vpack.c.b16 %v489, %v485
  %v662 = vpack.c.b16 %v490, %v486
  %v663 = vpack.c.b16 %v491, %v487
  %v664 = vpack.c.b16 %v492, %v488
  %v665 = vpack.c.b16 %v497, %v493
  %v666 = vpack.c.b16 %v498, %v494
  %v667 = vpack.c.b16 %v499, %v495
  %v668 = vpack.c.b16 %v500, %v496
  %v669 = vpack.c.b16 %v505, %v501
  %v670 = vpack.c.b16 %v506, %v502
  %v671 = vpack.c.b16 %v507, %v503
  %v672 = vpack.c.b16 %v508, %v504
  %v673 = vpack.c.b16 %v513, %v509
  %v674 = vpack.c.b16 %v514, %v510
  %v675 = vpack.c.b16 %v515, %v511
  %v676 = vpack.c.b16 %v516, %v512
  %v677 = vpack.c.b16 %v521, %v517
  %v678 = vpack.c.b16 %v522, %v518
  %v679 = vpack.c.b16 %v523, %v519
  %v680 = vpack.c.b16 %v524, %v520
  %v681 = vpack.c.b16 %v529, %v525
  %v682 = vpack.c.b16 %v530, %v526
  %v683 = vpack.c.b16 %v531, %v527
  %v684 = vpack.c.b16 %v532, %v528
  %v685 = vpack.c.b16 %v537, %v533
  %v686 = vpack.c.b16 %v538, %v534
  %v687 = vpack.c.b16 %v539, %v535
  %v688 = vpack.c.b16 %v540, %v536
  %v689 = vpack.c.b16 %v545, %v541
  %v690 = vpack.c.b16 %v546, %v542
  %v691 = vpack.c.b16 %v547, %v543
  %v692 = vpack.c.b16 %v548, %v544
  %v693 = vpack.c.b16 %v553, %v549
  %v694 = vpack.c.b16 %v554, %v550
  %v695 = vpack.c.b16 %v555, %v551
  %v696 = vpack.c.b16 %v556, %v552
  %v697 = vpack.c.b16 %v561, %v557
  %v698 = vpack.c.b16 %v562, %v558
  %v699 = vpack.c.b16 %v563, %v559
  %v700 = vpack.c.b16 %v564, %v560
  %v701 = vpack.c.b16 %v569, %v565
  %v702 = vpack.c.b16 %v570, %v566
  %v703 = vpack.c.b16 %v571, %v567
  %v704 = vpack.c.b16 %v572, %v568
  %v705 = vpack.c.b16 %v577, %v573
  %v706 = vpack.c.b16 %v578, %v574
  %v707 = vpack.c.b16 %v579, %v575
  %v708 = vpack.c.b16 %v580, %v576
  %837 = vmatprep.subr.bf16.mxu0 %v582
  %838 = vmatpush1.bf16.msra.mxu0 %v581
  %839 = vmatprep.subr.bf16.mxu0 %v586
  %840 = vmatpush1.bf16.msra.mxu0 %v585
  %841 = vmatprep.subr.bf16.mxu0 %v590
  %842 = vmatpush1.bf16.msra.mxu0 %v589
  %843 = vmatprep.subr.bf16.mxu0 %v594
  %844 = vmatpush1.bf16.msra.mxu0 %v593
  %845 = vmatprep.subr.bf16.mxu0 %v598
  %846 = vmatpush1.bf16.msra.mxu0 %v597
  %847 = vmatprep.subr.bf16.mxu0 %v602
  %848 = vmatpush1.bf16.msra.mxu0 %v601
  %849 = vmatprep.subr.bf16.mxu0 %v606
  %850 = vmatpush1.bf16.msra.mxu0 %v605
  %851 = vmatprep.subr.bf16.mxu0 %v610
  %852 = vmatpush1.bf16.msra.mxu0 %v609
  %853 = vmatprep.subr.bf16.mxu0 %v614
  %854 = vmatpush1.bf16.msra.mxu0 %v613
  %855 = vmatprep.subr.bf16.mxu0 %v618
  %856 = vmatpush1.bf16.msra.mxu0 %v617
  %857 = vmatprep.subr.bf16.mxu0 %v622
  %858 = vmatpush1.bf16.msra.mxu0 %v621
  %859 = vmatprep.subr.bf16.mxu0 %v626
  %860 = vmatpush1.bf16.msra.mxu0 %v625
  %861 = vmatprep.subr.bf16.mxu0 %v630
  %862 = vmatpush1.bf16.msra.mxu0 %v629
  %863 = vmatprep.subr.bf16.mxu0 %v634
  %864 = vmatpush1.bf16.msra.mxu0 %v633
  %865 = vmatprep.subr.bf16.mxu0 %v638
  %866 = vmatpush1.bf16.msra.mxu0 %v637
  %867 = vmatprep.subr.bf16.mxu0 %v642
  %868 = vmatpush1.bf16.msra.mxu0 %v641
  %869 = vmatprep.mubr.bf16.mxu0 %v190
  %870 = vmatmul.mubr.bf16.gmra.mrb[0].mxu0 %v189
  %v871 = vpop.f32.mrb[0].mxu0
  %v872 = vadd.f32 %v160, %v871
  %v873 = vpop.f32.mrb[0].mxu0
  %v874 = vadd.f32 %v164, %v873
  %v875 = vpop.f32.mrb[0].mxu0
  %v876 = vadd.f32 %v160, %v875
  %v877 = vpop.f32.mrb[0].mxu0
  %v878 = vadd.f32 %v164, %v877
  %879 = vdwg.mxu0
  %880 = vmatprep.subr.bf16.mxu0 %v646
  %881 = vmatpush1.bf16.msra.mxu0 %v645
  %882 = vmatprep.subr.bf16.mxu0 %v650
  %883 = vmatpush1.bf16.msra.mxu0 %v649
  %884 = vmatprep.subr.bf16.mxu0 %v654
  %885 = vmatpush1.bf16.msra.mxu0 %v653
  %886 = vmatprep.subr.bf16.mxu0 %v658
  %887 = vmatpush1.bf16.msra.mxu0 %v657
  %888 = vmatprep.subr.bf16.mxu0 %v662
  %889 = vmatpush1.bf16.msra.mxu0 %v661
  %890 = vmatprep.subr.bf16.mxu0 %v666
  %891 = vmatpush1.bf16.msra.mxu0 %v665
  %892 = vmatprep.subr.bf16.mxu0 %v670
  %893 = vmatpush1.bf16.msra.mxu0 %v669
  %894 = vmatprep.subr.bf16.mxu0 %v674
  %895 = vmatpush1.bf16.msra.mxu0 %v673
  %896 = vmatprep.subr.bf16.mxu0 %v678
  %897 = vmatpush1.bf16.msra.mxu0 %v677
  %898 = vmatprep.subr.bf16.mxu0 %v682
  %899 = vmatpush1.bf16.msra.mxu0 %v681
  %900 = vmatprep.subr.bf16.mxu0 %v686
  %901 = vmatpush1.bf16.msra.mxu0 %v685
  %902 = vmatprep.subr.bf16.mxu0 %v690
  %903 = vmatpush1.bf16.msra.mxu0 %v689
  %904 = vmatprep.subr.bf16.mxu0 %v694
  %905 = vmatpush1.bf16.msra.mxu0 %v693
  %906 = vmatprep.subr.bf16.mxu0 %v698
  %907 = vmatpush1.bf16.msra.mxu0 %v697
  %908 = vmatprep.subr.bf16.mxu0 %v702
  %909 = vmatpush1.bf16.msra.mxu0 %v701
  %910 = vmatprep.subr.bf16.mxu0 %v706
  %911 = vmatpush1.bf16.msra.mxu0 %v705
  %912 = vmatprep.mubr.bf16.mxu0 %v192
  %913 = vmatmul.mubr.bf16.gmra.mrb[0].mxu0 %v191
  %v914 = vpop.f32.mrb[0].mxu0
  %v915 = vadd.f32 %v872, %v914
  %v916 = vpop.f32.mrb[0].mxu0
  %v917 = vadd.f32 %v874, %v916
  %v918 = vpop.f32.mrb[0].mxu0
  %v919 = vadd.f32 %v876, %v918
  %v920 = vpop.f32.mrb[0].mxu0
  %v921 = vadd.f32 %v878, %v920
  %922 = vdwg.mxu0
  %923 = vmatprep.subr.bf16.mxu0 %v584
  %924 = vmatpush1.bf16.msra.mxu0 %v583
  %925 = vmatprep.subr.bf16.mxu0 %v588
  %926 = vmatpush1.bf16.msra.mxu0 %v587
  %927 = vmatprep.subr.bf16.mxu0 %v592
  %928 = vmatpush1.bf16.msra.mxu0 %v591
  %929 = vmatprep.subr.bf16.mxu0 %v596
  %930 = vmatpush1.bf16.msra.mxu0 %v595
  %931 = vmatprep.subr.bf16.mxu0 %v600
  %932 = vmatpush1.bf16.msra.mxu0 %v599
  %933 = vmatprep.subr.bf16.mxu0 %v604
  %934 = vmatpush1.bf16.msra.mxu0 %v603
  %935 = vmatprep.subr.bf16.mxu0 %v608
  %936 = vmatpush1.bf16.msra.mxu0 %v607
  %937 = vmatprep.subr.bf16.mxu0 %v612
  %938 = vmatpush1.bf16.msra.mxu0 %v611
  %939 = vmatprep.subr.bf16.mxu0 %v616
  %940 = vmatpush1.bf16.msra.mxu0 %v615
  %941 = vmatprep.subr.bf16.mxu0 %v620
  %942 = vmatpush1.bf16.msra.mxu0 %v619
  %943 = vmatprep.subr.bf16.mxu0 %v624
  %944 = vmatpush1.bf16.msra.mxu0 %v623
  %945 = vmatprep.subr.bf16.mxu0 %v628
  %946 = vmatpush1.bf16.msra.mxu0 %v627
  %947 = vmatprep.subr.bf16.mxu0 %v632
  %948 = vmatpush1.bf16.msra.mxu0 %v631
  %949 = vmatprep.subr.bf16.mxu0 %v636
  %950 = vmatpush1.bf16.msra.mxu0 %v635
  %951 = vmatprep.subr.bf16.mxu0 %v640
  %952 = vmatpush1.bf16.msra.mxu0 %v639
  %953 = vmatprep.subr.bf16.mxu0 %v644
  %954 = vmatpush1.bf16.msra.mxu0 %v643
  %955 = vmatprep.mubr.bf16.mxu0 %v190
  %956 = vmatmul.mubr.bf16.gmra.mrb[0].mxu0 %v189
  %v957 = vpop.f32.mrb[0].mxu0
  %v958 = vadd.f32 %v168, %v957
  %v959 = vpop.f32.mrb[0].mxu0
  %v960 = vadd.f32 %v172, %v959
  %v961 = vpop.f32.mrb[0].mxu0
  %v962 = vadd.f32 %v168, %v961
  %v963 = vpop.f32.mrb[0].mxu0
  %v964 = vadd.f32 %v172, %v963
  %965 = vdwg.mxu0
  %966 = vmatprep.subr.bf16.mxu0 %v648
  %967 = vmatpush1.bf16.msra.mxu0 %v647
  %968 = vmatprep.subr.bf16.mxu0 %v652
  %969 = vmatpush1.bf16.msra.mxu0 %v651
  %970 = vmatprep.subr.bf16.mxu0 %v656
  %971 = vmatpush1.bf16.msra.mxu0 %v655
  %972 = vmatprep.subr.bf16.mxu0 %v660
  %973 = vmatpush1.bf16.msra.mxu0 %v659
  %974 = vmatprep.subr.bf16.mxu0 %v664
  %975 = vmatpush1.bf16.msra.mxu0 %v663
  %976 = vmatprep.subr.bf16.mxu0 %v668
  %977 = vmatpush1.bf16.msra.mxu0 %v667
  %978 = vmatprep.subr.bf16.mxu0 %v672
  %979 = vmatpush1.bf16.msra.mxu0 %v671
  %980 = vmatprep.subr.bf16.mxu0 %v676
  %981 = vmatpush1.bf16.msra.mxu0 %v675
  %982 = vmatprep.subr.bf16.mxu0 %v680
  %983 = vmatpush1.bf16.msra.mxu0 %v679
  %984 = vmatprep.subr.bf16.mxu0 %v684
  %985 = vmatpush1.bf16.msra.mxu0 %v683
  %986 = vmatprep.subr.bf16.mxu0 %v688
  %987 = vmatpush1.bf16.msra.mxu0 %v687
  %988 = vmatprep.subr.bf16.mxu0 %v692
  %989 = vmatpush1.bf16.msra.mxu0 %v691
  %990 = vmatprep.subr.bf16.mxu0 %v696
  %991 = vmatpush1.bf16.msra.mxu0 %v695
  %992 = vmatprep.subr.bf16.mxu0 %v700
  %993 = vmatpush1.bf16.msra.mxu0 %v699
  %994 = vmatprep.subr.bf16.mxu0 %v704
  %995 = vmatpush1.bf16.msra.mxu0 %v703
  %996 = vmatprep.subr.bf16.mxu0 %v708
  %997 = vmatpush1.bf16.msra.mxu0 %v707
  %998 = vmatprep.mubr.bf16.mxu0 %v192
  %999 = vmatmul.mubr.bf16.gmra.mrb[0].mxu0 %v191
  %v1000 = vpop.f32.mrb[0].mxu0
  %v1001 = vadd.f32 %v958, %v1000
  %v1002 = vpop.f32.mrb[0].mxu0
  %v1003 = vadd.f32 %v960, %v1002
  %v1004 = vpop.f32.mrb[0].mxu0
  %v1005 = vadd.f32 %v962, %v1004
  %v1006 = vpop.f32.mrb[0].mxu0
  %v1007 = vadd.f32 %v964, %v1006
  %1008 = vdwg.mxu0
  %v1009 = vmax.f32 %v915, 0.0
  %v1010 = vmax.f32 %v917, 0.0
  %v1011 = vmax.f32 %v1001, 0.0
  %v1012 = vmax.f32 %v1003, 0.0
  %v1013 = vmax.f32 %v919, 0.0
  %v1014 = vmax.f32 %v921, 0.0
  %v1015 = vmax.f32 %v1005, 0.0
  %v1016 = vmax.f32 %v1007, 0.0
  %v1017 = vpack.c.bf16 %v1013, %v1009
  %v1018 = vpack.c.bf16 %v1014, %v1010
  %v1019 = vpack.c.bf16 %v1015, %v1011
  %v1020 = vpack.c.bf16 %v1016, %v1012
  %v1021 = vld [vmem:[%s3] sm:$0xff]
  %v1022 = vld [vmem:[%s3 + $0x8] sm:$0xff]
  %v1023 = vld [vmem:[%s3 + $0x10] sm:$0xff]
  %v1024 = vld [vmem:[%s3 + $0x18] sm:$0xff]
  %v1025 = vld [vmem:[%s3 + $0x20] sm:$0xff]
  %v1026 = vld [vmem:[%s3 + $0x28] sm:$0xff]
  %v1027 = vld [vmem:[%s3 + $0x30] sm:$0xff]
  %v1028 = vld [vmem:[%s3 + $0x38] sm:$0xff]
  %v1029 = vld [vmem:[%s3 + $0x40] sm:$0xff]
  %v1030 = vld [vmem:[%s3 + $0x48] sm:$0xff]
  %v1031 = vld [vmem:[%s3 + $0x50] sm:$0xff]
  %v1032 = vld [vmem:[%s3 + $0x58] sm:$0xff]
  %v1033 = vld [vmem:[%s3 + $0x60] sm:$0xff]
  %v1034 = vld [vmem:[%s3 + $0x68] sm:$0xff]
  %v1035 = vld [vmem:[%s3 + $0x70] sm:$0xff]
  %v1036 = vld [vmem:[%s3 + $0x78] sm:$0xff]
  %v1037 = vld [vmem:[%s3 + $0x80] sm:$0xff]
  %v1038 = vld [vmem:[%s3 + $0x88] sm:$0xff]
  %v1039 = vld [vmem:[%s3 + $0x90] sm:$0xff]
  %v1040 = vld [vmem:[%s3 + $0x98] sm:$0xff]
  %v1041 = vld [vmem:[%s3 + $0xa0] sm:$0xff]
  %v1042 = vld [vmem:[%s3 + $0xa8] sm:$0xff]
  %v1043 = vld [vmem:[%s3 + $0xb0] sm:$0xff]
  %v1044 = vld [vmem:[%s3 + $0xb8] sm:$0xff]
  %v1045 = vld [vmem:[%s3 + $0xc0] sm:$0xff]
  %v1046 = vld [vmem:[%s3 + $0xc8] sm:$0xff]
  %v1047 = vld [vmem:[%s3 + $0xd0] sm:$0xff]
  %v1048 = vld [vmem:[%s3 + $0xd8] sm:$0xff]
  %v1049 = vld [vmem:[%s3 + $0xe0] sm:$0xff]
  %v1050 = vld [vmem:[%s3 + $0xe8] sm:$0xff]
  %v1051 = vld [vmem:[%s3 + $0xf0] sm:$0xff]
  %v1052 = vld [vmem:[%s3 + $0xf8] sm:$0xff]
  %v1053 = vld [vmem:[%s3 + $0x100] sm:$0xff]
  %v1054 = vld [vmem:[%s3 + $0x108] sm:$0xff]
  %v1055 = vld [vmem:[%s3 + $0x110] sm:$0xff]
  %v1056 = vld [vmem:[%s3 + $0x118] sm:$0xff]
  %v1057 = vld [vmem:[%s3 + $0x120] sm:$0xff]
  %v1058 = vld [vmem:[%s3 + $0x128] sm:$0xff]
  %v1059 = vld [vmem:[%s3 + $0x130] sm:$0xff]
  %v1060 = vld [vmem:[%s3 + $0x138] sm:$0xff]
  %v1061 = vld [vmem:[%s3 + $0x140] sm:$0xff]
  %v1062 = vld [vmem:[%s3 + $0x148] sm:$0xff]
  %v1063 = vld [vmem:[%s3 + $0x150] sm:$0xff]
  %v1064 = vld [vmem:[%s3 + $0x158] sm:$0xff]
  %v1065 = vld [vmem:[%s3 + $0x160] sm:$0xff]
  %v1066 = vld [vmem:[%s3 + $0x168] sm:$0xff]
  %v1067 = vld [vmem:[%s3 + $0x170] sm:$0xff]
  %v1068 = vld [vmem:[%s3 + $0x178] sm:$0xff]
  %v1069 = vld [vmem:[%s3 + $0x180] sm:$0xff]
  %v1070 = vld [vmem:[%s3 + $0x188] sm:$0xff]
  %v1071 = vld [vmem:[%s3 + $0x190] sm:$0xff]
  %v1072 = vld [vmem:[%s3 + $0x198] sm:$0xff]
  %v1073 = vld [vmem:[%s3 + $0x1a0] sm:$0xff]
  %v1074 = vld [vmem:[%s3 + $0x1a8] sm:$0xff]
  %v1075 = vld [vmem:[%s3 + $0x1b0] sm:$0xff]
  %v1076 = vld [vmem:[%s3 + $0x1b8] sm:$0xff]
  %v1077 = vld [vmem:[%s3 + $0x1c0] sm:$0xff]
  %v1078 = vld [vmem:[%s3 + $0x1c8] sm:$0xff]
  %v1079 = vld [vmem:[%s3 + $0x1d0] sm:$0xff]
  %v1080 = vld [vmem:[%s3 + $0x1d8] sm:$0xff]
  %v1081 = vld [vmem:[%s3 + $0x1e0] sm:$0xff]
  %v1082 = vld [vmem:[%s3 + $0x1e8] sm:$0xff]
  %v1083 = vld [vmem:[%s3 + $0x1f0] sm:$0xff]
  %v1084 = vld [vmem:[%s3 + $0x1f8] sm:$0xff]
  %v1085 = vld [vmem:[%s3 + $0x200] sm:$0xff]
  %v1086 = vld [vmem:[%s3 + $0x208] sm:$0xff]
  %v1087 = vld [vmem:[%s3 + $0x210] sm:$0xff]
  %v1088 = vld [vmem:[%s3 + $0x218] sm:$0xff]
  %v1089 = vld [vmem:[%s3 + $0x220] sm:$0xff]
  %v1090 = vld [vmem:[%s3 + $0x228] sm:$0xff]
  %v1091 = vld [vmem:[%s3 + $0x230] sm:$0xff]
  %v1092 = vld [vmem:[%s3 + $0x238] sm:$0xff]
  %v1093 = vld [vmem:[%s3 + $0x240] sm:$0xff]
  %v1094 = vld [vmem:[%s3 + $0x248] sm:$0xff]
  %v1095 = vld [vmem:[%s3 + $0x250] sm:$0xff]
  %v1096 = vld [vmem:[%s3 + $0x258] sm:$0xff]
  %v1097 = vld [vmem:[%s3 + $0x260] sm:$0xff]
  %v1098 = vld [vmem:[%s3 + $0x268] sm:$0xff]
  %v1099 = vld [vmem:[%s3 + $0x270] sm:$0xff]
  %v1100 = vld [vmem:[%s3 + $0x278] sm:$0xff]
  %v1101 = vld [vmem:[%s3 + $0x280] sm:$0xff]
  %v1102 = vld [vmem:[%s3 + $0x288] sm:$0xff]
  %v1103 = vld [vmem:[%s3 + $0x290] sm:$0xff]
  %v1104 = vld [vmem:[%s3 + $0x298] sm:$0xff]
  %v1105 = vld [vmem:[%s3 + $0x2a0] sm:$0xff]
  %v1106 = vld [vmem:[%s3 + $0x2a8] sm:$0xff]
  %v1107 = vld [vmem:[%s3 + $0x2b0] sm:$0xff]
  %v1108 = vld [vmem:[%s3 + $0x2b8] sm:$0xff]
  %v1109 = vld [vmem:[%s3 + $0x2c0] sm:$0xff]
  %v1110 = vld [vmem:[%s3 + $0x2c8] sm:$0xff]
  %v1111 = vld [vmem:[%s3 + $0x2d0] sm:$0xff]
  %v1112 = vld [vmem:[%s3 + $0x2d8] sm:$0xff]
  %v1113 = vld [vmem:[%s3 + $0x2e0] sm:$0xff]
  %v1114 = vld [vmem:[%s3 + $0x2e8] sm:$0xff]
  %v1115 = vld [vmem:[%s3 + $0x2f0] sm:$0xff]
  %v1116 = vld [vmem:[%s3 + $0x2f8] sm:$0xff]
  %v1117 = vld [vmem:[%s3 + $0x300] sm:$0xff]
  %v1118 = vld [vmem:[%s3 + $0x308] sm:$0xff]
  %v1119 = vld [vmem:[%s3 + $0x310] sm:$0xff]
  %v1120 = vld [vmem:[%s3 + $0x318] sm:$0xff]
  %v1121 = vld [vmem:[%s3 + $0x320] sm:$0xff]
  %v1122 = vld [vmem:[%s3 + $0x328] sm:$0xff]
  %v1123 = vld [vmem:[%s3 + $0x330] sm:$0xff]
  %v1124 = vld [vmem:[%s3 + $0x338] sm:$0xff]
  %v1125 = vld [vmem:[%s3 + $0x340] sm:$0xff]
  %v1126 = vld [vmem:[%s3 + $0x348] sm:$0xff]
  %v1127 = vld [vmem:[%s3 + $0x350] sm:$0xff]
  %v1128 = vld [vmem:[%s3 + $0x358] sm:$0xff]
  %v1129 = vld [vmem:[%s3 + $0x360] sm:$0xff]
  %v1130 = vld [vmem:[%s3 + $0x368] sm:$0xff]
  %v1131 = vld [vmem:[%s3 + $0x370] sm:$0xff]
  %v1132 = vld [vmem:[%s3 + $0x378] sm:$0xff]
  %v1133 = vld [vmem:[%s3 + $0x380] sm:$0xff]
  %v1134 = vld [vmem:[%s3 + $0x388] sm:$0xff]
  %v1135 = vld [vmem:[%s3 + $0x390] sm:$0xff]
  %v1136 = vld [vmem:[%s3 + $0x398] sm:$0xff]
  %v1137 = vld [vmem:[%s3 + $0x3a0] sm:$0xff]
  %v1138 = vld [vmem:[%s3 + $0x3a8] sm:$0xff]
  %v1139 = vld [vmem:[%s3 + $0x3b0] sm:$0xff]
  %v1140 = vld [vmem:[%s3 + $0x3b8] sm:$0xff]
  %v1141 = vld [vmem:[%s3 + $0x3c0] sm:$0xff]
  %v1142 = vld [vmem:[%s3 + $0x3c8] sm:$0xff]
  %v1143 = vld [vmem:[%s3 + $0x3d0] sm:$0xff]
  %v1144 = vld [vmem:[%s3 + $0x3d8] sm:$0xff]
  %v1145 = vld [vmem:[%s3 + $0x3e0] sm:$0xff]
  %v1146 = vld [vmem:[%s3 + $0x3e8] sm:$0xff]
  %v1147 = vld [vmem:[%s3 + $0x3f0] sm:$0xff]
  %v1148 = vld [vmem:[%s3 + $0x3f8] sm:$0xff]
  %v1149 = vld [vmem:[%s4] sm:$0xf]
  %v1151 = vlaneseq
  %v1152 = vshrl.u32 %v1151, 7
  %v1153 = vsub.s32 0, %v1152
  %v1154 = vrot.slane %v1149, %v1153
  %v1155 = vlaneseq
  %v1156 = vshrl.u32 %v1155, 7
  %v1157 = vsub.s32 1, %v1156
  %v1158 = vrot.slane %v1149, %v1157
  %v1159 = vlaneseq
  %v1160 = vshrl.u32 %v1159, 7
  %v1161 = vsub.s32 2, %v1160
  %v1162 = vrot.slane %v1149, %v1161
  %v1163 = vlaneseq
  %v1164 = vshrl.u32 %v1163, 7
  %v1165 = vsub.s32 3, %v1164
  %v1166 = vrot.slane %v1149, %v1165
  %v1299 = vunpack.c.l.b16 %v1021
  %v1300 = vunpack.c.h.b16 %v1021
  %v1301 = vunpack.c.l.b16 %v1022
  %v1302 = vunpack.c.h.b16 %v1022
  %v1303 = vunpack.c.l.b16 %v1023
  %v1304 = vunpack.c.h.b16 %v1023
  %v1305 = vunpack.c.l.b16 %v1024
  %v1306 = vunpack.c.h.b16 %v1024
  %v1307 = vunpack.c.l.b16 %v1025
  %v1308 = vunpack.c.h.b16 %v1025
  %v1309 = vunpack.c.l.b16 %v1026
  %v1310 = vunpack.c.h.b16 %v1026
  %v1311 = vunpack.c.l.b16 %v1027
  %v1312 = vunpack.c.h.b16 %v1027
  %v1313 = vunpack.c.l.b16 %v1028
  %v1314 = vunpack.c.h.b16 %v1028
  %v1315 = vunpack.c.l.b16 %v1029
  %v1316 = vunpack.c.h.b16 %v1029
  %v1317 = vunpack.c.l.b16 %v1030
  %v1318 = vunpack.c.h.b16 %v1030
  %v1319 = vunpack.c.l.b16 %v1031
  %v1320 = vunpack.c.h.b16 %v1031
  %v1321 = vunpack.c.l.b16 %v1032
  %v1322 = vunpack.c.h.b16 %v1032
  %v1323 = vunpack.c.l.b16 %v1033
  %v1324 = vunpack.c.h.b16 %v1033
  %v1325 = vunpack.c.l.b16 %v1034
  %v1326 = vunpack.c.h.b16 %v1034
  %v1327 = vunpack.c.l.b16 %v1035
  %v1328 = vunpack.c.h.b16 %v1035
  %v1329 = vunpack.c.l.b16 %v1036
  %v1330 = vunpack.c.h.b16 %v1036
  %v1331 = vunpack.c.l.b16 %v1037
  %v1332 = vunpack.c.h.b16 %v1037
  %v1333 = vunpack.c.l.b16 %v1038
  %v1334 = vunpack.c.h.b16 %v1038
  %v1335 = vunpack.c.l.b16 %v1039
  %v1336 = vunpack.c.h.b16 %v1039
  %v1337 = vunpack.c.l.b16 %v1040
  %v1338 = vunpack.c.h.b16 %v1040
  %v1339 = vunpack.c.l.b16 %v1041
  %v1340 = vunpack.c.h.b16 %v1041
  %v1341 = vunpack.c.l.b16 %v1042
  %v1342 = vunpack.c.h.b16 %v1042
  %v1343 = vunpack.c.l.b16 %v1043
  %v1344 = vunpack.c.h.b16 %v1043
  %v1345 = vunpack.c.l.b16 %v1044
  %v1346 = vunpack.c.h.b16 %v1044
  %v1347 = vunpack.c.l.b16 %v1045
  %v1348 = vunpack.c.h.b16 %v1045
  %v1349 = vunpack.c.l.b16 %v1046
  %v1350 = vunpack.c.h.b16 %v1046
  %v1351 = vunpack.c.l.b16 %v1047
  %v1352 = vunpack.c.h.b16 %v1047
  %v1353 = vunpack.c.l.b16 %v1048
  %v1354 = vunpack.c.h.b16 %v1048
  %v1355 = vunpack.c.l.b16 %v1049
  %v1356 = vunpack.c.h.b16 %v1049
  %v1357 = vunpack.c.l.b16 %v1050
  %v1358 = vunpack.c.h.b16 %v1050
  %v1359 = vunpack.c.l.b16 %v1051
  %v1360 = vunpack.c.h.b16 %v1051
  %v1361 = vunpack.c.l.b16 %v1052
  %v1362 = vunpack.c.h.b16 %v1052
  %v1363 = vunpack.c.l.b16 %v1053
  %v1364 = vunpack.c.h.b16 %v1053
  %v1365 = vunpack.c.l.b16 %v1054
  %v1366 = vunpack.c.h.b16 %v1054
  %v1367 = vunpack.c.l.b16 %v1055
  %v1368 = vunpack.c.h.b16 %v1055
  %v1369 = vunpack.c.l.b16 %v1056
  %v1370 = vunpack.c.h.b16 %v1056
  %v1371 = vunpack.c.l.b16 %v1057
  %v1372 = vunpack.c.h.b16 %v1057
  %v1373 = vunpack.c.l.b16 %v1058
  %v1374 = vunpack.c.h.b16 %v1058
  %v1375 = vunpack.c.l.b16 %v1059
  %v1376 = vunpack.c.h.b16 %v1059
  %v1377 = vunpack.c.l.b16 %v1060
  %v1378 = vunpack.c.h.b16 %v1060
  %v1379 = vunpack.c.l.b16 %v1061
  %v1380 = vunpack.c.h.b16 %v1061
  %v1381 = vunpack.c.l.b16 %v1062
  %v1382 = vunpack.c.h.b16 %v1062
  %v1383 = vunpack.c.l.b16 %v1063
  %v1384 = vunpack.c.h.b16 %v1063
  %v1385 = vunpack.c.l.b16 %v1064
  %v1386 = vunpack.c.h.b16 %v1064
  %v1387 = vunpack.c.l.b16 %v1065
  %v1388 = vunpack.c.h.b16 %v1065
  %v1389 = vunpack.c.l.b16 %v1066
  %v1390 = vunpack.c.h.b16 %v1066
  %v1391 = vunpack.c.l.b16 %v1067
  %v1392 = vunpack.c.h.b16 %v1067
  %v1393 = vunpack.c.l.b16 %v1068
  %v1394 = vunpack.c.h.b16 %v1068
  %v1395 = vunpack.c.l.b16 %v1069
  %v1396 = vunpack.c.h.b16 %v1069
  %v1397 = vunpack.c.l.b16 %v1070
  %v1398 = vunpack.c.h.b16 %v1070
  %v1399 = vunpack.c.l.b16 %v1071
  %v1400 = vunpack.c.h.b16 %v1071
  %v1401 = vunpack.c.l.b16 %v1072
  %v1402 = vunpack.c.h.b16 %v1072
  %v1403 = vunpack.c.l.b16 %v1073
  %v1404 = vunpack.c.h.b16 %v1073
  %v1405 = vunpack.c.l.b16 %v1074
  %v1406 = vunpack.c.h.b16 %v1074
  %v1407 = vunpack.c.l.b16 %v1075
  %v1408 = vunpack.c.h.b16 %v1075
  %v1409 = vunpack.c.l.b16 %v1076
  %v1410 = vunpack.c.h.b16 %v1076
  %v1411 = vunpack.c.l.b16 %v1077
  %v1412 = vunpack.c.h.b16 %v1077
  %v1413 = vunpack.c.l.b16 %v1078
  %v1414 = vunpack.c.h.b16 %v1078
  %v1415 = vunpack.c.l.b16 %v1079
  %v1416 = vunpack.c.h.b16 %v1079
  %v1417 = vunpack.c.l.b16 %v1080
  %v1418 = vunpack.c.h.b16 %v1080
  %v1419 = vunpack.c.l.b16 %v1081
  %v1420 = vunpack.c.h.b16 %v1081
  %v1421 = vunpack.c.l.b16 %v1082
  %v1422 = vunpack.c.h.b16 %v1082
  %v1423 = vunpack.c.l.b16 %v1083
  %v1424 = vunpack.c.h.b16 %v1083
  %v1425 = vunpack.c.l.b16 %v1084
  %v1426 = vunpack.c.h.b16 %v1084
  %v1427 = vunpack.c.l.b16 %v1085
  %v1428 = vunpack.c.h.b16 %v1085
  %v1429 = vunpack.c.l.b16 %v1086
  %v1430 = vunpack.c.h.b16 %v1086
  %v1431 = vunpack.c.l.b16 %v1087
  %v1432 = vunpack.c.h.b16 %v1087
  %v1433 = vunpack.c.l.b16 %v1088
  %v1434 = vunpack.c.h.b16 %v1088
  %v1435 = vunpack.c.l.b16 %v1089
  %v1436 = vunpack.c.h.b16 %v1089
  %v1437 = vunpack.c.l.b16 %v1090
  %v1438 = vunpack.c.h.b16 %v1090
  %v1439 = vunpack.c.l.b16 %v1091
  %v1440 = vunpack.c.h.b16 %v1091
  %v1441 = vunpack.c.l.b16 %v1092
  %v1442 = vunpack.c.h.b16 %v1092
  %v1443 = vunpack.c.l.b16 %v1093
  %v1444 = vunpack.c.h.b16 %v1093
  %v1445 = vunpack.c.l.b16 %v1094
  %v1446 = vunpack.c.h.b16 %v1094
  %v1447 = vunpack.c.l.b16 %v1095
  %v1448 = vunpack.c.h.b16 %v1095
  %v1449 = vunpack.c.l.b16 %v1096
  %v1450 = vunpack.c.h.b16 %v1096
  %v1451 = vunpack.c.l.b16 %v1097
  %v1452 = vunpack.c.h.b16 %v1097
  %v1453 = vunpack.c.l.b16 %v1098
  %v1454 = vunpack.c.h.b16 %v1098
  %v1455 = vunpack.c.l.b16 %v1099
  %v1456 = vunpack.c.h.b16 %v1099
  %v1457 = vunpack.c.l.b16 %v1100
  %v1458 = vunpack.c.h.b16 %v1100
  %v1459 = vunpack.c.l.b16 %v1101
  %v1460 = vunpack.c.h.b16 %v1101
  %v1461 = vunpack.c.l.b16 %v1102
  %v1462 = vunpack.c.h.b16 %v1102
  %v1463 = vunpack.c.l.b16 %v1103
  %v1464 = vunpack.c.h.b16 %v1103
  %v1465 = vunpack.c.l.b16 %v1104
  %v1466 = vunpack.c.h.b16 %v1104
  %v1467 = vunpack.c.l.b16 %v1105
  %v1468 = vunpack.c.h.b16 %v1105
  %v1469 = vunpack.c.l.b16 %v1106
  %v1470 = vunpack.c.h.b16 %v1106
  %v1471 = vunpack.c.l.b16 %v1107
  %v1472 = vunpack.c.h.b16 %v1107
  %v1473 = vunpack.c.l.b16 %v1108
  %v1474 = vunpack.c.h.b16 %v1108
  %v1475 = vunpack.c.l.b16 %v1109
  %v1476 = vunpack.c.h.b16 %v1109
  %v1477 = vunpack.c.l.b16 %v1110
  %v1478 = vunpack.c.h.b16 %v1110
  %v1479 = vunpack.c.l.b16 %v1111
  %v1480 = vunpack.c.h.b16 %v1111
  %v1481 = vunpack.c.l.b16 %v1112
  %v1482 = vunpack.c.h.b16 %v1112
  %v1483 = vunpack.c.l.b16 %v1113
  %v1484 = vunpack.c.h.b16 %v1113
  %v1485 = vunpack.c.l.b16 %v1114
  %v1486 = vunpack.c.h.b16 %v1114
  %v1487 = vunpack.c.l.b16 %v1115
  %v1488 = vunpack.c.h.b16 %v1115
  %v1489 = vunpack.c.l.b16 %v1116
  %v1490 = vunpack.c.h.b16 %v1116
  %v1491 = vunpack.c.l.b16 %v1117
  %v1492 = vunpack.c.h.b16 %v1117
  %v1493 = vunpack.c.l.b16 %v1118
  %v1494 = vunpack.c.h.b16 %v1118
  %v1495 = vunpack.c.l.b16 %v1119
  %v1496 = vunpack.c.h.b16 %v1119
  %v1497 = vunpack.c.l.b16 %v1120
  %v1498 = vunpack.c.h.b16 %v1120
  %v1499 = vunpack.c.l.b16 %v1121
  %v1500 = vunpack.c.h.b16 %v1121
  %v1501 = vunpack.c.l.b16 %v1122
  %v1502 = vunpack.c.h.b16 %v1122
  %v1503 = vunpack.c.l.b16 %v1123
  %v1504 = vunpack.c.h.b16 %v1123
  %v1505 = vunpack.c.l.b16 %v1124
  %v1506 = vunpack.c.h.b16 %v1124
  %v1507 = vunpack.c.l.b16 %v1125
  %v1508 = vunpack.c.h.b16 %v1125
  %v1509 = vunpack.c.l.b16 %v1126
  %v1510 = vunpack.c.h.b16 %v1126
  %v1511 = vunpack.c.l.b16 %v1127
  %v1512 = vunpack.c.h.b16 %v1127
  %v1513 = vunpack.c.l.b16 %v1128
  %v1514 = vunpack.c.h.b16 %v1128
  %v1515 = vunpack.c.l.b16 %v1129
  %v1516 = vunpack.c.h.b16 %v1129
  %v1517 = vunpack.c.l.b16 %v1130
  %v1518 = vunpack.c.h.b16 %v1130
  %v1519 = vunpack.c.l.b16 %v1131
  %v1520 = vunpack.c.h.b16 %v1131
  %v1521 = vunpack.c.l.b16 %v1132
  %v1522 = vunpack.c.h.b16 %v1132
  %v1523 = vunpack.c.l.b16 %v1133
  %v1524 = vunpack.c.h.b16 %v1133
  %v1525 = vunpack.c.l.b16 %v1134
  %v1526 = vunpack.c.h.b16 %v1134
  %v1527 = vunpack.c.l.b16 %v1135
  %v1528 = vunpack.c.h.b16 %v1135
  %v1529 = vunpack.c.l.b16 %v1136
  %v1530 = vunpack.c.h.b16 %v1136
  %v1531 = vunpack.c.l.b16 %v1137
  %v1532 = vunpack.c.h.b16 %v1137
  %v1533 = vunpack.c.l.b16 %v1138
  %v1534 = vunpack.c.h.b16 %v1138
  %v1535 = vunpack.c.l.b16 %v1139
  %v1536 = vunpack.c.h.b16 %v1139
  %v1537 = vunpack.c.l.b16 %v1140
  %v1538 = vunpack.c.h.b16 %v1140
  %v1539 = vunpack.c.l.b16 %v1141
  %v1540 = vunpack.c.h.b16 %v1141
  %v1541 = vunpack.c.l.b16 %v1142
  %v1542 = vunpack.c.h.b16 %v1142
  %v1543 = vunpack.c.l.b16 %v1143
  %v1544 = vunpack.c.h.b16 %v1143
  %v1545 = vunpack.c.l.b16 %v1144
  %v1546 = vunpack.c.h.b16 %v1144
  %v1547 = vunpack.c.l.b16 %v1145
  %v1548 = vunpack.c.h.b16 %v1145
  %v1549 = vunpack.c.l.b16 %v1146
  %v1550 = vunpack.c.h.b16 %v1146
  %v1551 = vunpack.c.l.b16 %v1147
  %v1552 = vunpack.c.h.b16 %v1147
  %v1553 = vunpack.c.l.b16 %v1148
  %v1554 = vunpack.c.h.b16 %v1148
  %v1555 = vpack.c.b16 %v1303, %v1299
  %v1556 = vpack.c.b16 %v1304, %v1300
  %v1557 = vpack.c.b16 %v1305, %v1301
  %v1558 = vpack.c.b16 %v1306, %v1302
  %v1559 = vpack.c.b16 %v1311, %v1307
  %v1560 = vpack.c.b16 %v1312, %v1308
  %v1561 = vpack.c.b16 %v1313, %v1309
  %v1562 = vpack.c.b16 %v1314, %v1310
  %v1563 = vpack.c.b16 %v1319, %v1315
  %v1564 = vpack.c.b16 %v1320, %v1316
  %v1565 = vpack.c.b16 %v1321, %v1317
  %v1566 = vpack.c.b16 %v1322, %v1318
  %v1567 = vpack.c.b16 %v1327, %v1323
  %v1568 = vpack.c.b16 %v1328, %v1324
  %v1569 = vpack.c.b16 %v1329, %v1325
  %v1570 = vpack.c.b16 %v1330, %v1326
  %v1571 = vpack.c.b16 %v1335, %v1331
  %v1572 = vpack.c.b16 %v1336, %v1332
  %v1573 = vpack.c.b16 %v1337, %v1333
  %v1574 = vpack.c.b16 %v1338, %v1334
  %v1575 = vpack.c.b16 %v1343, %v1339
  %v1576 = vpack.c.b16 %v1344, %v1340
  %v1577 = vpack.c.b16 %v1345, %v1341
  %v1578 = vpack.c.b16 %v1346, %v1342
  %v1579 = vpack.c.b16 %v1351, %v1347
  %v1580 = vpack.c.b16 %v1352, %v1348
  %v1581 = vpack.c.b16 %v1353, %v1349
  %v1582 = vpack.c.b16 %v1354, %v1350
  %v1583 = vpack.c.b16 %v1359, %v1355
  %v1584 = vpack.c.b16 %v1360, %v1356
  %v1585 = vpack.c.b16 %v1361, %v1357
  %v1586 = vpack.c.b16 %v1362, %v1358
  %v1587 = vpack.c.b16 %v1367, %v1363
  %v1588 = vpack.c.b16 %v1368, %v1364
  %v1589 = vpack.c.b16 %v1369, %v1365
  %v1590 = vpack.c.b16 %v1370, %v1366
  %v1591 = vpack.c.b16 %v1375, %v1371
  %v1592 = vpack.c.b16 %v1376, %v1372
  %v1593 = vpack.c.b16 %v1377, %v1373
  %v1594 = vpack.c.b16 %v1378, %v1374
  %v1595 = vpack.c.b16 %v1383, %v1379
  %v1596 = vpack.c.b16 %v1384, %v1380
  %v1597 = vpack.c.b16 %v1385, %v1381
  %v1598 = vpack.c.b16 %v1386, %v1382
  %v1599 = vpack.c.b16 %v1391, %v1387
  %v1600 = vpack.c.b16 %v1392, %v1388
  %v1601 = vpack.c.b16 %v1393, %v1389
  %v1602 = vpack.c.b16 %v1394, %v1390
  %v1603 = vpack.c.b16 %v1399, %v1395
  %v1604 = vpack.c.b16 %v1400, %v1396
  %v1605 = vpack.c.b16 %v1401, %v1397
  %v1606 = vpack.c.b16 %v1402, %v1398
  %v1607 = vpack.c.b16 %v1407, %v1403
  %v1608 = vpack.c.b16 %v1408, %v1404
  %v1609 = vpack.c.b16 %v1409, %v1405
  %v1610 = vpack.c.b16 %v1410, %v1406
  %v1611 = vpack.c.b16 %v1415, %v1411
  %v1612 = vpack.c.b16 %v1416, %v1412
  %v1613 = vpack.c.b16 %v1417, %v1413
  %v1614 = vpack.c.b16 %v1418, %v1414
  %v1615 = vpack.c.b16 %v1423, %v1419
  %v1616 = vpack.c.b16 %v1424, %v1420
  %v1617 = vpack.c.b16 %v1425, %v1421
  %v1618 = vpack.c.b16 %v1426, %v1422
  %v1619 = vpack.c.b16 %v1431, %v1427
  %v1620 = vpack.c.b16 %v1432, %v1428
  %v1621 = vpack.c.b16 %v1433, %v1429
  %v1622 = vpack.c.b16 %v1434, %v1430
  %v1623 = vpack.c.b16 %v1439, %v1435
  %v1624 = vpack.c.b16 %v1440, %v1436
  %v1625 = vpack.c.b16 %v1441, %v1437
  %v1626 = vpack.c.b16 %v1442, %v1438
  %v1627 = vpack.c.b16 %v1447, %v1443
  %v1628 = vpack.c.b16 %v1448, %v1444
  %v1629 = vpack.c.b16 %v1449, %v1445
  %v1630 = vpack.c.b16 %v1450, %v1446
  %v1631 = vpack.c.b16 %v1455, %v1451
  %v1632 = vpack.c.b16 %v1456, %v1452
  %v1633 = vpack.c.b16 %v1457, %v1453
  %v1634 = vpack.c.b16 %v1458, %v1454
  %v1635 = vpack.c.b16 %v1463, %v1459
  %v1636 = vpack.c.b16 %v1464, %v1460
  %v1637 = vpack.c.b16 %v1465, %v1461
  %v1638 = vpack.c.b16 %v1466, %v1462
  %v1639 = vpack.c.b16 %v1471, %v1467
  %v1640 = vpack.c.b16 %v1472, %v1468
  %v1641 = vpack.c.b16 %v1473, %v1469
  %v1642 = vpack.c.b16 %v1474, %v1470
  %v1643 = vpack.c.b16 %v1479, %v1475
  %v1644 = vpack.c.b16 %v1480, %v1476
  %v1645 = vpack.c.b16 %v1481, %v1477
  %v1646 = vpack.c.b16 %v1482, %v1478
  %v1647 = vpack.c.b16 %v1487, %v1483
  %v1648 = vpack.c.b16 %v1488, %v1484
  %v1649 = vpack.c.b16 %v1489, %v1485
  %v1650 = vpack.c.b16 %v1490, %v1486
  %v1651 = vpack.c.b16 %v1495, %v1491
  %v1652 = vpack.c.b16 %v1496, %v1492
  %v1653 = vpack.c.b16 %v1497, %v1493
  %v1654 = vpack.c.b16 %v1498, %v1494
  %v1655 = vpack.c.b16 %v1503, %v1499
  %v1656 = vpack.c.b16 %v1504, %v1500
  %v1657 = vpack.c.b16 %v1505, %v1501
  %v1658 = vpack.c.b16 %v1506, %v1502
  %v1659 = vpack.c.b16 %v1511, %v1507
  %v1660 = vpack.c.b16 %v1512, %v1508
  %v1661 = vpack.c.b16 %v1513, %v1509
  %v1662 = vpack.c.b16 %v1514, %v1510
  %v1663 = vpack.c.b16 %v1519, %v1515
  %v1664 = vpack.c.b16 %v1520, %v1516
  %v1665 = vpack.c.b16 %v1521, %v1517
  %v1666 = vpack.c.b16 %v1522, %v1518
  %v1667 = vpack.c.b16 %v1527, %v1523
  %v1668 = vpack.c.b16 %v1528, %v1524
  %v1669 = vpack.c.b16 %v1529, %v1525
  %v1670 = vpack.c.b16 %v1530, %v1526
  %v1671 = vpack.c.b16 %v1535, %v1531
  %v1672 = vpack.c.b16 %v1536, %v1532
  %v1673 = vpack.c.b16 %v1537, %v1533
  %v1674 = vpack.c.b16 %v1538, %v1534
  %v1675 = vpack.c.b16 %v1543, %v1539
  %v1676 = vpack.c.b16 %v1544, %v1540
  %v1677 = vpack.c.b16 %v1545, %v1541
  %v1678 = vpack.c.b16 %v1546, %v1542
  %v1679 = vpack.c.b16 %v1551, %v1547
  %v1680 = vpack.c.b16 %v1552, %v1548
  %v1681 = vpack.c.b16 %v1553, %v1549
  %v1682 = vpack.c.b16 %v1554, %v1550
  %1811 = vmatprep.subr.bf16.mxu0 %v1556
  %1812 = vmatpush1.bf16.msra.mxu0 %v1555
  %1813 = vmatprep.subr.bf16.mxu0 %v1560
  %1814 = vmatpush1.bf16.msra.mxu0 %v1559
  %1815 = vmatprep.subr.bf16.mxu0 %v1564
  %1816 = vmatpush1.bf16.msra.mxu0 %v1563
  %1817 = vmatprep.subr.bf16.mxu0 %v1568
  %1818 = vmatpush1.bf16.msra.mxu0 %v1567
  %1819 = vmatprep.subr.bf16.mxu0 %v1572
  %1820 = vmatpush1.bf16.msra.mxu0 %v1571
  %1821 = vmatprep.subr.bf16.mxu0 %v1576
  %1822 = vmatpush1.bf16.msra.mxu0 %v1575
  %1823 = vmatprep.subr.bf16.mxu0 %v1580
  %1824 = vmatpush1.bf16.msra.mxu0 %v1579
  %1825 = vmatprep.subr.bf16.mxu0 %v1584
  %1826 = vmatpush1.bf16.msra.mxu0 %v1583
  %1827 = vmatprep.subr.bf16.mxu0 %v1588
  %1828 = vmatpush1.bf16.msra.mxu0 %v1587
  %1829 = vmatprep.subr.bf16.mxu0 %v1592
  %1830 = vmatpush1.bf16.msra.mxu0 %v1591
  %1831 = vmatprep.subr.bf16.mxu0 %v1596
  %1832 = vmatpush1.bf16.msra.mxu0 %v1595
  %1833 = vmatprep.subr.bf16.mxu0 %v1600
  %1834 = vmatpush1.bf16.msra.mxu0 %v1599
  %1835 = vmatprep.subr.bf16.mxu0 %v1604
  %1836 = vmatpush1.bf16.msra.mxu0 %v1603
  %1837 = vmatprep.subr.bf16.mxu0 %v1608
  %1838 = vmatpush1.bf16.msra.mxu0 %v1607
  %1839 = vmatprep.subr.bf16.mxu0 %v1612
  %1840 = vmatpush1.bf16.msra.mxu0 %v1611
  %1841 = vmatprep.subr.bf16.mxu0 %v1616
  %1842 = vmatpush1.bf16.msra.mxu0 %v1615
  %1843 = vmatprep.mubr.bf16.mxu0 %v1018
  %1844 = vmatmul.mubr.bf16.gmra.mrb[0].mxu0 %v1017
  %v1845 = vpop.f32.mrb[0].mxu0
  %v1846 = vadd.f32 %v1154, %v1845
  %v1847 = vpop.f32.mrb[0].mxu0
  %v1848 = vadd.f32 %v1158, %v1847
  %v1849 = vpop.f32.mrb[0].mxu0
  %v1850 = vadd.f32 %v1154, %v1849
  %v1851 = vpop.f32.mrb[0].mxu0
  %v1852 = vadd.f32 %v1158, %v1851
  %1853 = vdwg.mxu0
  %1854 = vmatprep.subr.bf16.mxu0 %v1620
  %1855 = vmatpush1.bf16.msra.mxu0 %v1619
  %1856 = vmatprep.subr.bf16.mxu0 %v1624
  %1857 = vmatpush1.bf16.msra.mxu0 %v1623
  %1858 = vmatprep.subr.bf16.mxu0 %v1628
  %1859 = vmatpush1.bf16.msra.mxu0 %v1627
  %1860 = vmatprep.subr.bf16.mxu0 %v1632
  %1861 = vmatpush1.bf16.msra.mxu0 %v1631
  %1862 = vmatprep.subr.bf16.mxu0 %v1636
  %1863 = vmatpush1.bf16.msra.mxu0 %v1635
  %1864 = vmatprep.subr.bf16.mxu0 %v1640
  %1865 = vmatpush1.bf16.msra.mxu0 %v1639
  %1866 = vmatprep.subr.bf16.mxu0 %v1644
  %1867 = vmatpush1.bf16.msra.mxu0 %v1643
  %1868 = vmatprep.subr.bf16.mxu0 %v1648
  %1869 = vmatpush1.bf16.msra.mxu0 %v1647
  %1870 = vmatprep.subr.bf16.mxu0 %v1652
  %1871 = vmatpush1.bf16.msra.mxu0 %v1651
  %1872 = vmatprep.subr.bf16.mxu0 %v1656
  %1873 = vmatpush1.bf16.msra.mxu0 %v1655
  %1874 = vmatprep.subr.bf16.mxu0 %v1660
  %1875 = vmatpush1.bf16.msra.mxu0 %v1659
  %1876 = vmatprep.subr.bf16.mxu0 %v1664
  %1877 = vmatpush1.bf16.msra.mxu0 %v1663
  %1878 = vmatprep.subr.bf16.mxu0 %v1668
  %1879 = vmatpush1.bf16.msra.mxu0 %v1667
  %1880 = vmatprep.subr.bf16.mxu0 %v1672
  %1881 = vmatpush1.bf16.msra.mxu0 %v1671
  %1882 = vmatprep.subr.bf16.mxu0 %v1676
  %1883 = vmatpush1.bf16.msra.mxu0 %v1675
  %1884 = vmatprep.subr.bf16.mxu0 %v1680
  %1885 = vmatpush1.bf16.msra.mxu0 %v1679
  %1886 = vmatprep.mubr.bf16.mxu0 %v1020
  %1887 = vmatmul.mubr.bf16.gmra.mrb[0].mxu0 %v1019
  %v1888 = vpop.f32.mrb[0].mxu0
  %v1889 = vadd.f32 %v1846, %v1888
  %v1890 = vpop.f32.mrb[0].mxu0
  %v1891 = vadd.f32 %v1848, %v1890
  %v1892 = vpop.f32.mrb[0].mxu0
  %v1893 = vadd.f32 %v1850, %v1892
  %v1894 = vpop.f32.mrb[0].mxu0
  %v1895 = vadd.f32 %v1852, %v1894
  %1896 = vdwg.mxu0
  %1897 = vmatprep.subr.bf16.mxu0 %v1558
  %1898 = vmatpush1.bf16.msra.mxu0 %v1557
  %1899 = vmatprep.subr.bf16.mxu0 %v1562
  %1900 = vmatpush1.bf16.msra.mxu0 %v1561
  %1901 = vmatprep.subr.bf16.mxu0 %v1566
  %1902 = vmatpush1.bf16.msra.mxu0 %v1565
  %1903 = vmatprep.subr.bf16.mxu0 %v1570
  %1904 = vmatpush1.bf16.msra.mxu0 %v1569
  %1905 = vmatprep.subr.bf16.mxu0 %v1574
  %1906 = vmatpush1.bf16.msra.mxu0 %v1573
  %1907 = vmatprep.subr.bf16.mxu0 %v1578
  %1908 = vmatpush1.bf16.msra.mxu0 %v1577
  %1909 = vmatprep.subr.bf16.mxu0 %v1582
  %1910 = vmatpush1.bf16.msra.mxu0 %v1581
  %1911 = vmatprep.subr.bf16.mxu0 %v1586
  %1912 = vmatpush1.bf16.msra.mxu0 %v1585
  %1913 = vmatprep.subr.bf16.mxu0 %v1590
  %1914 = vmatpush1.bf16.msra.mxu0 %v1589
  %1915 = vmatprep.subr.bf16.mxu0 %v1594
  %1916 = vmatpush1.bf16.msra.mxu0 %v1593
  %1917 = vmatprep.subr.bf16.mxu0 %v1598
  %1918 = vmatpush1.bf16.msra.mxu0 %v1597
  %1919 = vmatprep.subr.bf16.mxu0 %v1602
  %1920 = vmatpush1.bf16.msra.mxu0 %v1601
  %1921 = vmatprep.subr.bf16.mxu0 %v1606
  %1922 = vmatpush1.bf16.msra.mxu0 %v1605
  %1923 = vmatprep.subr.bf16.mxu0 %v1610
  %1924 = vmatpush1.bf16.msra.mxu0 %v1609
  %1925 = vmatprep.subr.bf16.mxu0 %v1614
  %1926 = vmatpush1.bf16.msra.mxu0 %v1613
  %1927 = vmatprep.subr.bf16.mxu0 %v1618
  %1928 = vmatpush1.bf16.msra.mxu0 %v1617
  %1929 = vmatprep.mubr.bf16.mxu0 %v1018
  %1930 = vmatmul.mubr.bf16.gmra.mrb[0].mxu0 %v1017
  %v1931 = vpop.f32.mrb[0].mxu0
  %v1932 = vadd.f32 %v1162, %v1931
  %v1933 = vpop.f32.mrb[0].mxu0
  %v1934 = vadd.f32 %v1166, %v1933
  %v1935 = vpop.f32.mrb[0].mxu0
  %v1936 = vadd.f32 %v1162, %v1935
  %v1937 = vpop.f32.mrb[0].mxu0
  %v1938 = vadd.f32 %v1166, %v1937
  %1939 = vdwg.mxu0
  %1940 = vmatprep.subr.bf16.mxu0 %v1622
  %1941 = vmatpush1.bf16.msra.mxu0 %v1621
  %1942 = vmatprep.subr.bf16.mxu0 %v1626
  %1943 = vmatpush1.bf16.msra.mxu0 %v1625
  %1944 = vmatprep.subr.bf16.mxu0 %v1630
  %1945 = vmatpush1.bf16.msra.mxu0 %v1629
  %1946 = vmatprep.subr.bf16.mxu0 %v1634
  %1947 = vmatpush1.bf16.msra.mxu0 %v1633
  %1948 = vmatprep.subr.bf16.mxu0 %v1638
  %1949 = vmatpush1.bf16.msra.mxu0 %v1637
  %1950 = vmatprep.subr.bf16.mxu0 %v1642
  %1951 = vmatpush1.bf16.msra.mxu0 %v1641
  %1952 = vmatprep.subr.bf16.mxu0 %v1646
  %1953 = vmatpush1.bf16.msra.mxu0 %v1645
  %1954 = vmatprep.subr.bf16.mxu0 %v1650
  %1955 = vmatpush1.bf16.msra.mxu0 %v1649
  %1956 = vmatprep.subr.bf16.mxu0 %v1654
  %1957 = vmatpush1.bf16.msra.mxu0 %v1653
  %1958 = vmatprep.subr.bf16.mxu0 %v1658
  %1959 = vmatpush1.bf16.msra.mxu0 %v1657
  %1960 = vmatprep.subr.bf16.mxu0 %v1662
  %1961 = vmatpush1.bf16.msra.mxu0 %v1661
  %1962 = vmatprep.subr.bf16.mxu0 %v1666
  %1963 = vmatpush1.bf16.msra.mxu0 %v1665
  %1964 = vmatprep.subr.bf16.mxu0 %v1670
  %1965 = vmatpush1.bf16.msra.mxu0 %v1669
  %1966 = vmatprep.subr.bf16.mxu0 %v1674
  %1967 = vmatpush1.bf16.msra.mxu0 %v1673
  %1968 = vmatprep.subr.bf16.mxu0 %v1678
  %1969 = vmatpush1.bf16.msra.mxu0 %v1677
  %1970 = vmatprep.subr.bf16.mxu0 %v1682
  %1971 = vmatpush1.bf16.msra.mxu0 %v1681
  %1972 = vmatprep.mubr.bf16.mxu0 %v1020
  %1973 = vmatmul.mubr.bf16.gmra.mrb[0].mxu0 %v1019
  %v1974 = vpop.f32.mrb[0].mxu0
  %v1975 = vadd.f32 %v1932, %v1974
  %v1976 = vpop.f32.mrb[0].mxu0
  %v1977 = vadd.f32 %v1934, %v1976
  %v1978 = vpop.f32.mrb[0].mxu0
  %v1979 = vadd.f32 %v1936, %v1978
  %v1980 = vpop.f32.mrb[0].mxu0
  %v1981 = vadd.f32 %v1938, %v1980
  %1982 = vdwg.mxu0
  %v1983 = vld [vmem:[%s5] sm:$0xff]
  %v1984 = vld [vmem:[%s5 + $0x8] sm:$0xff]
  %v1985 = vld [vmem:[%s5 + $0x10] sm:$0xff]
  %v1986 = vld [vmem:[%s5 + $0x18] sm:$0xff]
  %v1987 = vunpack.c.l.bf16 %v1983
  %v1988 = vunpack.c.h.bf16 %v1983
  %v1989 = vunpack.c.l.bf16 %v1984
  %v1990 = vunpack.c.h.bf16 %v1984
  %v1991 = vunpack.c.l.bf16 %v1985
  %v1992 = vunpack.c.h.bf16 %v1985
  %v1993 = vunpack.c.l.bf16 %v1986
  %v1994 = vunpack.c.h.bf16 %v1986
  %v1995 = vadd.f32 %v1889, %v1987
  %v1996 = vadd.f32 %v1891, %v1988
  %v1997 = vadd.f32 %v1975, %v1989
  %v1998 = vadd.f32 %v1977, %v1990
  %v1999 = vadd.f32 %v1893, %v1991
  %v2000 = vadd.f32 %v1895, %v1992
  %v2001 = vadd.f32 %v1979, %v1993
  %v2002 = vadd.f32 %v1981, %v1994
  %v2003 = vmax.f32 %v1995, 0.0
  %v2004 = vmax.f32 %v1996, 0.0
  %v2005 = vmax.f32 %v1997, 0.0
  %v2006 = vmax.f32 %v1998, 0.0
  %v2007 = vmax.f32 %v1999, 0.0
  %v2008 = vmax.f32 %v2000, 0.0
  %v2009 = vmax.f32 %v2001, 0.0
  %v2010 = vmax.f32 %v2002, 0.0
  %v2011 = vpack.c.bf16 %v2007, %v2003
  %v2012 = vpack.c.bf16 %v2008, %v2004
  %v2013 = vpack.c.bf16 %v2009, %v2005
  %v2014 = vpack.c.bf16 %v2010, %v2006
  %v2019 = vunpack.c.l.b16 %v2011
  %v2020 = vunpack.c.l.b16 %v2012
  %v2021 = vunpack.c.l.b16 %v2013
  %v2022 = vunpack.c.l.b16 %v2014
  %v2023 = vunpack.c.h.b16 %v2011
  %v2024 = vunpack.c.h.b16 %v2012
  %v2025 = vunpack.c.h.b16 %v2013
  %v2026 = vunpack.c.h.b16 %v2014
  %v2027 = vpack.c.b16 %v2020, %v2019
  %v2028 = vpack.c.b16 %v2022, %v2021
  %v2029 = vpack.c.b16 %v2024, %v2023
  %v2030 = vpack.c.b16 %v2026, %v2025
  %2035 = vst [vmem:[%s6] sm:$0xff] %v2027
  %2036 = vst [vmem:[%s6 + $0x8] sm:$0xff] %v2028
  %2037 = vst [vmem:[%s6 + $0x10] sm:$0xff] %v2029
  %2038 = vst [vmem:[%s6 + $0x18] sm:$0xff] %v2030
  // Predicated region
  $region26: #{_lambda_.49} parent=0 // pred_check
    _
  $region27: #{_lambda_.49} parent=0 // pred_check_branch
    %2040 = sbr.rel (0) target = $region29
  $region28: #{_lambda_.49} parent=0 // pred_region
    _
  $region29: #{_lambda_.49} parent=0 // pred_fallthru
    _
  // Predicated region
  $region30: #{_lambda_.49} parent=0 // pred_check
    _
  $region31: #{_lambda_.49} parent=0 // pred_check_branch
    %2042 = sbr.rel (0) target = $region33
  $region32: #{_lambda_.49} parent=0 // pred_region
    _
  $region33: #{_lambda_.49} parent=0 // pred_fallthru
    _

</llo_original>
